<compile_context>
chip_gen: v6e
topology: v6e:2x2x1
jax: 0.10.0
libtpu: 0.0.40
codegen_flags: <defaults>
</compile_context>

<pallas_src>
import functools

import numpy as np
import jax
import jax.numpy as jnp
from jax.experimental import pallas as pl
from jax.experimental.pallas import tpu as pltpu

COMPUTE_DTYPE = jnp.bfloat16   # set to jnp.float32 for closer parity testing
VMEM_LIMIT = 32 * 1024 * 1024  # >= default on v6e/v7x, raises v5e's 16MiB default


# ----------------------------------------------------------------------------
# Tiling helpers
# ----------------------------------------------------------------------------
def _pick_lane_tile(m, target=512):
    """Largest divisor of m that is a multiple of 128 and <= target (else m)."""
    if m % 128 != 0:
        return m
    best, d = 128, 128
    while d <= min(m, target):
        if m % d == 0:
            best = d
        d += 128
    return best


def _pick_batch_tile(b, target=8):
    """Largest divisor of b that is <= target."""
    for d in range(min(b, target), 0, -1):
        if b % d == 0:
            return d
    return b


# ----------------------------------------------------------------------------
# Pallas kernels
# ----------------------------------------------------------------------------
def _gemm_bias_act_kernel(*refs, act, has_bias, has_res):
    """refs = (w, x, [bias], [residual], out); out = act(w @ x + bias + res)."""
    w_ref, x_ref = refs[0], refs[1]
    o_ref = refs[-1]
    k = 2
    bias_ref = res_ref = None
    if has_bias:
        bias_ref = refs[k]; k += 1
    if has_res:
        res_ref = refs[k]; k += 1

    acc = jnp.dot(w_ref[...], x_ref[...], preferred_element_type=jnp.float32)
    if has_bias:
        acc = acc + bias_ref[...]           # (Cout, 1) broadcast over lanes
    if has_res:
        acc = acc + res_ref[...]            # fused residual (theta_x + phi_g)
    if act == "leaky_relu":
        acc = jnp.where(acc >= 0.0, acc, 0.2 * acc)
    elif act == "relu":
        acc = jnp.maximum(acc, 0.0)
    elif act == "sigmoid":
        acc = jax.nn.sigmoid(acc)
    o_ref[...] = acc.astype(o_ref.dtype)


def pallas_gemm(w, x, bias=None, residual=None, act="none"):
    """out = act(w @ x [+ bias] [+ residual]); w:(Cout,K), x:(K,M) -> (Cout,M).

    Lane-dense: the large spatial axis M sits on lanes; tiled over M with a
    "parallel" grid axis (auto double-buffering, megacore shardable)."""
    Cout, K = w.shape
    K2, M = x.shape
    assert K == K2
    tm = _pick_lane_tile(M)
    has_bias = bias is not None
    has_res = residual is not None

    in_specs = [
        pl.BlockSpec((Cout, K), lambda i: (0, 0)),
        pl.BlockSpec((K, tm), lambda i: (0, i)),
    ]
    args = [w.astype(COMPUTE_DTYPE), x.astype(COMPUTE_DTYPE)]
    if has_bias:
        in_specs.append(pl.BlockSpec((Cout, 1), lambda i: (0, 0)))
        args.append(bias.reshape(Cout, 1).astype(jnp.float32))
    if has_res:
        in_specs.append(pl.BlockSpec((Cout, tm), lambda i: (0, i)))
        args.append(residual.astype(jnp.float32))

    flops = 2 * Cout * K * M
    transcendentals = Cout * M if act == "sigmoid" else 0
    bytes_accessed = (Cout * K + K * M) * 2 + Cout * M * 4 * (2 if has_res else 1) \
        + (Cout * 4 if has_bias else 0)

    kernel = functools.partial(_gemm_bias_act_kernel, act=act,
                               has_bias=has_bias, has_res=has_res)
    return pl.pallas_call(
        kernel,
        out_shape=jax.ShapeDtypeStruct((Cout, M), jnp.float32),
        grid=(M // tm,),
        in_specs=in_specs,
        out_specs=pl.BlockSpec((Cout, tm), lambda i: (0, i)),
        compiler_params=pltpu.CompilerParams(
            dimension_semantics=("parallel",),
            vmem_limit_bytes=VMEM_LIMIT),
        cost_estimate=pl.CostEstimate(flops=flops,
                                      transcendentals=transcendentals,
                                      bytes_accessed=bytes_accessed),
    )(*args)


def _bilinear_kernel(x_ref, mwT_ref, mh_ref, o_ref):
    """Fused separable bilinear resize: o[b] = Mh @ (x[b] @ Mw^T)."""
    tb = x_ref.shape[0]
    mwT = mwT_ref[...]
    mh = mh_ref[...]
    for b in range(tb):  # tb <= 8: small static unroll, all data VMEM-resident
        t = jnp.dot(x_ref[b], mwT, preferred_element_type=jnp.float32)
        o_ref[b] = jnp.dot(mh, t, preferred_element_type=jnp.float32
                           ).astype(o_ref.dtype)


# ----------------------------------------------------------------------------
# Conv / resize built on the Pallas kernels
# ----------------------------------------------------------------------------
def conv2d_cnhw(x, w_oihw, bias, stride, padding, act, residual=None):
    """Conv2d (PyTorch OIHW weights) on a channels-first CNHW tensor via
    im2col + fused Pallas GEMM.  `residual` (CNHW, output-shaped) is added
    before the activation (used for the theta_x + phi_g -> relu fusion)."""
    Cin, N, H, W = x.shape
    Cout, Cin2, kh, kw = w_oihw.shape
    assert Cin == Cin2
    if padding:
        x = jnp.pad(x, ((0, 0), (0, 0), (padding, padding), (padding, padding)))
    Ho = (H + 2 * padding - kh) // stride + 1
    Wo = (W + 2 * padding - kw) // stride + 1

    if kh == 1 and kw == 1 and stride == 1:
        patches = x                                            # (Cin, N, Ho, Wo)
    else:
        taps = [x[:, :, i:i + (Ho - 1) * stride + 1:stride,
                      j:j + (Wo - 1) * stride + 1:stride]
                for i in range(kh) for j in range(kw)]
        patches = jnp.stack(taps, axis=1)                      # (Cin, kh*kw, N, Ho, Wo)
    A = patches.reshape(Cin * kh * kw, N * Ho * Wo)            # K on sublanes, M on lanes
    Wm = w_oihw.reshape(Cout, Cin * kh * kw)                   # matches (ci, i, j) K-order

    res2d = None
    if residual is not None:
        assert residual.shape == (Cout, N, Ho, Wo)
        res2d = residual.reshape(Cout, N * Ho * Wo)

    out = pallas_gemm(Wm, A, bias=bias, residual=res2d, act=act)
    return out.reshape(Cout, N, Ho, Wo)


def bilinear_matrix(in_size, out_size):
    """PyTorch F.interpolate(mode='bilinear', align_corners=False) as a matrix."""
    o = np.arange(out_size, dtype=np.float64)
    src = (o + 0.5) * (in_size / out_size) - 0.5
    src = np.maximum(src, 0.0)
    i0 = np.minimum(np.floor(src).astype(np.int64), in_size - 1)
    i1 = np.minimum(i0 + 1, in_size - 1)
    lam = src - i0
    M = np.zeros((out_size, in_size), dtype=np.float32)
    np.add.at(M, (np.arange(out_size), i0), 1.0 - lam)
    np.add.at(M, (np.arange(out_size), i1), lam)
    return jnp.asarray(M)


def bilinear_resize_cnhw(x, out_h, out_w):
    """Bilinear resize of a CNHW tensor; single fused Pallas kernel per call."""
    C, N, H, W = x.shape
    if (H, W) == (out_h, out_w):
        return x
    mwT = bilinear_matrix(W, out_w).T          # (W, OW)
    mh = bilinear_matrix(H, out_h)             # (OH, H)
    B = C * N
    xb = x.reshape(B, H, W).astype(jnp.float32)
    tb = _pick_batch_tile(B)
    out = pl.pallas_call(
        _bilinear_kernel,
        out_shape=jax.ShapeDtypeStruct((B, out_h, out_w), jnp.float32),
        grid=(B // tb,),
        in_specs=[
            pl.BlockSpec((tb, H, W), lambda i: (i, 0, 0)),
            pl.BlockSpec((W, out_w), lambda i: (0, 0)),
            pl.BlockSpec((out_h, H), lambda i: (0, 0)),
        ],
        out_specs=pl.BlockSpec((tb, out_h, out_w), lambda i: (i, 0, 0)),
        compiler_params=pltpu.CompilerParams(
            dimension_semantics=("parallel",),
            vmem_limit_bytes=VMEM_LIMIT),
    )(xb, mwT, mh)
    return out.reshape(C, N, out_h, out_w)


# ----------------------------------------------------------------------------
# Model
# ----------------------------------------------------------------------------
def attn_ly(p, x, phi_g):
    """Returns sigm_psi_f (the `ly` output) of add_attn.  The W branch
    (1x1 conv + BatchNorm) is discarded by the parent forward -> not computed."""
    Cx, N, H, W = x.shape
    Ht = (H - 2) // 2 + 1
    Wt = (W - 2) // 2 + 1
    phi_r = bilinear_resize_cnhw(phi_g, Ht, Wt)                   # (Cx, N, Ht, Wt)
    # theta conv (2x2, stride 2, bias=False per the spec) with fused
    # residual-add + relu epilogue: f = relu(theta(x) + phi_r)
    f = conv2d_cnhw(x, p["theta_w"], None, 2, 0, "relu", residual=phi_r)
    sig = conv2d_cnhw(f, p["psi_w"], p["psi_b"], 1, 0, "sigmoid")  # (1, N, Ht, Wt)
    return bilinear_resize_cnhw(sig, H, W)                        # (1, N, H, W)


def forward(params, x_nchw):
    x = jnp.transpose(x_nchw, (1, 0, 2, 3)).astype(jnp.float32)   # NCHW -> CNHW
    x0 = conv2d_cnhw(x,  params["conv0_w"], params["conv0_b"], 1, 1, "leaky_relu")
    x1 = conv2d_cnhw(x0, params["conv1_w"], None, 2, 1, "leaky_relu")
    x2 = conv2d_cnhw(x1, params["conv2_w"], None, 2, 1, "leaky_relu")
    x3 = conv2d_cnhw(x2, params["conv3_w"], None, 2, 1, "leaky_relu")
    # gating is a 1x1 conv with padding=1 exactly as in the PyTorch spec:
    # spatial grows by 2 and the border ring is leaky_relu(0) = 0.
    gated = conv2d_cnhw(x3, params["gating_w"], None, 1, 1, "leaky_relu")

    # The three attention `phi` 1x1 convs all consume `gated`: batch them into
    # a single GEMM (weights concatenated along Cout), then split.
    phi_w = jnp.concatenate([params["attn1"]["phi_w"],
                             params["attn2"]["phi_w"],
                             params["attn3"]["phi_w"]], axis=0)
    phi_b = jnp.concatenate([params["attn1"]["phi_b"],
                             params["attn2"]["phi_b"],
                             params["attn3"]["phi_b"]], axis=0)
    phi_all = conv2d_cnhw(gated, phi_w, phi_b, 1, 0, "none")
    c1, c2 = x2.shape[0], x1.shape[0]
    phi1 = phi_all[:c1]
    phi2 = phi_all[c1:c1 + c2]
    phi3 = phi_all[c1 + c2:]

    ly1 = attn_ly(params["attn1"], x2, phi1)
    ly2 = attn_ly(params["attn2"], x1, phi2)
    ly3 = attn_ly(params["attn3"], x0, phi3)
    # CNHW -> NCHW to match the PyTorch outputs
    return tuple(jnp.transpose(l, (1, 0, 2, 3)) for l in (ly1, ly2, ly3))


def init_params(key, num_in_ch=4, num_feat=8):
    keys = iter(jax.random.split(key, 64))

    def w(shape, scale=0.1):
        return scale * jax.random.normal(next(keys), shape, jnp.float32)

    def b(shape):
        return 0.01 * jax.random.normal(next(keys), shape, jnp.float32)

    def sn(wt):
        # spectral_norm: deterministic stand-in — divide by the exact largest
        # singular value of the (out, in*kh*kw) matrix (torch approximates it
        # with one-step power iteration; weights are synthetic here anyway).
        m = np.asarray(wt).reshape(wt.shape[0], -1)
        sigma = float(np.linalg.svd(m, compute_uv=False)[0])
        return wt / jnp.float32(sigma)

    nf = num_feat

    def attn(xc, gc):
        return {
            "theta_w": w((xc, xc, 2, 2)),
            "phi_w": w((xc, gc, 1, 1)), "phi_b": b((xc,)),
            "psi_w": w((1, xc, 1, 1)), "psi_b": b((1,)),
        }

    params = {
        "conv0_w": w((nf, num_in_ch, 3, 3)), "conv0_b": b((nf,)),
        "conv1_w": sn(w((2 * nf, nf, 3, 3))),
        "conv2_w": sn(w((4 * nf, 2 * nf, 3, 3))),
        "conv3_w": sn(w((8 * nf, 4 * nf, 3, 3))),
        "gating_w": sn(w((4 * nf, 8 * nf, 1, 1))),
        "attn1": attn(4 * nf, 4 * nf),
        "attn2": attn(2 * nf, 4 * nf),
        "attn3": attn(nf, 4 * nf),
        # TODO(synk): cat_1..3 / conv4..9 and the attn "W" (conv + BatchNorm)
        # branches are never used by this forward (only ly1..3 are returned),
        # so their parameters are omitted.
    }
    return params


if __name__ == "__main__":
    key = jax.random.PRNGKey(0)
    pkey, xkey = jax.random.split(key)
    num_in_ch, num_feat = 4, 8
    params = init_params(pkey, num_in_ch=num_in_ch, num_feat=num_feat)
    x = jax.random.normal(xkey, (2, num_in_ch, 16, 16), jnp.float32)

    fwd = jax.jit(forward)
    ly1, ly2, ly3 = fwd(params, x)
    jax.block_until_ready((ly1, ly2, ly3))

    assert ly1.shape == (2, 1, 4, 4), ly1.shape
    assert ly2.shape == (2, 1, 8, 8), ly2.shape
    assert ly3.shape == (2, 1, 16, 16), ly3.shape
    for l in (ly1, ly2, ly3):
        assert bool(jnp.all(jnp.isfinite(l)))
        assert bool(jnp.all((l > 0) & (l < 1)))  # sigmoid-interp outputs in (0,1)

    print("KERNEL_OK")
</pallas_src>

<mosaic_0001>
module attributes {stable_mosaic.version = 11 : i64} {
  func.func @_gemm_bias_act_kernel(%arg0: i32, %arg1: memref<8x36xbf16, #tpu.memory_space<vmem>>, %arg2: memref<36x512xbf16, #tpu.memory_space<vmem>>, %arg3: memref<8x1xf32, #tpu.memory_space<vmem>>, %arg4: memref<8x512xf32, #tpu.memory_space<vmem>>) attributes {dimension_semantics = [#tpu.dimension_semantics<parallel>], iteration_bounds = array<i64: 1>, scalar_prefetch = 0 : i64, scratch_operands = 0 : i64, tpu.core_type = #tpu.core_type<tc>, window_params = [{pipeline_mode = #tpu.pipeline_mode<synchronous>, transform_indices = @transform_0, window_bounds = array<i64: 8, 36>}, {transform_indices = @transform_1, window_bounds = array<i64: 36, 512>}, {pipeline_mode = #tpu.pipeline_mode<synchronous>, transform_indices = @transform_2, window_bounds = array<i64: 8, 1>}, {transform_indices = @transform_3, window_bounds = array<i64: 8, 512>}]} {
    %c0 = arith.constant 0 : index
    %c0_0 = arith.constant 0 : index
    %0 = vector.load %arg1[%c0, %c0_0] : memref<8x36xbf16, #tpu.memory_space<vmem>>, vector<8x36xbf16>
    %c0_1 = arith.constant 0 : index
    %c0_2 = arith.constant 0 : index
    %1 = vector.load %arg2[%c0_1, %c0_2] : memref<36x512xbf16, #tpu.memory_space<vmem>>, vector<36x512xbf16>
    %cst = arith.constant dense<0.000000e+00> : vector<8x512xf32>
    %2 = tpu.matmul %0, %1, %cst {dimension_numbers = #tpu.dot_dimension_numbers<[1], [0], [0], [1], [0, 0, 1, 1], [], []>} : vector<8x36xbf16>, vector<36x512xbf16>, vector<8x512xf32> -> vector<8x512xf32>
    %c0_3 = arith.constant 0 : index
    %c0_4 = arith.constant 0 : index
    %3 = vector.load %arg3[%c0_3, %c0_4] : memref<8x1xf32, #tpu.memory_space<vmem>>, vector<8x1xf32>
    %4 = vector.broadcast %3 : vector<8x1xf32> to vector<8x512xf32>
    %5 = arith.addf %2, %4 : vector<8x512xf32>
    %cst_5 = arith.constant 0.000000e+00 : f32
    %6 = vector.broadcast %cst_5 : f32 to vector<8x512xf32>
    %7 = arith.cmpf oge, %5, %6 : vector<8x512xf32>
    %cst_6 = arith.constant 2.000000e-01 : f32
    %8 = vector.broadcast %cst_6 : f32 to vector<8x512xf32>
    %9 = arith.mulf %8, %5 : vector<8x512xf32>
    %10 = arith.select %7, %5, %9 : vector<8x512xi1>, vector<8x512xf32>
    %c0_7 = arith.constant 0 : index
    %c0_8 = arith.constant 0 : index
    %11 = vector.load %arg4[%c0_7, %c0_8] : memref<8x512xf32, #tpu.memory_space<vmem>>, vector<8x512xf32>
    tpu.vector_store %arg4[%c0_7, %c0_8], %10 {strides = array<i32>} : memref<8x512xf32, #tpu.memory_space<vmem>>, vector<8x512xf32>,
    return
  }
  func.func @transform_0(%arg0: i32) -> (i32, i32) {
    %c0_i32 = arith.constant 0 : i32
    %c0_i32_0 = arith.constant 0 : i32
    %c0_i32_1 = arith.constant 0 : i32
    return %c0_i32, %c0_i32_0 : i32, i32
  }
  func.func @transform_1(%arg0: i32) -> (i32, i32) {
    %c0_i32 = arith.constant 0 : i32
    %c0_i32_0 = arith.constant 0 : i32
    return %c0_i32, %arg0 : i32, i32
  }
  func.func @transform_2(%arg0: i32) -> (i32, i32) {
    %c0_i32 = arith.constant 0 : i32
    %c0_i32_0 = arith.constant 0 : i32
    %c0_i32_1 = arith.constant 0 : i32
    return %c0_i32, %c0_i32_0 : i32, i32
  }
  func.func @transform_3(%arg0: i32) -> (i32, i32) {
    %c0_i32 = arith.constant 0 : i32
    %c0_i32_0 = arith.constant 0 : i32
    return %c0_i32, %arg0 : i32, i32
  }
}

module attributes {stable_mosaic.version = 11 : i64} {
  func.func @_gemm_bias_act_kernel(%arg0: i32, %arg1: memref<16x72xbf16, #tpu.memory_space<vmem>>, %arg2: memref<72x128xbf16, #tpu.memory_space<vmem>>, %arg3: memref<16x128xf32, #tpu.memory_space<vmem>>) attributes {dimension_semantics = [#tpu.dimension_semantics<parallel>], iteration_bounds = array<i64: 1>, scalar_prefetch = 0 : i64, scratch_operands = 0 : i64, tpu.core_type = #tpu.core_type<tc>, window_params = [{pipeline_mode = #tpu.pipeline_mode<synchronous>, transform_indices = @transform_0, window_bounds = array<i64: 16, 72>}, {transform_indices = @transform_1, window_bounds = array<i64: 72, 128>}, {transform_indices = @transform_2, window_bounds = array<i64: 16, 128>}]} {
    %c0 = arith.constant 0 : index
    %c0_0 = arith.constant 0 : index
    %0 = vector.load %arg1[%c0, %c0_0] : memref<16x72xbf16, #tpu.memory_space<vmem>>, vector<16x72xbf16>
    %c0_1 = arith.constant 0 : index
    %c0_2 = arith.constant 0 : index
    %1 = vector.load %arg2[%c0_1, %c0_2] : memref<72x128xbf16, #tpu.memory_space<vmem>>, vector<72x128xbf16>
    %cst = arith.constant dense<0.000000e+00> : vector<16x128xf32>
    %2 = tpu.matmul %0, %1, %cst {dimension_numbers = #tpu.dot_dimension_numbers<[1], [0], [0], [1], [0, 0, 1, 1], [], []>} : vector<16x72xbf16>, vector<72x128xbf16>, vector<16x128xf32> -> vector<16x128xf32>
    %cst_3 = arith.constant 0.000000e+00 : f32
    %3 = vector.broadcast %cst_3 : f32 to vector<16x128xf32>
    %4 = arith.cmpf oge, %2, %3 : vector<16x128xf32>
    %cst_4 = arith.constant 2.000000e-01 : f32
    %5 = vector.broadcast %cst_4 : f32 to vector<16x128xf32>
    %6 = arith.mulf %5, %2 : vector<16x128xf32>
    %7 = arith.select %4, %2, %6 : vector<16x128xi1>, vector<16x128xf32>
    %c0_5 = arith.constant 0 : index
    %c0_6 = arith.constant 0 : index
    %8 = vector.load %arg3[%c0_5, %c0_6] : memref<16x128xf32, #tpu.memory_space<vmem>>, vector<16x128xf32>
    tpu.vector_store %arg3[%c0_5, %c0_6], %7 {strides = array<i32>} : memref<16x128xf32, #tpu.memory_space<vmem>>, vector<16x128xf32>,
    return
  }
  func.func @transform_0(%arg0: i32) -> (i32, i32) {
    %c0_i32 = arith.constant 0 : i32
    %c0_i32_0 = arith.constant 0 : i32
    %c0_i32_1 = arith.constant 0 : i32
    return %c0_i32, %c0_i32_0 : i32, i32
  }
  func.func @transform_1(%arg0: i32) -> (i32, i32) {
    %c0_i32 = arith.constant 0 : i32
    %c0_i32_0 = arith.constant 0 : i32
    return %c0_i32, %arg0 : i32, i32
  }
  func.func @transform_2(%arg0: i32) -> (i32, i32) {
    %c0_i32 = arith.constant 0 : i32
    %c0_i32_0 = arith.constant 0 : i32
    return %c0_i32, %arg0 : i32, i32
  }
}

module attributes {stable_mosaic.version = 11 : i64} {
  func.func @_gemm_bias_act_kernel(%arg0: i32, %arg1: memref<32x144xbf16, #tpu.memory_space<vmem>>, %arg2: memref<144x32xbf16, #tpu.memory_space<vmem>>, %arg3: memref<32x32xf32, #tpu.memory_space<vmem>>) attributes {dimension_semantics = [#tpu.dimension_semantics<parallel>], iteration_bounds = array<i64: 1>, scalar_prefetch = 0 : i64, scratch_operands = 0 : i64, tpu.core_type = #tpu.core_type<tc>, window_params = [{pipeline_mode = #tpu.pipeline_mode<synchronous>, transform_indices = @transform_0, window_bounds = array<i64: 32, 144>}, {transform_indices = @transform_1, window_bounds = array<i64: 144, 32>}, {transform_indices = @transform_2, window_bounds = array<i64: 32, 32>}]} {
    %c0 = arith.constant 0 : index
    %c0_0 = arith.constant 0 : index
    %0 = vector.load %arg1[%c0, %c0_0] : memref<32x144xbf16, #tpu.memory_space<vmem>>, vector<32x144xbf16>
    %c0_1 = arith.constant 0 : index
    %c0_2 = arith.constant 0 : index
    %1 = vector.load %arg2[%c0_1, %c0_2] : memref<144x32xbf16, #tpu.memory_space<vmem>>, vector<144x32xbf16>
    %cst = arith.constant dense<0.000000e+00> : vector<32x32xf32>
    %2 = tpu.matmul %0, %1, %cst {dimension_numbers = #tpu.dot_dimension_numbers<[1], [0], [0], [1], [0, 0, 1, 1], [], []>} : vector<32x144xbf16>, vector<144x32xbf16>, vector<32x32xf32> -> vector<32x32xf32>
    %cst_3 = arith.constant 0.000000e+00 : f32
    %3 = vector.broadcast %cst_3 : f32 to vector<32x32xf32>
    %4 = arith.cmpf oge, %2, %3 : vector<32x32xf32>
    %cst_4 = arith.constant 2.000000e-01 : f32
    %5 = vector.broadcast %cst_4 : f32 to vector<32x32xf32>
    %6 = arith.mulf %5, %2 : vector<32x32xf32>
    %7 = arith.select %4, %2, %6 : vector<32x32xi1>, vector<32x32xf32>
    %c0_5 = arith.constant 0 : index
    %c0_6 = arith.constant 0 : index
    %8 = vector.load %arg3[%c0_5, %c0_6] : memref<32x32xf32, #tpu.memory_space<vmem>>, vector<32x32xf32>
    tpu.vector_store %arg3[%c0_5, %c0_6], %7 {strides = array<i32>} : memref<32x32xf32, #tpu.memory_space<vmem>>, vector<32x32xf32>,
    return
  }
  func.func @transform_0(%arg0: i32) -> (i32, i32) {
    %c0_i32 = arith.constant 0 : i32
    %c0_i32_0 = arith.constant 0 : i32
    %c0_i32_1 = arith.constant 0 : i32
    return %c0_i32, %c0_i32_0 : i32, i32
  }
  func.func @transform_1(%arg0: i32) -> (i32, i32) {
    %c0_i32 = arith.constant 0 : i32
    %c0_i32_0 = arith.constant 0 : i32
    return %c0_i32, %arg0 : i32, i32
  }
  func.func @transform_2(%arg0: i32) -> (i32, i32) {
    %c0_i32 = arith.constant 0 : i32
    %c0_i32_0 = arith.constant 0 : i32
    return %c0_i32, %arg0 : i32, i32
  }
}

module attributes {stable_mosaic.version = 11 : i64} {
  func.func @_gemm_bias_act_kernel(%arg0: i32, %arg1: memref<64x288xbf16, #tpu.memory_space<vmem>>, %arg2: memref<288x8xbf16, #tpu.memory_space<vmem>>, %arg3: memref<64x8xf32, #tpu.memory_space<vmem>>) attributes {dimension_semantics = [#tpu.dimension_semantics<parallel>], iteration_bounds = array<i64: 1>, scalar_prefetch = 0 : i64, scratch_operands = 0 : i64, tpu.core_type = #tpu.core_type<tc>, window_params = [{pipeline_mode = #tpu.pipeline_mode<synchronous>, transform_indices = @transform_0, window_bounds = array<i64: 64, 288>}, {transform_indices = @transform_1, window_bounds = array<i64: 288, 8>}, {transform_indices = @transform_2, window_bounds = array<i64: 64, 8>}]} {
    %c0 = arith.constant 0 : index
    %c0_0 = arith.constant 0 : index
    %0 = vector.load %arg1[%c0, %c0_0] : memref<64x288xbf16, #tpu.memory_space<vmem>>, vector<64x288xbf16>
    %c0_1 = arith.constant 0 : index
    %c0_2 = arith.constant 0 : index
    %1 = vector.load %arg2[%c0_1, %c0_2] : memref<288x8xbf16, #tpu.memory_space<vmem>>, vector<288x8xbf16>
    %cst = arith.constant dense<0.000000e+00> : vector<64x8xf32>
    %2 = tpu.matmul %0, %1, %cst {dimension_numbers = #tpu.dot_dimension_numbers<[1], [0], [0], [1], [0, 0, 1, 1], [], []>} : vector<64x288xbf16>, vector<288x8xbf16>, vector<64x8xf32> -> vector<64x8xf32>
    %cst_3 = arith.constant 0.000000e+00 : f32
    %3 = vector.broadcast %cst_3 : f32 to vector<64x8xf32>
    %4 = arith.cmpf oge, %2, %3 : vector<64x8xf32>
    %cst_4 = arith.constant 2.000000e-01 : f32
    %5 = vector.broadcast %cst_4 : f32 to vector<64x8xf32>
    %6 = arith.mulf %5, %2 : vector<64x8xf32>
    %7 = arith.select %4, %2, %6 : vector<64x8xi1>, vector<64x8xf32>
    %c0_5 = arith.constant 0 : index
    %c0_6 = arith.constant 0 : index
    %8 = vector.load %arg3[%c0_5, %c0_6] : memref<64x8xf32, #tpu.memory_space<vmem>>, vector<64x8xf32>
    tpu.vector_store %arg3[%c0_5, %c0_6], %7 {strides = array<i32>} : memref<64x8xf32, #tpu.memory_space<vmem>>, vector<64x8xf32>,
    return
  }
  func.func @transform_0(%arg0: i32) -> (i32, i32) {
    %c0_i32 = arith.constant 0 : i32
    %c0_i32_0 = arith.constant 0 : i32
    %c0_i32_1 = arith.constant 0 : i32
    return %c0_i32, %c0_i32_0 : i32, i32
  }
  func.func @transform_1(%arg0: i32) -> (i32, i32) {
    %c0_i32 = arith.constant 0 : i32
    %c0_i32_0 = arith.constant 0 : i32
    return %c0_i32, %arg0 : i32, i32
  }
  func.func @transform_2(%arg0: i32) -> (i32, i32) {
    %c0_i32 = arith.constant 0 : i32
    %c0_i32_0 = arith.constant 0 : i32
    return %c0_i32, %arg0 : i32, i32
  }
}

module attributes {stable_mosaic.version = 11 : i64} {
  func.func @_gemm_bias_act_kernel(%arg0: i32, %arg1: memref<32x64xbf16, #tpu.memory_space<vmem>>, %arg2: memref<64x32xbf16, #tpu.memory_space<vmem>>, %arg3: memref<32x32xf32, #tpu.memory_space<vmem>>) attributes {dimension_semantics = [#tpu.dimension_semantics<parallel>], iteration_bounds = array<i64: 1>, scalar_prefetch = 0 : i64, scratch_operands = 0 : i64, tpu.core_type = #tpu.core_type<tc>, window_params = [{pipeline_mode = #tpu.pipeline_mode<synchronous>, transform_indices = @transform_0, window_bounds = array<i64: 32, 64>}, {transform_indices = @transform_1, window_bounds = array<i64: 64, 32>}, {transform_indices = @transform_2, window_bounds = array<i64: 32, 32>}]} {
    %c0 = arith.constant 0 : index
    %c0_0 = arith.constant 0 : index
    %0 = vector.load %arg1[%c0, %c0_0] : memref<32x64xbf16, #tpu.memory_space<vmem>>, vector<32x64xbf16>
    %c0_1 = arith.constant 0 : index
    %c0_2 = arith.constant 0 : index
    %1 = vector.load %arg2[%c0_1, %c0_2] : memref<64x32xbf16, #tpu.memory_space<vmem>>, vector<64x32xbf16>
    %cst = arith.constant dense<0.000000e+00> : vector<32x32xf32>
    %2 = tpu.matmul %0, %1, %cst {dimension_numbers = #tpu.dot_dimension_numbers<[1], [0], [0], [1], [0, 0, 1, 1], [], []>} : vector<32x64xbf16>, vector<64x32xbf16>, vector<32x32xf32> -> vector<32x32xf32>
    %cst_3 = arith.constant 0.000000e+00 : f32
    %3 = vector.broadcast %cst_3 : f32 to vector<32x32xf32>
    %4 = arith.cmpf oge, %2, %3 : vector<32x32xf32>
    %cst_4 = arith.constant 2.000000e-01 : f32
    %5 = vector.broadcast %cst_4 : f32 to vector<32x32xf32>
    %6 = arith.mulf %5, %2 : vector<32x32xf32>
    %7 = arith.select %4, %2, %6 : vector<32x32xi1>, vector<32x32xf32>
    %c0_5 = arith.constant 0 : index
    %c0_6 = arith.constant 0 : index
    %8 = vector.load %arg3[%c0_5, %c0_6] : memref<32x32xf32, #tpu.memory_space<vmem>>, vector<32x32xf32>
    tpu.vector_store %arg3[%c0_5, %c0_6], %7 {strides = array<i32>} : memref<32x32xf32, #tpu.memory_space<vmem>>, vector<32x32xf32>,
    return
  }
  func.func @transform_0(%arg0: i32) -> (i32, i32) {
    %c0_i32 = arith.constant 0 : i32
    %c0_i32_0 = arith.constant 0 : i32
    %c0_i32_1 = arith.constant 0 : i32
    return %c0_i32, %c0_i32_0 : i32, i32
  }
  func.func @transform_1(%arg0: i32) -> (i32, i32) {
    %c0_i32 = arith.constant 0 : i32
    %c0_i32_0 = arith.constant 0 : i32
    return %c0_i32, %arg0 : i32, i32
  }
  func.func @transform_2(%arg0: i32) -> (i32, i32) {
    %c0_i32 = arith.constant 0 : i32
    %c0_i32_0 = arith.constant 0 : i32
    return %c0_i32, %arg0 : i32, i32
  }
}

module attributes {stable_mosaic.version = 11 : i64} {
  func.func @_gemm_bias_act_kernel(%arg0: i32, %arg1: memref<56x32xbf16, #tpu.memory_space<vmem>>, %arg2: memref<32x32xbf16, #tpu.memory_space<vmem>>, %arg3: memref<56x1xf32, #tpu.memory_space<vmem>>, %arg4: memref<56x32xf32, #tpu.memory_space<vmem>>) attributes {dimension_semantics = [#tpu.dimension_semantics<parallel>], iteration_bounds = array<i64: 1>, scalar_prefetch = 0 : i64, scratch_operands = 0 : i64, tpu.core_type = #tpu.core_type<tc>, window_params = [{pipeline_mode = #tpu.pipeline_mode<synchronous>, transform_indices = @transform_0, window_bounds = array<i64: 56, 32>}, {transform_indices = @transform_1, window_bounds = array<i64: 32, 32>}, {pipeline_mode = #tpu.pipeline_mode<synchronous>, transform_indices = @transform_2, window_bounds = array<i64: 56, 1>}, {transform_indices = @transform_3, window_bounds = array<i64: 56, 32>}]} {
    %c0 = arith.constant 0 : index
    %c0_0 = arith.constant 0 : index
    %0 = vector.load %arg1[%c0, %c0_0] : memref<56x32xbf16, #tpu.memory_space<vmem>>, vector<56x32xbf16>
    %c0_1 = arith.constant 0 : index
    %c0_2 = arith.constant 0 : index
    %1 = vector.load %arg2[%c0_1, %c0_2] : memref<32x32xbf16, #tpu.memory_space<vmem>>, vector<32x32xbf16>
    %cst = arith.constant dense<0.000000e+00> : vector<56x32xf32>
    %2 = tpu.matmul %0, %1, %cst {dimension_numbers = #tpu.dot_dimension_numbers<[1], [0], [0], [1], [0, 0, 1, 1], [], []>} : vector<56x32xbf16>, vector<32x32xbf16>, vector<56x32xf32> -> vector<56x32xf32>
    %c0_3 = arith.constant 0 : index
    %c0_4 = arith.constant 0 : index
    %3 = vector.load %arg3[%c0_3, %c0_4] : memref<56x1xf32, #tpu.memory_space<vmem>>, vector<56x1xf32>
    %4 = vector.broadcast %3 : vector<56x1xf32> to vector<56x32xf32>
    %5 = arith.addf %2, %4 : vector<56x32xf32>
    %c0_5 = arith.constant 0 : index
    %c0_6 = arith.constant 0 : index
    %6 = vector.load %arg4[%c0_5, %c0_6] : memref<56x32xf32, #tpu.memory_space<vmem>>, vector<56x32xf32>
    tpu.vector_store %arg4[%c0_5, %c0_6], %5 {strides = array<i32>} : memref<56x32xf32, #tpu.memory_space<vmem>>, vector<56x32xf32>,
    return
  }
  func.func @transform_0(%arg0: i32) -> (i32, i32) {
    %c0_i32 = arith.constant 0 : i32
    %c0_i32_0 = arith.constant 0 : i32
    %c0_i32_1 = arith.constant 0 : i32
    return %c0_i32, %c0_i32_0 : i32, i32
  }
  func.func @transform_1(%arg0: i32) -> (i32, i32) {
    %c0_i32 = arith.constant 0 : i32
    %c0_i32_0 = arith.constant 0 : i32
    return %c0_i32, %arg0 : i32, i32
  }
  func.func @transform_2(%arg0: i32) -> (i32, i32) {
    %c0_i32 = arith.constant 0 : i32
    %c0_i32_0 = arith.constant 0 : i32
    %c0_i32_1 = arith.constant 0 : i32
    return %c0_i32, %c0_i32_0 : i32, i32
  }
  func.func @transform_3(%arg0: i32) -> (i32, i32) {
    %c0_i32 = arith.constant 0 : i32
    %c0_i32_0 = arith.constant 0 : i32
    return %c0_i32, %arg0 : i32, i32
  }
}

module attributes {stable_mosaic.version = 11 : i64} {
  func.func @_bilinear_kernel(%arg0: i32, %arg1: memref<8x4x4xf32, #tpu.memory_space<vmem>>, %arg2: memref<4x8xf32, #tpu.memory_space<vmem>>, %arg3: memref<8x4xf32, #tpu.memory_space<vmem>>, %arg4: memref<8x8x8xf32, #tpu.memory_space<vmem>>) attributes {dimension_semantics = [#tpu.dimension_semantics<parallel>], iteration_bounds = array<i64: 2>, scalar_prefetch = 0 : i64, scratch_operands = 0 : i64, tpu.core_type = #tpu.core_type<tc>, window_params = [{transform_indices = @transform_0, window_bounds = array<i64: 8, 4, 4>}, {pipeline_mode = #tpu.pipeline_mode<synchronous>, transform_indices = @transform_1, window_bounds = array<i64: 4, 8>}, {pipeline_mode = #tpu.pipeline_mode<synchronous>, transform_indices = @transform_2, window_bounds = array<i64: 8, 4>}, {transform_indices = @transform_3, window_bounds = array<i64: 8, 8, 8>}]} {
    %c0 = arith.constant 0 : index
    %c0_0 = arith.constant 0 : index
    %0 = vector.load %arg2[%c0, %c0_0] : memref<4x8xf32, #tpu.memory_space<vmem>>, vector<4x8xf32>
    %c0_1 = arith.constant 0 : index
    %c0_2 = arith.constant 0 : index
    %1 = vector.load %arg3[%c0_1, %c0_2] : memref<8x4xf32, #tpu.memory_space<vmem>>, vector<8x4xf32>
    %c0_3 = arith.constant 0 : index
    %c0_4 = arith.constant 0 : index
    %c0_5 = arith.constant 0 : index
    %2 = vector.load %arg1[%c0_3, %c0_4, %c0_5] : memref<8x4x4xf32, #tpu.memory_space<vmem>>, vector<1x4x4xf32>
    %3 = vector.shape_cast %2 : vector<1x4x4xf32> to vector<4x4xf32>
    %cst = arith.constant dense<0.000000e+00> : vector<4x8xf32>
    %4 = tpu.matmul %3, %0, %cst {dimension_numbers = #tpu.dot_dimension_numbers<[1], [0], [0], [1], [0, 0, 1, 1], [], []>} : vector<4x4xf32>, vector<4x8xf32>, vector<4x8xf32> -> vector<4x8xf32>
    %cst_6 = arith.constant dense<0.000000e+00> : vector<8x8xf32>
    %5 = tpu.matmul %1, %4, %cst_6 {dimension_numbers = #tpu.dot_dimension_numbers<[1], [0], [0], [1], [0, 0, 1, 1], [], []>} : vector<8x4xf32>, vector<4x8xf32>, vector<8x8xf32> -> vector<8x8xf32>
    %c0_7 = arith.constant 0 : index
    %c0_8 = arith.constant 0 : index
    %c0_9 = arith.constant 0 : index
    %6 = vector.load %arg4[%c0_7, %c0_8, %c0_9] : memref<8x8x8xf32, #tpu.memory_space<vmem>>, vector<1x8x8xf32>
    %7 = vector.shape_cast %6 : vector<1x8x8xf32> to vector<8x8xf32>
    %8 = vector.shape_cast %5 : vector<8x8xf32> to vector<1x8x8xf32>
    tpu.vector_store %arg4[%c0_7, %c0_8, %c0_9], %8 {strides = array<i32>} : memref<8x8x8xf32, #tpu.memory_space<vmem>>, vector<1x8x8xf32>,
    %c1 = arith.constant 1 : index
    %c0_10 = arith.constant 0 : index
    %c0_11 = arith.constant 0 : index
    %9 = vector.load %arg1[%c1, %c0_10, %c0_11] : memref<8x4x4xf32, #tpu.memory_space<vmem>>, vector<1x4x4xf32>
    %10 = vector.shape_cast %9 : vector<1x4x4xf32> to vector<4x4xf32>
    %cst_12 = arith.constant dense<0.000000e+00> : vector<4x8xf32>
    %11 = tpu.matmul %10, %0, %cst_12 {dimension_numbers = #tpu.dot_dimension_numbers<[1], [0], [0], [1], [0, 0, 1, 1], [], []>} : vector<4x4xf32>, vector<4x8xf32>, vector<4x8xf32> -> vector<4x8xf32>
    %cst_13 = arith.constant dense<0.000000e+00> : vector<8x8xf32>
    %12 = tpu.matmul %1, %11, %cst_13 {dimension_numbers = #tpu.dot_dimension_numbers<[1], [0], [0], [1], [0, 0, 1, 1], [], []>} : vector<8x4xf32>, vector<4x8xf32>, vector<8x8xf32> -> vector<8x8xf32>
    %c1_14 = arith.constant 1 : index
    %c0_15 = arith.constant 0 : index
    %c0_16 = arith.constant 0 : index
    %13 = vector.load %arg4[%c1_14, %c0_15, %c0_16] : memref<8x8x8xf32, #tpu.memory_space<vmem>>, vector<1x8x8xf32>
    %14 = vector.shape_cast %13 : vector<1x8x8xf32> to vector<8x8xf32>
    %15 = vector.shape_cast %12 : vector<8x8xf32> to vector<1x8x8xf32>
    tpu.vector_store %arg4[%c1_14, %c0_15, %c0_16], %15 {strides = array<i32>} : memref<8x8x8xf32, #tpu.memory_space<vmem>>, vector<1x8x8xf32>,
    %c2 = arith.constant 2 : index
    %c0_17 = arith.constant 0 : index
    %c0_18 = arith.constant 0 : index
    %16 = vector.load %arg1[%c2, %c0_17, %c0_18] : memref<8x4x4xf32, #tpu.memory_space<vmem>>, vector<1x4x4xf32>
    %17 = vector.shape_cast %16 : vector<1x4x4xf32> to vector<4x4xf32>
    %cst_19 = arith.constant dense<0.000000e+00> : vector<4x8xf32>
    %18 = tpu.matmul %17, %0, %cst_19 {dimension_numbers = #tpu.dot_dimension_numbers<[1], [0], [0], [1], [0, 0, 1, 1], [], []>} : vector<4x4xf32>, vector<4x8xf32>, vector<4x8xf32> -> vector<4x8xf32>
    %cst_20 = arith.constant dense<0.000000e+00> : vector<8x8xf32>
    %19 = tpu.matmul %1, %18, %cst_20 {dimension_numbers = #tpu.dot_dimension_numbers<[1], [0], [0], [1], [0, 0, 1, 1], [], []>} : vector<8x4xf32>, vector<4x8xf32>, vector<8x8xf32> -> vector<8x8xf32>
    %c2_21 = arith.constant 2 : index
    %c0_22 = arith.constant 0 : index
    %c0_23 = arith.constant 0 : index
    %20 = vector.load %arg4[%c2_21, %c0_22, %c0_23] : memref<8x8x8xf32, #tpu.memory_space<vmem>>, vector<1x8x8xf32>
    %21 = vector.shape_cast %20 : vector<1x8x8xf32> to vector<8x8xf32>
    %22 = vector.shape_cast %19 : vector<8x8xf32> to vector<1x8x8xf32>
    tpu.vector_store %arg4[%c2_21, %c0_22, %c0_23], %22 {strides = array<i32>} : memref<8x8x8xf32, #tpu.memory_space<vmem>>, vector<1x8x8xf32>,
    %c3 = arith.constant 3 : index
    %c0_24 = arith.constant 0 : index
    %c0_25 = arith.constant 0 : index
    %23 = vector.load %arg1[%c3, %c0_24, %c0_25] : memref<8x4x4xf32, #tpu.memory_space<vmem>>, vector<1x4x4xf32>
    %24 = vector.shape_cast %23 : vector<1x4x4xf32> to vector<4x4xf32>
    %cst_26 = arith.constant dense<0.000000e+00> : vector<4x8xf32>
    %25 = tpu.matmul %24, %0, %cst_26 {dimension_numbers = #tpu.dot_dimension_numbers<[1], [0], [0], [1], [0, 0, 1, 1], [], []>} : vector<4x4xf32>, vector<4x8xf32>, vector<4x8xf32> -> vector<4x8xf32>
    %cst_27 = arith.constant dense<0.000000e+00> : vector<8x8xf32>
    %26 = tpu.matmul %1, %25, %cst_27 {dimension_numbers = #tpu.dot_dimension_numbers<[1], [0], [0], [1], [0, 0, 1, 1], [], []>} : vector<8x4xf32>, vector<4x8xf32>, vector<8x8xf32> -> vector<8x8xf32>
    %c3_28 = arith.constant 3 : index
    %c0_29 = arith.constant 0 : index
    %c0_30 = arith.constant 0 : index
    %27 = vector.load %arg4[%c3_28, %c0_29, %c0_30] : memref<8x8x8xf32, #tpu.memory_space<vmem>>, vector<1x8x8xf32>
    %28 = vector.shape_cast %27 : vector<1x8x8xf32> to vector<8x8xf32>
    %29 = vector.shape_cast %26 : vector<8x8xf32> to vector<1x8x8xf32>
    tpu.vector_store %arg4[%c3_28, %c0_29, %c0_30], %29 {strides = array<i32>} : memref<8x8x8xf32, #tpu.memory_space<vmem>>, vector<1x8x8xf32>,
    %c4 = arith.constant 4 : index
    %c0_31 = arith.constant 0 : index
    %c0_32 = arith.constant 0 : index
    %30 = vector.load %arg1[%c4, %c0_31, %c0_32] : memref<8x4x4xf32, #tpu.memory_space<vmem>>, vector<1x4x4xf32>
    %31 = vector.shape_cast %30 : vector<1x4x4xf32> to vector<4x4xf32>
    %cst_33 = arith.constant dense<0.000000e+00> : vector<4x8xf32>
    %32 = tpu.matmul %31, %0, %cst_33 {dimension_numbers = #tpu.dot_dimension_numbers<[1], [0], [0], [1], [0, 0, 1, 1], [], []>} : vector<4x4xf32>, vector<4x8xf32>, vector<4x8xf32> -> vector<4x8xf32>
    %cst_34 = arith.constant dense<0.000000e+00> : vector<8x8xf32>
    %33 = tpu.matmul %1, %32, %cst_34 {dimension_numbers = #tpu.dot_dimension_numbers<[1], [0], [0], [1], [0, 0, 1, 1], [], []>} : vector<8x4xf32>, vector<4x8xf32>, vector<8x8xf32> -> vector<8x8xf32>
    %c4_35 = arith.constant 4 : index
    %c0_36 = arith.constant 0 : index
    %c0_37 = arith.constant 0 : index
    %34 = vector.load %arg4[%c4_35, %c0_36, %c0_37] : memref<8x8x8xf32, #tpu.memory_space<vmem>>, vector<1x8x8xf32>
    %35 = vector.shape_cast %34 : vector<1x8x8xf32> to vector<8x8xf32>
    %36 = vector.shape_cast %33 : vector<8x8xf32> to vector<1x8x8xf32>
    tpu.vector_store %arg4[%c4_35, %c0_36, %c0_37], %36 {strides = array<i32>} : memref<8x8x8xf32, #tpu.memory_space<vmem>>, vector<1x8x8xf32>,
    %c5 = arith.constant 5 : index
    %c0_38 = arith.constant 0 : index
    %c0_39 = arith.constant 0 : index
    %37 = vector.load %arg1[%c5, %c0_38, %c0_39] : memref<8x4x4xf32, #tpu.memory_space<vmem>>, vector<1x4x4xf32>
    %38 = vector.shape_cast %37 : vector<1x4x4xf32> to vector<4x4xf32>
    %cst_40 = arith.constant dense<0.000000e+00> : vector<4x8xf32>
    %39 = tpu.matmul %38, %0, %cst_40 {dimension_numbers = #tpu.dot_dimension_numbers<[1], [0], [0], [1], [0, 0, 1, 1], [], []>} : vector<4x4xf32>, vector<4x8xf32>, vector<4x8xf32> -> vector<4x8xf32>
    %cst_41 = arith.constant dense<0.000000e+00> : vector<8x8xf32>
    %40 = tpu.matmul %1, %39, %cst_41 {dimension_numbers = #tpu.dot_dimension_numbers<[1], [0], [0], [1], [0, 0, 1, 1], [], []>} : vector<8x4xf32>, vector<4x8xf32>, vector<8x8xf32> -> vector<8x8xf32>
    %c5_42 = arith.constant 5 : index
    %c0_43 = arith.constant 0 : index
    %c0_44 = arith.constant 0 : index
    %41 = vector.load %arg4[%c5_42, %c0_43, %c0_44] : memref<8x8x8xf32, #tpu.memory_space<vmem>>, vector<1x8x8xf32>
    %42 = vector.shape_cast %41 : vector<1x8x8xf32> to vector<8x8xf32>
    %43 = vector.shape_cast %40 : vector<8x8xf32> to vector<1x8x8xf32>
    tpu.vector_store %arg4[%c5_42, %c0_43, %c0_44], %43 {strides = array<i32>} : memref<8x8x8xf32, #tpu.memory_space<vmem>>, vector<1x8x8xf32>,
    %c6 = arith.constant 6 : index
    %c0_45 = arith.constant 0 : index
    %c0_46 = arith.constant 0 : index
    %44 = vector.load %arg1[%c6, %c0_45, %c0_46] : memref<8x4x4xf32, #tpu.memory_space<vmem>>, vector<1x4x4xf32>
    %45 = vector.shape_cast %44 : vector<1x4x4xf32> to vector<4x4xf32>
    %cst_47 = arith.constant dense<0.000000e+00> : vector<4x8xf32>
    %46 = tpu.matmul %45, %0, %cst_47 {dimension_numbers = #tpu.dot_dimension_numbers<[1], [0], [0], [1], [0, 0, 1, 1], [], []>} : vector<4x4xf32>, vector<4x8xf32>, vector<4x8xf32> -> vector<4x8xf32>
    %cst_48 = arith.constant dense<0.000000e+00> : vector<8x8xf32>
    %47 = tpu.matmul %1, %46, %cst_48 {dimension_numbers = #tpu.dot_dimension_numbers<[1], [0], [0], [1], [0, 0, 1, 1], [], []>} : vector<8x4xf32>, vector<4x8xf32>, vector<8x8xf32> -> vector<8x8xf32>
    %c6_49 = arith.constant 6 : index
    %c0_50 = arith.constant 0 : index
    %c0_51 = arith.constant 0 : index
    %48 = vector.load %arg4[%c6_49, %c0_50, %c0_51] : memref<8x8x8xf32, #tpu.memory_space<vmem>>, vector<1x8x8xf32>
    %49 = vector.shape_cast %48 : vector<1x8x8xf32> to vector<8x8xf32>
    %50 = vector.shape_cast %47 : vector<8x8xf32> to vector<1x8x8xf32>
    tpu.vector_store %arg4[%c6_49, %c0_50, %c0_51], %50 {strides = array<i32>} : memref<8x8x8xf32, #tpu.memory_space<vmem>>, vector<1x8x8xf32>,
    %c7 = arith.constant 7 : index
    %c0_52 = arith.constant 0 : index
    %c0_53 = arith.constant 0 : index
    %51 = vector.load %arg1[%c7, %c0_52, %c0_53] : memref<8x4x4xf32, #tpu.memory_space<vmem>>, vector<1x4x4xf32>
    %52 = vector.shape_cast %51 : vector<1x4x4xf32> to vector<4x4xf32>
    %cst_54 = arith.constant dense<0.000000e+00> : vector<4x8xf32>
    %53 = tpu.matmul %52, %0, %cst_54 {dimension_numbers = #tpu.dot_dimension_numbers<[1], [0], [0], [1], [0, 0, 1, 1], [], []>} : vector<4x4xf32>, vector<4x8xf32>, vector<4x8xf32> -> vector<4x8xf32>
    %cst_55 = arith.constant dense<0.000000e+00> : vector<8x8xf32>
    %54 = tpu.matmul %1, %53, %cst_55 {dimension_numbers = #tpu.dot_dimension_numbers<[1], [0], [0], [1], [0, 0, 1, 1], [], []>} : vector<8x4xf32>, vector<4x8xf32>, vector<8x8xf32> -> vector<8x8xf32>
    %c7_56 = arith.constant 7 : index
    %c0_57 = arith.constant 0 : index
    %c0_58 = arith.constant 0 : index
    %55 = vector.load %arg4[%c7_56, %c0_57, %c0_58] : memref<8x8x8xf32, #tpu.memory_space<vmem>>, vector<1x8x8xf32>
    %56 = vector.shape_cast %55 : vector<1x8x8xf32> to vector<8x8xf32>
    %57 = vector.shape_cast %54 : vector<8x8xf32> to vector<1x8x8xf32>
    tpu.vector_store %arg4[%c7_56, %c0_57, %c0_58], %57 {strides = array<i32>} : memref<8x8x8xf32, #tpu.memory_space<vmem>>, vector<1x8x8xf32>,
    return
  }
  func.func @transform_0(%arg0: i32) -> (i32, i32, i32) {
    %c0_i32 = arith.constant 0 : i32
    %c0_i32_0 = arith.constant 0 : i32
    %c0_i32_1 = arith.constant 0 : i32
    return %arg0, %c0_i32, %c0_i32_0 : i32, i32, i32
  }
  func.func @transform_1(%arg0: i32) -> (i32, i32) {
    %c0_i32 = arith.constant 0 : i32
    %c0_i32_0 = arith.constant 0 : i32
    %c0_i32_1 = arith.constant 0 : i32
    return %c0_i32, %c0_i32_0 : i32, i32
  }
  func.func @transform_2(%arg0: i32) -> (i32, i32) {
    %c0_i32 = arith.constant 0 : i32
    %c0_i32_0 = arith.constant 0 : i32
    %c0_i32_1 = arith.constant 0 : i32
    return %c0_i32, %c0_i32_0 : i32, i32
  }
  func.func @transform_3(%arg0: i32) -> (i32, i32, i32) {
    %c0_i32 = arith.constant 0 : i32
    %c0_i32_0 = arith.constant 0 : i32
    %c0_i32_1 = arith.constant 0 : i32
    return %arg0, %c0_i32, %c0_i32_0 : i32, i32, i32
  }
}

module attributes {stable_mosaic.version = 11 : i64} {
  func.func @_gemm_bias_act_kernel(%arg0: i32, %arg1: memref<8x32xbf16, #tpu.memory_space<vmem>>, %arg2: memref<32x128xbf16, #tpu.memory_space<vmem>>, %arg3: memref<8x128xf32, #tpu.memory_space<vmem>>, %arg4: memref<8x128xf32, #tpu.memory_space<vmem>>) attributes {dimension_semantics = [#tpu.dimension_semantics<parallel>], iteration_bounds = array<i64: 1>, scalar_prefetch = 0 : i64, scratch_operands = 0 : i64, tpu.core_type = #tpu.core_type<tc>, window_params = [{pipeline_mode = #tpu.pipeline_mode<synchronous>, transform_indices = @transform_0, window_bounds = array<i64: 8, 32>}, {transform_indices = @transform_1, window_bounds = array<i64: 32, 128>}, {transform_indices = @transform_2, window_bounds = array<i64: 8, 128>}, {transform_indices = @transform_3, window_bounds = array<i64: 8, 128>}]} {
    %c0 = arith.constant 0 : index
    %c0_0 = arith.constant 0 : index
    %0 = vector.load %arg1[%c0, %c0_0] : memref<8x32xbf16, #tpu.memory_space<vmem>>, vector<8x32xbf16>
    %c0_1 = arith.constant 0 : index
    %c0_2 = arith.constant 0 : index
    %1 = vector.load %arg2[%c0_1, %c0_2] : memref<32x128xbf16, #tpu.memory_space<vmem>>, vector<32x128xbf16>
    %cst = arith.constant dense<0.000000e+00> : vector<8x128xf32>
    %2 = tpu.matmul %0, %1, %cst {dimension_numbers = #tpu.dot_dimension_numbers<[1], [0], [0], [1], [0, 0, 1, 1], [], []>} : vector<8x32xbf16>, vector<32x128xbf16>, vector<8x128xf32> -> vector<8x128xf32>
    %c0_3 = arith.constant 0 : index
    %c0_4 = arith.constant 0 : index
    %3 = vector.load %arg3[%c0_3, %c0_4] : memref<8x128xf32, #tpu.memory_space<vmem>>, vector<8x128xf32>
    %4 = arith.addf %2, %3 : vector<8x128xf32>
    %cst_5 = arith.constant 0.000000e+00 : f32
    %5 = vector.broadcast %cst_5 : f32 to vector<8x128xf32>
    %6 = arith.maximumf %4, %5 : vector<8x128xf32>
    %c0_6 = arith.constant 0 : index
    %c0_7 = arith.constant 0 : index
    %7 = vector.load %arg4[%c0_6, %c0_7] : memref<8x128xf32, #tpu.memory_space<vmem>>, vector<8x128xf32>
    tpu.vector_store %arg4[%c0_6, %c0_7], %6 {strides = array<i32>} : memref<8x128xf32, #tpu.memory_space<vmem>>, vector<8x128xf32>,
    return
  }
  func.func @transform_0(%arg0: i32) -> (i32, i32) {
    %c0_i32 = arith.constant 0 : i32
    %c0_i32_0 = arith.constant 0 : i32
    %c0_i32_1 = arith.constant 0 : i32
    return %c0_i32, %c0_i32_0 : i32, i32
  }
  func.func @transform_1(%arg0: i32) -> (i32, i32) {
    %c0_i32 = arith.constant 0 : i32
    %c0_i32_0 = arith.constant 0 : i32
    return %c0_i32, %arg0 : i32, i32
  }
  func.func @transform_2(%arg0: i32) -> (i32, i32) {
    %c0_i32 = arith.constant 0 : i32
    %c0_i32_0 = arith.constant 0 : i32
    return %c0_i32, %arg0 : i32, i32
  }
  func.func @transform_3(%arg0: i32) -> (i32, i32) {
    %c0_i32 = arith.constant 0 : i32
    %c0_i32_0 = arith.constant 0 : i32
    return %c0_i32, %arg0 : i32, i32
  }
}

module attributes {stable_mosaic.version = 11 : i64} {
  func.func @_gemm_bias_act_kernel(%arg0: i32, %arg1: memref<1x8xbf16, #tpu.memory_space<vmem>>, %arg2: memref<8x128xbf16, #tpu.memory_space<vmem>>, %arg3: memref<1x1xf32, #tpu.memory_space<vmem>>, %arg4: memref<1x128xf32, #tpu.memory_space<vmem>>) attributes {dimension_semantics = [#tpu.dimension_semantics<parallel>], iteration_bounds = array<i64: 1>, scalar_prefetch = 0 : i64, scratch_operands = 0 : i64, tpu.core_type = #tpu.core_type<tc>, window_params = [{pipeline_mode = #tpu.pipeline_mode<synchronous>, transform_indices = @transform_0, window_bounds = array<i64: 1, 8>}, {transform_indices = @transform_1, window_bounds = array<i64: 8, 128>}, {pipeline_mode = #tpu.pipeline_mode<synchronous>, transform_indices = @transform_2, window_bounds = array<i64: 1, 1>}, {transform_indices = @transform_3, window_bounds = array<i64: 1, 128>}]} {
    %c0 = arith.constant 0 : index
    %c0_0 = arith.constant 0 : index
    %0 = vector.load %arg1[%c0, %c0_0] : memref<1x8xbf16, #tpu.memory_space<vmem>>, vector<1x8xbf16>
    %c0_1 = arith.constant 0 : index
    %c0_2 = arith.constant 0 : index
    %1 = vector.load %arg2[%c0_1, %c0_2] : memref<8x128xbf16, #tpu.memory_space<vmem>>, vector<8x128xbf16>
    %cst = arith.constant dense<0.000000e+00> : vector<1x128xf32>
    %2 = tpu.matmul %0, %1, %cst {dimension_numbers = #tpu.dot_dimension_numbers<[1], [0], [0], [1], [0, 0, 1, 1], [], []>} : vector<1x8xbf16>, vector<8x128xbf16>, vector<1x128xf32> -> vector<1x128xf32>
    %c0_3 = arith.constant 0 : index
    %c0_4 = arith.constant 0 : index
    %3 = vector.load %arg3[%c0_3, %c0_4] : memref<1x1xf32, #tpu.memory_space<vmem>>, vector<1x1xf32>
    %4 = vector.broadcast %3 : vector<1x1xf32> to vector<1x128xf32>
    %5 = arith.addf %2, %4 : vector<1x128xf32>
    %6 = arith.negf %5 : vector<1x128xf32>
    %7 = math.exp %6 : vector<1x128xf32>
    %cst_5 = arith.constant 1.000000e+00 : f32
    %8 = vector.broadcast %cst_5 : f32 to vector<1x128xf32>
    %9 = arith.addf %8, %7 : vector<1x128xf32>
    %10 = arith.divf %8, %9 : vector<1x128xf32>
    %c0_6 = arith.constant 0 : index
    %c0_7 = arith.constant 0 : index
    %11 = vector.load %arg4[%c0_6, %c0_7] : memref<1x128xf32, #tpu.memory_space<vmem>>, vector<1x128xf32>
    tpu.vector_store %arg4[%c0_6, %c0_7], %10 {strides = array<i32>} : memref<1x128xf32, #tpu.memory_space<vmem>>, vector<1x128xf32>,
    return
  }
  func.func @transform_0(%arg0: i32) -> (i32, i32) {
    %c0_i32 = arith.constant 0 : i32
    %c0_i32_0 = arith.constant 0 : i32
    %c0_i32_1 = arith.constant 0 : i32
    return %c0_i32, %c0_i32_0 : i32, i32
  }
  func.func @transform_1(%arg0: i32) -> (i32, i32) {
    %c0_i32 = arith.constant 0 : i32
    %c0_i32_0 = arith.constant 0 : i32
    return %c0_i32, %arg0 : i32, i32
  }
  func.func @transform_2(%arg0: i32) -> (i32, i32) {
    %c0_i32 = arith.constant 0 : i32
    %c0_i32_0 = arith.constant 0 : i32
    %c0_i32_1 = arith.constant 0 : i32
    return %c0_i32, %c0_i32_0 : i32, i32
  }
  func.func @transform_3(%arg0: i32) -> (i32, i32) {
    %c0_i32 = arith.constant 0 : i32
    %c0_i32_0 = arith.constant 0 : i32
    return %c0_i32, %arg0 : i32, i32
  }
}

module attributes {stable_mosaic.version = 11 : i64} {
  func.func @_bilinear_kernel(%arg0: i32, %arg1: memref<2x8x8xf32, #tpu.memory_space<vmem>>, %arg2: memref<8x16xf32, #tpu.memory_space<vmem>>, %arg3: memref<16x8xf32, #tpu.memory_space<vmem>>, %arg4: memref<2x16x16xf32, #tpu.memory_space<vmem>>) attributes {dimension_semantics = [#tpu.dimension_semantics<parallel>], iteration_bounds = array<i64: 1>, scalar_prefetch = 0 : i64, scratch_operands = 0 : i64, tpu.core_type = #tpu.core_type<tc>, window_params = [{transform_indices = @transform_0, window_bounds = array<i64: 2, 8, 8>}, {pipeline_mode = #tpu.pipeline_mode<synchronous>, transform_indices = @transform_1, window_bounds = array<i64: 8, 16>}, {pipeline_mode = #tpu.pipeline_mode<synchronous>, transform_indices = @transform_2, window_bounds = array<i64: 16, 8>}, {transform_indices = @transform_3, window_bounds = array<i64: 2, 16, 16>}]} {
    %c0 = arith.constant 0 : index
    %c0_0 = arith.constant 0 : index
    %0 = vector.load %arg2[%c0, %c0_0] : memref<8x16xf32, #tpu.memory_space<vmem>>, vector<8x16xf32>
    %c0_1 = arith.constant 0 : index
    %c0_2 = arith.constant 0 : index
    %1 = vector.load %arg3[%c0_1, %c0_2] : memref<16x8xf32, #tpu.memory_space<vmem>>, vector<16x8xf32>
    %c0_3 = arith.constant 0 : index
    %c0_4 = arith.constant 0 : index
    %c0_5 = arith.constant 0 : index
    %2 = vector.load %arg1[%c0_3, %c0_4, %c0_5] : memref<2x8x8xf32, #tpu.memory_space<vmem>>, vector<1x8x8xf32>
    %3 = vector.shape_cast %2 : vector<1x8x8xf32> to vector<8x8xf32>
    %cst = arith.constant dense<0.000000e+00> : vector<8x16xf32>
    %4 = tpu.matmul %3, %0, %cst {dimension_numbers = #tpu.dot_dimension_numbers<[1], [0], [0], [1], [0, 0, 1, 1], [], []>} : vector<8x8xf32>, vector<8x16xf32>, vector<8x16xf32> -> vector<8x16xf32>
    %cst_6 = arith.constant dense<0.000000e+00> : vector<16x16xf32>
    %5 = tpu.matmul %1, %4, %cst_6 {dimension_numbers = #tpu.dot_dimension_numbers<[1], [0], [0], [1], [0, 0, 1, 1], [], []>} : vector<16x8xf32>, vector<8x16xf32>, vector<16x16xf32> -> vector<16x16xf32>
    %c0_7 = arith.constant 0 : index
    %c0_8 = arith.constant 0 : index
    %c0_9 = arith.constant 0 : index
    %6 = vector.load %arg4[%c0_7, %c0_8, %c0_9] : memref<2x16x16xf32, #tpu.memory_space<vmem>>, vector<1x16x16xf32>
    %7 = vector.shape_cast %6 : vector<1x16x16xf32> to vector<16x16xf32>
    %8 = vector.shape_cast %5 : vector<16x16xf32> to vector<1x16x16xf32>
    tpu.vector_store %arg4[%c0_7, %c0_8, %c0_9], %8 {strides = array<i32>} : memref<2x16x16xf32, #tpu.memory_space<vmem>>, vector<1x16x16xf32>,
    %c1 = arith.constant 1 : index
    %c0_10 = arith.constant 0 : index
    %c0_11 = arith.constant 0 : index
    %9 = vector.load %arg1[%c1, %c0_10, %c0_11] : memref<2x8x8xf32, #tpu.memory_space<vmem>>, vector<1x8x8xf32>
    %10 = vector.shape_cast %9 : vector<1x8x8xf32> to vector<8x8xf32>
    %cst_12 = arith.constant dense<0.000000e+00> : vector<8x16xf32>
    %11 = tpu.matmul %10, %0, %cst_12 {dimension_numbers = #tpu.dot_dimension_numbers<[1], [0], [0], [1], [0, 0, 1, 1], [], []>} : vector<8x8xf32>, vector<8x16xf32>, vector<8x16xf32> -> vector<8x16xf32>
    %cst_13 = arith.constant dense<0.000000e+00> : vector<16x16xf32>
    %12 = tpu.matmul %1, %11, %cst_13 {dimension_numbers = #tpu.dot_dimension_numbers<[1], [0], [0], [1], [0, 0, 1, 1], [], []>} : vector<16x8xf32>, vector<8x16xf32>, vector<16x16xf32> -> vector<16x16xf32>
    %c1_14 = arith.constant 1 : index
    %c0_15 = arith.constant 0 : index
    %c0_16 = arith.constant 0 : index
    %13 = vector.load %arg4[%c1_14, %c0_15, %c0_16] : memref<2x16x16xf32, #tpu.memory_space<vmem>>, vector<1x16x16xf32>
    %14 = vector.shape_cast %13 : vector<1x16x16xf32> to vector<16x16xf32>
    %15 = vector.shape_cast %12 : vector<16x16xf32> to vector<1x16x16xf32>
    tpu.vector_store %arg4[%c1_14, %c0_15, %c0_16], %15 {strides = array<i32>} : memref<2x16x16xf32, #tpu.memory_space<vmem>>, vector<1x16x16xf32>,
    return
  }
  func.func @transform_0(%arg0: i32) -> (i32, i32, i32) {
    %c0_i32 = arith.constant 0 : i32
    %c0_i32_0 = arith.constant 0 : i32
    %c0_i32_1 = arith.constant 0 : i32
    return %arg0, %c0_i32, %c0_i32_0 : i32, i32, i32
  }
  func.func @transform_1(%arg0: i32) -> (i32, i32) {
    %c0_i32 = arith.constant 0 : i32
    %c0_i32_0 = arith.constant 0 : i32
    %c0_i32_1 = arith.constant 0 : i32
    return %c0_i32, %c0_i32_0 : i32, i32
  }
  func.func @transform_2(%arg0: i32) -> (i32, i32) {
    %c0_i32 = arith.constant 0 : i32
    %c0_i32_0 = arith.constant 0 : i32
    %c0_i32_1 = arith.constant 0 : i32
    return %c0_i32, %c0_i32_0 : i32, i32
  }
  func.func @transform_3(%arg0: i32) -> (i32, i32, i32) {
    %c0_i32 = arith.constant 0 : i32
    %c0_i32_0 = arith.constant 0 : i32
    %c0_i32_1 = arith.constant 0 : i32
    return %arg0, %c0_i32, %c0_i32_0 : i32, i32, i32
  }
}

module attributes {stable_mosaic.version = 11 : i64} {
  func.func @_gemm_bias_act_kernel(%arg0: i32, %arg1: memref<16x64xbf16, #tpu.memory_space<vmem>>, %arg2: memref<64x32xbf16, #tpu.memory_space<vmem>>, %arg3: memref<16x32xf32, #tpu.memory_space<vmem>>, %arg4: memref<16x32xf32, #tpu.memory_space<vmem>>) attributes {dimension_semantics = [#tpu.dimension_semantics<parallel>], iteration_bounds = array<i64: 1>, scalar_prefetch = 0 : i64, scratch_operands = 0 : i64, tpu.core_type = #tpu.core_type<tc>, window_params = [{pipeline_mode = #tpu.pipeline_mode<synchronous>, transform_indices = @transform_0, window_bounds = array<i64: 16, 64>}, {transform_indices = @transform_1, window_bounds = array<i64: 64, 32>}, {transform_indices = @transform_2, window_bounds = array<i64: 16, 32>}, {transform_indices = @transform_3, window_bounds = array<i64: 16, 32>}]} {
    %c0 = arith.constant 0 : index
    %c0_0 = arith.constant 0 : index
    %0 = vector.load %arg1[%c0, %c0_0] : memref<16x64xbf16, #tpu.memory_space<vmem>>, vector<16x64xbf16>
    %c0_1 = arith.constant 0 : index
    %c0_2 = arith.constant 0 : index
    %1 = vector.load %arg2[%c0_1, %c0_2] : memref<64x32xbf16, #tpu.memory_space<vmem>>, vector<64x32xbf16>
    %cst = arith.constant dense<0.000000e+00> : vector<16x32xf32>
    %2 = tpu.matmul %0, %1, %cst {dimension_numbers = #tpu.dot_dimension_numbers<[1], [0], [0], [1], [0, 0, 1, 1], [], []>} : vector<16x64xbf16>, vector<64x32xbf16>, vector<16x32xf32> -> vector<16x32xf32>
    %c0_3 = arith.constant 0 : index
    %c0_4 = arith.constant 0 : index
    %3 = vector.load %arg3[%c0_3, %c0_4] : memref<16x32xf32, #tpu.memory_space<vmem>>, vector<16x32xf32>
    %4 = arith.addf %2, %3 : vector<16x32xf32>
    %cst_5 = arith.constant 0.000000e+00 : f32
    %5 = vector.broadcast %cst_5 : f32 to vector<16x32xf32>
    %6 = arith.maximumf %4, %5 : vector<16x32xf32>
    %c0_6 = arith.constant 0 : index
    %c0_7 = arith.constant 0 : index
    %7 = vector.load %arg4[%c0_6, %c0_7] : memref<16x32xf32, #tpu.memory_space<vmem>>, vector<16x32xf32>
    tpu.vector_store %arg4[%c0_6, %c0_7], %6 {strides = array<i32>} : memref<16x32xf32, #tpu.memory_space<vmem>>, vector<16x32xf32>,
    return
  }
  func.func @transform_0(%arg0: i32) -> (i32, i32) {
    %c0_i32 = arith.constant 0 : i32
    %c0_i32_0 = arith.constant 0 : i32
    %c0_i32_1 = arith.constant 0 : i32
    return %c0_i32, %c0_i32_0 : i32, i32
  }
  func.func @transform_1(%arg0: i32) -> (i32, i32) {
    %c0_i32 = arith.constant 0 : i32
    %c0_i32_0 = arith.constant 0 : i32
    return %c0_i32, %arg0 : i32, i32
  }
  func.func @transform_2(%arg0: i32) -> (i32, i32) {
    %c0_i32 = arith.constant 0 : i32
    %c0_i32_0 = arith.constant 0 : i32
    return %c0_i32, %arg0 : i32, i32
  }
  func.func @transform_3(%arg0: i32) -> (i32, i32) {
    %c0_i32 = arith.constant 0 : i32
    %c0_i32_0 = arith.constant 0 : i32
    return %c0_i32, %arg0 : i32, i32
  }
}

module attributes {stable_mosaic.version = 11 : i64} {
  func.func @_gemm_bias_act_kernel(%arg0: i32, %arg1: memref<1x16xbf16, #tpu.memory_space<vmem>>, %arg2: memref<16x32xbf16, #tpu.memory_space<vmem>>, %arg3: memref<1x1xf32, #tpu.memory_space<vmem>>, %arg4: memref<1x32xf32, #tpu.memory_space<vmem>>) attributes {dimension_semantics = [#tpu.dimension_semantics<parallel>], iteration_bounds = array<i64: 1>, scalar_prefetch = 0 : i64, scratch_operands = 0 : i64, tpu.core_type = #tpu.core_type<tc>, window_params = [{pipeline_mode = #tpu.pipeline_mode<synchronous>, transform_indices = @transform_0, window_bounds = array<i64: 1, 16>}, {transform_indices = @transform_1, window_bounds = array<i64: 16, 32>}, {pipeline_mode = #tpu.pipeline_mode<synchronous>, transform_indices = @transform_2, window_bounds = array<i64: 1, 1>}, {transform_indices = @transform_3, window_bounds = array<i64: 1, 32>}]} {
    %c0 = arith.constant 0 : index
    %c0_0 = arith.constant 0 : index
    %0 = vector.load %arg1[%c0, %c0_0] : memref<1x16xbf16, #tpu.memory_space<vmem>>, vector<1x16xbf16>
    %c0_1 = arith.constant 0 : index
    %c0_2 = arith.constant 0 : index
    %1 = vector.load %arg2[%c0_1, %c0_2] : memref<16x32xbf16, #tpu.memory_space<vmem>>, vector<16x32xbf16>
    %cst = arith.constant dense<0.000000e+00> : vector<1x32xf32>
    %2 = tpu.matmul %0, %1, %cst {dimension_numbers = #tpu.dot_dimension_numbers<[1], [0], [0], [1], [0, 0, 1, 1], [], []>} : vector<1x16xbf16>, vector<16x32xbf16>, vector<1x32xf32> -> vector<1x32xf32>
    %c0_3 = arith.constant 0 : index
    %c0_4 = arith.constant 0 : index
    %3 = vector.load %arg3[%c0_3, %c0_4] : memref<1x1xf32, #tpu.memory_space<vmem>>, vector<1x1xf32>
    %4 = vector.broadcast %3 : vector<1x1xf32> to vector<1x32xf32>
    %5 = arith.addf %2, %4 : vector<1x32xf32>
    %6 = arith.negf %5 : vector<1x32xf32>
    %7 = math.exp %6 : vector<1x32xf32>
    %cst_5 = arith.constant 1.000000e+00 : f32
    %8 = vector.broadcast %cst_5 : f32 to vector<1x32xf32>
    %9 = arith.addf %8, %7 : vector<1x32xf32>
    %10 = arith.divf %8, %9 : vector<1x32xf32>
    %c0_6 = arith.constant 0 : index
    %c0_7 = arith.constant 0 : index
    %11 = vector.load %arg4[%c0_6, %c0_7] : memref<1x32xf32, #tpu.memory_space<vmem>>, vector<1x32xf32>
    tpu.vector_store %arg4[%c0_6, %c0_7], %10 {strides = array<i32>} : memref<1x32xf32, #tpu.memory_space<vmem>>, vector<1x32xf32>,
    return
  }
  func.func @transform_0(%arg0: i32) -> (i32, i32) {
    %c0_i32 = arith.constant 0 : i32
    %c0_i32_0 = arith.constant 0 : i32
    %c0_i32_1 = arith.constant 0 : i32
    return %c0_i32, %c0_i32_0 : i32, i32
  }
  func.func @transform_1(%arg0: i32) -> (i32, i32) {
    %c0_i32 = arith.constant 0 : i32
    %c0_i32_0 = arith.constant 0 : i32
    return %c0_i32, %arg0 : i32, i32
  }
  func.func @transform_2(%arg0: i32) -> (i32, i32) {
    %c0_i32 = arith.constant 0 : i32
    %c0_i32_0 = arith.constant 0 : i32
    %c0_i32_1 = arith.constant 0 : i32
    return %c0_i32, %c0_i32_0 : i32, i32
  }
  func.func @transform_3(%arg0: i32) -> (i32, i32) {
    %c0_i32 = arith.constant 0 : i32
    %c0_i32_0 = arith.constant 0 : i32
    return %c0_i32, %arg0 : i32, i32
  }
}

module attributes {stable_mosaic.version = 11 : i64} {
  func.func @_bilinear_kernel(%arg0: i32, %arg1: memref<2x4x4xf32, #tpu.memory_space<vmem>>, %arg2: memref<4x8xf32, #tpu.memory_space<vmem>>, %arg3: memref<8x4xf32, #tpu.memory_space<vmem>>, %arg4: memref<2x8x8xf32, #tpu.memory_space<vmem>>) attributes {dimension_semantics = [#tpu.dimension_semantics<parallel>], iteration_bounds = array<i64: 1>, scalar_prefetch = 0 : i64, scratch_operands = 0 : i64, tpu.core_type = #tpu.core_type<tc>, window_params = [{transform_indices = @transform_0, window_bounds = array<i64: 2, 4, 4>}, {pipeline_mode = #tpu.pipeline_mode<synchronous>, transform_indices = @transform_1, window_bounds = array<i64: 4, 8>}, {pipeline_mode = #tpu.pipeline_mode<synchronous>, transform_indices = @transform_2, window_bounds = array<i64: 8, 4>}, {transform_indices = @transform_3, window_bounds = array<i64: 2, 8, 8>}]} {
    %c0 = arith.constant 0 : index
    %c0_0 = arith.constant 0 : index
    %0 = vector.load %arg2[%c0, %c0_0] : memref<4x8xf32, #tpu.memory_space<vmem>>, vector<4x8xf32>
    %c0_1 = arith.constant 0 : index
    %c0_2 = arith.constant 0 : index
    %1 = vector.load %arg3[%c0_1, %c0_2] : memref<8x4xf32, #tpu.memory_space<vmem>>, vector<8x4xf32>
    %c0_3 = arith.constant 0 : index
    %c0_4 = arith.constant 0 : index
    %c0_5 = arith.constant 0 : index
    %2 = vector.load %arg1[%c0_3, %c0_4, %c0_5] : memref<2x4x4xf32, #tpu.memory_space<vmem>>, vector<1x4x4xf32>
    %3 = vector.shape_cast %2 : vector<1x4x4xf32> to vector<4x4xf32>
    %cst = arith.constant dense<0.000000e+00> : vector<4x8xf32>
    %4 = tpu.matmul %3, %0, %cst {dimension_numbers = #tpu.dot_dimension_numbers<[1], [0], [0], [1], [0, 0, 1, 1], [], []>} : vector<4x4xf32>, vector<4x8xf32>, vector<4x8xf32> -> vector<4x8xf32>
    %cst_6 = arith.constant dense<0.000000e+00> : vector<8x8xf32>
    %5 = tpu.matmul %1, %4, %cst_6 {dimension_numbers = #tpu.dot_dimension_numbers<[1], [0], [0], [1], [0, 0, 1, 1], [], []>} : vector<8x4xf32>, vector<4x8xf32>, vector<8x8xf32> -> vector<8x8xf32>
    %c0_7 = arith.constant 0 : index
    %c0_8 = arith.constant 0 : index
    %c0_9 = arith.constant 0 : index
    %6 = vector.load %arg4[%c0_7, %c0_8, %c0_9] : memref<2x8x8xf32, #tpu.memory_space<vmem>>, vector<1x8x8xf32>
    %7 = vector.shape_cast %6 : vector<1x8x8xf32> to vector<8x8xf32>
    %8 = vector.shape_cast %5 : vector<8x8xf32> to vector<1x8x8xf32>
    tpu.vector_store %arg4[%c0_7, %c0_8, %c0_9], %8 {strides = array<i32>} : memref<2x8x8xf32, #tpu.memory_space<vmem>>, vector<1x8x8xf32>,
    %c1 = arith.constant 1 : index
    %c0_10 = arith.constant 0 : index
    %c0_11 = arith.constant 0 : index
    %9 = vector.load %arg1[%c1, %c0_10, %c0_11] : memref<2x4x4xf32, #tpu.memory_space<vmem>>, vector<1x4x4xf32>
    %10 = vector.shape_cast %9 : vector<1x4x4xf32> to vector<4x4xf32>
    %cst_12 = arith.constant dense<0.000000e+00> : vector<4x8xf32>
    %11 = tpu.matmul %10, %0, %cst_12 {dimension_numbers = #tpu.dot_dimension_numbers<[1], [0], [0], [1], [0, 0, 1, 1], [], []>} : vector<4x4xf32>, vector<4x8xf32>, vector<4x8xf32> -> vector<4x8xf32>
    %cst_13 = arith.constant dense<0.000000e+00> : vector<8x8xf32>
    %12 = tpu.matmul %1, %11, %cst_13 {dimension_numbers = #tpu.dot_dimension_numbers<[1], [0], [0], [1], [0, 0, 1, 1], [], []>} : vector<8x4xf32>, vector<4x8xf32>, vector<8x8xf32> -> vector<8x8xf32>
    %c1_14 = arith.constant 1 : index
    %c0_15 = arith.constant 0 : index
    %c0_16 = arith.constant 0 : index
    %13 = vector.load %arg4[%c1_14, %c0_15, %c0_16] : memref<2x8x8xf32, #tpu.memory_space<vmem>>, vector<1x8x8xf32>
    %14 = vector.shape_cast %13 : vector<1x8x8xf32> to vector<8x8xf32>
    %15 = vector.shape_cast %12 : vector<8x8xf32> to vector<1x8x8xf32>
    tpu.vector_store %arg4[%c1_14, %c0_15, %c0_16], %15 {strides = array<i32>} : memref<2x8x8xf32, #tpu.memory_space<vmem>>, vector<1x8x8xf32>,
    return
  }
  func.func @transform_0(%arg0: i32) -> (i32, i32, i32) {
    %c0_i32 = arith.constant 0 : i32
    %c0_i32_0 = arith.constant 0 : i32
    %c0_i32_1 = arith.constant 0 : i32
    return %arg0, %c0_i32, %c0_i32_0 : i32, i32, i32
  }
  func.func @transform_1(%arg0: i32) -> (i32, i32) {
    %c0_i32 = arith.constant 0 : i32
    %c0_i32_0 = arith.constant 0 : i32
    %c0_i32_1 = arith.constant 0 : i32
    return %c0_i32, %c0_i32_0 : i32, i32
  }
  func.func @transform_2(%arg0: i32) -> (i32, i32) {
    %c0_i32 = arith.constant 0 : i32
    %c0_i32_0 = arith.constant 0 : i32
    %c0_i32_1 = arith.constant 0 : i32
    return %c0_i32, %c0_i32_0 : i32, i32
  }
  func.func @transform_3(%arg0: i32) -> (i32, i32, i32) {
    %c0_i32 = arith.constant 0 : i32
    %c0_i32_0 = arith.constant 0 : i32
    %c0_i32_1 = arith.constant 0 : i32
    return %arg0, %c0_i32, %c0_i32_0 : i32, i32, i32
  }
}

module attributes {stable_mosaic.version = 11 : i64} {
  func.func @_bilinear_kernel(%arg0: i32, %arg1: memref<8x4x4xf32, #tpu.memory_space<vmem>>, %arg2: memref<4x2xf32, #tpu.memory_space<vmem>>, %arg3: memref<2x4xf32, #tpu.memory_space<vmem>>, %arg4: memref<8x2x2xf32, #tpu.memory_space<vmem>>) attributes {dimension_semantics = [#tpu.dimension_semantics<parallel>], iteration_bounds = array<i64: 8>, scalar_prefetch = 0 : i64, scratch_operands = 0 : i64, tpu.core_type = #tpu.core_type<tc>, window_params = [{transform_indices = @transform_0, window_bounds = array<i64: 8, 4, 4>}, {pipeline_mode = #tpu.pipeline_mode<synchronous>, transform_indices = @transform_1, window_bounds = array<i64: 4, 2>}, {pipeline_mode = #tpu.pipeline_mode<synchronous>, transform_indices = @transform_2, window_bounds = array<i64: 2, 4>}, {transform_indices = @transform_3, window_bounds = array<i64: 8, 2, 2>}]} {
    %c0 = arith.constant 0 : index
    %c0_0 = arith.constant 0 : index
    %0 = vector.load %arg2[%c0, %c0_0] : memref<4x2xf32, #tpu.memory_space<vmem>>, vector<4x2xf32>
    %c0_1 = arith.constant 0 : index
    %c0_2 = arith.constant 0 : index
    %1 = vector.load %arg3[%c0_1, %c0_2] : memref<2x4xf32, #tpu.memory_space<vmem>>, vector<2x4xf32>
    %c0_3 = arith.constant 0 : index
    %c0_4 = arith.constant 0 : index
    %c0_5 = arith.constant 0 : index
    %2 = vector.load %arg1[%c0_3, %c0_4, %c0_5] : memref<8x4x4xf32, #tpu.memory_space<vmem>>, vector<1x4x4xf32>
    %3 = vector.shape_cast %2 : vector<1x4x4xf32> to vector<4x4xf32>
    %cst = arith.constant dense<0.000000e+00> : vector<4x2xf32>
    %4 = tpu.matmul %3, %0, %cst {dimension_numbers = #tpu.dot_dimension_numbers<[1], [0], [0], [1], [0, 0, 1, 1], [], []>} : vector<4x4xf32>, vector<4x2xf32>, vector<4x2xf32> -> vector<4x2xf32>
    %cst_6 = arith.constant dense<0.000000e+00> : vector<2x2xf32>
    %5 = tpu.matmul %1, %4, %cst_6 {dimension_numbers = #tpu.dot_dimension_numbers<[1], [0], [0], [1], [0, 0, 1, 1], [], []>} : vector<2x4xf32>, vector<4x2xf32>, vector<2x2xf32> -> vector<2x2xf32>
    %c0_7 = arith.constant 0 : index
    %c0_8 = arith.constant 0 : index
    %c0_9 = arith.constant 0 : index
    %6 = vector.load %arg4[%c0_7, %c0_8, %c0_9] : memref<8x2x2xf32, #tpu.memory_space<vmem>>, vector<1x2x2xf32>
    %7 = vector.shape_cast %6 : vector<1x2x2xf32> to vector<2x2xf32>
    %8 = vector.shape_cast %5 : vector<2x2xf32> to vector<1x2x2xf32>
    tpu.vector_store %arg4[%c0_7, %c0_8, %c0_9], %8 {strides = array<i32>} : memref<8x2x2xf32, #tpu.memory_space<vmem>>, vector<1x2x2xf32>,
    %c1 = arith.constant 1 : index
    %c0_10 = arith.constant 0 : index
    %c0_11 = arith.constant 0 : index
    %9 = vector.load %arg1[%c1, %c0_10, %c0_11] : memref<8x4x4xf32, #tpu.memory_space<vmem>>, vector<1x4x4xf32>
    %10 = vector.shape_cast %9 : vector<1x4x4xf32> to vector<4x4xf32>
    %cst_12 = arith.constant dense<0.000000e+00> : vector<4x2xf32>
    %11 = tpu.matmul %10, %0, %cst_12 {dimension_numbers = #tpu.dot_dimension_numbers<[1], [0], [0], [1], [0, 0, 1, 1], [], []>} : vector<4x4xf32>, vector<4x2xf32>, vector<4x2xf32> -> vector<4x2xf32>
    %cst_13 = arith.constant dense<0.000000e+00> : vector<2x2xf32>
    %12 = tpu.matmul %1, %11, %cst_13 {dimension_numbers = #tpu.dot_dimension_numbers<[1], [0], [0], [1], [0, 0, 1, 1], [], []>} : vector<2x4xf32>, vector<4x2xf32>, vector<2x2xf32> -> vector<2x2xf32>
    %c1_14 = arith.constant 1 : index
    %c0_15 = arith.constant 0 : index
    %c0_16 = arith.constant 0 : index
    %13 = vector.load %arg4[%c1_14, %c0_15, %c0_16] : memref<8x2x2xf32, #tpu.memory_space<vmem>>, vector<1x2x2xf32>
    %14 = vector.shape_cast %13 : vector<1x2x2xf32> to vector<2x2xf32>
    %15 = vector.shape_cast %12 : vector<2x2xf32> to vector<1x2x2xf32>
    tpu.vector_store %arg4[%c1_14, %c0_15, %c0_16], %15 {strides = array<i32>} : memref<8x2x2xf32, #tpu.memory_space<vmem>>, vector<1x2x2xf32>,
    %c2 = arith.constant 2 : index
    %c0_17 = arith.constant 0 : index
    %c0_18 = arith.constant 0 : index
    %16 = vector.load %arg1[%c2, %c0_17, %c0_18] : memref<8x4x4xf32, #tpu.memory_space<vmem>>, vector<1x4x4xf32>
    %17 = vector.shape_cast %16 : vector<1x4x4xf32> to vector<4x4xf32>
    %cst_19 = arith.constant dense<0.000000e+00> : vector<4x2xf32>
    %18 = tpu.matmul %17, %0, %cst_19 {dimension_numbers = #tpu.dot_dimension_numbers<[1], [0], [0], [1], [0, 0, 1, 1], [], []>} : vector<4x4xf32>, vector<4x2xf32>, vector<4x2xf32> -> vector<4x2xf32>
    %cst_20 = arith.constant dense<0.000000e+00> : vector<2x2xf32>
    %19 = tpu.matmul %1, %18, %cst_20 {dimension_numbers = #tpu.dot_dimension_numbers<[1], [0], [0], [1], [0, 0, 1, 1], [], []>} : vector<2x4xf32>, vector<4x2xf32>, vector<2x2xf32> -> vector<2x2xf32>
    %c2_21 = arith.constant 2 : index
    %c0_22 = arith.constant 0 : index
    %c0_23 = arith.constant 0 : index
    %20 = vector.load %arg4[%c2_21, %c0_22, %c0_23] : memref<8x2x2xf32, #tpu.memory_space<vmem>>, vector<1x2x2xf32>
    %21 = vector.shape_cast %20 : vector<1x2x2xf32> to vector<2x2xf32>
    %22 = vector.shape_cast %19 : vector<2x2xf32> to vector<1x2x2xf32>
    tpu.vector_store %arg4[%c2_21, %c0_22, %c0_23], %22 {strides = array<i32>} : memref<8x2x2xf32, #tpu.memory_space<vmem>>, vector<1x2x2xf32>,
    %c3 = arith.constant 3 : index
    %c0_24 = arith.constant 0 : index
    %c0_25 = arith.constant 0 : index
    %23 = vector.load %arg1[%c3, %c0_24, %c0_25] : memref<8x4x4xf32, #tpu.memory_space<vmem>>, vector<1x4x4xf32>
    %24 = vector.shape_cast %23 : vector<1x4x4xf32> to vector<4x4xf32>
    %cst_26 = arith.constant dense<0.000000e+00> : vector<4x2xf32>
    %25 = tpu.matmul %24, %0, %cst_26 {dimension_numbers = #tpu.dot_dimension_numbers<[1], [0], [0], [1], [0, 0, 1, 1], [], []>} : vector<4x4xf32>, vector<4x2xf32>, vector<4x2xf32> -> vector<4x2xf32>
    %cst_27 = arith.constant dense<0.000000e+00> : vector<2x2xf32>
    %26 = tpu.matmul %1, %25, %cst_27 {dimension_numbers = #tpu.dot_dimension_numbers<[1], [0], [0], [1], [0, 0, 1, 1], [], []>} : vector<2x4xf32>, vector<4x2xf32>, vector<2x2xf32> -> vector<2x2xf32>
    %c3_28 = arith.constant 3 : index
    %c0_29 = arith.constant 0 : index
    %c0_30 = arith.constant 0 : index
    %27 = vector.load %arg4[%c3_28, %c0_29, %c0_30] : memref<8x2x2xf32, #tpu.memory_space<vmem>>, vector<1x2x2xf32>
    %28 = vector.shape_cast %27 : vector<1x2x2xf32> to vector<2x2xf32>
    %29 = vector.shape_cast %26 : vector<2x2xf32> to vector<1x2x2xf32>
    tpu.vector_store %arg4[%c3_28, %c0_29, %c0_30], %29 {strides = array<i32>} : memref<8x2x2xf32, #tpu.memory_space<vmem>>, vector<1x2x2xf32>,
    %c4 = arith.constant 4 : index
    %c0_31 = arith.constant 0 : index
    %c0_32 = arith.constant 0 : index
    %30 = vector.load %arg1[%c4, %c0_31, %c0_32] : memref<8x4x4xf32, #tpu.memory_space<vmem>>, vector<1x4x4xf32>
    %31 = vector.shape_cast %30 : vector<1x4x4xf32> to vector<4x4xf32>
    %cst_33 = arith.constant dense<0.000000e+00> : vector<4x2xf32>
    %32 = tpu.matmul %31, %0, %cst_33 {dimension_numbers = #tpu.dot_dimension_numbers<[1], [0], [0], [1], [0, 0, 1, 1], [], []>} : vector<4x4xf32>, vector<4x2xf32>, vector<4x2xf32> -> vector<4x2xf32>
    %cst_34 = arith.constant dense<0.000000e+00> : vector<2x2xf32>
    %33 = tpu.matmul %1, %32, %cst_34 {dimension_numbers = #tpu.dot_dimension_numbers<[1], [0], [0], [1], [0, 0, 1, 1], [], []>} : vector<2x4xf32>, vector<4x2xf32>, vector<2x2xf32> -> vector<2x2xf32>
    %c4_35 = arith.constant 4 : index
    %c0_36 = arith.constant 0 : index
    %c0_37 = arith.constant 0 : index
    %34 = vector.load %arg4[%c4_35, %c0_36, %c0_37] : memref<8x2x2xf32, #tpu.memory_space<vmem>>, vector<1x2x2xf32>
    %35 = vector.shape_cast %34 : vector<1x2x2xf32> to vector<2x2xf32>
    %36 = vector.shape_cast %33 : vector<2x2xf32> to vector<1x2x2xf32>
    tpu.vector_store %arg4[%c4_35, %c0_36, %c0_37], %36 {strides = array<i32>} : memref<8x2x2xf32, #tpu.memory_space<vmem>>, vector<1x2x2xf32>,
    %c5 = arith.constant 5 : index
    %c0_38 = arith.constant 0 : index
    %c0_39 = arith.constant 0 : index
    %37 = vector.load %arg1[%c5, %c0_38, %c0_39] : memref<8x4x4xf32, #tpu.memory_space<vmem>>, vector<1x4x4xf32>
    %38 = vector.shape_cast %37 : vector<1x4x4xf32> to vector<4x4xf32>
    %cst_40 = arith.constant dense<0.000000e+00> : vector<4x2xf32>
    %39 = tpu.matmul %38, %0, %cst_40 {dimension_numbers = #tpu.dot_dimension_numbers<[1], [0], [0], [1], [0, 0, 1, 1], [], []>} : vector<4x4xf32>, vector<4x2xf32>, vector<4x2xf32> -> vector<4x2xf32>
    %cst_41 = arith.constant dense<0.000000e+00> : vector<2x2xf32>
    %40 = tpu.matmul %1, %39, %cst_41 {dimension_numbers = #tpu.dot_dimension_numbers<[1], [0], [0], [1], [0, 0, 1, 1], [], []>} : vector<2x4xf32>, vector<4x2xf32>, vector<2x2xf32> -> vector<2x2xf32>
    %c5_42 = arith.constant 5 : index
    %c0_43 = arith.constant 0 : index
    %c0_44 = arith.constant 0 : index
    %41 = vector.load %arg4[%c5_42, %c0_43, %c0_44] : memref<8x2x2xf32, #tpu.memory_space<vmem>>, vector<1x2x2xf32>
    %42 = vector.shape_cast %41 : vector<1x2x2xf32> to vector<2x2xf32>
    %43 = vector.shape_cast %40 : vector<2x2xf32> to vector<1x2x2xf32>
    tpu.vector_store %arg4[%c5_42, %c0_43, %c0_44], %43 {strides = array<i32>} : memref<8x2x2xf32, #tpu.memory_space<vmem>>, vector<1x2x2xf32>,
    %c6 = arith.constant 6 : index
    %c0_45 = arith.constant 0 : index
    %c0_46 = arith.constant 0 : index
    %44 = vector.load %arg1[%c6, %c0_45, %c0_46] : memref<8x4x4xf32, #tpu.memory_space<vmem>>, vector<1x4x4xf32>
    %45 = vector.shape_cast %44 : vector<1x4x4xf32> to vector<4x4xf32>
    %cst_47 = arith.constant dense<0.000000e+00> : vector<4x2xf32>
    %46 = tpu.matmul %45, %0, %cst_47 {dimension_numbers = #tpu.dot_dimension_numbers<[1], [0], [0], [1], [0, 0, 1, 1], [], []>} : vector<4x4xf32>, vector<4x2xf32>, vector<4x2xf32> -> vector<4x2xf32>
    %cst_48 = arith.constant dense<0.000000e+00> : vector<2x2xf32>
    %47 = tpu.matmul %1, %46, %cst_48 {dimension_numbers = #tpu.dot_dimension_numbers<[1], [0], [0], [1], [0, 0, 1, 1], [], []>} : vector<2x4xf32>, vector<4x2xf32>, vector<2x2xf32> -> vector<2x2xf32>
    %c6_49 = arith.constant 6 : index
    %c0_50 = arith.constant 0 : index
    %c0_51 = arith.constant 0 : index
    %48 = vector.load %arg4[%c6_49, %c0_50, %c0_51] : memref<8x2x2xf32, #tpu.memory_space<vmem>>, vector<1x2x2xf32>
    %49 = vector.shape_cast %48 : vector<1x2x2xf32> to vector<2x2xf32>
    %50 = vector.shape_cast %47 : vector<2x2xf32> to vector<1x2x2xf32>
    tpu.vector_store %arg4[%c6_49, %c0_50, %c0_51], %50 {strides = array<i32>} : memref<8x2x2xf32, #tpu.memory_space<vmem>>, vector<1x2x2xf32>,
    %c7 = arith.constant 7 : index
    %c0_52 = arith.constant 0 : index
    %c0_53 = arith.constant 0 : index
    %51 = vector.load %arg1[%c7, %c0_52, %c0_53] : memref<8x4x4xf32, #tpu.memory_space<vmem>>, vector<1x4x4xf32>
    %52 = vector.shape_cast %51 : vector<1x4x4xf32> to vector<4x4xf32>
    %cst_54 = arith.constant dense<0.000000e+00> : vector<4x2xf32>
    %53 = tpu.matmul %52, %0, %cst_54 {dimension_numbers = #tpu.dot_dimension_numbers<[1], [0], [0], [1], [0, 0, 1, 1], [], []>} : vector<4x4xf32>, vector<4x2xf32>, vector<4x2xf32> -> vector<4x2xf32>
    %cst_55 = arith.constant dense<0.000000e+00> : vector<2x2xf32>
    %54 = tpu.matmul %1, %53, %cst_55 {dimension_numbers = #tpu.dot_dimension_numbers<[1], [0], [0], [1], [0, 0, 1, 1], [], []>} : vector<2x4xf32>, vector<4x2xf32>, vector<2x2xf32> -> vector<2x2xf32>
    %c7_56 = arith.constant 7 : index
    %c0_57 = arith.constant 0 : index
    %c0_58 = arith.constant 0 : index
    %55 = vector.load %arg4[%c7_56, %c0_57, %c0_58] : memref<8x2x2xf32, #tpu.memory_space<vmem>>, vector<1x2x2xf32>
    %56 = vector.shape_cast %55 : vector<1x2x2xf32> to vector<2x2xf32>
    %57 = vector.shape_cast %54 : vector<2x2xf32> to vector<1x2x2xf32>
    tpu.vector_store %arg4[%c7_56, %c0_57, %c0_58], %57 {strides = array<i32>} : memref<8x2x2xf32, #tpu.memory_space<vmem>>, vector<1x2x2xf32>,
    return
  }
  func.func @transform_0(%arg0: i32) -> (i32, i32, i32) {
    %c0_i32 = arith.constant 0 : i32
    %c0_i32_0 = arith.constant 0 : i32
    %c0_i32_1 = arith.constant 0 : i32
    return %arg0, %c0_i32, %c0_i32_0 : i32, i32, i32
  }
  func.func @transform_1(%arg0: i32) -> (i32, i32) {
    %c0_i32 = arith.constant 0 : i32
    %c0_i32_0 = arith.constant 0 : i32
    %c0_i32_1 = arith.constant 0 : i32
    return %c0_i32, %c0_i32_0 : i32, i32
  }
  func.func @transform_2(%arg0: i32) -> (i32, i32) {
    %c0_i32 = arith.constant 0 : i32
    %c0_i32_0 = arith.constant 0 : i32
    %c0_i32_1 = arith.constant 0 : i32
    return %c0_i32, %c0_i32_0 : i32, i32
  }
  func.func @transform_3(%arg0: i32) -> (i32, i32, i32) {
    %c0_i32 = arith.constant 0 : i32
    %c0_i32_0 = arith.constant 0 : i32
    %c0_i32_1 = arith.constant 0 : i32
    return %arg0, %c0_i32, %c0_i32_0 : i32, i32, i32
  }
}

module attributes {stable_mosaic.version = 11 : i64} {
  func.func @_gemm_bias_act_kernel(%arg0: i32, %arg1: memref<32x128xbf16, #tpu.memory_space<vmem>>, %arg2: memref<128x8xbf16, #tpu.memory_space<vmem>>, %arg3: memref<32x8xf32, #tpu.memory_space<vmem>>, %arg4: memref<32x8xf32, #tpu.memory_space<vmem>>) attributes {dimension_semantics = [#tpu.dimension_semantics<parallel>], iteration_bounds = array<i64: 1>, scalar_prefetch = 0 : i64, scratch_operands = 0 : i64, tpu.core_type = #tpu.core_type<tc>, window_params = [{pipeline_mode = #tpu.pipeline_mode<synchronous>, transform_indices = @transform_0, window_bounds = array<i64: 32, 128>}, {transform_indices = @transform_1, window_bounds = array<i64: 128, 8>}, {transform_indices = @transform_2, window_bounds = array<i64: 32, 8>}, {transform_indices = @transform_3, window_bounds = array<i64: 32, 8>}]} {
    %c0 = arith.constant 0 : index
    %c0_0 = arith.constant 0 : index
    %0 = vector.load %arg1[%c0, %c0_0] : memref<32x128xbf16, #tpu.memory_space<vmem>>, vector<32x128xbf16>
    %c0_1 = arith.constant 0 : index
    %c0_2 = arith.constant 0 : index
    %1 = vector.load %arg2[%c0_1, %c0_2] : memref<128x8xbf16, #tpu.memory_space<vmem>>, vector<128x8xbf16>
    %cst = arith.constant dense<0.000000e+00> : vector<32x8xf32>
    %2 = tpu.matmul %0, %1, %cst {dimension_numbers = #tpu.dot_dimension_numbers<[1], [0], [0], [1], [0, 0, 1, 1], [], []>} : vector<32x128xbf16>, vector<128x8xbf16>, vector<32x8xf32> -> vector<32x8xf32>
    %c0_3 = arith.constant 0 : index
    %c0_4 = arith.constant 0 : index
    %3 = vector.load %arg3[%c0_3, %c0_4] : memref<32x8xf32, #tpu.memory_space<vmem>>, vector<32x8xf32>
    %4 = arith.addf %2, %3 : vector<32x8xf32>
    %cst_5 = arith.constant 0.000000e+00 : f32
    %5 = vector.broadcast %cst_5 : f32 to vector<32x8xf32>
    %6 = arith.maximumf %4, %5 : vector<32x8xf32>
    %c0_6 = arith.constant 0 : index
    %c0_7 = arith.constant 0 : index
    %7 = vector.load %arg4[%c0_6, %c0_7] : memref<32x8xf32, #tpu.memory_space<vmem>>, vector<32x8xf32>
    tpu.vector_store %arg4[%c0_6, %c0_7], %6 {strides = array<i32>} : memref<32x8xf32, #tpu.memory_space<vmem>>, vector<32x8xf32>,
    return
  }
  func.func @transform_0(%arg0: i32) -> (i32, i32) {
    %c0_i32 = arith.constant 0 : i32
    %c0_i32_0 = arith.constant 0 : i32
    %c0_i32_1 = arith.constant 0 : i32
    return %c0_i32, %c0_i32_0 : i32, i32
  }
  func.func @transform_1(%arg0: i32) -> (i32, i32) {
    %c0_i32 = arith.constant 0 : i32
    %c0_i32_0 = arith.constant 0 : i32
    return %c0_i32, %arg0 : i32, i32
  }
  func.func @transform_2(%arg0: i32) -> (i32, i32) {
    %c0_i32 = arith.constant 0 : i32
    %c0_i32_0 = arith.constant 0 : i32
    return %c0_i32, %arg0 : i32, i32
  }
  func.func @transform_3(%arg0: i32) -> (i32, i32) {
    %c0_i32 = arith.constant 0 : i32
    %c0_i32_0 = arith.constant 0 : i32
    return %c0_i32, %arg0 : i32, i32
  }
}

module attributes {stable_mosaic.version = 11 : i64} {
  func.func @_gemm_bias_act_kernel(%arg0: i32, %arg1: memref<1x32xbf16, #tpu.memory_space<vmem>>, %arg2: memref<32x8xbf16, #tpu.memory_space<vmem>>, %arg3: memref<1x1xf32, #tpu.memory_space<vmem>>, %arg4: memref<1x8xf32, #tpu.memory_space<vmem>>) attributes {dimension_semantics = [#tpu.dimension_semantics<parallel>], iteration_bounds = array<i64: 1>, scalar_prefetch = 0 : i64, scratch_operands = 0 : i64, tpu.core_type = #tpu.core_type<tc>, window_params = [{pipeline_mode = #tpu.pipeline_mode<synchronous>, transform_indices = @transform_0, window_bounds = array<i64: 1, 32>}, {transform_indices = @transform_1, window_bounds = array<i64: 32, 8>}, {pipeline_mode = #tpu.pipeline_mode<synchronous>, transform_indices = @transform_2, window_bounds = array<i64: 1, 1>}, {transform_indices = @transform_3, window_bounds = array<i64: 1, 8>}]} {
    %c0 = arith.constant 0 : index
    %c0_0 = arith.constant 0 : index
    %0 = vector.load %arg1[%c0, %c0_0] : memref<1x32xbf16, #tpu.memory_space<vmem>>, vector<1x32xbf16>
    %c0_1 = arith.constant 0 : index
    %c0_2 = arith.constant 0 : index
    %1 = vector.load %arg2[%c0_1, %c0_2] : memref<32x8xbf16, #tpu.memory_space<vmem>>, vector<32x8xbf16>
    %cst = arith.constant dense<0.000000e+00> : vector<1x8xf32>
    %2 = tpu.matmul %0, %1, %cst {dimension_numbers = #tpu.dot_dimension_numbers<[1], [0], [0], [1], [0, 0, 1, 1], [], []>} : vector<1x32xbf16>, vector<32x8xbf16>, vector<1x8xf32> -> vector<1x8xf32>
    %c0_3 = arith.constant 0 : index
    %c0_4 = arith.constant 0 : index
    %3 = vector.load %arg3[%c0_3, %c0_4] : memref<1x1xf32, #tpu.memory_space<vmem>>, vector<1x1xf32>
    %4 = vector.broadcast %3 : vector<1x1xf32> to vector<1x8xf32>
    %5 = arith.addf %2, %4 : vector<1x8xf32>
    %6 = arith.negf %5 : vector<1x8xf32>
    %7 = math.exp %6 : vector<1x8xf32>
    %cst_5 = arith.constant 1.000000e+00 : f32
    %8 = vector.broadcast %cst_5 : f32 to vector<1x8xf32>
    %9 = arith.addf %8, %7 : vector<1x8xf32>
    %10 = arith.divf %8, %9 : vector<1x8xf32>
    %c0_6 = arith.constant 0 : index
    %c0_7 = arith.constant 0 : index
    %11 = vector.load %arg4[%c0_6, %c0_7] : memref<1x8xf32, #tpu.memory_space<vmem>>, vector<1x8xf32>
    tpu.vector_store %arg4[%c0_6, %c0_7], %10 {strides = array<i32>} : memref<1x8xf32, #tpu.memory_space<vmem>>, vector<1x8xf32>,
    return
  }
  func.func @transform_0(%arg0: i32) -> (i32, i32) {
    %c0_i32 = arith.constant 0 : i32
    %c0_i32_0 = arith.constant 0 : i32
    %c0_i32_1 = arith.constant 0 : i32
    return %c0_i32, %c0_i32_0 : i32, i32
  }
  func.func @transform_1(%arg0: i32) -> (i32, i32) {
    %c0_i32 = arith.constant 0 : i32
    %c0_i32_0 = arith.constant 0 : i32
    return %c0_i32, %arg0 : i32, i32
  }
  func.func @transform_2(%arg0: i32) -> (i32, i32) {
    %c0_i32 = arith.constant 0 : i32
    %c0_i32_0 = arith.constant 0 : i32
    %c0_i32_1 = arith.constant 0 : i32
    return %c0_i32, %c0_i32_0 : i32, i32
  }
  func.func @transform_3(%arg0: i32) -> (i32, i32) {
    %c0_i32 = arith.constant 0 : i32
    %c0_i32_0 = arith.constant 0 : i32
    return %c0_i32, %arg0 : i32, i32
  }
}

module attributes {stable_mosaic.version = 11 : i64} {
  func.func @_bilinear_kernel(%arg0: i32, %arg1: memref<2x2x2xf32, #tpu.memory_space<vmem>>, %arg2: memref<2x4xf32, #tpu.memory_space<vmem>>, %arg3: memref<4x2xf32, #tpu.memory_space<vmem>>, %arg4: memref<2x4x4xf32, #tpu.memory_space<vmem>>) attributes {dimension_semantics = [#tpu.dimension_semantics<parallel>], iteration_bounds = array<i64: 1>, scalar_prefetch = 0 : i64, scratch_operands = 0 : i64, tpu.core_type = #tpu.core_type<tc>, window_params = [{transform_indices = @transform_0, window_bounds = array<i64: 2, 2, 2>}, {pipeline_mode = #tpu.pipeline_mode<synchronous>, transform_indices = @transform_1, window_bounds = array<i64: 2, 4>}, {pipeline_mode = #tpu.pipeline_mode<synchronous>, transform_indices = @transform_2, window_bounds = array<i64: 4, 2>}, {transform_indices = @transform_3, window_bounds = array<i64: 2, 4, 4>}]} {
    %c0 = arith.constant 0 : index
    %c0_0 = arith.constant 0 : index
    %0 = vector.load %arg2[%c0, %c0_0] : memref<2x4xf32, #tpu.memory_space<vmem>>, vector<2x4xf32>
    %c0_1 = arith.constant 0 : index
    %c0_2 = arith.constant 0 : index
    %1 = vector.load %arg3[%c0_1, %c0_2] : memref<4x2xf32, #tpu.memory_space<vmem>>, vector<4x2xf32>
    %c0_3 = arith.constant 0 : index
    %c0_4 = arith.constant 0 : index
    %c0_5 = arith.constant 0 : index
    %2 = vector.load %arg1[%c0_3, %c0_4, %c0_5] : memref<2x2x2xf32, #tpu.memory_space<vmem>>, vector<1x2x2xf32>
    %3 = vector.shape_cast %2 : vector<1x2x2xf32> to vector<2x2xf32>
    %cst = arith.constant dense<0.000000e+00> : vector<2x4xf32>
    %4 = tpu.matmul %3, %0, %cst {dimension_numbers = #tpu.dot_dimension_numbers<[1], [0], [0], [1], [0, 0, 1, 1], [], []>} : vector<2x2xf32>, vector<2x4xf32>, vector<2x4xf32> -> vector<2x4xf32>
    %cst_6 = arith.constant dense<0.000000e+00> : vector<4x4xf32>
    %5 = tpu.matmul %1, %4, %cst_6 {dimension_numbers = #tpu.dot_dimension_numbers<[1], [0], [0], [1], [0, 0, 1, 1], [], []>} : vector<4x2xf32>, vector<2x4xf32>, vector<4x4xf32> -> vector<4x4xf32>
    %c0_7 = arith.constant 0 : index
    %c0_8 = arith.constant 0 : index
    %c0_9 = arith.constant 0 : index
    %6 = vector.load %arg4[%c0_7, %c0_8, %c0_9] : memref<2x4x4xf32, #tpu.memory_space<vmem>>, vector<1x4x4xf32>
    %7 = vector.shape_cast %6 : vector<1x4x4xf32> to vector<4x4xf32>
    %8 = vector.shape_cast %5 : vector<4x4xf32> to vector<1x4x4xf32>
    tpu.vector_store %arg4[%c0_7, %c0_8, %c0_9], %8 {strides = array<i32>} : memref<2x4x4xf32, #tpu.memory_space<vmem>>, vector<1x4x4xf32>,
    %c1 = arith.constant 1 : index
    %c0_10 = arith.constant 0 : index
    %c0_11 = arith.constant 0 : index
    %9 = vector.load %arg1[%c1, %c0_10, %c0_11] : memref<2x2x2xf32, #tpu.memory_space<vmem>>, vector<1x2x2xf32>
    %10 = vector.shape_cast %9 : vector<1x2x2xf32> to vector<2x2xf32>
    %cst_12 = arith.constant dense<0.000000e+00> : vector<2x4xf32>
    %11 = tpu.matmul %10, %0, %cst_12 {dimension_numbers = #tpu.dot_dimension_numbers<[1], [0], [0], [1], [0, 0, 1, 1], [], []>} : vector<2x2xf32>, vector<2x4xf32>, vector<2x4xf32> -> vector<2x4xf32>
    %cst_13 = arith.constant dense<0.000000e+00> : vector<4x4xf32>
    %12 = tpu.matmul %1, %11, %cst_13 {dimension_numbers = #tpu.dot_dimension_numbers<[1], [0], [0], [1], [0, 0, 1, 1], [], []>} : vector<4x2xf32>, vector<2x4xf32>, vector<4x4xf32> -> vector<4x4xf32>
    %c1_14 = arith.constant 1 : index
    %c0_15 = arith.constant 0 : index
    %c0_16 = arith.constant 0 : index
    %13 = vector.load %arg4[%c1_14, %c0_15, %c0_16] : memref<2x4x4xf32, #tpu.memory_space<vmem>>, vector<1x4x4xf32>
    %14 = vector.shape_cast %13 : vector<1x4x4xf32> to vector<4x4xf32>
    %15 = vector.shape_cast %12 : vector<4x4xf32> to vector<1x4x4xf32>
    tpu.vector_store %arg4[%c1_14, %c0_15, %c0_16], %15 {strides = array<i32>} : memref<2x4x4xf32, #tpu.memory_space<vmem>>, vector<1x4x4xf32>,
    return
  }
  func.func @transform_0(%arg0: i32) -> (i32, i32, i32) {
    %c0_i32 = arith.constant 0 : i32
    %c0_i32_0 = arith.constant 0 : i32
    %c0_i32_1 = arith.constant 0 : i32
    return %arg0, %c0_i32, %c0_i32_0 : i32, i32, i32
  }
  func.func @transform_1(%arg0: i32) -> (i32, i32) {
    %c0_i32 = arith.constant 0 : i32
    %c0_i32_0 = arith.constant 0 : i32
    %c0_i32_1 = arith.constant 0 : i32
    return %c0_i32, %c0_i32_0 : i32, i32
  }
  func.func @transform_2(%arg0: i32) -> (i32, i32) {
    %c0_i32 = arith.constant 0 : i32
    %c0_i32_0 = arith.constant 0 : i32
    %c0_i32_1 = arith.constant 0 : i32
    return %c0_i32, %c0_i32_0 : i32, i32
  }
  func.func @transform_3(%arg0: i32) -> (i32, i32, i32) {
    %c0_i32 = arith.constant 0 : i32
    %c0_i32_0 = arith.constant 0 : i32
    %c0_i32_1 = arith.constant 0 : i32
    return %arg0, %c0_i32, %c0_i32_0 : i32, i32, i32
  }
}

</mosaic_0001>

<llo_original>
// kernel: forward.17
$region0: #{forward.17}
  #allocation0 [shape = 'u32[]', space=smem, size = 0x4, offset = 0x4, fixed_abs, tag = 'smem constant byte address 0x4 - core index']
  #allocation1 [shape = 'u32[144,128]{1,0:T(1,128)}', space=vmem, size = 0x12000, scoped, tag = 'internal scratch']
  %s0 = inlined_call_operand.vmem [shape: bf16[8,36], index: 0, kind: input, shape index: {}]
  %s1 = inlined_call_operand.vmem [shape: bf16[36,512], index: 1, kind: input, shape index: {}]
  %s2 = inlined_call_operand.vmem [shape: f32[8,1], index: 2, kind: input, shape index: {}]
  %s3 = inlined_call_operand.vmem [shape: f32[8,512], index: 3, kind: output, shape index: {}]
  %s4 = sld [smem:[#allocation0]]
  $region22: #{forward.17} parent=0
    _
  %s6 = ssub.s32 1, %s4
  %s7 = scalar_select 0, %s6, %s4
  // Predicated region
  $region2: #{forward.17} parent=0 // pred_check
    _
  $region3: #{forward.17} parent=0 // pred_check_branch
    %9 = sbr.rel (0) target = $region5
  $region4: #{forward.17} parent=0 // pred_region
    _
  $region5: #{forward.17} parent=0 // pred_fallthru
    _
  // Predicated region
  $region6: #{forward.17} parent=0 // pred_check
    _
  $region7: #{forward.17} parent=0 // pred_check_branch
    %11 = sbr.rel (0) target = $region9
  $region8: #{forward.17} parent=0 // pred_region
    _
  $region9: #{forward.17} parent=0 // pred_fallthru
    _
  // Predicated region
  $region10: #{forward.17} parent=0 // pred_check
    _
  $region11: #{forward.17} parent=0 // pred_check_branch
    %13 = sbr.rel (0) target = $region13
  $region12: #{forward.17} parent=0 // pred_region
    _
  $region13: #{forward.17} parent=0 // pred_fallthru
    _
  %v15 = vld [vmem:[%s0] sm:$0xf]
  %v16 = vld [vmem:[%s1] sm:$0xff]
  %v17 = vld [vmem:[%s1 + $0x8] sm:$0xff]
  %v18 = vld [vmem:[%s1 + $0x10] sm:$0xff]
  %v19 = vld [vmem:[%s1 + $0x18] sm:$0xff]
  %v20 = vld [vmem:[%s1 + $0x20] sm:$0xff]
  %v21 = vld [vmem:[%s1 + $0x28] sm:$0xff]
  %v22 = vld [vmem:[%s1 + $0x30] sm:$0xff]
  %v23 = vld [vmem:[%s1 + $0x38] sm:$0xff]
  %v24 = vld [vmem:[%s1 + $0x40] sm:$0x33]
  %v25 = vld [vmem:[%s1 + $0x48] sm:$0x33]
  %v26 = vld [vmem:[%s2] sm:$0xff]
  %28 = vset.pattern.permute.xlu0 0
  %29 = vperm.xlu0 %28, %v26
  %v30 = vpop.permute.xlu0 %29
  %v42 = vunpack.c.l.b16 %v16
  %v43 = vunpack.c.h.b16 %v16
  %v44 = vunpack.c.l.b16 %v17
  %v45 = vunpack.c.h.b16 %v17
  %v46 = vunpack.c.l.b16 %v18
  %v47 = vunpack.c.h.b16 %v18
  %v48 = vunpack.c.l.b16 %v19
  %v49 = vunpack.c.h.b16 %v19
  %v50 = vunpack.c.l.b16 %v20
  %v51 = vunpack.c.h.b16 %v20
  %v52 = vunpack.c.l.b16 %v21
  %v53 = vunpack.c.h.b16 %v21
  %v54 = vunpack.c.l.b16 %v22
  %v55 = vunpack.c.h.b16 %v22
  %v56 = vunpack.c.l.b16 %v23
  %v57 = vunpack.c.h.b16 %v23
  %v58 = vunpack.c.l.b16 %v24
  %v59 = vunpack.c.h.b16 %v24
  %v60 = vunpack.c.l.b16 %v25
  %v61 = vunpack.c.h.b16 %v25
  %v62 = vpack.c.b16 %v46, %v42
  %v63 = vpack.c.b16 %v47, %v43
  %v64 = vpack.c.b16 %v48, %v44
  %v65 = vpack.c.b16 %v49, %v45
  %v66 = vpack.c.b16 %v54, %v50
  %v67 = vpack.c.b16 %v55, %v51
  %v68 = vpack.c.b16 %v56, %v52
  %v69 = vpack.c.b16 %v57, %v53
  %v70 = vpack.c.b16 %v58, %v58
  %v71 = vpack.c.b16 %v59, %v59
  %v72 = vpack.c.b16 %v60, %v60
  %v73 = vpack.c.b16 %v61, %v61
  %vm82 = vcmask 293888
  %v84 = vsel %vm82, %v15, 0
  %vm86 = vcmask 1041408
  %v88 = vsel %vm86, %v70, 0
  %v91 = vsel %vm86, %v71, 0
  %v94 = vsel %vm86, %v72, 0
  %v97 = vsel %vm86, %v73, 0
  %99 = vmatprep.subr.bf16.mxu0 0
  %100 = vmatpush1.bf16.msra.mxu0 0
  %101 = vmatprep.subr.bf16.mxu0 0
  %102 = vmatpush1.bf16.msra.mxu0 0
  %103 = vmatprep.subr.bf16.mxu0 0
  %104 = vmatpush1.bf16.msra.mxu0 0
  %105 = vmatprep.subr.bf16.mxu0 0
  %106 = vmatpush1.bf16.msra.mxu0 0
  %107 = vmatprep.subr.bf16.mxu0 0
  %108 = vmatpush1.bf16.msra.mxu0 0
  %109 = vmatprep.subr.bf16.mxu0 %v91
  %110 = vmatpush1.bf16.msra.mxu0 %v88
  %111 = vmatprep.subr.bf16.mxu0 %v67
  %112 = vmatpush1.bf16.msra.mxu0 %v66
  %113 = vmatprep.subr.bf16.mxu0 %v63
  %114 = vmatpush1.bf16.msra.mxu0 %v62
  %115 = vmatprep.subr.bf16.mxu0 0
  %116 = vmatpush2.bf16.msra.mxu0 0
  %117 = vmatprep.subr.bf16.mxu0 0
  %118 = vmatpush2.bf16.msra.mxu0 0
  %119 = vmatprep.subr.bf16.mxu0 0
  %120 = vmatpush2.bf16.msra.mxu0 0
  %121 = vmatprep.subr.bf16.mxu0 0
  %122 = vmatpush2.bf16.msra.mxu0 0
  %123 = vmatprep.subr.bf16.mxu0 0
  %124 = vmatpush2.bf16.msra.mxu0 0
  %125 = vmatprep.subr.bf16.mxu0 0
  %126 = vmatpush2.bf16.msra.mxu0 0
  %127 = vmatprep.subr.bf16.mxu0 0
  %128 = vmatpush2.bf16.msra.mxu0 0
  %129 = vmatprep.subr.bf16.mxu0 0
  %130 = vmatpush2.bf16.msra.mxu0 0
  %131 = vmatprep.mubr.bf16.mxu0 0
  %132 = vmatmul.mubr.bf16.gmra.mxu0 %v84
  %v133 = vpop.f32.mrf.mxu0
  %v134 = vadd.f32 %v30, %v133
  %v135 = vpop.f32.mrf.mxu0
  %v136 = vadd.f32 %v30, %v135
  %v137 = vpop.f32.mrf.mxu0
  %v138 = vpop.f32.mrf.mxu0
  %139 = vdwg.mxu0
  %140 = vmatprep.subr.bf16.mxu0 0
  %141 = vmatpush1.bf16.msra.mxu0 0
  %142 = vmatprep.subr.bf16.mxu0 0
  %143 = vmatpush1.bf16.msra.mxu0 0
  %144 = vmatprep.subr.bf16.mxu0 0
  %145 = vmatpush1.bf16.msra.mxu0 0
  %146 = vmatprep.subr.bf16.mxu0 0
  %147 = vmatpush1.bf16.msra.mxu0 0
  %148 = vmatprep.subr.bf16.mxu0 0
  %149 = vmatpush1.bf16.msra.mxu0 0
  %150 = vmatprep.subr.bf16.mxu0 %v97
  %151 = vmatpush1.bf16.msra.mxu0 %v94
  %152 = vmatprep.subr.bf16.mxu0 %v69
  %153 = vmatpush1.bf16.msra.mxu0 %v68
  %154 = vmatprep.subr.bf16.mxu0 %v65
  %155 = vmatpush1.bf16.msra.mxu0 %v64
  %156 = vmatprep.subr.bf16.mxu0 0
  %157 = vmatpush2.bf16.msra.mxu0 0
  %158 = vmatprep.subr.bf16.mxu0 0
  %159 = vmatpush2.bf16.msra.mxu0 0
  %160 = vmatprep.subr.bf16.mxu0 0
  %161 = vmatpush2.bf16.msra.mxu0 0
  %162 = vmatprep.subr.bf16.mxu0 0
  %163 = vmatpush2.bf16.msra.mxu0 0
  %164 = vmatprep.subr.bf16.mxu0 0
  %165 = vmatpush2.bf16.msra.mxu0 0
  %166 = vmatprep.subr.bf16.mxu0 0
  %167 = vmatpush2.bf16.msra.mxu0 0
  %168 = vmatprep.subr.bf16.mxu0 0
  %169 = vmatpush2.bf16.msra.mxu0 0
  %170 = vmatprep.subr.bf16.mxu0 0
  %171 = vmatpush2.bf16.msra.mxu0 0
  %172 = vmatprep.mubr.bf16.mxu0 0
  %173 = vmatmul.mubr.bf16.gmra.mxu0 %v84
  %v174 = vpop.f32.mrf.mxu0
  %v175 = vadd.f32 %v30, %v174
  %v176 = vpop.f32.mrf.mxu0
  %v177 = vadd.f32 %v30, %v176
  %v178 = vpop.f32.mrf.mxu0
  %v179 = vpop.f32.mrf.mxu0
  %180 = vdwg.mxu0
  %vm181 = vcmp.ge.f32.partialorder %v134, 0.0
  %vm182 = vcmp.ge.f32.partialorder %v136, 0.0
  %vm183 = vcmp.ge.f32.partialorder %v175, 0.0
  %vm184 = vcmp.ge.f32.partialorder %v177, 0.0
  %v185 = vmul.f32 %v134, 0.2
  %v186 = vmul.f32 %v136, 0.2
  %v187 = vmul.f32 %v175, 0.2
  %v188 = vmul.f32 %v177, 0.2
  %v189 = vsel %vm181, %v134, %v185
  %v190 = vsel %vm182, %v136, %v186
  %v191 = vsel %vm183, %v175, %v187
  %v192 = vsel %vm184, %v177, %v188
  %193 = vst [vmem:[%s3] sm:$0xff] %v189
  %194 = vst [vmem:[%s3 + $0x8] sm:$0xff] %v190
  %195 = vst [vmem:[%s3 + $0x10] sm:$0xff] %v191
  %196 = vst [vmem:[%s3 + $0x18] sm:$0xff] %v192
  // Predicated region
  $region14: #{forward.17} parent=0 // pred_check
    _
  $region15: #{forward.17} parent=0 // pred_check_branch
    %198 = sbr.rel (0) target = $region17
  $region16: #{forward.17} parent=0 // pred_region
    _
  $region17: #{forward.17} parent=0 // pred_fallthru
    _
  // Predicated region
  $region18: #{forward.17} parent=0 // pred_check
    _
  $region19: #{forward.17} parent=0 // pred_check_branch
    %200 = sbr.rel (0) target = $region21
  $region20: #{forward.17} parent=0 // pred_region
    _
  $region21: #{forward.17} parent=0 // pred_fallthru
    _

// kernel: forward.18
$region0: #{forward.18}
  #allocation0 [shape = 'u32[]', space=smem, size = 0x4, offset = 0x4, fixed_abs, tag = 'smem constant byte address 0x4 - core index']
  #allocation1 [shape = 'u32[144,128]{1,0:T(1,128)}', space=vmem, size = 0x12000, scoped, tag = 'internal scratch']
  %s0 = inlined_call_operand.vmem [shape: bf16[16,72], index: 0, kind: input, shape index: {}]
  %s1 = inlined_call_operand.vmem [shape: bf16[72,128], index: 1, kind: input, shape index: {}]
  %s2 = inlined_call_operand.vmem [shape: f32[16,128], index: 2, kind: output, shape index: {}]
  %s3 = sld [smem:[#allocation0]]
  $region18: #{forward.18} parent=0
    _
  %s5 = ssub.s32 1, %s3
  %s6 = scalar_select 0, %s5, %s3
  // Predicated region
  $region2: #{forward.18} parent=0 // pred_check
    _
  $region3: #{forward.18} parent=0 // pred_check_branch
    %8 = sbr.rel (0) target = $region5
  $region4: #{forward.18} parent=0 // pred_region
    _
  $region5: #{forward.18} parent=0 // pred_fallthru
    _
  // Predicated region
  $region6: #{forward.18} parent=0 // pred_check
    _
  $region7: #{forward.18} parent=0 // pred_check_branch
    %10 = sbr.rel (0) target = $region9
  $region8: #{forward.18} parent=0 // pred_region
    _
  $region9: #{forward.18} parent=0 // pred_fallthru
    _
  %v12 = vld [vmem:[%s0] sm:$0xf]
  %v13 = vld [vmem:[%s0 + $0x4] sm:$0xf]
  %v14 = vld [vmem:[%s1] sm:$0xf]
  %v15 = vld [vmem:[%s1 + $0x4] sm:$0xf]
  %v16 = vld [vmem:[%s1 + $0x8] sm:$0xf]
  %v17 = vld [vmem:[%s1 + $0xc] sm:$0xf]
  %v18 = vld [vmem:[%s1 + $0x10] sm:$0xf]
  %v19 = vld [vmem:[%s1 + $0x14] sm:$0xf]
  %v20 = vld [vmem:[%s1 + $0x18] sm:$0xf]
  %v21 = vld [vmem:[%s1 + $0x1c] sm:$0xf]
  %v22 = vld [vmem:[%s1 + $0x20] sm:$0xf]
  %v25 = vunpack.c.l.b16 %v12
  %v26 = vunpack.c.l.b16 %v13
  %v27 = vpack.c.b16 %v26, %v25
  %v37 = vunpack.c.l.b16 %v14
  %v38 = vunpack.c.l.b16 %v15
  %v39 = vunpack.c.l.b16 %v16
  %v40 = vunpack.c.l.b16 %v17
  %v41 = vunpack.c.l.b16 %v18
  %v42 = vunpack.c.l.b16 %v19
  %v43 = vunpack.c.l.b16 %v20
  %v44 = vunpack.c.l.b16 %v21
  %v45 = vunpack.c.l.b16 %v22
  %v46 = vpack.c.b16 %v38, %v37
  %v47 = vpack.c.b16 %v40, %v39
  %v48 = vpack.c.b16 %v42, %v41
  %v49 = vpack.c.b16 %v44, %v43
  %v50 = vpack.c.b16 %v45, %v45
  %vm55 = vcmask 588800
  %v57 = vsel %vm55, %v27, 0
  %vm59 = vcmask 1043456
  %v61 = vsel %vm59, %v50, 0
  %63 = vmatprep.subr.bf16.mxu0 0
  %64 = vmatpush1.bf16.msra.mxu0 0
  %65 = vmatprep.subr.bf16.mxu0 0
  %66 = vmatpush1.bf16.msra.mxu0 0
  %67 = vmatprep.subr.bf16.mxu0 0
  %68 = vmatpush1.bf16.msra.mxu0 0
  %69 = vmatprep.subr.bf16.mxu0 0
  %70 = vmatpush1.bf16.msra.mxu0 %v61
  %71 = vmatprep.subr.bf16.mxu0 0
  %72 = vmatpush1.bf16.msra.mxu0 %v49
  %73 = vmatprep.subr.bf16.mxu0 0
  %74 = vmatpush1.bf16.msra.mxu0 %v48
  %75 = vmatprep.subr.bf16.mxu0 0
  %76 = vmatpush1.bf16.msra.mxu0 %v47
  %77 = vmatprep.subr.bf16.mxu0 0
  %78 = vmatpush1.bf16.msra.mxu0 %v46
  %79 = vmatprep.subr.bf16.mxu0 0
  %80 = vmatpush2.bf16.msra.mxu0 0
  %81 = vmatprep.subr.bf16.mxu0 0
  %82 = vmatpush2.bf16.msra.mxu0 0
  %83 = vmatprep.subr.bf16.mxu0 0
  %84 = vmatpush2.bf16.msra.mxu0 0
  %85 = vmatprep.subr.bf16.mxu0 0
  %86 = vmatpush2.bf16.msra.mxu0 0
  %87 = vmatprep.subr.bf16.mxu0 0
  %88 = vmatpush2.bf16.msra.mxu0 0
  %89 = vmatprep.subr.bf16.mxu0 0
  %90 = vmatpush2.bf16.msra.mxu0 0
  %91 = vmatprep.subr.bf16.mxu0 0
  %92 = vmatpush2.bf16.msra.mxu0 0
  %93 = vmatprep.subr.bf16.mxu0 0
  %94 = vmatpush2.bf16.msra.mxu0 0
  %95 = vmatprep.mubr.bf16.mxu0 0
  %96 = vmatmul.mubr.bf16.gmra.mxu0 %v57
  %v97 = vpop.f32.mrf.mxu0
  %v98 = vadd.f32 0.0, %v97
  %v99 = vpop.f32.mrf.mxu0
  %v100 = vpop.f32.mrf.mxu0
  %v101 = vadd.f32 0.0, %v100
  %v102 = vpop.f32.mrf.mxu0
  %103 = vdwg.mxu0
  %vm104 = vcmp.ge.f32.partialorder %v98, 0.0
  %vm105 = vcmp.ge.f32.partialorder %v101, 0.0
  %v106 = vmul.f32 %v98, 0.2
  %v107 = vmul.f32 %v101, 0.2
  %v108 = vsel %vm104, %v98, %v106
  %v109 = vsel %vm105, %v101, %v107
  %110 = vst [vmem:[%s2] sm:$0xff] %v108
  %111 = vst [vmem:[%s2 + $0x8] sm:$0xff] %v109
  // Predicated region
  $region10: #{forward.18} parent=0 // pred_check
    _
  $region11: #{forward.18} parent=0 // pred_check_branch
    %113 = sbr.rel (0) target = $region13
  $region12: #{forward.18} parent=0 // pred_region
    _
  $region13: #{forward.18} parent=0 // pred_fallthru
    _
  // Predicated region
  $region14: #{forward.18} parent=0 // pred_check
    _
  $region15: #{forward.18} parent=0 // pred_check_branch
    %115 = sbr.rel (0) target = $region17
  $region16: #{forward.18} parent=0 // pred_region
    _
  $region17: #{forward.18} parent=0 // pred_fallthru
    _

// kernel: forward.19
$region0: #{forward.19}
  #allocation0 [shape = 'u32[]', space=smem, size = 0x4, offset = 0x4, fixed_abs, tag = 'smem constant byte address 0x4 - core index']
  #allocation1 [shape = 'u32[144,128]{1,0:T(1,128)}', space=vmem, size = 0x12000, scoped, tag = 'internal scratch']
  %s0 = inlined_call_operand.vmem [shape: bf16[32,144], index: 0, kind: input, shape index: {}]
  %s1 = inlined_call_operand.vmem [shape: bf16[144,32], index: 1, kind: input, shape index: {}]
  %s2 = inlined_call_operand.vmem [shape: f32[32,32], index: 2, kind: output, shape index: {}]
  %s3 = sld [smem:[#allocation0]]
  $region18: #{forward.19} parent=0
    _
  %s5 = ssub.s32 1, %s3
  %s6 = scalar_select 0, %s5, %s3
  // Predicated region
  $region2: #{forward.19} parent=0 // pred_check
    _
  $region3: #{forward.19} parent=0 // pred_check_branch
    %8 = sbr.rel (0) target = $region5
  $region4: #{forward.19} parent=0 // pred_region
    _
  $region5: #{forward.19} parent=0 // pred_fallthru
    _
  // Predicated region
  $region6: #{forward.19} parent=0 // pred_check
    _
  $region7: #{forward.19} parent=0 // pred_check_branch
    %10 = sbr.rel (0) target = $region9
  $region8: #{forward.19} parent=0 // pred_region
    _
  $region9: #{forward.19} parent=0 // pred_fallthru
    _
  %v12 = vld [vmem:[%s0] sm:$0xff]
  %v13 = vld [vmem:[%s0 + $0x8] sm:$0xff]
  %v14 = vld [vmem:[%s0 + $0x10] sm:$0xff]
  %v15 = vld [vmem:[%s0 + $0x18] sm:$0xff]
  %v16 = vld [vmem:[%s1] sm:$0xf]
  %v17 = vld [vmem:[%s1 + $0x4] sm:$0xf]
  %v18 = vld [vmem:[%s1 + $0x8] sm:$0xf]
  %v19 = vld [vmem:[%s1 + $0xc] sm:$0xf]
  %v20 = vld [vmem:[%s1 + $0x10] sm:$0xf]
  %v21 = vld [vmem:[%s1 + $0x14] sm:$0xf]
  %v22 = vld [vmem:[%s1 + $0x18] sm:$0xf]
  %v23 = vld [vmem:[%s1 + $0x1c] sm:$0xf]
  %v24 = vld [vmem:[%s1 + $0x20] sm:$0xf]
  %v25 = vld [vmem:[%s1 + $0x24] sm:$0xf]
  %v26 = vld [vmem:[%s1 + $0x28] sm:$0xf]
  %v27 = vld [vmem:[%s1 + $0x2c] sm:$0xf]
  %v28 = vld [vmem:[%s1 + $0x30] sm:$0xf]
  %v29 = vld [vmem:[%s1 + $0x34] sm:$0xf]
  %v30 = vld [vmem:[%s1 + $0x38] sm:$0xf]
  %v31 = vld [vmem:[%s1 + $0x3c] sm:$0xf]
  %v32 = vld [vmem:[%s1 + $0x40] sm:$0xf]
  %v33 = vld [vmem:[%s1 + $0x44] sm:$0xf]
  %v38 = vunpack.c.l.b16 %v12
  %v39 = vunpack.c.h.b16 %v12
  %v40 = vunpack.c.l.b16 %v13
  %v41 = vunpack.c.h.b16 %v13
  %v42 = vunpack.c.l.b16 %v14
  %v43 = vunpack.c.h.b16 %v14
  %v44 = vunpack.c.l.b16 %v15
  %v45 = vunpack.c.h.b16 %v15
  %v46 = vpack.c.b16 %v40, %v38
  %v47 = vpack.c.b16 %v41, %v39
  %v48 = vpack.c.b16 %v44, %v42
  %v49 = vpack.c.b16 %v45, %v43
  %v70 = vunpack.c.l.b16 %v16
  %v71 = vunpack.c.l.b16 %v17
  %v72 = vunpack.c.l.b16 %v18
  %v73 = vunpack.c.l.b16 %v19
  %v74 = vunpack.c.l.b16 %v20
  %v75 = vunpack.c.l.b16 %v21
  %v76 = vunpack.c.l.b16 %v22
  %v77 = vunpack.c.l.b16 %v23
  %v78 = vunpack.c.l.b16 %v24
  %v79 = vunpack.c.l.b16 %v25
  %v80 = vunpack.c.l.b16 %v26
  %v81 = vunpack.c.l.b16 %v27
  %v82 = vunpack.c.l.b16 %v28
  %v83 = vunpack.c.l.b16 %v29
  %v84 = vunpack.c.l.b16 %v30
  %v85 = vunpack.c.l.b16 %v31
  %v86 = vunpack.c.l.b16 %v32
  %v87 = vunpack.c.l.b16 %v33
  %v88 = vpack.c.b16 %v71, %v70
  %v89 = vpack.c.b16 %v73, %v72
  %v90 = vpack.c.b16 %v75, %v74
  %v91 = vpack.c.b16 %v77, %v76
  %v92 = vpack.c.b16 %v79, %v78
  %v93 = vpack.c.b16 %v81, %v80
  %v94 = vpack.c.b16 %v83, %v82
  %v95 = vpack.c.b16 %v85, %v84
  %v96 = vpack.c.b16 %v87, %v86
  %vm106 = vcmask 130048
  %v108 = vsel %vm106, %v47, 0
  %v111 = vsel %vm106, %v49, 0
  %113 = vmatprep.subr.bf16.mxu0 0
  %114 = vmatpush1.bf16.msra.mxu0 %v95
  %115 = vmatprep.subr.bf16.mxu0 0
  %116 = vmatpush1.bf16.msra.mxu0 %v94
  %117 = vmatprep.subr.bf16.mxu0 0
  %118 = vmatpush1.bf16.msra.mxu0 %v93
  %119 = vmatprep.subr.bf16.mxu0 0
  %120 = vmatpush1.bf16.msra.mxu0 %v92
  %121 = vmatprep.subr.bf16.mxu0 0
  %122 = vmatpush1.bf16.msra.mxu0 %v91
  %123 = vmatprep.subr.bf16.mxu0 0
  %124 = vmatpush1.bf16.msra.mxu0 %v90
  %125 = vmatprep.subr.bf16.mxu0 0
  %126 = vmatpush1.bf16.msra.mxu0 %v89
  %127 = vmatprep.subr.bf16.mxu0 0
  %128 = vmatpush1.bf16.msra.mxu0 %v88
  %129 = vmatprep.subr.bf16.mxu0 0
  %130 = vmatpush2.bf16.msra.mxu0 0
  %131 = vmatprep.subr.bf16.mxu0 0
  %132 = vmatpush2.bf16.msra.mxu0 0
  %133 = vmatprep.subr.bf16.mxu0 0
  %134 = vmatpush2.bf16.msra.mxu0 0
  %135 = vmatprep.subr.bf16.mxu0 0
  %136 = vmatpush2.bf16.msra.mxu0 0
  %137 = vmatprep.subr.bf16.mxu0 0
  %138 = vmatpush2.bf16.msra.mxu0 0
  %139 = vmatprep.subr.bf16.mxu0 0
  %140 = vmatpush2.bf16.msra.mxu0 0
  %141 = vmatprep.subr.bf16.mxu0 0
  %142 = vmatpush2.bf16.msra.mxu0 0
  %143 = vmatprep.subr.bf16.mxu0 0
  %144 = vmatpush2.bf16.msra.mxu0 %v96
  %145 = vmatprep.mubr.bf16.mxu0 %v108
  %146 = vmatmul.mubr.bf16.gmra.mxu0 %v46
  %v147 = vpop.f32.mrf.mxu0
  %v148 = vadd.f32 0.0, %v147
  %v149 = vpop.f32.mrf.mxu0
  %v150 = vpop.f32.mrf.mxu0
  %v151 = vadd.f32 0.0, %v150
  %v152 = vpop.f32.mrf.mxu0
  %153 = vmatprep.mubr.bf16.mxu0 %v111
  %154 = vmatmul.mubr.bf16.gmra.mxu0 %v48
  %v155 = vpop.f32.mrf.mxu0
  %v156 = vadd.f32 0.0, %v155
  %v157 = vpop.f32.mrf.mxu0
  %v158 = vpop.f32.mrf.mxu0
  %v159 = vadd.f32 0.0, %v158
  %v160 = vpop.f32.mrf.mxu0
  %161 = vdwg.mxu0
  %vm162 = vcmp.ge.f32.partialorder %v148, 0.0
  %vm163 = vcmp.ge.f32.partialorder %v151, 0.0
  %vm164 = vcmp.ge.f32.partialorder %v156, 0.0
  %vm165 = vcmp.ge.f32.partialorder %v159, 0.0
  %v166 = vmul.f32 %v148, 0.2
  %v167 = vmul.f32 %v151, 0.2
  %v168 = vmul.f32 %v156, 0.2
  %v169 = vmul.f32 %v159, 0.2
  %v170 = vsel %vm162, %v148, %v166
  %v171 = vsel %vm163, %v151, %v167
  %v172 = vsel %vm164, %v156, %v168
  %v173 = vsel %vm165, %v159, %v169
  %vm174 = vcmask 261120
  %175 = vst.msk [vmem:[%s2] sm:$0xff] %vm174, %v170
  %176 = vst.msk [vmem:[%s2 + $0x8] sm:$0xff] %vm174, %v171
  %177 = vst.msk [vmem:[%s2 + $0x10] sm:$0xff] %vm174, %v172
  %178 = vst.msk [vmem:[%s2 + $0x18] sm:$0xff] %vm174, %v173
  // Predicated region
  $region10: #{forward.19} parent=0 // pred_check
    _
  $region11: #{forward.19} parent=0 // pred_check_branch
    %180 = sbr.rel (0) target = $region13
  $region12: #{forward.19} parent=0 // pred_region
    _
  $region13: #{forward.19} parent=0 // pred_fallthru
    _
  // Predicated region
  $region14: #{forward.19} parent=0 // pred_check
    _
  $region15: #{forward.19} parent=0 // pred_check_branch
    %182 = sbr.rel (0) target = $region17
  $region16: #{forward.19} parent=0 // pred_region
    _
  $region17: #{forward.19} parent=0 // pred_fallthru
    _

// kernel: forward.20
$region0: #{forward.20}
  #allocation0 [shape = 'u32[]', space=smem, size = 0x4, offset = 0x4, fixed_abs, tag = 'smem constant byte address 0x4 - core index']
  #allocation1 [shape = 'u32[144,128]{1,0:T(1,128)}', space=vmem, size = 0x12000, scoped, tag = 'internal scratch']
  %s0 = inlined_call_operand.vmem [shape: bf16[64,288], index: 0, kind: input, shape index: {}]
  %s1 = inlined_call_operand.vmem [shape: bf16[288,8], index: 1, kind: input, shape index: {}]
  %s2 = inlined_call_operand.vmem [shape: f32[64,8], index: 2, kind: output, shape index: {}]
  %s3 = sld [smem:[#allocation0]]
  $region18: #{forward.20} parent=0
    _
  %s5 = ssub.s32 1, %s3
  %s6 = scalar_select 0, %s5, %s3
  // Predicated region
  $region2: #{forward.20} parent=0 // pred_check
    _
  $region3: #{forward.20} parent=0 // pred_check_branch
    %8 = sbr.rel (0) target = $region5
  $region4: #{forward.20} parent=0 // pred_region
    _
  $region5: #{forward.20} parent=0 // pred_fallthru
    _
  // Predicated region
  $region6: #{forward.20} parent=0 // pred_check
    _
  $region7: #{forward.20} parent=0 // pred_check_branch
    %10 = sbr.rel (0) target = $region9
  $region8: #{forward.20} parent=0 // pred_region
    _
  $region9: #{forward.20} parent=0 // pred_fallthru
    _
  %v12 = vld [vmem:[%s0] sm:$0xff]
  %v13 = vld [vmem:[%s0 + $0x8] sm:$0xf]
  %v14 = vld [vmem:[%s0 + $0xc] sm:$0xff]
  %v15 = vld [vmem:[%s0 + $0x14] sm:$0xf]
  %v16 = vld [vmem:[%s0 + $0x18] sm:$0xff]
  %v17 = vld [vmem:[%s0 + $0x20] sm:$0xf]
  %v18 = vld [vmem:[%s0 + $0x24] sm:$0xff]
  %v19 = vld [vmem:[%s0 + $0x2c] sm:$0xf]
  %v20 = vld [vmem:[%s0 + $0x30] sm:$0xff]
  %v21 = vld [vmem:[%s0 + $0x38] sm:$0xf]
  %v22 = vld [vmem:[%s0 + $0x3c] sm:$0xff]
  %v23 = vld [vmem:[%s0 + $0x44] sm:$0xf]
  %v24 = vld [vmem:[%s0 + $0x48] sm:$0xff]
  %v25 = vld [vmem:[%s0 + $0x50] sm:$0xf]
  %v26 = vld [vmem:[%s0 + $0x54] sm:$0xff]
  %v27 = vld [vmem:[%s0 + $0x5c] sm:$0xf]
  %v28 = vld [vmem:[%s1] sm:$0xf]
  %v29 = vld [vmem:[%s1 + $0x4] sm:$0xf]
  %v30 = vld [vmem:[%s1 + $0x8] sm:$0xf]
  %v31 = vld [vmem:[%s1 + $0xc] sm:$0xf]
  %v32 = vld [vmem:[%s1 + $0x10] sm:$0xf]
  %v33 = vld [vmem:[%s1 + $0x14] sm:$0xf]
  %v34 = vld [vmem:[%s1 + $0x18] sm:$0xf]
  %v35 = vld [vmem:[%s1 + $0x1c] sm:$0xf]
  %v36 = vld [vmem:[%s1 + $0x20] sm:$0xf]
  %v37 = vld [vmem:[%s1 + $0x24] sm:$0xf]
  %v38 = vld [vmem:[%s1 + $0x28] sm:$0xf]
  %v39 = vld [vmem:[%s1 + $0x2c] sm:$0xf]
  %v40 = vld [vmem:[%s1 + $0x30] sm:$0xf]
  %v41 = vld [vmem:[%s1 + $0x34] sm:$0xf]
  %v42 = vld [vmem:[%s1 + $0x38] sm:$0xf]
  %v43 = vld [vmem:[%s1 + $0x3c] sm:$0xf]
  %v44 = vld [vmem:[%s1 + $0x40] sm:$0xf]
  %v45 = vld [vmem:[%s1 + $0x44] sm:$0xf]
  %v46 = vld [vmem:[%s1 + $0x48] sm:$0xf]
  %v47 = vld [vmem:[%s1 + $0x4c] sm:$0xf]
  %v48 = vld [vmem:[%s1 + $0x50] sm:$0xf]
  %v49 = vld [vmem:[%s1 + $0x54] sm:$0xf]
  %v50 = vld [vmem:[%s1 + $0x58] sm:$0xf]
  %v51 = vld [vmem:[%s1 + $0x5c] sm:$0xf]
  %v52 = vld [vmem:[%s1 + $0x60] sm:$0xf]
  %v53 = vld [vmem:[%s1 + $0x64] sm:$0xf]
  %v54 = vld [vmem:[%s1 + $0x68] sm:$0xf]
  %v55 = vld [vmem:[%s1 + $0x6c] sm:$0xf]
  %v56 = vld [vmem:[%s1 + $0x70] sm:$0xf]
  %v57 = vld [vmem:[%s1 + $0x74] sm:$0xf]
  %v58 = vld [vmem:[%s1 + $0x78] sm:$0xf]
  %v59 = vld [vmem:[%s1 + $0x7c] sm:$0xf]
  %v60 = vld [vmem:[%s1 + $0x80] sm:$0xf]
  %v61 = vld [vmem:[%s1 + $0x84] sm:$0xf]
  %v62 = vld [vmem:[%s1 + $0x88] sm:$0xf]
  %v63 = vld [vmem:[%s1 + $0x8c] sm:$0xf]
  %v80 = vunpack.c.l.b16 %v12
  %v81 = vunpack.c.h.b16 %v12
  %v82 = vunpack.c.l.b16 %v13
  %v83 = vunpack.c.l.b16 %v14
  %v84 = vunpack.c.h.b16 %v14
  %v85 = vunpack.c.l.b16 %v15
  %v86 = vunpack.c.l.b16 %v16
  %v87 = vunpack.c.h.b16 %v16
  %v88 = vunpack.c.l.b16 %v17
  %v89 = vunpack.c.l.b16 %v18
  %v90 = vunpack.c.h.b16 %v18
  %v91 = vunpack.c.l.b16 %v19
  %v92 = vunpack.c.l.b16 %v20
  %v93 = vunpack.c.h.b16 %v20
  %v94 = vunpack.c.l.b16 %v21
  %v95 = vunpack.c.l.b16 %v22
  %v96 = vunpack.c.h.b16 %v22
  %v97 = vunpack.c.l.b16 %v23
  %v98 = vunpack.c.l.b16 %v24
  %v99 = vunpack.c.h.b16 %v24
  %v100 = vunpack.c.l.b16 %v25
  %v101 = vunpack.c.l.b16 %v26
  %v102 = vunpack.c.h.b16 %v26
  %v103 = vunpack.c.l.b16 %v27
  %v104 = vpack.c.b16 %v83, %v80
  %v105 = vpack.c.b16 %v84, %v81
  %v106 = vpack.c.b16 %v85, %v82
  %v107 = vpack.c.b16 %v89, %v86
  %v108 = vpack.c.b16 %v90, %v87
  %v109 = vpack.c.b16 %v91, %v88
  %v110 = vpack.c.b16 %v95, %v92
  %v111 = vpack.c.b16 %v96, %v93
  %v112 = vpack.c.b16 %v97, %v94
  %v113 = vpack.c.b16 %v101, %v98
  %v114 = vpack.c.b16 %v102, %v99
  %v115 = vpack.c.b16 %v103, %v100
  %v160 = vunpack.c.l.b16 %v28
  %v161 = vunpack.c.l.b16 %v29
  %v162 = vunpack.c.l.b16 %v30
  %v163 = vunpack.c.l.b16 %v31
  %v164 = vunpack.c.l.b16 %v32
  %v165 = vunpack.c.l.b16 %v33
  %v166 = vunpack.c.l.b16 %v34
  %v167 = vunpack.c.l.b16 %v35
  %v168 = vunpack.c.l.b16 %v36
  %v169 = vunpack.c.l.b16 %v37
  %v170 = vunpack.c.l.b16 %v38
  %v171 = vunpack.c.l.b16 %v39
  %v172 = vunpack.c.l.b16 %v40
  %v173 = vunpack.c.l.b16 %v41
  %v174 = vunpack.c.l.b16 %v42
  %v175 = vunpack.c.l.b16 %v43
  %v176 = vunpack.c.l.b16 %v44
  %v177 = vunpack.c.l.b16 %v45
  %v178 = vunpack.c.l.b16 %v46
  %v179 = vunpack.c.l.b16 %v47
  %v180 = vunpack.c.l.b16 %v48
  %v181 = vunpack.c.l.b16 %v49
  %v182 = vunpack.c.l.b16 %v50
  %v183 = vunpack.c.l.b16 %v51
  %v184 = vunpack.c.l.b16 %v52
  %v185 = vunpack.c.l.b16 %v53
  %v186 = vunpack.c.l.b16 %v54
  %v187 = vunpack.c.l.b16 %v55
  %v188 = vunpack.c.l.b16 %v56
  %v189 = vunpack.c.l.b16 %v57
  %v190 = vunpack.c.l.b16 %v58
  %v191 = vunpack.c.l.b16 %v59
  %v192 = vunpack.c.l.b16 %v60
  %v193 = vunpack.c.l.b16 %v61
  %v194 = vunpack.c.l.b16 %v62
  %v195 = vunpack.c.l.b16 %v63
  %v196 = vpack.c.b16 %v161, %v160
  %v197 = vpack.c.b16 %v163, %v162
  %v198 = vpack.c.b16 %v165, %v164
  %v199 = vpack.c.b16 %v167, %v166
  %v200 = vpack.c.b16 %v169, %v168
  %v201 = vpack.c.b16 %v171, %v170
  %v202 = vpack.c.b16 %v173, %v172
  %v203 = vpack.c.b16 %v175, %v174
  %v204 = vpack.c.b16 %v177, %v176
  %v205 = vpack.c.b16 %v179, %v178
  %v206 = vpack.c.b16 %v181, %v180
  %v207 = vpack.c.b16 %v183, %v182
  %v208 = vpack.c.b16 %v185, %v184
  %v209 = vpack.c.b16 %v187, %v186
  %v210 = vpack.c.b16 %v189, %v188
  %v211 = vpack.c.b16 %v191, %v190
  %v212 = vpack.c.b16 %v193, %v192
  %v213 = vpack.c.b16 %v195, %v194
  %vm232 = vcmask 261120
  %v234 = vsel %vm232, %v106, 0
  %v237 = vsel %vm232, %v109, 0
  %v240 = vsel %vm232, %v112, 0
  %v243 = vsel %vm232, %v115, 0
  %245 = vmatprep.subr.bf16.mxu0 0
  %246 = vmatpush1.bf16.msra.mxu0 %v203
  %247 = vmatprep.subr.bf16.mxu0 0
  %248 = vmatpush1.bf16.msra.mxu0 %v202
  %249 = vmatprep.subr.bf16.mxu0 0
  %250 = vmatpush1.bf16.msra.mxu0 %v201
  %251 = vmatprep.subr.bf16.mxu0 0
  %252 = vmatpush1.bf16.msra.mxu0 %v200
  %253 = vmatprep.subr.bf16.mxu0 0
  %254 = vmatpush1.bf16.msra.mxu0 %v199
  %255 = vmatprep.subr.bf16.mxu0 0
  %256 = vmatpush1.bf16.msra.mxu0 %v198
  %257 = vmatprep.subr.bf16.mxu0 0
  %258 = vmatpush1.bf16.msra.mxu0 %v197
  %259 = vmatprep.subr.bf16.mxu0 0
  %260 = vmatpush1.bf16.msra.mxu0 %v196
  %261 = vmatprep.subr.bf16.mxu0 0
  %262 = vmatpush2.bf16.msra.mxu0 %v211
  %263 = vmatprep.subr.bf16.mxu0 0
  %264 = vmatpush2.bf16.msra.mxu0 %v210
  %265 = vmatprep.subr.bf16.mxu0 0
  %266 = vmatpush2.bf16.msra.mxu0 %v209
  %267 = vmatprep.subr.bf16.mxu0 0
  %268 = vmatpush2.bf16.msra.mxu0 %v208
  %269 = vmatprep.subr.bf16.mxu0 0
  %270 = vmatpush2.bf16.msra.mxu0 %v207
  %271 = vmatprep.subr.bf16.mxu0 0
  %272 = vmatpush2.bf16.msra.mxu0 %v206
  %273 = vmatprep.subr.bf16.mxu0 0
  %274 = vmatpush2.bf16.msra.mxu0 %v205
  %275 = vmatprep.subr.bf16.mxu0 0
  %276 = vmatpush2.bf16.msra.mxu0 %v204
  %277 = vmatprep.mubr.bf16.mxu0 %v105
  %278 = vmatmul.mubr.bf16.gmra.mxu0 %v104
  %v279 = vpop.f32.mrf.mxu0
  %v280 = vadd.f32 0.0, %v279
  %v281 = vpop.f32.mrf.mxu0
  %v282 = vpop.f32.mrf.mxu0
  %v283 = vadd.f32 0.0, %v282
  %v284 = vpop.f32.mrf.mxu0
  %285 = vmatprep.mubr.bf16.mxu0 %v108
  %286 = vmatmul.mubr.bf16.gmra.mxu0 %v107
  %v287 = vpop.f32.mrf.mxu0
  %v288 = vadd.f32 0.0, %v287
  %v289 = vpop.f32.mrf.mxu0
  %v290 = vpop.f32.mrf.mxu0
  %v291 = vadd.f32 0.0, %v290
  %v292 = vpop.f32.mrf.mxu0
  %293 = vmatprep.mubr.bf16.mxu0 %v111
  %294 = vmatmul.mubr.bf16.gmra.mxu0 %v110
  %v295 = vpop.f32.mrf.mxu0
  %v296 = vadd.f32 0.0, %v295
  %v297 = vpop.f32.mrf.mxu0
  %v298 = vpop.f32.mrf.mxu0
  %v299 = vadd.f32 0.0, %v298
  %v300 = vpop.f32.mrf.mxu0
  %301 = vmatprep.mubr.bf16.mxu0 %v114
  %302 = vmatmul.mubr.bf16.gmra.mxu0 %v113
  %v303 = vpop.f32.mrf.mxu0
  %v304 = vadd.f32 0.0, %v303
  %v305 = vpop.f32.mrf.mxu0
  %v306 = vpop.f32.mrf.mxu0
  %v307 = vadd.f32 0.0, %v306
  %v308 = vpop.f32.mrf.mxu0
  %309 = vdwg.mxu0
  %310 = vmatprep.subr.bf16.mxu0 0
  %311 = vmatpush1.bf16.msra.mxu0 0
  %312 = vmatprep.subr.bf16.mxu0 0
  %313 = vmatpush1.bf16.msra.mxu0 0
  %314 = vmatprep.subr.bf16.mxu0 0
  %315 = vmatpush1.bf16.msra.mxu0 0
  %316 = vmatprep.subr.bf16.mxu0 0
  %317 = vmatpush1.bf16.msra.mxu0 0
  %318 = vmatprep.subr.bf16.mxu0 0
  %319 = vmatpush1.bf16.msra.mxu0 0
  %320 = vmatprep.subr.bf16.mxu0 0
  %321 = vmatpush1.bf16.msra.mxu0 0
  %322 = vmatprep.subr.bf16.mxu0 0
  %323 = vmatpush1.bf16.msra.mxu0 %v213
  %324 = vmatprep.subr.bf16.mxu0 0
  %325 = vmatpush1.bf16.msra.mxu0 %v212
  %326 = vmatprep.subr.bf16.mxu0 0
  %327 = vmatpush2.bf16.msra.mxu0 0
  %328 = vmatprep.subr.bf16.mxu0 0
  %329 = vmatpush2.bf16.msra.mxu0 0
  %330 = vmatprep.subr.bf16.mxu0 0
  %331 = vmatpush2.bf16.msra.mxu0 0
  %332 = vmatprep.subr.bf16.mxu0 0
  %333 = vmatpush2.bf16.msra.mxu0 0
  %334 = vmatprep.subr.bf16.mxu0 0
  %335 = vmatpush2.bf16.msra.mxu0 0
  %336 = vmatprep.subr.bf16.mxu0 0
  %337 = vmatpush2.bf16.msra.mxu0 0
  %338 = vmatprep.subr.bf16.mxu0 0
  %339 = vmatpush2.bf16.msra.mxu0 0
  %340 = vmatprep.subr.bf16.mxu0 0
  %341 = vmatpush2.bf16.msra.mxu0 0
  %342 = vmatprep.mubr.bf16.mxu0 0
  %343 = vmatmul.mubr.bf16.gmra.mxu0 %v234
  %v344 = vpop.f32.mrf.mxu0
  %v345 = vadd.f32 %v280, %v344
  %v346 = vpop.f32.mrf.mxu0
  %v347 = vpop.f32.mrf.mxu0
  %v348 = vadd.f32 %v283, %v347
  %v349 = vpop.f32.mrf.mxu0
  %350 = vmatprep.mubr.bf16.mxu0 0
  %351 = vmatmul.mubr.bf16.gmra.mxu0 %v237
  %v352 = vpop.f32.mrf.mxu0
  %v353 = vadd.f32 %v288, %v352
  %v354 = vpop.f32.mrf.mxu0
  %v355 = vpop.f32.mrf.mxu0
  %v356 = vadd.f32 %v291, %v355
  %v357 = vpop.f32.mrf.mxu0
  %358 = vmatprep.mubr.bf16.mxu0 0
  %359 = vmatmul.mubr.bf16.gmra.mxu0 %v240
  %v360 = vpop.f32.mrf.mxu0
  %v361 = vadd.f32 %v296, %v360
  %v362 = vpop.f32.mrf.mxu0
  %v363 = vpop.f32.mrf.mxu0
  %v364 = vadd.f32 %v299, %v363
  %v365 = vpop.f32.mrf.mxu0
  %366 = vmatprep.mubr.bf16.mxu0 0
  %367 = vmatmul.mubr.bf16.gmra.mxu0 %v243
  %v368 = vpop.f32.mrf.mxu0
  %v369 = vadd.f32 %v304, %v368
  %v370 = vpop.f32.mrf.mxu0
  %v371 = vpop.f32.mrf.mxu0
  %v372 = vadd.f32 %v307, %v371
  %v373 = vpop.f32.mrf.mxu0
  %374 = vdwg.mxu0
  %vm375 = vcmp.ge.f32.partialorder %v345, 0.0
  %vm376 = vcmp.ge.f32.partialorder %v348, 0.0
  %vm377 = vcmp.ge.f32.partialorder %v353, 0.0
  %vm378 = vcmp.ge.f32.partialorder %v356, 0.0
  %vm379 = vcmp.ge.f32.partialorder %v361, 0.0
  %vm380 = vcmp.ge.f32.partialorder %v364, 0.0
  %vm381 = vcmp.ge.f32.partialorder %v369, 0.0
  %vm382 = vcmp.ge.f32.partialorder %v372, 0.0
  %v383 = vmul.f32 %v345, 0.2
  %v384 = vmul.f32 %v348, 0.2
  %v385 = vmul.f32 %v353, 0.2
  %v386 = vmul.f32 %v356, 0.2
  %v387 = vmul.f32 %v361, 0.2
  %v388 = vmul.f32 %v364, 0.2
  %v389 = vmul.f32 %v369, 0.2
  %v390 = vmul.f32 %v372, 0.2
  %v391 = vsel %vm375, %v345, %v383
  %v392 = vsel %vm376, %v348, %v384
  %v393 = vsel %vm377, %v353, %v385
  %v394 = vsel %vm378, %v356, %v386
  %v395 = vsel %vm379, %v361, %v387
  %v396 = vsel %vm380, %v364, %v388
  %v397 = vsel %vm381, %v369, %v389
  %v398 = vsel %vm382, %v372, %v390
  %vm399 = vcmask 64512
  %400 = vst.msk [vmem:[%s2] sm:$0xff] %vm399, %v391
  %401 = vst.msk [vmem:[%s2 + $0x8] sm:$0xff] %vm399, %v392
  %402 = vst.msk [vmem:[%s2 + $0x10] sm:$0xff] %vm399, %v393
  %403 = vst.msk [vmem:[%s2 + $0x18] sm:$0xff] %vm399, %v394
  %404 = vst.msk [vmem:[%s2 + $0x20] sm:$0xff] %vm399, %v395
  %405 = vst.msk [vmem:[%s2 + $0x28] sm:$0xff] %vm399, %v396
  %406 = vst.msk [vmem:[%s2 + $0x30] sm:$0xff] %vm399, %v397
  %407 = vst.msk [vmem:[%s2 + $0x38] sm:$0xff] %vm399, %v398
  // Predicated region
  $region10: #{forward.20} parent=0 // pred_check
    _
  $region11: #{forward.20} parent=0 // pred_check_branch
    %409 = sbr.rel (0) target = $region13
  $region12: #{forward.20} parent=0 // pred_region
    _
  $region13: #{forward.20} parent=0 // pred_fallthru
    _
  // Predicated region
  $region14: #{forward.20} parent=0 // pred_check
    _
  $region15: #{forward.20} parent=0 // pred_check_branch
    %411 = sbr.rel (0) target = $region17
  $region16: #{forward.20} parent=0 // pred_region
    _
  $region17: #{forward.20} parent=0 // pred_fallthru
    _

// kernel: forward.21
$region0: #{forward.21}
  #allocation0 [shape = 'u32[]', space=smem, size = 0x4, offset = 0x4, fixed_abs, tag = 'smem constant byte address 0x4 - core index']
  #allocation1 [shape = 'u32[144,128]{1,0:T(1,128)}', space=vmem, size = 0x12000, scoped, tag = 'internal scratch']
  %s0 = inlined_call_operand.vmem [shape: bf16[32,64], index: 0, kind: input, shape index: {}]
  %s1 = inlined_call_operand.vmem [shape: bf16[64,32], index: 1, kind: input, shape index: {}]
  %s2 = inlined_call_operand.vmem [shape: f32[32,32], index: 2, kind: output, shape index: {}]
  %s3 = sld [smem:[#allocation0]]
  $region18: #{forward.21} parent=0
    _
  %s5 = ssub.s32 1, %s3
  %s6 = scalar_select 0, %s5, %s3
  // Predicated region
  $region2: #{forward.21} parent=0 // pred_check
    _
  $region3: #{forward.21} parent=0 // pred_check_branch
    %8 = sbr.rel (0) target = $region5
  $region4: #{forward.21} parent=0 // pred_region
    _
  $region5: #{forward.21} parent=0 // pred_fallthru
    _
  // Predicated region
  $region6: #{forward.21} parent=0 // pred_check
    _
  $region7: #{forward.21} parent=0 // pred_check_branch
    %10 = sbr.rel (0) target = $region9
  $region8: #{forward.21} parent=0 // pred_region
    _
  $region9: #{forward.21} parent=0 // pred_fallthru
    _
  %v12 = vld [vmem:[%s0] sm:$0xf]
  %v13 = vld [vmem:[%s0 + $0x4] sm:$0xf]
  %v14 = vld [vmem:[%s0 + $0x8] sm:$0xf]
  %v15 = vld [vmem:[%s0 + $0xc] sm:$0xf]
  %v16 = vld [vmem:[%s1] sm:$0xf]
  %v17 = vld [vmem:[%s1 + $0x4] sm:$0xf]
  %v18 = vld [vmem:[%s1 + $0x8] sm:$0xf]
  %v19 = vld [vmem:[%s1 + $0xc] sm:$0xf]
  %v20 = vld [vmem:[%s1 + $0x10] sm:$0xf]
  %v21 = vld [vmem:[%s1 + $0x14] sm:$0xf]
  %v22 = vld [vmem:[%s1 + $0x18] sm:$0xf]
  %v23 = vld [vmem:[%s1 + $0x1c] sm:$0xf]
  %v28 = vunpack.c.l.b16 %v12
  %v29 = vunpack.c.l.b16 %v13
  %v30 = vunpack.c.l.b16 %v14
  %v31 = vunpack.c.l.b16 %v15
  %v32 = vpack.c.b16 %v29, %v28
  %v33 = vpack.c.b16 %v31, %v30
  %v42 = vunpack.c.l.b16 %v16
  %v43 = vunpack.c.l.b16 %v17
  %v44 = vunpack.c.l.b16 %v18
  %v45 = vunpack.c.l.b16 %v19
  %v46 = vunpack.c.l.b16 %v20
  %v47 = vunpack.c.l.b16 %v21
  %v48 = vunpack.c.l.b16 %v22
  %v49 = vunpack.c.l.b16 %v23
  %v50 = vpack.c.b16 %v43, %v42
  %v51 = vpack.c.b16 %v45, %v44
  %v52 = vpack.c.b16 %v47, %v46
  %v53 = vpack.c.b16 %v49, %v48
  %vm58 = vcmask 523264
  %v60 = vsel %vm58, %v32, 0
  %v63 = vsel %vm58, %v33, 0
  %65 = vmatprep.subr.bf16.mxu0 0
  %66 = vmatpush1.bf16.msra.mxu0 0
  %67 = vmatprep.subr.bf16.mxu0 0
  %68 = vmatpush1.bf16.msra.mxu0 0
  %69 = vmatprep.subr.bf16.mxu0 0
  %70 = vmatpush1.bf16.msra.mxu0 0
  %71 = vmatprep.subr.bf16.mxu0 0
  %72 = vmatpush1.bf16.msra.mxu0 0
  %73 = vmatprep.subr.bf16.mxu0 0
  %74 = vmatpush1.bf16.msra.mxu0 %v53
  %75 = vmatprep.subr.bf16.mxu0 0
  %76 = vmatpush1.bf16.msra.mxu0 %v52
  %77 = vmatprep.subr.bf16.mxu0 0
  %78 = vmatpush1.bf16.msra.mxu0 %v51
  %79 = vmatprep.subr.bf16.mxu0 0
  %80 = vmatpush1.bf16.msra.mxu0 %v50
  %81 = vmatprep.subr.bf16.mxu0 0
  %82 = vmatpush2.bf16.msra.mxu0 0
  %83 = vmatprep.subr.bf16.mxu0 0
  %84 = vmatpush2.bf16.msra.mxu0 0
  %85 = vmatprep.subr.bf16.mxu0 0
  %86 = vmatpush2.bf16.msra.mxu0 0
  %87 = vmatprep.subr.bf16.mxu0 0
  %88 = vmatpush2.bf16.msra.mxu0 0
  %89 = vmatprep.subr.bf16.mxu0 0
  %90 = vmatpush2.bf16.msra.mxu0 0
  %91 = vmatprep.subr.bf16.mxu0 0
  %92 = vmatpush2.bf16.msra.mxu0 0
  %93 = vmatprep.subr.bf16.mxu0 0
  %94 = vmatpush2.bf16.msra.mxu0 0
  %95 = vmatprep.subr.bf16.mxu0 0
  %96 = vmatpush2.bf16.msra.mxu0 0
  %97 = vmatprep.mubr.bf16.mxu0 0
  %98 = vmatmul.mubr.bf16.gmra.mxu0 %v60
  %v99 = vpop.f32.mrf.mxu0
  %v100 = vadd.f32 0.0, %v99
  %v101 = vpop.f32.mrf.mxu0
  %v102 = vpop.f32.mrf.mxu0
  %v103 = vadd.f32 0.0, %v102
  %v104 = vpop.f32.mrf.mxu0
  %105 = vmatprep.mubr.bf16.mxu0 0
  %106 = vmatmul.mubr.bf16.gmra.mxu0 %v63
  %v107 = vpop.f32.mrf.mxu0
  %v108 = vadd.f32 0.0, %v107
  %v109 = vpop.f32.mrf.mxu0
  %v110 = vpop.f32.mrf.mxu0
  %v111 = vadd.f32 0.0, %v110
  %v112 = vpop.f32.mrf.mxu0
  %113 = vdwg.mxu0
  %vm114 = vcmp.ge.f32.partialorder %v100, 0.0
  %vm115 = vcmp.ge.f32.partialorder %v103, 0.0
  %vm116 = vcmp.ge.f32.partialorder %v108, 0.0
  %vm117 = vcmp.ge.f32.partialorder %v111, 0.0
  %v118 = vmul.f32 %v100, 0.2
  %v119 = vmul.f32 %v103, 0.2
  %v120 = vmul.f32 %v108, 0.2
  %v121 = vmul.f32 %v111, 0.2
  %v122 = vsel %vm114, %v100, %v118
  %v123 = vsel %vm115, %v103, %v119
  %v124 = vsel %vm116, %v108, %v120
  %v125 = vsel %vm117, %v111, %v121
  %vm126 = vcmask 261120
  %127 = vst.msk [vmem:[%s2] sm:$0xff] %vm126, %v122
  %128 = vst.msk [vmem:[%s2 + $0x8] sm:$0xff] %vm126, %v123
  %129 = vst.msk [vmem:[%s2 + $0x10] sm:$0xff] %vm126, %v124
  %130 = vst.msk [vmem:[%s2 + $0x18] sm:$0xff] %vm126, %v125
  // Predicated region
  $region10: #{forward.21} parent=0 // pred_check
    _
  $region11: #{forward.21} parent=0 // pred_check_branch
    %132 = sbr.rel (0) target = $region13
  $region12: #{forward.21} parent=0 // pred_region
    _
  $region13: #{forward.21} parent=0 // pred_fallthru
    _
  // Predicated region
  $region14: #{forward.21} parent=0 // pred_check
    _
  $region15: #{forward.21} parent=0 // pred_check_branch
    %134 = sbr.rel (0) target = $region17
  $region16: #{forward.21} parent=0 // pred_region
    _
  $region17: #{forward.21} parent=0 // pred_fallthru
    _

// kernel: forward.22
$region0: #{forward.22}
  #allocation0 [shape = 'u32[]', space=smem, size = 0x4, offset = 0x4, fixed_abs, tag = 'smem constant byte address 0x4 - core index']
  #allocation1 [shape = 'u32[144,128]{1,0:T(1,128)}', space=vmem, size = 0x12000, scoped, tag = 'internal scratch']
  %s0 = inlined_call_operand.vmem [shape: bf16[56,32], index: 0, kind: input, shape index: {}]
  %s1 = inlined_call_operand.vmem [shape: bf16[32,32], index: 1, kind: input, shape index: {}]
  %s2 = inlined_call_operand.vmem [shape: f32[56,1], index: 2, kind: input, shape index: {}]
  %s3 = inlined_call_operand.vmem [shape: f32[56,32], index: 3, kind: output, shape index: {}]
  %s4 = sld [smem:[#allocation0]]
  $region22: #{forward.22} parent=0
    _
  %s6 = ssub.s32 1, %s4
  %s7 = scalar_select 0, %s6, %s4
  // Predicated region
  $region2: #{forward.22} parent=0 // pred_check
    _
  $region3: #{forward.22} parent=0 // pred_check_branch
    %9 = sbr.rel (0) target = $region5
  $region4: #{forward.22} parent=0 // pred_region
    _
  $region5: #{forward.22} parent=0 // pred_fallthru
    _
  // Predicated region
  $region6: #{forward.22} parent=0 // pred_check
    _
  $region7: #{forward.22} parent=0 // pred_check_branch
    %11 = sbr.rel (0) target = $region9
  $region8: #{forward.22} parent=0 // pred_region
    _
  $region9: #{forward.22} parent=0 // pred_fallthru
    _
  // Predicated region
  $region10: #{forward.22} parent=0 // pred_check
    _
  $region11: #{forward.22} parent=0 // pred_check_branch
    %13 = sbr.rel (0) target = $region13
  $region12: #{forward.22} parent=0 // pred_region
    _
  $region13: #{forward.22} parent=0 // pred_fallthru
    _
  %v15 = vld [vmem:[%s0] sm:$0xf]
  %v16 = vld [vmem:[%s0 + $0x4] sm:$0xf]
  %v17 = vld [vmem:[%s0 + $0x8] sm:$0xf]
  %v18 = vld [vmem:[%s0 + $0xc] sm:$0xf]
  %v19 = vld [vmem:[%s0 + $0x10] sm:$0xf]
  %v20 = vld [vmem:[%s0 + $0x14] sm:$0xf]
  %v21 = vld [vmem:[%s0 + $0x18] sm:$0xf]
  %v22 = vld [vmem:[%s1] sm:$0xf]
  %v23 = vld [vmem:[%s1 + $0x4] sm:$0xf]
  %v24 = vld [vmem:[%s1 + $0x8] sm:$0xf]
  %v25 = vld [vmem:[%s1 + $0xc] sm:$0xf]
  %v26 = vld [vmem:[%s2] sm:$0xff]
  %v27 = vld [vmem:[%s2 + $0x8] sm:$0xff]
  %v28 = vld [vmem:[%s2 + $0x10] sm:$0xff]
  %v29 = vld [vmem:[%s2 + $0x18] sm:$0xff]
  %v30 = vld [vmem:[%s2 + $0x20] sm:$0xff]
  %v31 = vld [vmem:[%s2 + $0x28] sm:$0xff]
  %v32 = vld [vmem:[%s2 + $0x30] sm:$0xff]
  %34 = vset.pattern.permute.xlu0 0
  %35 = vperm.xlu0 %34, %v26
  %v36 = vpop.permute.xlu0 %35
  %39 = vset.pattern.permute.xlu0 0
  %40 = vperm.xlu0 %39, %v27
  %v41 = vpop.permute.xlu0 %40
  %44 = vset.pattern.permute.xlu0 0
  %45 = vperm.xlu0 %44, %v28
  %v46 = vpop.permute.xlu0 %45
  %49 = vset.pattern.permute.xlu0 0
  %50 = vperm.xlu0 %49, %v29
  %v51 = vpop.permute.xlu0 %50
  %54 = vset.pattern.permute.xlu0 0
  %55 = vperm.xlu0 %54, %v30
  %v56 = vpop.permute.xlu0 %55
  %59 = vset.pattern.permute.xlu0 0
  %60 = vperm.xlu0 %59, %v31
  %v61 = vpop.permute.xlu0 %60
  %64 = vset.pattern.permute.xlu0 0
  %65 = vperm.xlu0 %64, %v32
  %v66 = vpop.permute.xlu0 %65
  %v75 = vunpack.c.l.b16 %v15
  %v76 = vunpack.c.l.b16 %v16
  %v77 = vunpack.c.l.b16 %v17
  %v78 = vunpack.c.l.b16 %v18
  %v79 = vunpack.c.l.b16 %v19
  %v80 = vunpack.c.l.b16 %v20
  %v81 = vunpack.c.l.b16 %v21
  %v82 = vpack.c.b16 %v76, %v75
  %v83 = vpack.c.b16 %v78, %v77
  %v84 = vpack.c.b16 %v80, %v79
  %v85 = vpack.c.b16 %v81, %v81
  %v90 = vunpack.c.l.b16 %v22
  %v91 = vunpack.c.l.b16 %v23
  %v92 = vunpack.c.l.b16 %v24
  %v93 = vunpack.c.l.b16 %v25
  %v94 = vpack.c.b16 %v91, %v90
  %v95 = vpack.c.b16 %v93, %v92
  %vm98 = vcmask 261120
  %v100 = vsel %vm98, %v82, 0
  %v103 = vsel %vm98, %v83, 0
  %v106 = vsel %vm98, %v84, 0
  %v109 = vsel %vm98, %v85, 0
  %111 = vmatprep.subr.bf16.mxu0 0
  %112 = vmatpush1.bf16.msra.mxu0 0
  %113 = vmatprep.subr.bf16.mxu0 0
  %114 = vmatpush1.bf16.msra.mxu0 0
  %115 = vmatprep.subr.bf16.mxu0 0
  %116 = vmatpush1.bf16.msra.mxu0 0
  %117 = vmatprep.subr.bf16.mxu0 0
  %118 = vmatpush1.bf16.msra.mxu0 0
  %119 = vmatprep.subr.bf16.mxu0 0
  %120 = vmatpush1.bf16.msra.mxu0 0
  %121 = vmatprep.subr.bf16.mxu0 0
  %122 = vmatpush1.bf16.msra.mxu0 0
  %123 = vmatprep.subr.bf16.mxu0 0
  %124 = vmatpush1.bf16.msra.mxu0 %v95
  %125 = vmatprep.subr.bf16.mxu0 0
  %126 = vmatpush1.bf16.msra.mxu0 %v94
  %127 = vmatprep.subr.bf16.mxu0 0
  %128 = vmatpush2.bf16.msra.mxu0 0
  %129 = vmatprep.subr.bf16.mxu0 0
  %130 = vmatpush2.bf16.msra.mxu0 0
  %131 = vmatprep.subr.bf16.mxu0 0
  %132 = vmatpush2.bf16.msra.mxu0 0
  %133 = vmatprep.subr.bf16.mxu0 0
  %134 = vmatpush2.bf16.msra.mxu0 0
  %135 = vmatprep.subr.bf16.mxu0 0
  %136 = vmatpush2.bf16.msra.mxu0 0
  %137 = vmatprep.subr.bf16.mxu0 0
  %138 = vmatpush2.bf16.msra.mxu0 0
  %139 = vmatprep.subr.bf16.mxu0 0
  %140 = vmatpush2.bf16.msra.mxu0 0
  %141 = vmatprep.subr.bf16.mxu0 0
  %142 = vmatpush2.bf16.msra.mxu0 0
  %143 = vmatprep.mubr.bf16.mxu0 0
  %144 = vmatmul.mubr.bf16.gmra.mxu0 %v100
  %v145 = vpop.f32.mrf.mxu0
  %v146 = vadd.f32 %v36, %v145
  %v147 = vpop.f32.mrf.mxu0
  %v148 = vpop.f32.mrf.mxu0
  %v149 = vadd.f32 %v41, %v148
  %v150 = vpop.f32.mrf.mxu0
  %151 = vmatprep.mubr.bf16.mxu0 0
  %152 = vmatmul.mubr.bf16.gmra.mxu0 %v103
  %v153 = vpop.f32.mrf.mxu0
  %v154 = vadd.f32 %v46, %v153
  %v155 = vpop.f32.mrf.mxu0
  %v156 = vpop.f32.mrf.mxu0
  %v157 = vadd.f32 %v51, %v156
  %v158 = vpop.f32.mrf.mxu0
  %159 = vmatprep.mubr.bf16.mxu0 0
  %160 = vmatmul.mubr.bf16.gmra.mxu0 %v106
  %v161 = vpop.f32.mrf.mxu0
  %v162 = vadd.f32 %v56, %v161
  %v163 = vpop.f32.mrf.mxu0
  %v164 = vpop.f32.mrf.mxu0
  %v165 = vadd.f32 %v61, %v164
  %v166 = vpop.f32.mrf.mxu0
  %167 = vmatprep.mubr.bf16.mxu0 0
  %168 = vmatmul.mubr.bf16.gmra.mxu0 %v109
  %v169 = vpop.f32.mrf.mxu0
  %v170 = vadd.f32 %v66, %v169
  %v171 = vpop.f32.mrf.mxu0
  %v172 = vpop.f32.mrf.mxu0
  %v173 = vpop.f32.mrf.mxu0
  %174 = vdwg.mxu0
  %175 = vst.msk [vmem:[%s3] sm:$0xff] %vm98, %v146
  %176 = vst.msk [vmem:[%s3 + $0x8] sm:$0xff] %vm98, %v149
  %177 = vst.msk [vmem:[%s3 + $0x10] sm:$0xff] %vm98, %v154
  %178 = vst.msk [vmem:[%s3 + $0x18] sm:$0xff] %vm98, %v157
  %179 = vst.msk [vmem:[%s3 + $0x20] sm:$0xff] %vm98, %v162
  %180 = vst.msk [vmem:[%s3 + $0x28] sm:$0xff] %vm98, %v165
  %181 = vst.msk [vmem:[%s3 + $0x30] sm:$0xff] %vm98, %v170
  // Predicated region
  $region14: #{forward.22} parent=0 // pred_check
    _
  $region15: #{forward.22} parent=0 // pred_check_branch
    %183 = sbr.rel (0) target = $region17
  $region16: #{forward.22} parent=0 // pred_region
    _
  $region17: #{forward.22} parent=0 // pred_fallthru
    _
  // Predicated region
  $region18: #{forward.22} parent=0 // pred_check
    _
  $region19: #{forward.22} parent=0 // pred_check_branch
    %185 = sbr.rel (0) target = $region21
  $region20: #{forward.22} parent=0 // pred_region
    _
  $region21: #{forward.22} parent=0 // pred_fallthru
    _

// kernel: forward.30
$region0: #{forward.30}
  #allocation0 [shape = 'u32[]', space=smem, size = 0x4, offset = 0x4, fixed_abs, tag = 'smem constant byte address 0x4 - core index']
  #allocation1 [shape = 'u32[144,128]{1,0:T(1,128)}', space=vmem, size = 0x12000, scoped, tag = 'internal scratch']
  %s0 = inlined_call_operand.vmem [shape: f32[16,4,4], index: 0, kind: input, shape index: {}]
  %s1 = inlined_call_operand.vmem [shape: f32[4,8], index: 1, kind: input, shape index: {}]
  %s2 = inlined_call_operand.vmem [shape: f32[8,4], index: 2, kind: input, shape index: {}]
  %s3 = inlined_call_operand.vmem [shape: f32[16,8,8], index: 3, kind: output, shape index: {}]
  %s4 = sld [smem:[#allocation0]]
  $region45: #{forward.30} parent=0
    _
  %s6 = ssub.s32 1, %s4
  %s7 = scalar_select 0, %s6, %s4
  loop: start=0, step=1, limit=4
  $region2: #{forward.30} parent=0 // loop_pre_header
    _
  $region3: #{forward.30} parent=0 // loop_header
    %s9 = sphi 0, %s13
    %p10 = scmp.ge.s32.totalorder %s9, 4
    %s19 = sphi 0, %s21
    %s22 = sphi 0, %s19
    %s23 = sphi 0, %s22
    %s39 = sphi 0, %s23
    %s43 = sphi 0, %s43
    %s45 = sphi 0, %s43
    %s46 = sphi 0, %s45
    %s60 = sphi 0, %s46
    %s64 = sphi 0, %s64
    %s66 = sphi 0, %s64
    %s67 = sphi 0, %s66
    %s81 = sphi 0, %s67
    %s87 = sphi 0, %s89
    %s90 = sphi 0, %s87
    %s91 = sphi 0, %s90
    %s107 = sphi 0, %s91
  $region4: #{forward.30} parent=0 // loop_header_branch
    %12 = sbr.rel (%p10) target = $region8
  $region5: #{forward.30} parent=0 // loop_body
    %s14 = ssub.s32 %s9, 1
    %s15 = ssub.s32 %s9, 2
    %s16 = sadd.s32 %s9, 1
    %s17 = ssub.s32 %s9, %s16
    %p18 = scmp.eq.s32.totalorder %s17, 0
    %s20 = sadd.s32 %s19, 1
    %s21 = scalar_select %p18, %s19, %s20
    %p24 = pneg %p18
    %p25 = scmp.eq.s32.totalorder %s9, 1
    %p26 = por %p24, %p25
    %p27 = scmp.ne.s32.totalorder %s19, %s22
    %p28 = scmp.eq.s32.totalorder %s9, 0
    %p29 = por %p27, %p28
    %p30 = scmp.ne.s32.totalorder %s19, %s22
    %p31 = scmp.eq.s32.totalorder %s14, 1
    %p32 = por %p30, %p31
    %p33 = scmp.ne.s32.totalorder %s22, %s23
    %p34 = scmp.eq.s32.totalorder %s14, 0
    %p35 = por %p33, %p34
    %p36 = scmp.ne.s32.totalorder %s22, %s23
    %p37 = scmp.eq.s32.totalorder %s15, 1
    %p38 = por %p36, %p37
    %p40 = scmp.ne.s32.totalorder %s23, %s39
    %p41 = scmp.eq.s32.totalorder %s15, 0
    %p42 = por %p40, %p41
    %s44 = sadd.s32 %s43, 1
    %p47 = scmp.eq.s32.totalorder %s9, 1
    %p48 = scmp.ne.s32.totalorder %s43, %s45
    %p49 = scmp.eq.s32.totalorder %s9, 0
    %p50 = por %p48, %p49
    %p51 = scmp.ne.s32.totalorder %s43, %s45
    %p52 = scmp.eq.s32.totalorder %s14, 1
    %p53 = por %p51, %p52
    %p54 = scmp.ne.s32.totalorder %s45, %s46
    %p55 = scmp.eq.s32.totalorder %s14, 0
    %p56 = por %p54, %p55
    %p57 = scmp.ne.s32.totalorder %s45, %s46
    %p58 = scmp.eq.s32.totalorder %s15, 1
    %p59 = por %p57, %p58
    %p61 = scmp.ne.s32.totalorder %s46, %s60
    %p62 = scmp.eq.s32.totalorder %s15, 0
    %p63 = por %p61, %p62
    %s65 = sadd.s32 %s64, 1
    %p68 = scmp.eq.s32.totalorder %s9, 1
    %p69 = scmp.ne.s32.totalorder %s64, %s66
    %p70 = scmp.eq.s32.totalorder %s9, 0
    %p71 = por %p69, %p70
    %p72 = scmp.ne.s32.totalorder %s64, %s66
    %p73 = scmp.eq.s32.totalorder %s14, 1
    %p74 = por %p72, %p73
    %p75 = scmp.ne.s32.totalorder %s66, %s67
    %p76 = scmp.eq.s32.totalorder %s14, 0
    %p77 = por %p75, %p76
    %p78 = scmp.ne.s32.totalorder %s66, %s67
    %p79 = scmp.eq.s32.totalorder %s15, 1
    %p80 = por %p78, %p79
    %p82 = scmp.ne.s32.totalorder %s67, %s81
    %p83 = scmp.eq.s32.totalorder %s15, 0
    %p84 = por %p82, %p83
    %s85 = ssub.s32 %s9, %s16
    %p86 = scmp.eq.s32.totalorder %s85, 0
    %s88 = sadd.s32 %s87, 1
    %s89 = scalar_select %p86, %s87, %s88
    %p92 = pneg %p86
    %p93 = scmp.eq.s32.totalorder %s9, 1
    %p94 = por %p92, %p93
    %p95 = scmp.ne.s32.totalorder %s87, %s90
    %p96 = scmp.eq.s32.totalorder %s9, 0
    %p97 = por %p95, %p96
    %p98 = scmp.ne.s32.totalorder %s87, %s90
    %p99 = scmp.eq.s32.totalorder %s14, 1
    %p100 = por %p98, %p99
    %p101 = scmp.ne.s32.totalorder %s90, %s91
    %p102 = scmp.eq.s32.totalorder %s14, 0
    %p103 = por %p101, %p102
    %p104 = scmp.ne.s32.totalorder %s90, %s91
    %p105 = scmp.eq.s32.totalorder %s15, 1
    %p106 = por %p104, %p105
    %p108 = scmp.ne.s32.totalorder %s91, %s107
    %p109 = scmp.eq.s32.totalorder %s15, 0
    %p110 = por %p108, %p109
    %p111 = scmp.le.s32.totalorder 1, %s9
    %p112 = scmp.lt.s32.totalorder %s9, 3
    %p113 = pnand %p111, %p112
    %p114 = pneg %p113
    // Predicated region
    $region9: #{forward.30} parent=5 // pred_check
      _
    $region10: #{forward.30} parent=5 // pred_check_branch
      %116 = sbr.rel (%p113) target = $region12
    $region11: #{forward.30} parent=5 // pred_region
      %s117 = ssub.s32 %s9, 1
      // Predicated region
      $region13: #{forward.30} parent=11 // pred_check
        %p118 = pneg %p56
      $region14: #{forward.30} parent=11 // pred_check_branch
        %120 = sbr.rel (%p118) target = $region16
      $region15: #{forward.30} parent=11 // pred_region
        _
      $region16: #{forward.30} parent=11 // pred_fallthru
        _
      // Predicated region
      $region17: #{forward.30} parent=11 // pred_check
        %p121 = pneg %p77
      $region18: #{forward.30} parent=11 // pred_check_branch
        %123 = sbr.rel (%p121) target = $region20
      $region19: #{forward.30} parent=11 // pred_region
        _
      $region20: #{forward.30} parent=11 // pred_fallthru
        _
    $region12: #{forward.30} parent=5 // pred_fallthru
      _
    %p124 = scmp.lt.s32.totalorder %s9, 2
    // Predicated region
    $region21: #{forward.30} parent=5 // pred_check
      %p125 = pneg %p124
    $region22: #{forward.30} parent=5 // pred_check_branch
      %127 = sbr.rel (%p125) target = $region24
    $region23: #{forward.30} parent=5 // pred_region
      // Predicated region
      $region25: #{forward.30} parent=23 // pred_check
        %p128 = pneg %p29
      $region26: #{forward.30} parent=23 // pred_check_branch
        %130 = sbr.rel (%p128) target = $region28
      $region27: #{forward.30} parent=23 // pred_region
        %s131 = smul.u32 8, %s9
        %p132 = scmp.lt.s32.totalorder %s131, 15
        %s133 = scalar_select %p132, %s131, 15
        %s134 = smul.addr %s133, 4
        %s135 = scalar_lea.vmem %s0, %s134
        %s136 = smul.u32 8, %s9
      $region28: #{forward.30} parent=23 // pred_fallthru
        _
    $region24: #{forward.30} parent=5 // pred_fallthru
      _
    %p137 = scmp.le.s32.totalorder 1, %s9
    %p138 = scmp.lt.s32.totalorder %s9, 3
    %p139 = pnand %p137, %p138
    %p140 = pneg %p139
    // Predicated region
    $region29: #{forward.30} parent=5 // pred_check
      _
    $region30: #{forward.30} parent=5 // pred_check_branch
      %142 = sbr.rel (%p139) target = $region32
    $region31: #{forward.30} parent=5 // pred_region
      %s143 = ssub.s32 %s9, 1
      %s144 = smul.u32 8, %s14
      %p145 = scmp.lt.s32.totalorder %s144, 15
      %s146 = scalar_select %p145, %s144, 15
      %s147 = smul.addr %s146, 4
      %s148 = scalar_lea.vmem %s0, %s147
      %p149 = pneg %p35
      %p150 = pneg %p32
      %p151 = pneg %p56
      %p152 = pneg %p53
      %p153 = pneg %p77
      %p154 = pneg %p74
      %p155 = pneg %p103
      %p156 = pneg %p100
      %s157 = smul.u32 8, %s14
      %p158 = scmp.lt.s32.totalorder %s157, 15
      %s159 = scalar_select %p158, %s157, 15
      %s160 = smul.addr %s159, 8
      %s161 = scalar_lea.vmem %s3, %s160
      %s162 = smul.u32 8, %s14
      %p163 = scmp.lt.s32.totalorder %s162, 15
      %s164 = scalar_select %p163, %s162, 15
      %s165 = smul.addr %s164, 4
      %s166 = scalar_lea.vmem %s0, %s165
      %s167 = smul.u32 8, %s14
      %s168 = smul.u32 8, %s14
      %p169 = scmp.lt.s32.totalorder %s168, 15
      %s170 = scalar_select %p169, %s168, 15
      %s171 = smul.addr %s170, 8
      %s172 = scalar_lea.vmem %s3, %s171
      %s173 = smul.u32 8, %s14
      %v174 = vld [vmem:[%s1] sm:$0xf]
      %v175 = vld [vmem:[%s2] sm:$0xff]
      %v176 = vld [vmem:[%s166] sm:$0xf]
      %vm177 = vcmask 31744
      %v179 = vsel %vm177, %v176, 0
      %vm181 = vcmask 1043456
      %v183 = vsel %vm181, %v174, 0
      %185 = vmatprep.subr.mxu0 0.0
      %186 = vmatpush1.msra.mxu0 0.0
      %187 = vmatprep.subr.mxu0 0.0
      %188 = vmatpush1.msra.mxu0 0.0
      %189 = vmatprep.subr.mxu0 0.0
      %190 = vmatpush1.msra.mxu0 0.0
      %191 = vmatprep.subr.mxu0 0.0
      %192 = vmatpush1.msra.mxu0 0.0
      %193 = vmatprep.subr.mxu0 0.0
      %194 = vmatpush1.msra.mxu0 0.0
      %195 = vmatprep.subr.mxu0 0.0
      %196 = vmatpush1.msra.mxu0 0.0
      %197 = vmatprep.subr.mxu0 0.0
      %198 = vmatpush1.msra.mxu0 0.0
      %199 = vmatprep.subr.mxu0 0.0
      %200 = vmatpush1.msra.mxu0 0.0
      %201 = vmatprep.subr.mxu0 0.0
      %202 = vmatpush1.msra.mxu0 0.0
      %203 = vmatprep.subr.mxu0 0.0
      %204 = vmatpush1.msra.mxu0 0.0
      %205 = vmatprep.subr.mxu0 0.0
      %206 = vmatpush1.msra.mxu0 0.0
      %207 = vmatprep.subr.mxu0 0.0
      %208 = vmatpush1.msra.mxu0 0.0
      %209 = vmatprep.subr.mxu0 0.0
      %210 = vmatpush1.msra.mxu0 0.0
      %211 = vmatprep.subr.mxu0 0.0
      %212 = vmatpush1.msra.mxu0 0.0
      %213 = vmatprep.subr.mxu0 0.0
      %214 = vmatpush1.msra.mxu0 0.0
      %215 = vmatprep.subr.mxu0 0.0
      %216 = vmatpush1.msra.mxu0 %v183
      %217 = vmatprep.subr.mxu0 0.0
      %218 = vmatpush2.msra.mxu0 0.0
      %219 = vmatprep.subr.mxu0 0.0
      %220 = vmatpush2.msra.mxu0 0.0
      %221 = vmatprep.subr.mxu0 0.0
      %222 = vmatpush2.msra.mxu0 0.0
      %223 = vmatprep.subr.mxu0 0.0
      %224 = vmatpush2.msra.mxu0 0.0
      %225 = vmatprep.subr.mxu0 0.0
      %226 = vmatpush2.msra.mxu0 0.0
      %227 = vmatprep.subr.mxu0 0.0
      %228 = vmatpush2.msra.mxu0 0.0
      %229 = vmatprep.subr.mxu0 0.0
      %230 = vmatpush2.msra.mxu0 0.0
      %231 = vmatprep.subr.mxu0 0.0
      %232 = vmatpush2.msra.mxu0 0.0
      %233 = vmatprep.subr.mxu0 0.0
      %234 = vmatpush2.msra.mxu0 0.0
      %235 = vmatprep.subr.mxu0 0.0
      %236 = vmatpush2.msra.mxu0 0.0
      %237 = vmatprep.subr.mxu0 0.0
      %238 = vmatpush2.msra.mxu0 0.0
      %239 = vmatprep.subr.mxu0 0.0
      %240 = vmatpush2.msra.mxu0 0.0
      %241 = vmatprep.subr.mxu0 0.0
      %242 = vmatpush2.msra.mxu0 0.0
      %243 = vmatprep.subr.mxu0 0.0
      %244 = vmatpush2.msra.mxu0 0.0
      %245 = vmatprep.subr.mxu0 0.0
      %246 = vmatpush2.msra.mxu0 0.0
      %247 = vmatprep.subr.mxu0 0.0
      %248 = vmatpush2.msra.mxu0 0.0
      %249 = vmatprep.mubr.f32.mxu0 0.0
      %250 = vmatmul.mubr.f32.gmra.mxu0 %v179
      %v251 = vpop.f32.mrf.mxu0
      %v252 = vadd.f32 0.0, %v251
      %v253 = vpop.f32.mrf.mxu0
      %254 = vdwg.mxu0
      %v256 = vsel %vm177, %v175, 0
      %v259 = vsel %vm181, %v252, 0
      %261 = vmatprep.subr.mxu0 0.0
      %262 = vmatpush1.msra.mxu0 0.0
      %263 = vmatprep.subr.mxu0 0.0
      %264 = vmatpush1.msra.mxu0 0.0
      %265 = vmatprep.subr.mxu0 0.0
      %266 = vmatpush1.msra.mxu0 0.0
      %267 = vmatprep.subr.mxu0 0.0
      %268 = vmatpush1.msra.mxu0 0.0
      %269 = vmatprep.subr.mxu0 0.0
      %270 = vmatpush1.msra.mxu0 0.0
      %271 = vmatprep.subr.mxu0 0.0
      %272 = vmatpush1.msra.mxu0 0.0
      %273 = vmatprep.subr.mxu0 0.0
      %274 = vmatpush1.msra.mxu0 0.0
      %275 = vmatprep.subr.mxu0 0.0
      %276 = vmatpush1.msra.mxu0 0.0
      %277 = vmatprep.subr.mxu0 0.0
      %278 = vmatpush1.msra.mxu0 0.0
      %279 = vmatprep.subr.mxu0 0.0
      %280 = vmatpush1.msra.mxu0 0.0
      %281 = vmatprep.subr.mxu0 0.0
      %282 = vmatpush1.msra.mxu0 0.0
      %283 = vmatprep.subr.mxu0 0.0
      %284 = vmatpush1.msra.mxu0 0.0
      %285 = vmatprep.subr.mxu0 0.0
      %286 = vmatpush1.msra.mxu0 0.0
      %287 = vmatprep.subr.mxu0 0.0
      %288 = vmatpush1.msra.mxu0 0.0
      %289 = vmatprep.subr.mxu0 0.0
      %290 = vmatpush1.msra.mxu0 0.0
      %291 = vmatprep.subr.mxu0 0.0
      %292 = vmatpush1.msra.mxu0 %v259
      %293 = vmatprep.subr.mxu0 0.0
      %294 = vmatpush2.msra.mxu0 0.0
      %295 = vmatprep.subr.mxu0 0.0
      %296 = vmatpush2.msra.mxu0 0.0
      %297 = vmatprep.subr.mxu0 0.0
      %298 = vmatpush2.msra.mxu0 0.0
      %299 = vmatprep.subr.mxu0 0.0
      %300 = vmatpush2.msra.mxu0 0.0
      %301 = vmatprep.subr.mxu0 0.0
      %302 = vmatpush2.msra.mxu0 0.0
      %303 = vmatprep.subr.mxu0 0.0
      %304 = vmatpush2.msra.mxu0 0.0
      %305 = vmatprep.subr.mxu0 0.0
      %306 = vmatpush2.msra.mxu0 0.0
      %307 = vmatprep.subr.mxu0 0.0
      %308 = vmatpush2.msra.mxu0 0.0
      %309 = vmatprep.subr.mxu0 0.0
      %310 = vmatpush2.msra.mxu0 0.0
      %311 = vmatprep.subr.mxu0 0.0
      %312 = vmatpush2.msra.mxu0 0.0
      %313 = vmatprep.subr.mxu0 0.0
      %314 = vmatpush2.msra.mxu0 0.0
      %315 = vmatprep.subr.mxu0 0.0
      %316 = vmatpush2.msra.mxu0 0.0
      %317 = vmatprep.subr.mxu0 0.0
      %318 = vmatpush2.msra.mxu0 0.0
      %319 = vmatprep.subr.mxu0 0.0
      %320 = vmatpush2.msra.mxu0 0.0
      %321 = vmatprep.subr.mxu0 0.0
      %322 = vmatpush2.msra.mxu0 0.0
      %323 = vmatprep.subr.mxu0 0.0
      %324 = vmatpush2.msra.mxu0 0.0
      %325 = vmatprep.mubr.f32.mxu0 0.0
      %326 = vmatmul.mubr.f32.gmra.mxu0 %v256
      %v327 = vpop.f32.mrf.mxu0
      %v328 = vadd.f32 0.0, %v327
      %v329 = vpop.f32.mrf.mxu0
      %330 = vdwg.mxu0
      %vm331 = vcmask 64512
      %332 = vst.msk [vmem:[%s172] sm:$0xff] %vm331, %v328
      %s333 = scalar_lea.vmem %s166, 4
      %v334 = vld [vmem:[%s333] sm:$0xf]
      %v336 = vsel %vm177, %v334, 0
      %338 = vmatprep.subr.mxu0 0.0
      %339 = vmatpush1.msra.mxu0 0.0
      %340 = vmatprep.subr.mxu0 0.0
      %341 = vmatpush1.msra.mxu0 0.0
      %342 = vmatprep.subr.mxu0 0.0
      %343 = vmatpush1.msra.mxu0 0.0
      %344 = vmatprep.subr.mxu0 0.0
      %345 = vmatpush1.msra.mxu0 0.0
      %346 = vmatprep.subr.mxu0 0.0
      %347 = vmatpush1.msra.mxu0 0.0
      %348 = vmatprep.subr.mxu0 0.0
      %349 = vmatpush1.msra.mxu0 0.0
      %350 = vmatprep.subr.mxu0 0.0
      %351 = vmatpush1.msra.mxu0 0.0
      %352 = vmatprep.subr.mxu0 0.0
      %353 = vmatpush1.msra.mxu0 0.0
      %354 = vmatprep.subr.mxu0 0.0
      %355 = vmatpush1.msra.mxu0 0.0
      %356 = vmatprep.subr.mxu0 0.0
      %357 = vmatpush1.msra.mxu0 0.0
      %358 = vmatprep.subr.mxu0 0.0
      %359 = vmatpush1.msra.mxu0 0.0
      %360 = vmatprep.subr.mxu0 0.0
      %361 = vmatpush1.msra.mxu0 0.0
      %362 = vmatprep.subr.mxu0 0.0
      %363 = vmatpush1.msra.mxu0 0.0
      %364 = vmatprep.subr.mxu0 0.0
      %365 = vmatpush1.msra.mxu0 0.0
      %366 = vmatprep.subr.mxu0 0.0
      %367 = vmatpush1.msra.mxu0 0.0
      %368 = vmatprep.subr.mxu0 0.0
      %369 = vmatpush1.msra.mxu0 %v183
      %370 = vmatprep.subr.mxu0 0.0
      %371 = vmatpush2.msra.mxu0 0.0
      %372 = vmatprep.subr.mxu0 0.0
      %373 = vmatpush2.msra.mxu0 0.0
      %374 = vmatprep.subr.mxu0 0.0
      %375 = vmatpush2.msra.mxu0 0.0
      %376 = vmatprep.subr.mxu0 0.0
      %377 = vmatpush2.msra.mxu0 0.0
      %378 = vmatprep.subr.mxu0 0.0
      %379 = vmatpush2.msra.mxu0 0.0
      %380 = vmatprep.subr.mxu0 0.0
      %381 = vmatpush2.msra.mxu0 0.0
      %382 = vmatprep.subr.mxu0 0.0
      %383 = vmatpush2.msra.mxu0 0.0
      %384 = vmatprep.subr.mxu0 0.0
      %385 = vmatpush2.msra.mxu0 0.0
      %386 = vmatprep.subr.mxu0 0.0
      %387 = vmatpush2.msra.mxu0 0.0
      %388 = vmatprep.subr.mxu0 0.0
      %389 = vmatpush2.msra.mxu0 0.0
      %390 = vmatprep.subr.mxu0 0.0
      %391 = vmatpush2.msra.mxu0 0.0
      %392 = vmatprep.subr.mxu0 0.0
      %393 = vmatpush2.msra.mxu0 0.0
      %394 = vmatprep.subr.mxu0 0.0
      %395 = vmatpush2.msra.mxu0 0.0
      %396 = vmatprep.subr.mxu0 0.0
      %397 = vmatpush2.msra.mxu0 0.0
      %398 = vmatprep.subr.mxu0 0.0
      %399 = vmatpush2.msra.mxu0 0.0
      %400 = vmatprep.subr.mxu0 0.0
      %401 = vmatpush2.msra.mxu0 0.0
      %402 = vmatprep.mubr.f32.mxu0 0.0
      %403 = vmatmul.mubr.f32.gmra.mxu0 %v336
      %v404 = vpop.f32.mrf.mxu0
      %v405 = vadd.f32 0.0, %v404
      %v406 = vpop.f32.mrf.mxu0
      %407 = vdwg.mxu0
      %v409 = vsel %vm181, %v405, 0
      %411 = vmatprep.subr.mxu0 0.0
      %412 = vmatpush1.msra.mxu0 0.0
      %413 = vmatprep.subr.mxu0 0.0
      %414 = vmatpush1.msra.mxu0 0.0
      %415 = vmatprep.subr.mxu0 0.0
      %416 = vmatpush1.msra.mxu0 0.0
      %417 = vmatprep.subr.mxu0 0.0
      %418 = vmatpush1.msra.mxu0 0.0
      %419 = vmatprep.subr.mxu0 0.0
      %420 = vmatpush1.msra.mxu0 0.0
      %421 = vmatprep.subr.mxu0 0.0
      %422 = vmatpush1.msra.mxu0 0.0
      %423 = vmatprep.subr.mxu0 0.0
      %424 = vmatpush1.msra.mxu0 0.0
      %425 = vmatprep.subr.mxu0 0.0
      %426 = vmatpush1.msra.mxu0 0.0
      %427 = vmatprep.subr.mxu0 0.0
      %428 = vmatpush1.msra.mxu0 0.0
      %429 = vmatprep.subr.mxu0 0.0
      %430 = vmatpush1.msra.mxu0 0.0
      %431 = vmatprep.subr.mxu0 0.0
      %432 = vmatpush1.msra.mxu0 0.0
      %433 = vmatprep.subr.mxu0 0.0
      %434 = vmatpush1.msra.mxu0 0.0
      %435 = vmatprep.subr.mxu0 0.0
      %436 = vmatpush1.msra.mxu0 0.0
      %437 = vmatprep.subr.mxu0 0.0
      %438 = vmatpush1.msra.mxu0 0.0
      %439 = vmatprep.subr.mxu0 0.0
      %440 = vmatpush1.msra.mxu0 0.0
      %441 = vmatprep.subr.mxu0 0.0
      %442 = vmatpush1.msra.mxu0 %v409
      %443 = vmatprep.subr.mxu0 0.0
      %444 = vmatpush2.msra.mxu0 0.0
      %445 = vmatprep.subr.mxu0 0.0
      %446 = vmatpush2.msra.mxu0 0.0
      %447 = vmatprep.subr.mxu0 0.0
      %448 = vmatpush2.msra.mxu0 0.0
      %449 = vmatprep.subr.mxu0 0.0
      %450 = vmatpush2.msra.mxu0 0.0
      %451 = vmatprep.subr.mxu0 0.0
      %452 = vmatpush2.msra.mxu0 0.0
      %453 = vmatprep.subr.mxu0 0.0
      %454 = vmatpush2.msra.mxu0 0.0
      %455 = vmatprep.subr.mxu0 0.0
      %456 = vmatpush2.msra.mxu0 0.0
      %457 = vmatprep.subr.mxu0 0.0
      %458 = vmatpush2.msra.mxu0 0.0
      %459 = vmatprep.subr.mxu0 0.0
      %460 = vmatpush2.msra.mxu0 0.0
      %461 = vmatprep.subr.mxu0 0.0
      %462 = vmatpush2.msra.mxu0 0.0
      %463 = vmatprep.subr.mxu0 0.0
      %464 = vmatpush2.msra.mxu0 0.0
      %465 = vmatprep.subr.mxu0 0.0
      %466 = vmatpush2.msra.mxu0 0.0
      %467 = vmatprep.subr.mxu0 0.0
      %468 = vmatpush2.msra.mxu0 0.0
      %469 = vmatprep.subr.mxu0 0.0
      %470 = vmatpush2.msra.mxu0 0.0
      %471 = vmatprep.subr.mxu0 0.0
      %472 = vmatpush2.msra.mxu0 0.0
      %473 = vmatprep.subr.mxu0 0.0
      %474 = vmatpush2.msra.mxu0 0.0
      %475 = vmatprep.mubr.f32.mxu0 0.0
      %476 = vmatmul.mubr.f32.gmra.mxu0 %v256
      %v477 = vpop.f32.mrf.mxu0
      %v478 = vadd.f32 0.0, %v477
      %v479 = vpop.f32.mrf.mxu0
      %480 = vdwg.mxu0
      %s481 = scalar_lea.vmem %s172, 8
      %482 = vst.msk [vmem:[%s481] sm:$0xff] %vm331, %v478
      %s483 = scalar_lea.vmem %s166, 8
      %v484 = vld [vmem:[%s483] sm:$0xf]
      %v486 = vsel %vm177, %v484, 0
      %488 = vmatprep.subr.mxu0 0.0
      %489 = vmatpush1.msra.mxu0 0.0
      %490 = vmatprep.subr.mxu0 0.0
      %491 = vmatpush1.msra.mxu0 0.0
      %492 = vmatprep.subr.mxu0 0.0
      %493 = vmatpush1.msra.mxu0 0.0
      %494 = vmatprep.subr.mxu0 0.0
      %495 = vmatpush1.msra.mxu0 0.0
      %496 = vmatprep.subr.mxu0 0.0
      %497 = vmatpush1.msra.mxu0 0.0
      %498 = vmatprep.subr.mxu0 0.0
      %499 = vmatpush1.msra.mxu0 0.0
      %500 = vmatprep.subr.mxu0 0.0
      %501 = vmatpush1.msra.mxu0 0.0
      %502 = vmatprep.subr.mxu0 0.0
      %503 = vmatpush1.msra.mxu0 0.0
      %504 = vmatprep.subr.mxu0 0.0
      %505 = vmatpush1.msra.mxu0 0.0
      %506 = vmatprep.subr.mxu0 0.0
      %507 = vmatpush1.msra.mxu0 0.0
      %508 = vmatprep.subr.mxu0 0.0
      %509 = vmatpush1.msra.mxu0 0.0
      %510 = vmatprep.subr.mxu0 0.0
      %511 = vmatpush1.msra.mxu0 0.0
      %512 = vmatprep.subr.mxu0 0.0
      %513 = vmatpush1.msra.mxu0 0.0
      %514 = vmatprep.subr.mxu0 0.0
      %515 = vmatpush1.msra.mxu0 0.0
      %516 = vmatprep.subr.mxu0 0.0
      %517 = vmatpush1.msra.mxu0 0.0
      %518 = vmatprep.subr.mxu0 0.0
      %519 = vmatpush1.msra.mxu0 %v183
      %520 = vmatprep.subr.mxu0 0.0
      %521 = vmatpush2.msra.mxu0 0.0
      %522 = vmatprep.subr.mxu0 0.0
      %523 = vmatpush2.msra.mxu0 0.0
      %524 = vmatprep.subr.mxu0 0.0
      %525 = vmatpush2.msra.mxu0 0.0
      %526 = vmatprep.subr.mxu0 0.0
      %527 = vmatpush2.msra.mxu0 0.0
      %528 = vmatprep.subr.mxu0 0.0
      %529 = vmatpush2.msra.mxu0 0.0
      %530 = vmatprep.subr.mxu0 0.0
      %531 = vmatpush2.msra.mxu0 0.0
      %532 = vmatprep.subr.mxu0 0.0
      %533 = vmatpush2.msra.mxu0 0.0
      %534 = vmatprep.subr.mxu0 0.0
      %535 = vmatpush2.msra.mxu0 0.0
      %536 = vmatprep.subr.mxu0 0.0
      %537 = vmatpush2.msra.mxu0 0.0
      %538 = vmatprep.subr.mxu0 0.0
      %539 = vmatpush2.msra.mxu0 0.0
      %540 = vmatprep.subr.mxu0 0.0
      %541 = vmatpush2.msra.mxu0 0.0
      %542 = vmatprep.subr.mxu0 0.0
      %543 = vmatpush2.msra.mxu0 0.0
      %544 = vmatprep.subr.mxu0 0.0
      %545 = vmatpush2.msra.mxu0 0.0
      %546 = vmatprep.subr.mxu0 0.0
      %547 = vmatpush2.msra.mxu0 0.0
      %548 = vmatprep.subr.mxu0 0.0
      %549 = vmatpush2.msra.mxu0 0.0
      %550 = vmatprep.subr.mxu0 0.0
      %551 = vmatpush2.msra.mxu0 0.0
      %552 = vmatprep.mubr.f32.mxu0 0.0
      %553 = vmatmul.mubr.f32.gmra.mxu0 %v486
      %v554 = vpop.f32.mrf.mxu0
      %v555 = vadd.f32 0.0, %v554
      %v556 = vpop.f32.mrf.mxu0
      %557 = vdwg.mxu0
      %v559 = vsel %vm181, %v555, 0
      %561 = vmatprep.subr.mxu0 0.0
      %562 = vmatpush1.msra.mxu0 0.0
      %563 = vmatprep.subr.mxu0 0.0
      %564 = vmatpush1.msra.mxu0 0.0
      %565 = vmatprep.subr.mxu0 0.0
      %566 = vmatpush1.msra.mxu0 0.0
      %567 = vmatprep.subr.mxu0 0.0
      %568 = vmatpush1.msra.mxu0 0.0
      %569 = vmatprep.subr.mxu0 0.0
      %570 = vmatpush1.msra.mxu0 0.0
      %571 = vmatprep.subr.mxu0 0.0
      %572 = vmatpush1.msra.mxu0 0.0
      %573 = vmatprep.subr.mxu0 0.0
      %574 = vmatpush1.msra.mxu0 0.0
      %575 = vmatprep.subr.mxu0 0.0
      %576 = vmatpush1.msra.mxu0 0.0
      %577 = vmatprep.subr.mxu0 0.0
      %578 = vmatpush1.msra.mxu0 0.0
      %579 = vmatprep.subr.mxu0 0.0
      %580 = vmatpush1.msra.mxu0 0.0
      %581 = vmatprep.subr.mxu0 0.0
      %582 = vmatpush1.msra.mxu0 0.0
      %583 = vmatprep.subr.mxu0 0.0
      %584 = vmatpush1.msra.mxu0 0.0
      %585 = vmatprep.subr.mxu0 0.0
      %586 = vmatpush1.msra.mxu0 0.0
      %587 = vmatprep.subr.mxu0 0.0
      %588 = vmatpush1.msra.mxu0 0.0
      %589 = vmatprep.subr.mxu0 0.0
      %590 = vmatpush1.msra.mxu0 0.0
      %591 = vmatprep.subr.mxu0 0.0
      %592 = vmatpush1.msra.mxu0 %v559
      %593 = vmatprep.subr.mxu0 0.0
      %594 = vmatpush2.msra.mxu0 0.0
      %595 = vmatprep.subr.mxu0 0.0
      %596 = vmatpush2.msra.mxu0 0.0
      %597 = vmatprep.subr.mxu0 0.0
      %598 = vmatpush2.msra.mxu0 0.0
      %599 = vmatprep.subr.mxu0 0.0
      %600 = vmatpush2.msra.mxu0 0.0
      %601 = vmatprep.subr.mxu0 0.0
      %602 = vmatpush2.msra.mxu0 0.0
      %603 = vmatprep.subr.mxu0 0.0
      %604 = vmatpush2.msra.mxu0 0.0
      %605 = vmatprep.subr.mxu0 0.0
      %606 = vmatpush2.msra.mxu0 0.0
      %607 = vmatprep.subr.mxu0 0.0
      %608 = vmatpush2.msra.mxu0 0.0
      %609 = vmatprep.subr.mxu0 0.0
      %610 = vmatpush2.msra.mxu0 0.0
      %611 = vmatprep.subr.mxu0 0.0
      %612 = vmatpush2.msra.mxu0 0.0
      %613 = vmatprep.subr.mxu0 0.0
      %614 = vmatpush2.msra.mxu0 0.0
      %615 = vmatprep.subr.mxu0 0.0
      %616 = vmatpush2.msra.mxu0 0.0
      %617 = vmatprep.subr.mxu0 0.0
      %618 = vmatpush2.msra.mxu0 0.0
      %619 = vmatprep.subr.mxu0 0.0
      %620 = vmatpush2.msra.mxu0 0.0
      %621 = vmatprep.subr.mxu0 0.0
      %622 = vmatpush2.msra.mxu0 0.0
      %623 = vmatprep.subr.mxu0 0.0
      %624 = vmatpush2.msra.mxu0 0.0
      %625 = vmatprep.mubr.f32.mxu0 0.0
      %626 = vmatmul.mubr.f32.gmra.mxu0 %v256
      %v627 = vpop.f32.mrf.mxu0
      %v628 = vadd.f32 0.0, %v627
      %v629 = vpop.f32.mrf.mxu0
      %630 = vdwg.mxu0
      %s631 = scalar_lea.vmem %s172, 16
      %632 = vst.msk [vmem:[%s631] sm:$0xff] %vm331, %v628
      %s633 = scalar_lea.vmem %s166, 12
      %v634 = vld [vmem:[%s633] sm:$0xf]
      %v636 = vsel %vm177, %v634, 0
      %638 = vmatprep.subr.mxu0 0.0
      %639 = vmatpush1.msra.mxu0 0.0
      %640 = vmatprep.subr.mxu0 0.0
      %641 = vmatpush1.msra.mxu0 0.0
      %642 = vmatprep.subr.mxu0 0.0
      %643 = vmatpush1.msra.mxu0 0.0
      %644 = vmatprep.subr.mxu0 0.0
      %645 = vmatpush1.msra.mxu0 0.0
      %646 = vmatprep.subr.mxu0 0.0
      %647 = vmatpush1.msra.mxu0 0.0
      %648 = vmatprep.subr.mxu0 0.0
      %649 = vmatpush1.msra.mxu0 0.0
      %650 = vmatprep.subr.mxu0 0.0
      %651 = vmatpush1.msra.mxu0 0.0
      %652 = vmatprep.subr.mxu0 0.0
      %653 = vmatpush1.msra.mxu0 0.0
      %654 = vmatprep.subr.mxu0 0.0
      %655 = vmatpush1.msra.mxu0 0.0
      %656 = vmatprep.subr.mxu0 0.0
      %657 = vmatpush1.msra.mxu0 0.0
      %658 = vmatprep.subr.mxu0 0.0
      %659 = vmatpush1.msra.mxu0 0.0
      %660 = vmatprep.subr.mxu0 0.0
      %661 = vmatpush1.msra.mxu0 0.0
      %662 = vmatprep.subr.mxu0 0.0
      %663 = vmatpush1.msra.mxu0 0.0
      %664 = vmatprep.subr.mxu0 0.0
      %665 = vmatpush1.msra.mxu0 0.0
      %666 = vmatprep.subr.mxu0 0.0
      %667 = vmatpush1.msra.mxu0 0.0
      %668 = vmatprep.subr.mxu0 0.0
      %669 = vmatpush1.msra.mxu0 %v183
      %670 = vmatprep.subr.mxu0 0.0
      %671 = vmatpush2.msra.mxu0 0.0
      %672 = vmatprep.subr.mxu0 0.0
      %673 = vmatpush2.msra.mxu0 0.0
      %674 = vmatprep.subr.mxu0 0.0
      %675 = vmatpush2.msra.mxu0 0.0
      %676 = vmatprep.subr.mxu0 0.0
      %677 = vmatpush2.msra.mxu0 0.0
      %678 = vmatprep.subr.mxu0 0.0
      %679 = vmatpush2.msra.mxu0 0.0
      %680 = vmatprep.subr.mxu0 0.0
      %681 = vmatpush2.msra.mxu0 0.0
      %682 = vmatprep.subr.mxu0 0.0
      %683 = vmatpush2.msra.mxu0 0.0
      %684 = vmatprep.subr.mxu0 0.0
      %685 = vmatpush2.msra.mxu0 0.0
      %686 = vmatprep.subr.mxu0 0.0
      %687 = vmatpush2.msra.mxu0 0.0
      %688 = vmatprep.subr.mxu0 0.0
      %689 = vmatpush2.msra.mxu0 0.0
      %690 = vmatprep.subr.mxu0 0.0
      %691 = vmatpush2.msra.mxu0 0.0
      %692 = vmatprep.subr.mxu0 0.0
      %693 = vmatpush2.msra.mxu0 0.0
      %694 = vmatprep.subr.mxu0 0.0
      %695 = vmatpush2.msra.mxu0 0.0
      %696 = vmatprep.subr.mxu0 0.0
      %697 = vmatpush2.msra.mxu0 0.0
      %698 = vmatprep.subr.mxu0 0.0
      %699 = vmatpush2.msra.mxu0 0.0
      %700 = vmatprep.subr.mxu0 0.0
      %701 = vmatpush2.msra.mxu0 0.0
      %702 = vmatprep.mubr.f32.mxu0 0.0
      %703 = vmatmul.mubr.f32.gmra.mxu0 %v636
      %v704 = vpop.f32.mrf.mxu0
      %v705 = vadd.f32 0.0, %v704
      %v706 = vpop.f32.mrf.mxu0
      %707 = vdwg.mxu0
      %v709 = vsel %vm181, %v705, 0
      %711 = vmatprep.subr.mxu0 0.0
      %712 = vmatpush1.msra.mxu0 0.0
      %713 = vmatprep.subr.mxu0 0.0
      %714 = vmatpush1.msra.mxu0 0.0
      %715 = vmatprep.subr.mxu0 0.0
      %716 = vmatpush1.msra.mxu0 0.0
      %717 = vmatprep.subr.mxu0 0.0
      %718 = vmatpush1.msra.mxu0 0.0
      %719 = vmatprep.subr.mxu0 0.0
      %720 = vmatpush1.msra.mxu0 0.0
      %721 = vmatprep.subr.mxu0 0.0
      %722 = vmatpush1.msra.mxu0 0.0
      %723 = vmatprep.subr.mxu0 0.0
      %724 = vmatpush1.msra.mxu0 0.0
      %725 = vmatprep.subr.mxu0 0.0
      %726 = vmatpush1.msra.mxu0 0.0
      %727 = vmatprep.subr.mxu0 0.0
      %728 = vmatpush1.msra.mxu0 0.0
      %729 = vmatprep.subr.mxu0 0.0
      %730 = vmatpush1.msra.mxu0 0.0
      %731 = vmatprep.subr.mxu0 0.0
      %732 = vmatpush1.msra.mxu0 0.0
      %733 = vmatprep.subr.mxu0 0.0
      %734 = vmatpush1.msra.mxu0 0.0
      %735 = vmatprep.subr.mxu0 0.0
      %736 = vmatpush1.msra.mxu0 0.0
      %737 = vmatprep.subr.mxu0 0.0
      %738 = vmatpush1.msra.mxu0 0.0
      %739 = vmatprep.subr.mxu0 0.0
      %740 = vmatpush1.msra.mxu0 0.0
      %741 = vmatprep.subr.mxu0 0.0
      %742 = vmatpush1.msra.mxu0 %v709
      %743 = vmatprep.subr.mxu0 0.0
      %744 = vmatpush2.msra.mxu0 0.0
      %745 = vmatprep.subr.mxu0 0.0
      %746 = vmatpush2.msra.mxu0 0.0
      %747 = vmatprep.subr.mxu0 0.0
      %748 = vmatpush2.msra.mxu0 0.0
      %749 = vmatprep.subr.mxu0 0.0
      %750 = vmatpush2.msra.mxu0 0.0
      %751 = vmatprep.subr.mxu0 0.0
      %752 = vmatpush2.msra.mxu0 0.0
      %753 = vmatprep.subr.mxu0 0.0
      %754 = vmatpush2.msra.mxu0 0.0
      %755 = vmatprep.subr.mxu0 0.0
      %756 = vmatpush2.msra.mxu0 0.0
      %757 = vmatprep.subr.mxu0 0.0
      %758 = vmatpush2.msra.mxu0 0.0
      %759 = vmatprep.subr.mxu0 0.0
      %760 = vmatpush2.msra.mxu0 0.0
      %761 = vmatprep.subr.mxu0 0.0
      %762 = vmatpush2.msra.mxu0 0.0
      %763 = vmatprep.subr.mxu0 0.0
      %764 = vmatpush2.msra.mxu0 0.0
      %765 = vmatprep.subr.mxu0 0.0
      %766 = vmatpush2.msra.mxu0 0.0
      %767 = vmatprep.subr.mxu0 0.0
      %768 = vmatpush2.msra.mxu0 0.0
      %769 = vmatprep.subr.mxu0 0.0
      %770 = vmatpush2.msra.mxu0 0.0
      %771 = vmatprep.subr.mxu0 0.0
      %772 = vmatpush2.msra.mxu0 0.0
      %773 = vmatprep.subr.mxu0 0.0
      %774 = vmatpush2.msra.mxu0 0.0
      %775 = vmatprep.mubr.f32.mxu0 0.0
      %776 = vmatmul.mubr.f32.gmra.mxu0 %v256
      %v777 = vpop.f32.mrf.mxu0
      %v778 = vadd.f32 0.0, %v777
      %v779 = vpop.f32.mrf.mxu0
      %780 = vdwg.mxu0
      %s781 = scalar_lea.vmem %s172, 24
      %782 = vst.msk [vmem:[%s781] sm:$0xff] %vm331, %v778
      %s783 = scalar_lea.vmem %s166, 16
      %v784 = vld [vmem:[%s783] sm:$0xf]
      %v786 = vsel %vm177, %v784, 0
      %788 = vmatprep.subr.mxu0 0.0
      %789 = vmatpush1.msra.mxu0 0.0
      %790 = vmatprep.subr.mxu0 0.0
      %791 = vmatpush1.msra.mxu0 0.0
      %792 = vmatprep.subr.mxu0 0.0
      %793 = vmatpush1.msra.mxu0 0.0
      %794 = vmatprep.subr.mxu0 0.0
      %795 = vmatpush1.msra.mxu0 0.0
      %796 = vmatprep.subr.mxu0 0.0
      %797 = vmatpush1.msra.mxu0 0.0
      %798 = vmatprep.subr.mxu0 0.0
      %799 = vmatpush1.msra.mxu0 0.0
      %800 = vmatprep.subr.mxu0 0.0
      %801 = vmatpush1.msra.mxu0 0.0
      %802 = vmatprep.subr.mxu0 0.0
      %803 = vmatpush1.msra.mxu0 0.0
      %804 = vmatprep.subr.mxu0 0.0
      %805 = vmatpush1.msra.mxu0 0.0
      %806 = vmatprep.subr.mxu0 0.0
      %807 = vmatpush1.msra.mxu0 0.0
      %808 = vmatprep.subr.mxu0 0.0
      %809 = vmatpush1.msra.mxu0 0.0
      %810 = vmatprep.subr.mxu0 0.0
      %811 = vmatpush1.msra.mxu0 0.0
      %812 = vmatprep.subr.mxu0 0.0
      %813 = vmatpush1.msra.mxu0 0.0
      %814 = vmatprep.subr.mxu0 0.0
      %815 = vmatpush1.msra.mxu0 0.0
      %816 = vmatprep.subr.mxu0 0.0
      %817 = vmatpush1.msra.mxu0 0.0
      %818 = vmatprep.subr.mxu0 0.0
      %819 = vmatpush1.msra.mxu0 %v183
      %820 = vmatprep.subr.mxu0 0.0
      %821 = vmatpush2.msra.mxu0 0.0
      %822 = vmatprep.subr.mxu0 0.0
      %823 = vmatpush2.msra.mxu0 0.0
      %824 = vmatprep.subr.mxu0 0.0
      %825 = vmatpush2.msra.mxu0 0.0
      %826 = vmatprep.subr.mxu0 0.0
      %827 = vmatpush2.msra.mxu0 0.0
      %828 = vmatprep.subr.mxu0 0.0
      %829 = vmatpush2.msra.mxu0 0.0
      %830 = vmatprep.subr.mxu0 0.0
      %831 = vmatpush2.msra.mxu0 0.0
      %832 = vmatprep.subr.mxu0 0.0
      %833 = vmatpush2.msra.mxu0 0.0
      %834 = vmatprep.subr.mxu0 0.0
      %835 = vmatpush2.msra.mxu0 0.0
      %836 = vmatprep.subr.mxu0 0.0
      %837 = vmatpush2.msra.mxu0 0.0
      %838 = vmatprep.subr.mxu0 0.0
      %839 = vmatpush2.msra.mxu0 0.0
      %840 = vmatprep.subr.mxu0 0.0
      %841 = vmatpush2.msra.mxu0 0.0
      %842 = vmatprep.subr.mxu0 0.0
      %843 = vmatpush2.msra.mxu0 0.0
      %844 = vmatprep.subr.mxu0 0.0
      %845 = vmatpush2.msra.mxu0 0.0
      %846 = vmatprep.subr.mxu0 0.0
      %847 = vmatpush2.msra.mxu0 0.0
      %848 = vmatprep.subr.mxu0 0.0
      %849 = vmatpush2.msra.mxu0 0.0
      %850 = vmatprep.subr.mxu0 0.0
      %851 = vmatpush2.msra.mxu0 0.0
      %852 = vmatprep.mubr.f32.mxu0 0.0
      %853 = vmatmul.mubr.f32.gmra.mxu0 %v786
      %v854 = vpop.f32.mrf.mxu0
      %v855 = vadd.f32 0.0, %v854
      %v856 = vpop.f32.mrf.mxu0
      %857 = vdwg.mxu0
      %v859 = vsel %vm181, %v855, 0
      %861 = vmatprep.subr.mxu0 0.0
      %862 = vmatpush1.msra.mxu0 0.0
      %863 = vmatprep.subr.mxu0 0.0
      %864 = vmatpush1.msra.mxu0 0.0
      %865 = vmatprep.subr.mxu0 0.0
      %866 = vmatpush1.msra.mxu0 0.0
      %867 = vmatprep.subr.mxu0 0.0
      %868 = vmatpush1.msra.mxu0 0.0
      %869 = vmatprep.subr.mxu0 0.0
      %870 = vmatpush1.msra.mxu0 0.0
      %871 = vmatprep.subr.mxu0 0.0
      %872 = vmatpush1.msra.mxu0 0.0
      %873 = vmatprep.subr.mxu0 0.0
      %874 = vmatpush1.msra.mxu0 0.0
      %875 = vmatprep.subr.mxu0 0.0
      %876 = vmatpush1.msra.mxu0 0.0
      %877 = vmatprep.subr.mxu0 0.0
      %878 = vmatpush1.msra.mxu0 0.0
      %879 = vmatprep.subr.mxu0 0.0
      %880 = vmatpush1.msra.mxu0 0.0
      %881 = vmatprep.subr.mxu0 0.0
      %882 = vmatpush1.msra.mxu0 0.0
      %883 = vmatprep.subr.mxu0 0.0
      %884 = vmatpush1.msra.mxu0 0.0
      %885 = vmatprep.subr.mxu0 0.0
      %886 = vmatpush1.msra.mxu0 0.0
      %887 = vmatprep.subr.mxu0 0.0
      %888 = vmatpush1.msra.mxu0 0.0
      %889 = vmatprep.subr.mxu0 0.0
      %890 = vmatpush1.msra.mxu0 0.0
      %891 = vmatprep.subr.mxu0 0.0
      %892 = vmatpush1.msra.mxu0 %v859
      %893 = vmatprep.subr.mxu0 0.0
      %894 = vmatpush2.msra.mxu0 0.0
      %895 = vmatprep.subr.mxu0 0.0
      %896 = vmatpush2.msra.mxu0 0.0
      %897 = vmatprep.subr.mxu0 0.0
      %898 = vmatpush2.msra.mxu0 0.0
      %899 = vmatprep.subr.mxu0 0.0
      %900 = vmatpush2.msra.mxu0 0.0
      %901 = vmatprep.subr.mxu0 0.0
      %902 = vmatpush2.msra.mxu0 0.0
      %903 = vmatprep.subr.mxu0 0.0
      %904 = vmatpush2.msra.mxu0 0.0
      %905 = vmatprep.subr.mxu0 0.0
      %906 = vmatpush2.msra.mxu0 0.0
      %907 = vmatprep.subr.mxu0 0.0
      %908 = vmatpush2.msra.mxu0 0.0
      %909 = vmatprep.subr.mxu0 0.0
      %910 = vmatpush2.msra.mxu0 0.0
      %911 = vmatprep.subr.mxu0 0.0
      %912 = vmatpush2.msra.mxu0 0.0
      %913 = vmatprep.subr.mxu0 0.0
      %914 = vmatpush2.msra.mxu0 0.0
      %915 = vmatprep.subr.mxu0 0.0
      %916 = vmatpush2.msra.mxu0 0.0
      %917 = vmatprep.subr.mxu0 0.0
      %918 = vmatpush2.msra.mxu0 0.0
      %919 = vmatprep.subr.mxu0 0.0
      %920 = vmatpush2.msra.mxu0 0.0
      %921 = vmatprep.subr.mxu0 0.0
      %922 = vmatpush2.msra.mxu0 0.0
      %923 = vmatprep.subr.mxu0 0.0
      %924 = vmatpush2.msra.mxu0 0.0
      %925 = vmatprep.mubr.f32.mxu0 0.0
      %926 = vmatmul.mubr.f32.gmra.mxu0 %v256
      %v927 = vpop.f32.mrf.mxu0
      %v928 = vadd.f32 0.0, %v927
      %v929 = vpop.f32.mrf.mxu0
      %930 = vdwg.mxu0
      %s931 = scalar_lea.vmem %s172, 32
      %932 = vst.msk [vmem:[%s931] sm:$0xff] %vm331, %v928
      %s933 = scalar_lea.vmem %s166, 20
      %v934 = vld [vmem:[%s933] sm:$0xf]
      %v936 = vsel %vm177, %v934, 0
      %938 = vmatprep.subr.mxu0 0.0
      %939 = vmatpush1.msra.mxu0 0.0
      %940 = vmatprep.subr.mxu0 0.0
      %941 = vmatpush1.msra.mxu0 0.0
      %942 = vmatprep.subr.mxu0 0.0
      %943 = vmatpush1.msra.mxu0 0.0
      %944 = vmatprep.subr.mxu0 0.0
      %945 = vmatpush1.msra.mxu0 0.0
      %946 = vmatprep.subr.mxu0 0.0
      %947 = vmatpush1.msra.mxu0 0.0
      %948 = vmatprep.subr.mxu0 0.0
      %949 = vmatpush1.msra.mxu0 0.0
      %950 = vmatprep.subr.mxu0 0.0
      %951 = vmatpush1.msra.mxu0 0.0
      %952 = vmatprep.subr.mxu0 0.0
      %953 = vmatpush1.msra.mxu0 0.0
      %954 = vmatprep.subr.mxu0 0.0
      %955 = vmatpush1.msra.mxu0 0.0
      %956 = vmatprep.subr.mxu0 0.0
      %957 = vmatpush1.msra.mxu0 0.0
      %958 = vmatprep.subr.mxu0 0.0
      %959 = vmatpush1.msra.mxu0 0.0
      %960 = vmatprep.subr.mxu0 0.0
      %961 = vmatpush1.msra.mxu0 0.0
      %962 = vmatprep.subr.mxu0 0.0
      %963 = vmatpush1.msra.mxu0 0.0
      %964 = vmatprep.subr.mxu0 0.0
      %965 = vmatpush1.msra.mxu0 0.0
      %966 = vmatprep.subr.mxu0 0.0
      %967 = vmatpush1.msra.mxu0 0.0
      %968 = vmatprep.subr.mxu0 0.0
      %969 = vmatpush1.msra.mxu0 %v183
      %970 = vmatprep.subr.mxu0 0.0
      %971 = vmatpush2.msra.mxu0 0.0
      %972 = vmatprep.subr.mxu0 0.0
      %973 = vmatpush2.msra.mxu0 0.0
      %974 = vmatprep.subr.mxu0 0.0
      %975 = vmatpush2.msra.mxu0 0.0
      %976 = vmatprep.subr.mxu0 0.0
      %977 = vmatpush2.msra.mxu0 0.0
      %978 = vmatprep.subr.mxu0 0.0
      %979 = vmatpush2.msra.mxu0 0.0
      %980 = vmatprep.subr.mxu0 0.0
      %981 = vmatpush2.msra.mxu0 0.0
      %982 = vmatprep.subr.mxu0 0.0
      %983 = vmatpush2.msra.mxu0 0.0
      %984 = vmatprep.subr.mxu0 0.0
      %985 = vmatpush2.msra.mxu0 0.0
      %986 = vmatprep.subr.mxu0 0.0
      %987 = vmatpush2.msra.mxu0 0.0
      %988 = vmatprep.subr.mxu0 0.0
      %989 = vmatpush2.msra.mxu0 0.0
      %990 = vmatprep.subr.mxu0 0.0
      %991 = vmatpush2.msra.mxu0 0.0
      %992 = vmatprep.subr.mxu0 0.0
      %993 = vmatpush2.msra.mxu0 0.0
      %994 = vmatprep.subr.mxu0 0.0
      %995 = vmatpush2.msra.mxu0 0.0
      %996 = vmatprep.subr.mxu0 0.0
      %997 = vmatpush2.msra.mxu0 0.0
      %998 = vmatprep.subr.mxu0 0.0
      %999 = vmatpush2.msra.mxu0 0.0
      %1000 = vmatprep.subr.mxu0 0.0
      %1001 = vmatpush2.msra.mxu0 0.0
      %1002 = vmatprep.mubr.f32.mxu0 0.0
      %1003 = vmatmul.mubr.f32.gmra.mxu0 %v936
      %v1004 = vpop.f32.mrf.mxu0
      %v1005 = vadd.f32 0.0, %v1004
      %v1006 = vpop.f32.mrf.mxu0
      %1007 = vdwg.mxu0
      %v1009 = vsel %vm181, %v1005, 0
      %1011 = vmatprep.subr.mxu0 0.0
      %1012 = vmatpush1.msra.mxu0 0.0
      %1013 = vmatprep.subr.mxu0 0.0
      %1014 = vmatpush1.msra.mxu0 0.0
      %1015 = vmatprep.subr.mxu0 0.0
      %1016 = vmatpush1.msra.mxu0 0.0
      %1017 = vmatprep.subr.mxu0 0.0
      %1018 = vmatpush1.msra.mxu0 0.0
      %1019 = vmatprep.subr.mxu0 0.0
      %1020 = vmatpush1.msra.mxu0 0.0
      %1021 = vmatprep.subr.mxu0 0.0
      %1022 = vmatpush1.msra.mxu0 0.0
      %1023 = vmatprep.subr.mxu0 0.0
      %1024 = vmatpush1.msra.mxu0 0.0
      %1025 = vmatprep.subr.mxu0 0.0
      %1026 = vmatpush1.msra.mxu0 0.0
      %1027 = vmatprep.subr.mxu0 0.0
      %1028 = vmatpush1.msra.mxu0 0.0
      %1029 = vmatprep.subr.mxu0 0.0
      %1030 = vmatpush1.msra.mxu0 0.0
      %1031 = vmatprep.subr.mxu0 0.0
      %1032 = vmatpush1.msra.mxu0 0.0
      %1033 = vmatprep.subr.mxu0 0.0
      %1034 = vmatpush1.msra.mxu0 0.0
      %1035 = vmatprep.subr.mxu0 0.0
      %1036 = vmatpush1.msra.mxu0 0.0
      %1037 = vmatprep.subr.mxu0 0.0
      %1038 = vmatpush1.msra.mxu0 0.0
      %1039 = vmatprep.subr.mxu0 0.0
      %1040 = vmatpush1.msra.mxu0 0.0
      %1041 = vmatprep.subr.mxu0 0.0
      %1042 = vmatpush1.msra.mxu0 %v1009
      %1043 = vmatprep.subr.mxu0 0.0
      %1044 = vmatpush2.msra.mxu0 0.0
      %1045 = vmatprep.subr.mxu0 0.0
      %1046 = vmatpush2.msra.mxu0 0.0
      %1047 = vmatprep.subr.mxu0 0.0
      %1048 = vmatpush2.msra.mxu0 0.0
      %1049 = vmatprep.subr.mxu0 0.0
      %1050 = vmatpush2.msra.mxu0 0.0
      %1051 = vmatprep.subr.mxu0 0.0
      %1052 = vmatpush2.msra.mxu0 0.0
      %1053 = vmatprep.subr.mxu0 0.0
      %1054 = vmatpush2.msra.mxu0 0.0
      %1055 = vmatprep.subr.mxu0 0.0
      %1056 = vmatpush2.msra.mxu0 0.0
      %1057 = vmatprep.subr.mxu0 0.0
      %1058 = vmatpush2.msra.mxu0 0.0
      %1059 = vmatprep.subr.mxu0 0.0
      %1060 = vmatpush2.msra.mxu0 0.0
      %1061 = vmatprep.subr.mxu0 0.0
      %1062 = vmatpush2.msra.mxu0 0.0
      %1063 = vmatprep.subr.mxu0 0.0
      %1064 = vmatpush2.msra.mxu0 0.0
      %1065 = vmatprep.subr.mxu0 0.0
      %1066 = vmatpush2.msra.mxu0 0.0
      %1067 = vmatprep.subr.mxu0 0.0
      %1068 = vmatpush2.msra.mxu0 0.0
      %1069 = vmatprep.subr.mxu0 0.0
      %1070 = vmatpush2.msra.mxu0 0.0
      %1071 = vmatprep.subr.mxu0 0.0
      %1072 = vmatpush2.msra.mxu0 0.0
      %1073 = vmatprep.subr.mxu0 0.0
      %1074 = vmatpush2.msra.mxu0 0.0
      %1075 = vmatprep.mubr.f32.mxu0 0.0
      %1076 = vmatmul.mubr.f32.gmra.mxu0 %v256
      %v1077 = vpop.f32.mrf.mxu0
      %v1078 = vadd.f32 0.0, %v1077
      %v1079 = vpop.f32.mrf.mxu0
      %1080 = vdwg.mxu0
      %s1081 = scalar_lea.vmem %s172, 40
      %1082 = vst.msk [vmem:[%s1081] sm:$0xff] %vm331, %v1078
      %s1083 = scalar_lea.vmem %s166, 24
      %v1084 = vld [vmem:[%s1083] sm:$0xf]
      %v1086 = vsel %vm177, %v1084, 0
      %1088 = vmatprep.subr.mxu0 0.0
      %1089 = vmatpush1.msra.mxu0 0.0
      %1090 = vmatprep.subr.mxu0 0.0
      %1091 = vmatpush1.msra.mxu0 0.0
      %1092 = vmatprep.subr.mxu0 0.0
      %1093 = vmatpush1.msra.mxu0 0.0
      %1094 = vmatprep.subr.mxu0 0.0
      %1095 = vmatpush1.msra.mxu0 0.0
      %1096 = vmatprep.subr.mxu0 0.0
      %1097 = vmatpush1.msra.mxu0 0.0
      %1098 = vmatprep.subr.mxu0 0.0
      %1099 = vmatpush1.msra.mxu0 0.0
      %1100 = vmatprep.subr.mxu0 0.0
      %1101 = vmatpush1.msra.mxu0 0.0
      %1102 = vmatprep.subr.mxu0 0.0
      %1103 = vmatpush1.msra.mxu0 0.0
      %1104 = vmatprep.subr.mxu0 0.0
      %1105 = vmatpush1.msra.mxu0 0.0
      %1106 = vmatprep.subr.mxu0 0.0
      %1107 = vmatpush1.msra.mxu0 0.0
      %1108 = vmatprep.subr.mxu0 0.0
      %1109 = vmatpush1.msra.mxu0 0.0
      %1110 = vmatprep.subr.mxu0 0.0
      %1111 = vmatpush1.msra.mxu0 0.0
      %1112 = vmatprep.subr.mxu0 0.0
      %1113 = vmatpush1.msra.mxu0 0.0
      %1114 = vmatprep.subr.mxu0 0.0
      %1115 = vmatpush1.msra.mxu0 0.0
      %1116 = vmatprep.subr.mxu0 0.0
      %1117 = vmatpush1.msra.mxu0 0.0
      %1118 = vmatprep.subr.mxu0 0.0
      %1119 = vmatpush1.msra.mxu0 %v183
      %1120 = vmatprep.subr.mxu0 0.0
      %1121 = vmatpush2.msra.mxu0 0.0
      %1122 = vmatprep.subr.mxu0 0.0
      %1123 = vmatpush2.msra.mxu0 0.0
      %1124 = vmatprep.subr.mxu0 0.0
      %1125 = vmatpush2.msra.mxu0 0.0
      %1126 = vmatprep.subr.mxu0 0.0
      %1127 = vmatpush2.msra.mxu0 0.0
      %1128 = vmatprep.subr.mxu0 0.0
      %1129 = vmatpush2.msra.mxu0 0.0
      %1130 = vmatprep.subr.mxu0 0.0
      %1131 = vmatpush2.msra.mxu0 0.0
      %1132 = vmatprep.subr.mxu0 0.0
      %1133 = vmatpush2.msra.mxu0 0.0
      %1134 = vmatprep.subr.mxu0 0.0
      %1135 = vmatpush2.msra.mxu0 0.0
      %1136 = vmatprep.subr.mxu0 0.0
      %1137 = vmatpush2.msra.mxu0 0.0
      %1138 = vmatprep.subr.mxu0 0.0
      %1139 = vmatpush2.msra.mxu0 0.0
      %1140 = vmatprep.subr.mxu0 0.0
      %1141 = vmatpush2.msra.mxu0 0.0
      %1142 = vmatprep.subr.mxu0 0.0
      %1143 = vmatpush2.msra.mxu0 0.0
      %1144 = vmatprep.subr.mxu0 0.0
      %1145 = vmatpush2.msra.mxu0 0.0
      %1146 = vmatprep.subr.mxu0 0.0
      %1147 = vmatpush2.msra.mxu0 0.0
      %1148 = vmatprep.subr.mxu0 0.0
      %1149 = vmatpush2.msra.mxu0 0.0
      %1150 = vmatprep.subr.mxu0 0.0
      %1151 = vmatpush2.msra.mxu0 0.0
      %1152 = vmatprep.mubr.f32.mxu0 0.0
      %1153 = vmatmul.mubr.f32.gmra.mxu0 %v1086
      %v1154 = vpop.f32.mrf.mxu0
      %v1155 = vadd.f32 0.0, %v1154
      %v1156 = vpop.f32.mrf.mxu0
      %1157 = vdwg.mxu0
      %v1159 = vsel %vm181, %v1155, 0
      %1161 = vmatprep.subr.mxu0 0.0
      %1162 = vmatpush1.msra.mxu0 0.0
      %1163 = vmatprep.subr.mxu0 0.0
      %1164 = vmatpush1.msra.mxu0 0.0
      %1165 = vmatprep.subr.mxu0 0.0
      %1166 = vmatpush1.msra.mxu0 0.0
      %1167 = vmatprep.subr.mxu0 0.0
      %1168 = vmatpush1.msra.mxu0 0.0
      %1169 = vmatprep.subr.mxu0 0.0
      %1170 = vmatpush1.msra.mxu0 0.0
      %1171 = vmatprep.subr.mxu0 0.0
      %1172 = vmatpush1.msra.mxu0 0.0
      %1173 = vmatprep.subr.mxu0 0.0
      %1174 = vmatpush1.msra.mxu0 0.0
      %1175 = vmatprep.subr.mxu0 0.0
      %1176 = vmatpush1.msra.mxu0 0.0
      %1177 = vmatprep.subr.mxu0 0.0
      %1178 = vmatpush1.msra.mxu0 0.0
      %1179 = vmatprep.subr.mxu0 0.0
      %1180 = vmatpush1.msra.mxu0 0.0
      %1181 = vmatprep.subr.mxu0 0.0
      %1182 = vmatpush1.msra.mxu0 0.0
      %1183 = vmatprep.subr.mxu0 0.0
      %1184 = vmatpush1.msra.mxu0 0.0
      %1185 = vmatprep.subr.mxu0 0.0
      %1186 = vmatpush1.msra.mxu0 0.0
      %1187 = vmatprep.subr.mxu0 0.0
      %1188 = vmatpush1.msra.mxu0 0.0
      %1189 = vmatprep.subr.mxu0 0.0
      %1190 = vmatpush1.msra.mxu0 0.0
      %1191 = vmatprep.subr.mxu0 0.0
      %1192 = vmatpush1.msra.mxu0 %v1159
      %1193 = vmatprep.subr.mxu0 0.0
      %1194 = vmatpush2.msra.mxu0 0.0
      %1195 = vmatprep.subr.mxu0 0.0
      %1196 = vmatpush2.msra.mxu0 0.0
      %1197 = vmatprep.subr.mxu0 0.0
      %1198 = vmatpush2.msra.mxu0 0.0
      %1199 = vmatprep.subr.mxu0 0.0
      %1200 = vmatpush2.msra.mxu0 0.0
      %1201 = vmatprep.subr.mxu0 0.0
      %1202 = vmatpush2.msra.mxu0 0.0
      %1203 = vmatprep.subr.mxu0 0.0
      %1204 = vmatpush2.msra.mxu0 0.0
      %1205 = vmatprep.subr.mxu0 0.0
      %1206 = vmatpush2.msra.mxu0 0.0
      %1207 = vmatprep.subr.mxu0 0.0
      %1208 = vmatpush2.msra.mxu0 0.0
      %1209 = vmatprep.subr.mxu0 0.0
      %1210 = vmatpush2.msra.mxu0 0.0
      %1211 = vmatprep.subr.mxu0 0.0
      %1212 = vmatpush2.msra.mxu0 0.0
      %1213 = vmatprep.subr.mxu0 0.0
      %1214 = vmatpush2.msra.mxu0 0.0
      %1215 = vmatprep.subr.mxu0 0.0
      %1216 = vmatpush2.msra.mxu0 0.0
      %1217 = vmatprep.subr.mxu0 0.0
      %1218 = vmatpush2.msra.mxu0 0.0
      %1219 = vmatprep.subr.mxu0 0.0
      %1220 = vmatpush2.msra.mxu0 0.0
      %1221 = vmatprep.subr.mxu0 0.0
      %1222 = vmatpush2.msra.mxu0 0.0
      %1223 = vmatprep.subr.mxu0 0.0
      %1224 = vmatpush2.msra.mxu0 0.0
      %1225 = vmatprep.mubr.f32.mxu0 0.0
      %1226 = vmatmul.mubr.f32.gmra.mxu0 %v256
      %v1227 = vpop.f32.mrf.mxu0
      %v1228 = vadd.f32 0.0, %v1227
      %v1229 = vpop.f32.mrf.mxu0
      %1230 = vdwg.mxu0
      %s1231 = scalar_lea.vmem %s172, 48
      %1232 = vst.msk [vmem:[%s1231] sm:$0xff] %vm331, %v1228
      %s1233 = scalar_lea.vmem %s166, 28
      %v1234 = vld [vmem:[%s1233] sm:$0xf]
      %v1236 = vsel %vm177, %v1234, 0
      %1238 = vmatprep.subr.mxu0 0.0
      %1239 = vmatpush1.msra.mxu0 0.0
      %1240 = vmatprep.subr.mxu0 0.0
      %1241 = vmatpush1.msra.mxu0 0.0
      %1242 = vmatprep.subr.mxu0 0.0
      %1243 = vmatpush1.msra.mxu0 0.0
      %1244 = vmatprep.subr.mxu0 0.0
      %1245 = vmatpush1.msra.mxu0 0.0
      %1246 = vmatprep.subr.mxu0 0.0
      %1247 = vmatpush1.msra.mxu0 0.0
      %1248 = vmatprep.subr.mxu0 0.0
      %1249 = vmatpush1.msra.mxu0 0.0
      %1250 = vmatprep.subr.mxu0 0.0
      %1251 = vmatpush1.msra.mxu0 0.0
      %1252 = vmatprep.subr.mxu0 0.0
      %1253 = vmatpush1.msra.mxu0 0.0
      %1254 = vmatprep.subr.mxu0 0.0
      %1255 = vmatpush1.msra.mxu0 0.0
      %1256 = vmatprep.subr.mxu0 0.0
      %1257 = vmatpush1.msra.mxu0 0.0
      %1258 = vmatprep.subr.mxu0 0.0
      %1259 = vmatpush1.msra.mxu0 0.0
      %1260 = vmatprep.subr.mxu0 0.0
      %1261 = vmatpush1.msra.mxu0 0.0
      %1262 = vmatprep.subr.mxu0 0.0
      %1263 = vmatpush1.msra.mxu0 0.0
      %1264 = vmatprep.subr.mxu0 0.0
      %1265 = vmatpush1.msra.mxu0 0.0
      %1266 = vmatprep.subr.mxu0 0.0
      %1267 = vmatpush1.msra.mxu0 0.0
      %1268 = vmatprep.subr.mxu0 0.0
      %1269 = vmatpush1.msra.mxu0 %v183
      %1270 = vmatprep.subr.mxu0 0.0
      %1271 = vmatpush2.msra.mxu0 0.0
      %1272 = vmatprep.subr.mxu0 0.0
      %1273 = vmatpush2.msra.mxu0 0.0
      %1274 = vmatprep.subr.mxu0 0.0
      %1275 = vmatpush2.msra.mxu0 0.0
      %1276 = vmatprep.subr.mxu0 0.0
      %1277 = vmatpush2.msra.mxu0 0.0
      %1278 = vmatprep.subr.mxu0 0.0
      %1279 = vmatpush2.msra.mxu0 0.0
      %1280 = vmatprep.subr.mxu0 0.0
      %1281 = vmatpush2.msra.mxu0 0.0
      %1282 = vmatprep.subr.mxu0 0.0
      %1283 = vmatpush2.msra.mxu0 0.0
      %1284 = vmatprep.subr.mxu0 0.0
      %1285 = vmatpush2.msra.mxu0 0.0
      %1286 = vmatprep.subr.mxu0 0.0
      %1287 = vmatpush2.msra.mxu0 0.0
      %1288 = vmatprep.subr.mxu0 0.0
      %1289 = vmatpush2.msra.mxu0 0.0
      %1290 = vmatprep.subr.mxu0 0.0
      %1291 = vmatpush2.msra.mxu0 0.0
      %1292 = vmatprep.subr.mxu0 0.0
      %1293 = vmatpush2.msra.mxu0 0.0
      %1294 = vmatprep.subr.mxu0 0.0
      %1295 = vmatpush2.msra.mxu0 0.0
      %1296 = vmatprep.subr.mxu0 0.0
      %1297 = vmatpush2.msra.mxu0 0.0
      %1298 = vmatprep.subr.mxu0 0.0
      %1299 = vmatpush2.msra.mxu0 0.0
      %1300 = vmatprep.subr.mxu0 0.0
      %1301 = vmatpush2.msra.mxu0 0.0
      %1302 = vmatprep.mubr.f32.mxu0 0.0
      %1303 = vmatmul.mubr.f32.gmra.mxu0 %v1236
      %v1304 = vpop.f32.mrf.mxu0
      %v1305 = vadd.f32 0.0, %v1304
      %v1306 = vpop.f32.mrf.mxu0
      %1307 = vdwg.mxu0
      %v1309 = vsel %vm181, %v1305, 0
      %1311 = vmatprep.subr.mxu0 0.0
      %1312 = vmatpush1.msra.mxu0 0.0
      %1313 = vmatprep.subr.mxu0 0.0
      %1314 = vmatpush1.msra.mxu0 0.0
      %1315 = vmatprep.subr.mxu0 0.0
      %1316 = vmatpush1.msra.mxu0 0.0
      %1317 = vmatprep.subr.mxu0 0.0
      %1318 = vmatpush1.msra.mxu0 0.0
      %1319 = vmatprep.subr.mxu0 0.0
      %1320 = vmatpush1.msra.mxu0 0.0
      %1321 = vmatprep.subr.mxu0 0.0
      %1322 = vmatpush1.msra.mxu0 0.0
      %1323 = vmatprep.subr.mxu0 0.0
      %1324 = vmatpush1.msra.mxu0 0.0
      %1325 = vmatprep.subr.mxu0 0.0
      %1326 = vmatpush1.msra.mxu0 0.0
      %1327 = vmatprep.subr.mxu0 0.0
      %1328 = vmatpush1.msra.mxu0 0.0
      %1329 = vmatprep.subr.mxu0 0.0
      %1330 = vmatpush1.msra.mxu0 0.0
      %1331 = vmatprep.subr.mxu0 0.0
      %1332 = vmatpush1.msra.mxu0 0.0
      %1333 = vmatprep.subr.mxu0 0.0
      %1334 = vmatpush1.msra.mxu0 0.0
      %1335 = vmatprep.subr.mxu0 0.0
      %1336 = vmatpush1.msra.mxu0 0.0
      %1337 = vmatprep.subr.mxu0 0.0
      %1338 = vmatpush1.msra.mxu0 0.0
      %1339 = vmatprep.subr.mxu0 0.0
      %1340 = vmatpush1.msra.mxu0 0.0
      %1341 = vmatprep.subr.mxu0 0.0
      %1342 = vmatpush1.msra.mxu0 %v1309
      %1343 = vmatprep.subr.mxu0 0.0
      %1344 = vmatpush2.msra.mxu0 0.0
      %1345 = vmatprep.subr.mxu0 0.0
      %1346 = vmatpush2.msra.mxu0 0.0
      %1347 = vmatprep.subr.mxu0 0.0
      %1348 = vmatpush2.msra.mxu0 0.0
      %1349 = vmatprep.subr.mxu0 0.0
      %1350 = vmatpush2.msra.mxu0 0.0
      %1351 = vmatprep.subr.mxu0 0.0
      %1352 = vmatpush2.msra.mxu0 0.0
      %1353 = vmatprep.subr.mxu0 0.0
      %1354 = vmatpush2.msra.mxu0 0.0
      %1355 = vmatprep.subr.mxu0 0.0
      %1356 = vmatpush2.msra.mxu0 0.0
      %1357 = vmatprep.subr.mxu0 0.0
      %1358 = vmatpush2.msra.mxu0 0.0
      %1359 = vmatprep.subr.mxu0 0.0
      %1360 = vmatpush2.msra.mxu0 0.0
      %1361 = vmatprep.subr.mxu0 0.0
      %1362 = vmatpush2.msra.mxu0 0.0
      %1363 = vmatprep.subr.mxu0 0.0
      %1364 = vmatpush2.msra.mxu0 0.0
      %1365 = vmatprep.subr.mxu0 0.0
      %1366 = vmatpush2.msra.mxu0 0.0
      %1367 = vmatprep.subr.mxu0 0.0
      %1368 = vmatpush2.msra.mxu0 0.0
      %1369 = vmatprep.subr.mxu0 0.0
      %1370 = vmatpush2.msra.mxu0 0.0
      %1371 = vmatprep.subr.mxu0 0.0
      %1372 = vmatpush2.msra.mxu0 0.0
      %1373 = vmatprep.subr.mxu0 0.0
      %1374 = vmatpush2.msra.mxu0 0.0
      %1375 = vmatprep.mubr.f32.mxu0 0.0
      %1376 = vmatmul.mubr.f32.gmra.mxu0 %v256
      %v1377 = vpop.f32.mrf.mxu0
      %v1378 = vadd.f32 0.0, %v1377
      %v1379 = vpop.f32.mrf.mxu0
      %1380 = vdwg.mxu0
      %s1381 = scalar_lea.vmem %s172, 56
      %1382 = vst.msk [vmem:[%s1381] sm:$0xff] %vm331, %v1378
      %s1383 = smul.u32 8, %s14
      %p1384 = scmp.lt.s32.totalorder %s1383, 15
      %s1385 = scalar_select %p1384, %s1383, 15
      %s1386 = smul.addr %s1385, 8
      %s1387 = scalar_lea.vmem %s3, %s1386
      // Predicated region
      $region33: #{forward.30} parent=31 // pred_check
        %p1388 = pneg %p100
      $region34: #{forward.30} parent=31 // pred_check_branch
        %1390 = sbr.rel (%p1388) target = $region36
      $region35: #{forward.30} parent=31 // pred_region
        %s1391 = smul.u32 8, %s14
      $region36: #{forward.30} parent=31 // pred_fallthru
        _
    $region32: #{forward.30} parent=5 // pred_fallthru
      _
    %p1392 = scmp.le.s32.totalorder 2, %s9
    // Predicated region
    $region37: #{forward.30} parent=5 // pred_check
      %p1393 = pneg %p1392
    $region38: #{forward.30} parent=5 // pred_check_branch
      %1395 = sbr.rel (%p1393) target = $region40
    $region39: #{forward.30} parent=5 // pred_region
      %s1396 = ssub.s32 %s9, 2
      // Predicated region
      $region41: #{forward.30} parent=39 // pred_check
        %p1397 = pneg %p106
      $region42: #{forward.30} parent=39 // pred_check_branch
        %1399 = sbr.rel (%p1397) target = $region44
      $region43: #{forward.30} parent=39 // pred_region
        %s1400 = smul.u32 8, %s15
        %p1401 = scmp.lt.s32.totalorder %s1400, 15
        %s1402 = scalar_select %p1401, %s1400, 15
        %s1403 = smul.addr %s1402, 8
        %s1404 = scalar_lea.vmem %s3, %s1403
      $region44: #{forward.30} parent=39 // pred_fallthru
        _
    $region40: #{forward.30} parent=5 // pred_fallthru
      _
  $region6: #{forward.30} parent=0 // loop_footer
    %s13 = sadd.s32 1, %s9
  $region7: #{forward.30} parent=0 // loop_footer_branch
    %8 = sbr.rel target = $region3
  $region8: #{forward.30} parent=0 // loop_exit
    _

// kernel: forward.31
$region0: #{forward.31}
  #allocation0 [shape = 'u32[]', space=smem, size = 0x4, offset = 0x4, fixed_abs, tag = 'smem constant byte address 0x4 - core index']
  #allocation1 [shape = 'u32[144,128]{1,0:T(1,128)}', space=vmem, size = 0x12000, scoped, tag = 'internal scratch']
  %s0 = inlined_call_operand.vmem [shape: bf16[8,32], index: 0, kind: input, shape index: {}]
  %s1 = inlined_call_operand.vmem [shape: bf16[32,128], index: 1, kind: input, shape index: {}]
  %s2 = inlined_call_operand.vmem [shape: f32[8,128], index: 2, kind: input, shape index: {}]
  %s3 = inlined_call_operand.vmem [shape: f32[8,128], index: 3, kind: output, shape index: {}]
  %s4 = sld [smem:[#allocation0]]
  $region22: #{forward.31} parent=0
    _
  %s6 = ssub.s32 1, %s4
  %s7 = scalar_select 0, %s6, %s4
  // Predicated region
  $region2: #{forward.31} parent=0 // pred_check
    _
  $region3: #{forward.31} parent=0 // pred_check_branch
    %9 = sbr.rel (0) target = $region5
  $region4: #{forward.31} parent=0 // pred_region
    _
  $region5: #{forward.31} parent=0 // pred_fallthru
    _
  // Predicated region
  $region6: #{forward.31} parent=0 // pred_check
    _
  $region7: #{forward.31} parent=0 // pred_check_branch
    %11 = sbr.rel (0) target = $region9
  $region8: #{forward.31} parent=0 // pred_region
    _
  $region9: #{forward.31} parent=0 // pred_fallthru
    _
  // Predicated region
  $region10: #{forward.31} parent=0 // pred_check
    _
  $region11: #{forward.31} parent=0 // pred_check_branch
    %13 = sbr.rel (0) target = $region13
  $region12: #{forward.31} parent=0 // pred_region
    _
  $region13: #{forward.31} parent=0 // pred_fallthru
    _
  %v15 = vld [vmem:[%s0] sm:$0xf]
  %v16 = vld [vmem:[%s1] sm:$0xf]
  %v17 = vld [vmem:[%s1 + $0x4] sm:$0xf]
  %v18 = vld [vmem:[%s1 + $0x8] sm:$0xf]
  %v19 = vld [vmem:[%s1 + $0xc] sm:$0xf]
  %v20 = vld [vmem:[%s2] sm:$0xff]
  %v25 = vunpack.c.l.b16 %v16
  %v26 = vunpack.c.l.b16 %v17
  %v27 = vunpack.c.l.b16 %v18
  %v28 = vunpack.c.l.b16 %v19
  %v29 = vpack.c.b16 %v26, %v25
  %v30 = vpack.c.b16 %v28, %v27
  %vm33 = vcmask 261120
  %v35 = vsel %vm33, %v15, 0
  %37 = vmatprep.subr.bf16.mxu0 0
  %38 = vmatpush1.bf16.msra.mxu0 0
  %39 = vmatprep.subr.bf16.mxu0 0
  %40 = vmatpush1.bf16.msra.mxu0 0
  %41 = vmatprep.subr.bf16.mxu0 0
  %42 = vmatpush1.bf16.msra.mxu0 0
  %43 = vmatprep.subr.bf16.mxu0 0
  %44 = vmatpush1.bf16.msra.mxu0 0
  %45 = vmatprep.subr.bf16.mxu0 0
  %46 = vmatpush1.bf16.msra.mxu0 0
  %47 = vmatprep.subr.bf16.mxu0 0
  %48 = vmatpush1.bf16.msra.mxu0 0
  %49 = vmatprep.subr.bf16.mxu0 0
  %50 = vmatpush1.bf16.msra.mxu0 %v30
  %51 = vmatprep.subr.bf16.mxu0 0
  %52 = vmatpush1.bf16.msra.mxu0 %v29
  %53 = vmatprep.subr.bf16.mxu0 0
  %54 = vmatpush2.bf16.msra.mxu0 0
  %55 = vmatprep.subr.bf16.mxu0 0
  %56 = vmatpush2.bf16.msra.mxu0 0
  %57 = vmatprep.subr.bf16.mxu0 0
  %58 = vmatpush2.bf16.msra.mxu0 0
  %59 = vmatprep.subr.bf16.mxu0 0
  %60 = vmatpush2.bf16.msra.mxu0 0
  %61 = vmatprep.subr.bf16.mxu0 0
  %62 = vmatpush2.bf16.msra.mxu0 0
  %63 = vmatprep.subr.bf16.mxu0 0
  %64 = vmatpush2.bf16.msra.mxu0 0
  %65 = vmatprep.subr.bf16.mxu0 0
  %66 = vmatpush2.bf16.msra.mxu0 0
  %67 = vmatprep.subr.bf16.mxu0 0
  %68 = vmatpush2.bf16.msra.mxu0 0
  %69 = vmatprep.mubr.bf16.mxu0 0
  %70 = vmatmul.mubr.bf16.gmra.mxu0 %v35
  %v71 = vpop.f32.mrf.mxu0
  %v72 = vadd.f32 %v20, %v71
  %v73 = vpop.f32.mrf.mxu0
  %v74 = vpop.f32.mrf.mxu0
  %v75 = vpop.f32.mrf.mxu0
  %76 = vdwg.mxu0
  %v77 = vmax.f32 %v72, 0.0
  %78 = vst [vmem:[%s3] sm:$0xff] %v77
  // Predicated region
  $region14: #{forward.31} parent=0 // pred_check
    _
  $region15: #{forward.31} parent=0 // pred_check_branch
    %80 = sbr.rel (0) target = $region17
  $region16: #{forward.31} parent=0 // pred_region
    _
  $region17: #{forward.31} parent=0 // pred_fallthru
    _
  // Predicated region
  $region18: #{forward.31} parent=0 // pred_check
    _
  $region19: #{forward.31} parent=0 // pred_check_branch
    %82 = sbr.rel (0) target = $region21
  $region20: #{forward.31} parent=0 // pred_region
    _
  $region21: #{forward.31} parent=0 // pred_fallthru
    _

// kernel: forward.32
$region0: #{forward.32}
  #allocation0 [shape = 'u32[]', space=smem, size = 0x4, offset = 0x4, fixed_abs, tag = 'smem constant byte address 0x4 - core index']
  #allocation1 [shape = 'u32[144,128]{1,0:T(1,128)}', space=vmem, size = 0x12000, scoped, tag = 'internal scratch']
  #allocation2 [shape = 'f32[1,1]{1,0:T(1,128)S(1)}', space=vmem, size = 0x200, scoped, tag = 'scoped memory for forward.32']
  %s0 = inlined_call_operand.vmem [shape: bf16[1,8], index: 0, kind: input, shape index: {}]
  %s1 = inlined_call_operand.vmem [shape: bf16[8,128], index: 1, kind: input, shape index: {}]
  %s2 = inlined_call_operand.<no memory space> [shape: f32[1,1], index: 2, kind: input, shape index: {}]
  %s3 = inlined_call_operand.vmem [shape: f32[1,128], index: 3, kind: output, shape index: {}]
  %s4 = sld [smem:[#allocation0]]
  $region22: #{forward.32} parent=0
    _
  %s6 = ssub.s32 1, %s4
  %s7 = scalar_select 0, %s6, %s4
  %v8 = vstv %s2
  %9 = vst [vmem:[#allocation2] sm:$0x1] %v8
  // Predicated region
  $region2: #{forward.32} parent=0 // pred_check
    _
  $region3: #{forward.32} parent=0 // pred_check_branch
    %11 = sbr.rel (0) target = $region5
  $region4: #{forward.32} parent=0 // pred_region
    _
  $region5: #{forward.32} parent=0 // pred_fallthru
    _
  // Predicated region
  $region6: #{forward.32} parent=0 // pred_check
    _
  $region7: #{forward.32} parent=0 // pred_check_branch
    %13 = sbr.rel (0) target = $region9
  $region8: #{forward.32} parent=0 // pred_region
    _
  $region9: #{forward.32} parent=0 // pred_fallthru
    _
  // Predicated region
  $region10: #{forward.32} parent=0 // pred_check
    _
  $region11: #{forward.32} parent=0 // pred_check_branch
    %15 = sbr.rel (0) target = $region13
  $region12: #{forward.32} parent=0 // pred_region
    _
  $region13: #{forward.32} parent=0 // pred_fallthru
    _
  %v17 = vld [vmem:[%s0] sm:$0x1]
  %v18 = vld [vmem:[%s1] sm:$0xf]
  %v19 = vld [vmem:[#allocation2] sm:$0x1]
  %21 = vset.pattern.permute.xlu0 0
  %22 = vperm.xlu0 %21, %v19
  %v23 = vpop.permute.xlu0 %22
  %v25 = vlaneseq
  %v26 = vshrl.u32 %v25, 7
  %v27 = vsub.s32 0, %v26
  %v28 = vrot.slane %v23, %v27
  %vm29 = vcmask 64512
  %v31 = vsel %vm29, %v17, 0
  %vm33 = vcmask 1043456
  %v35 = vsel %vm33, %v18, 0
  %37 = vmatprep.subr.bf16.mxu0 0
  %38 = vmatpush1.bf16.msra.mxu0 0
  %39 = vmatprep.subr.bf16.mxu0 0
  %40 = vmatpush1.bf16.msra.mxu0 0
  %41 = vmatprep.subr.bf16.mxu0 0
  %42 = vmatpush1.bf16.msra.mxu0 0
  %43 = vmatprep.subr.bf16.mxu0 0
  %44 = vmatpush1.bf16.msra.mxu0 0
  %45 = vmatprep.subr.bf16.mxu0 0
  %46 = vmatpush1.bf16.msra.mxu0 0
  %47 = vmatprep.subr.bf16.mxu0 0
  %48 = vmatpush1.bf16.msra.mxu0 0
  %49 = vmatprep.subr.bf16.mxu0 0
  %50 = vmatpush1.bf16.msra.mxu0 0
  %51 = vmatprep.subr.bf16.mxu0 0
  %52 = vmatpush1.bf16.msra.mxu0 %v35
  %53 = vmatprep.subr.bf16.mxu0 0
  %54 = vmatpush2.bf16.msra.mxu0 0
  %55 = vmatprep.subr.bf16.mxu0 0
  %56 = vmatpush2.bf16.msra.mxu0 0
  %57 = vmatprep.subr.bf16.mxu0 0
  %58 = vmatpush2.bf16.msra.mxu0 0
  %59 = vmatprep.subr.bf16.mxu0 0
  %60 = vmatpush2.bf16.msra.mxu0 0
  %61 = vmatprep.subr.bf16.mxu0 0
  %62 = vmatpush2.bf16.msra.mxu0 0
  %63 = vmatprep.subr.bf16.mxu0 0
  %64 = vmatpush2.bf16.msra.mxu0 0
  %65 = vmatprep.subr.bf16.mxu0 0
  %66 = vmatpush2.bf16.msra.mxu0 0
  %67 = vmatprep.subr.bf16.mxu0 0
  %68 = vmatpush2.bf16.msra.mxu0 0
  %69 = vmatprep.mubr.bf16.mxu0 0
  %70 = vmatmul.mubr.bf16.gmra.mxu0 %v31
  %v71 = vpop.f32.mrf.mxu0
  %v72 = vadd.f32 %v28, %v71
  %v73 = vpop.f32.mrf.mxu0
  %v74 = vpop.f32.mrf.mxu0
  %v75 = vpop.f32.mrf.mxu0
  %76 = vdwg.mxu0
  %v77 = vxor.u32 %v72, 2147483648
  %v78 = vmul.f32 %v77, 1.442695
  %v79 = vpow.pop %v78
  %v80 = vadd.f32 %v79, 1.0
  %v81 = vrcp.pop %v80
  %v82 = vmul.f32 1.0, %v81
  %83 = vst [vmem:[%s3] sm:$0x1] %v82
  // Predicated region
  $region14: #{forward.32} parent=0 // pred_check
    _
  $region15: #{forward.32} parent=0 // pred_check_branch
    %85 = sbr.rel (0) target = $region17
  $region16: #{forward.32} parent=0 // pred_region
    _
  $region17: #{forward.32} parent=0 // pred_fallthru
    _
  // Predicated region
  $region18: #{forward.32} parent=0 // pred_check
    _
  $region19: #{forward.32} parent=0 // pred_check_branch
    %87 = sbr.rel (0) target = $region21
  $region20: #{forward.32} parent=0 // pred_region
    _
  $region21: #{forward.32} parent=0 // pred_fallthru
    _

// kernel: forward.33
$region0: #{forward.33}
  #allocation0 [shape = 'u32[]', space=smem, size = 0x4, offset = 0x4, fixed_abs, tag = 'smem constant byte address 0x4 - core index']
  #allocation1 [shape = 'u32[144,128]{1,0:T(1,128)}', space=vmem, size = 0x12000, scoped, tag = 'internal scratch']
  %s0 = inlined_call_operand.vmem [shape: f32[2,8,8], index: 0, kind: input, shape index: {}]
  %s1 = inlined_call_operand.vmem [shape: f32[8,16], index: 1, kind: input, shape index: {}]
  %s2 = inlined_call_operand.vmem [shape: f32[16,8], index: 2, kind: input, shape index: {}]
  %s3 = inlined_call_operand.hbm [shape: f32[2,16,16], index: 3, kind: output, shape index: {}]
  %s4 = sld [smem:[#allocation0]]
  $region22: #{forward.33} parent=0
    _
  %s6 = ssub.s32 1, %s4
  %s7 = scalar_select 0, %s6, %s4
  $region1: #{forward.33} parent=0
    #allocation2 [shape = 'u8[16384]{0}', space=vmem, size = 0x4000, scoped, tag = 'output window, operand 0, single buffered']
    #allocation3 [shape = 's32[1]{0}', space=sflag, size = 0x4, scoped, tag = 'scoped memory for forward.33']
    %8 = vsyncpa [#allocation3], 0
    // Predicated region
    $region2: #{forward.33} parent=1 // pred_check
      _
    $region3: #{forward.33} parent=1 // pred_check_branch
      %10 = sbr.rel (0) target = $region5
    $region4: #{forward.33} parent=1 // pred_region
      _
    $region5: #{forward.33} parent=1 // pred_fallthru
      _
    // Predicated region
    $region6: #{forward.33} parent=1 // pred_check
      _
    $region7: #{forward.33} parent=1 // pred_check_branch
      %12 = sbr.rel (0) target = $region9
    $region8: #{forward.33} parent=1 // pred_region
      _
    $region9: #{forward.33} parent=1 // pred_fallthru
      _
    // Predicated region
    $region10: #{forward.33} parent=1 // pred_check
      _
    $region11: #{forward.33} parent=1 // pred_check_branch
      %14 = sbr.rel (0) target = $region13
    $region12: #{forward.33} parent=1 // pred_region
      _
    $region13: #{forward.33} parent=1 // pred_fallthru
      _
    %v15 = vld [vmem:[%s1] sm:$0xff]
    %v16 = vld [vmem:[%s2] sm:$0xff]
    %v17 = vld [vmem:[%s2 + $0x8] sm:$0xff]
    %v18 = vld [vmem:[%s0] sm:$0xff]
    %vm19 = vcmask 64512
    %v21 = vsel %vm19, %v18, 0
    %23 = vmatprep.subr.mxu0 0.0
    %24 = vmatpush1.msra.mxu0 0.0
    %25 = vmatprep.subr.mxu0 0.0
    %26 = vmatpush1.msra.mxu0 0.0
    %27 = vmatprep.subr.mxu0 0.0
    %28 = vmatpush1.msra.mxu0 0.0
    %29 = vmatprep.subr.mxu0 0.0
    %30 = vmatpush1.msra.mxu0 0.0
    %31 = vmatprep.subr.mxu0 0.0
    %32 = vmatpush1.msra.mxu0 0.0
    %33 = vmatprep.subr.mxu0 0.0
    %34 = vmatpush1.msra.mxu0 0.0
    %35 = vmatprep.subr.mxu0 0.0
    %36 = vmatpush1.msra.mxu0 0.0
    %37 = vmatprep.subr.mxu0 0.0
    %38 = vmatpush1.msra.mxu0 0.0
    %39 = vmatprep.subr.mxu0 0.0
    %40 = vmatpush1.msra.mxu0 0.0
    %41 = vmatprep.subr.mxu0 0.0
    %42 = vmatpush1.msra.mxu0 0.0
    %43 = vmatprep.subr.mxu0 0.0
    %44 = vmatpush1.msra.mxu0 0.0
    %45 = vmatprep.subr.mxu0 0.0
    %46 = vmatpush1.msra.mxu0 0.0
    %47 = vmatprep.subr.mxu0 0.0
    %48 = vmatpush1.msra.mxu0 0.0
    %49 = vmatprep.subr.mxu0 0.0
    %50 = vmatpush1.msra.mxu0 0.0
    %51 = vmatprep.subr.mxu0 0.0
    %52 = vmatpush1.msra.mxu0 0.0
    %53 = vmatprep.subr.mxu0 0.0
    %54 = vmatpush1.msra.mxu0 %v15
    %55 = vmatprep.subr.mxu0 0.0
    %56 = vmatpush2.msra.mxu0 0.0
    %57 = vmatprep.subr.mxu0 0.0
    %58 = vmatpush2.msra.mxu0 0.0
    %59 = vmatprep.subr.mxu0 0.0
    %60 = vmatpush2.msra.mxu0 0.0
    %61 = vmatprep.subr.mxu0 0.0
    %62 = vmatpush2.msra.mxu0 0.0
    %63 = vmatprep.subr.mxu0 0.0
    %64 = vmatpush2.msra.mxu0 0.0
    %65 = vmatprep.subr.mxu0 0.0
    %66 = vmatpush2.msra.mxu0 0.0
    %67 = vmatprep.subr.mxu0 0.0
    %68 = vmatpush2.msra.mxu0 0.0
    %69 = vmatprep.subr.mxu0 0.0
    %70 = vmatpush2.msra.mxu0 0.0
    %71 = vmatprep.subr.mxu0 0.0
    %72 = vmatpush2.msra.mxu0 0.0
    %73 = vmatprep.subr.mxu0 0.0
    %74 = vmatpush2.msra.mxu0 0.0
    %75 = vmatprep.subr.mxu0 0.0
    %76 = vmatpush2.msra.mxu0 0.0
    %77 = vmatprep.subr.mxu0 0.0
    %78 = vmatpush2.msra.mxu0 0.0
    %79 = vmatprep.subr.mxu0 0.0
    %80 = vmatpush2.msra.mxu0 0.0
    %81 = vmatprep.subr.mxu0 0.0
    %82 = vmatpush2.msra.mxu0 0.0
    %83 = vmatprep.subr.mxu0 0.0
    %84 = vmatpush2.msra.mxu0 0.0
    %85 = vmatprep.subr.mxu0 0.0
    %86 = vmatpush2.msra.mxu0 0.0
    %87 = vmatprep.mubr.f32.mxu0 0.0
    %88 = vmatmul.mubr.f32.gmra.mxu0 %v21
    %v89 = vpop.f32.mrf.mxu0
    %v90 = vadd.f32 0.0, %v89
    %v91 = vpop.f32.mrf.mxu0
    %92 = vdwg.mxu0
    %v94 = vsel %vm19, %v16, 0
    %v97 = vsel %vm19, %v17, 0
    %99 = vmatprep.subr.mxu0 0.0
    %100 = vmatpush1.msra.mxu0 0.0
    %101 = vmatprep.subr.mxu0 0.0
    %102 = vmatpush1.msra.mxu0 0.0
    %103 = vmatprep.subr.mxu0 0.0
    %104 = vmatpush1.msra.mxu0 0.0
    %105 = vmatprep.subr.mxu0 0.0
    %106 = vmatpush1.msra.mxu0 0.0
    %107 = vmatprep.subr.mxu0 0.0
    %108 = vmatpush1.msra.mxu0 0.0
    %109 = vmatprep.subr.mxu0 0.0
    %110 = vmatpush1.msra.mxu0 0.0
    %111 = vmatprep.subr.mxu0 0.0
    %112 = vmatpush1.msra.mxu0 0.0
    %113 = vmatprep.subr.mxu0 0.0
    %114 = vmatpush1.msra.mxu0 0.0
    %115 = vmatprep.subr.mxu0 0.0
    %116 = vmatpush1.msra.mxu0 0.0
    %117 = vmatprep.subr.mxu0 0.0
    %118 = vmatpush1.msra.mxu0 0.0
    %119 = vmatprep.subr.mxu0 0.0
    %120 = vmatpush1.msra.mxu0 0.0
    %121 = vmatprep.subr.mxu0 0.0
    %122 = vmatpush1.msra.mxu0 0.0
    %123 = vmatprep.subr.mxu0 0.0
    %124 = vmatpush1.msra.mxu0 0.0
    %125 = vmatprep.subr.mxu0 0.0
    %126 = vmatpush1.msra.mxu0 0.0
    %127 = vmatprep.subr.mxu0 0.0
    %128 = vmatpush1.msra.mxu0 0.0
    %129 = vmatprep.subr.mxu0 0.0
    %130 = vmatpush1.msra.mxu0 %v90
    %131 = vmatprep.subr.mxu0 0.0
    %132 = vmatpush2.msra.mxu0 0.0
    %133 = vmatprep.subr.mxu0 0.0
    %134 = vmatpush2.msra.mxu0 0.0
    %135 = vmatprep.subr.mxu0 0.0
    %136 = vmatpush2.msra.mxu0 0.0
    %137 = vmatprep.subr.mxu0 0.0
    %138 = vmatpush2.msra.mxu0 0.0
    %139 = vmatprep.subr.mxu0 0.0
    %140 = vmatpush2.msra.mxu0 0.0
    %141 = vmatprep.subr.mxu0 0.0
    %142 = vmatpush2.msra.mxu0 0.0
    %143 = vmatprep.subr.mxu0 0.0
    %144 = vmatpush2.msra.mxu0 0.0
    %145 = vmatprep.subr.mxu0 0.0
    %146 = vmatpush2.msra.mxu0 0.0
    %147 = vmatprep.subr.mxu0 0.0
    %148 = vmatpush2.msra.mxu0 0.0
    %149 = vmatprep.subr.mxu0 0.0
    %150 = vmatpush2.msra.mxu0 0.0
    %151 = vmatprep.subr.mxu0 0.0
    %152 = vmatpush2.msra.mxu0 0.0
    %153 = vmatprep.subr.mxu0 0.0
    %154 = vmatpush2.msra.mxu0 0.0
    %155 = vmatprep.subr.mxu0 0.0
    %156 = vmatpush2.msra.mxu0 0.0
    %157 = vmatprep.subr.mxu0 0.0
    %158 = vmatpush2.msra.mxu0 0.0
    %159 = vmatprep.subr.mxu0 0.0
    %160 = vmatpush2.msra.mxu0 0.0
    %161 = vmatprep.subr.mxu0 0.0
    %162 = vmatpush2.msra.mxu0 0.0
    %163 = vmatprep.mubr.f32.mxu0 0.0
    %164 = vmatmul.mubr.f32.gmra.mxu0 %v94
    %v165 = vpop.f32.mrf.mxu0
    %v166 = vadd.f32 0.0, %v165
    %v167 = vpop.f32.mrf.mxu0
    %168 = vmatprep.mubr.f32.mxu0 0.0
    %169 = vmatmul.mubr.f32.gmra.mxu0 %v97
    %v170 = vpop.f32.mrf.mxu0
    %v171 = vadd.f32 0.0, %v170
    %v172 = vpop.f32.mrf.mxu0
    %173 = vdwg.mxu0
    %vm174 = vcmask 130048
    %175 = vst.msk [vmem:[#allocation2] sm:$0xff] %vm174, %v166
    %176 = vst.msk [vmem:[#allocation2 + $0x8] sm:$0xff] %vm174, %v171
    %s177 = scalar_lea.vmem %s0, 8
    %v178 = vld [vmem:[%s177] sm:$0xff]
    %v180 = vsel %vm19, %v178, 0
    %182 = vmatprep.subr.mxu0 0.0
    %183 = vmatpush1.msra.mxu0 0.0
    %184 = vmatprep.subr.mxu0 0.0
    %185 = vmatpush1.msra.mxu0 0.0
    %186 = vmatprep.subr.mxu0 0.0
    %187 = vmatpush1.msra.mxu0 0.0
    %188 = vmatprep.subr.mxu0 0.0
    %189 = vmatpush1.msra.mxu0 0.0
    %190 = vmatprep.subr.mxu0 0.0
    %191 = vmatpush1.msra.mxu0 0.0
    %192 = vmatprep.subr.mxu0 0.0
    %193 = vmatpush1.msra.mxu0 0.0
    %194 = vmatprep.subr.mxu0 0.0
    %195 = vmatpush1.msra.mxu0 0.0
    %196 = vmatprep.subr.mxu0 0.0
    %197 = vmatpush1.msra.mxu0 0.0
    %198 = vmatprep.subr.mxu0 0.0
    %199 = vmatpush1.msra.mxu0 0.0
    %200 = vmatprep.subr.mxu0 0.0
    %201 = vmatpush1.msra.mxu0 0.0
    %202 = vmatprep.subr.mxu0 0.0
    %203 = vmatpush1.msra.mxu0 0.0
    %204 = vmatprep.subr.mxu0 0.0
    %205 = vmatpush1.msra.mxu0 0.0
    %206 = vmatprep.subr.mxu0 0.0
    %207 = vmatpush1.msra.mxu0 0.0
    %208 = vmatprep.subr.mxu0 0.0
    %209 = vmatpush1.msra.mxu0 0.0
    %210 = vmatprep.subr.mxu0 0.0
    %211 = vmatpush1.msra.mxu0 0.0
    %212 = vmatprep.subr.mxu0 0.0
    %213 = vmatpush1.msra.mxu0 %v15
    %214 = vmatprep.subr.mxu0 0.0
    %215 = vmatpush2.msra.mxu0 0.0
    %216 = vmatprep.subr.mxu0 0.0
    %217 = vmatpush2.msra.mxu0 0.0
    %218 = vmatprep.subr.mxu0 0.0
    %219 = vmatpush2.msra.mxu0 0.0
    %220 = vmatprep.subr.mxu0 0.0
    %221 = vmatpush2.msra.mxu0 0.0
    %222 = vmatprep.subr.mxu0 0.0
    %223 = vmatpush2.msra.mxu0 0.0
    %224 = vmatprep.subr.mxu0 0.0
    %225 = vmatpush2.msra.mxu0 0.0
    %226 = vmatprep.subr.mxu0 0.0
    %227 = vmatpush2.msra.mxu0 0.0
    %228 = vmatprep.subr.mxu0 0.0
    %229 = vmatpush2.msra.mxu0 0.0
    %230 = vmatprep.subr.mxu0 0.0
    %231 = vmatpush2.msra.mxu0 0.0
    %232 = vmatprep.subr.mxu0 0.0
    %233 = vmatpush2.msra.mxu0 0.0
    %234 = vmatprep.subr.mxu0 0.0
    %235 = vmatpush2.msra.mxu0 0.0
    %236 = vmatprep.subr.mxu0 0.0
    %237 = vmatpush2.msra.mxu0 0.0
    %238 = vmatprep.subr.mxu0 0.0
    %239 = vmatpush2.msra.mxu0 0.0
    %240 = vmatprep.subr.mxu0 0.0
    %241 = vmatpush2.msra.mxu0 0.0
    %242 = vmatprep.subr.mxu0 0.0
    %243 = vmatpush2.msra.mxu0 0.0
    %244 = vmatprep.subr.mxu0 0.0
    %245 = vmatpush2.msra.mxu0 0.0
    %246 = vmatprep.mubr.f32.mxu0 0.0
    %247 = vmatmul.mubr.f32.gmra.mxu0 %v180
    %v248 = vpop.f32.mrf.mxu0
    %v249 = vadd.f32 0.0, %v248
    %v250 = vpop.f32.mrf.mxu0
    %251 = vdwg.mxu0
    %252 = vmatprep.subr.mxu0 0.0
    %253 = vmatpush1.msra.mxu0 0.0
    %254 = vmatprep.subr.mxu0 0.0
    %255 = vmatpush1.msra.mxu0 0.0
    %256 = vmatprep.subr.mxu0 0.0
    %257 = vmatpush1.msra.mxu0 0.0
    %258 = vmatprep.subr.mxu0 0.0
    %259 = vmatpush1.msra.mxu0 0.0
    %260 = vmatprep.subr.mxu0 0.0
    %261 = vmatpush1.msra.mxu0 0.0
    %262 = vmatprep.subr.mxu0 0.0
    %263 = vmatpush1.msra.mxu0 0.0
    %264 = vmatprep.subr.mxu0 0.0
    %265 = vmatpush1.msra.mxu0 0.0
    %266 = vmatprep.subr.mxu0 0.0
    %267 = vmatpush1.msra.mxu0 0.0
    %268 = vmatprep.subr.mxu0 0.0
    %269 = vmatpush1.msra.mxu0 0.0
    %270 = vmatprep.subr.mxu0 0.0
    %271 = vmatpush1.msra.mxu0 0.0
    %272 = vmatprep.subr.mxu0 0.0
    %273 = vmatpush1.msra.mxu0 0.0
    %274 = vmatprep.subr.mxu0 0.0
    %275 = vmatpush1.msra.mxu0 0.0
    %276 = vmatprep.subr.mxu0 0.0
    %277 = vmatpush1.msra.mxu0 0.0
    %278 = vmatprep.subr.mxu0 0.0
    %279 = vmatpush1.msra.mxu0 0.0
    %280 = vmatprep.subr.mxu0 0.0
    %281 = vmatpush1.msra.mxu0 0.0
    %282 = vmatprep.subr.mxu0 0.0
    %283 = vmatpush1.msra.mxu0 %v249
    %284 = vmatprep.subr.mxu0 0.0
    %285 = vmatpush2.msra.mxu0 0.0
    %286 = vmatprep.subr.mxu0 0.0
    %287 = vmatpush2.msra.mxu0 0.0
    %288 = vmatprep.subr.mxu0 0.0
    %289 = vmatpush2.msra.mxu0 0.0
    %290 = vmatprep.subr.mxu0 0.0
    %291 = vmatpush2.msra.mxu0 0.0
    %292 = vmatprep.subr.mxu0 0.0
    %293 = vmatpush2.msra.mxu0 0.0
    %294 = vmatprep.subr.mxu0 0.0
    %295 = vmatpush2.msra.mxu0 0.0
    %296 = vmatprep.subr.mxu0 0.0
    %297 = vmatpush2.msra.mxu0 0.0
    %298 = vmatprep.subr.mxu0 0.0
    %299 = vmatpush2.msra.mxu0 0.0
    %300 = vmatprep.subr.mxu0 0.0
    %301 = vmatpush2.msra.mxu0 0.0
    %302 = vmatprep.subr.mxu0 0.0
    %303 = vmatpush2.msra.mxu0 0.0
    %304 = vmatprep.subr.mxu0 0.0
    %305 = vmatpush2.msra.mxu0 0.0
    %306 = vmatprep.subr.mxu0 0.0
    %307 = vmatpush2.msra.mxu0 0.0
    %308 = vmatprep.subr.mxu0 0.0
    %309 = vmatpush2.msra.mxu0 0.0
    %310 = vmatprep.subr.mxu0 0.0
    %311 = vmatpush2.msra.mxu0 0.0
    %312 = vmatprep.subr.mxu0 0.0
    %313 = vmatpush2.msra.mxu0 0.0
    %314 = vmatprep.subr.mxu0 0.0
    %315 = vmatpush2.msra.mxu0 0.0
    %316 = vmatprep.mubr.f32.mxu0 0.0
    %317 = vmatmul.mubr.f32.gmra.mxu0 %v94
    %v318 = vpop.f32.mrf.mxu0
    %v319 = vadd.f32 0.0, %v318
    %v320 = vpop.f32.mrf.mxu0
    %321 = vmatprep.mubr.f32.mxu0 0.0
    %322 = vmatmul.mubr.f32.gmra.mxu0 %v97
    %v323 = vpop.f32.mrf.mxu0
    %v324 = vadd.f32 0.0, %v323
    %v325 = vpop.f32.mrf.mxu0
    %326 = vdwg.mxu0
    %s327 = scalar_lea.vmem [#allocation2], 16
    %328 = vst.msk [vmem:[%s327] sm:$0xff] %vm174, %v319
    %329 = vst.msk [vmem:[%s327 + $0x8] sm:$0xff] %vm174, %v324
    // Predicated region
    $region14: #{forward.33} parent=1 // pred_check
      _
    $region15: #{forward.33} parent=1 // pred_check_branch
      %331 = sbr.rel (0) target = $region17
    $region16: #{forward.33} parent=1 // pred_region
      %s333 = ssub.s32 512, 512
      %334 = vsyncadd [#allocation3], %s333
      %s335 = sshll.u32 [#allocation2], 4
      %s336 = int_to_ptr.vmem [resolvable:$true] %s335
      %341 = dma.vmem_to_hbm [thread:$0]  %s336, 512, %s3, [#allocation3], 128, 128, 8
    $region17: #{forward.33} parent=1 // pred_fallthru
      _
    // Predicated region
    $region18: #{forward.33} parent=1 // pred_check
      _
    $region19: #{forward.33} parent=1 // pred_check_branch
      %343 = sbr.rel (0) target = $region21
    $region20: #{forward.33} parent=1 // pred_region
      %344 = dma.done [#allocation3], 512
    $region21: #{forward.33} parent=1 // pred_fallthru
      _
    %345 = vsyncpa [#allocation3], 1

// kernel: forward.27
$region0: #{forward.27}
  #allocation0 [shape = 'u32[]', space=smem, size = 0x4, offset = 0x4, fixed_abs, tag = 'smem constant byte address 0x4 - core index']
  #allocation1 [shape = 'u32[144,128]{1,0:T(1,128)}', space=vmem, size = 0x12000, scoped, tag = 'internal scratch']
  %s0 = inlined_call_operand.vmem [shape: bf16[16,64], index: 0, kind: input, shape index: {}]
  %s1 = inlined_call_operand.vmem [shape: bf16[64,32], index: 1, kind: input, shape index: {}]
  %s2 = inlined_call_operand.vmem [shape: f32[16,32], index: 2, kind: input, shape index: {}]
  %s3 = inlined_call_operand.vmem [shape: f32[16,32], index: 3, kind: output, shape index: {}]
  %s4 = sld [smem:[#allocation0]]
  $region22: #{forward.27} parent=0
    _
  %s6 = ssub.s32 1, %s4
  %s7 = scalar_select 0, %s6, %s4
  // Predicated region
  $region2: #{forward.27} parent=0 // pred_check
    _
  $region3: #{forward.27} parent=0 // pred_check_branch
    %9 = sbr.rel (0) target = $region5
  $region4: #{forward.27} parent=0 // pred_region
    _
  $region5: #{forward.27} parent=0 // pred_fallthru
    _
  // Predicated region
  $region6: #{forward.27} parent=0 // pred_check
    _
  $region7: #{forward.27} parent=0 // pred_check_branch
    %11 = sbr.rel (0) target = $region9
  $region8: #{forward.27} parent=0 // pred_region
    _
  $region9: #{forward.27} parent=0 // pred_fallthru
    _
  // Predicated region
  $region10: #{forward.27} parent=0 // pred_check
    _
  $region11: #{forward.27} parent=0 // pred_check_branch
    %13 = sbr.rel (0) target = $region13
  $region12: #{forward.27} parent=0 // pred_region
    _
  $region13: #{forward.27} parent=0 // pred_fallthru
    _
  %v15 = vld [vmem:[%s0] sm:$0xf]
  %v16 = vld [vmem:[%s0 + $0x4] sm:$0xf]
  %v17 = vld [vmem:[%s1] sm:$0xf]
  %v18 = vld [vmem:[%s1 + $0x4] sm:$0xf]
  %v19 = vld [vmem:[%s1 + $0x8] sm:$0xf]
  %v20 = vld [vmem:[%s1 + $0xc] sm:$0xf]
  %v21 = vld [vmem:[%s1 + $0x10] sm:$0xf]
  %v22 = vld [vmem:[%s1 + $0x14] sm:$0xf]
  %v23 = vld [vmem:[%s1 + $0x18] sm:$0xf]
  %v24 = vld [vmem:[%s1 + $0x1c] sm:$0xf]
  %v25 = vld [vmem:[%s2] sm:$0xff]
  %v26 = vld [vmem:[%s2 + $0x8] sm:$0xff]
  %v29 = vunpack.c.l.b16 %v15
  %v30 = vunpack.c.l.b16 %v16
  %v31 = vpack.c.b16 %v30, %v29
  %v40 = vunpack.c.l.b16 %v17
  %v41 = vunpack.c.l.b16 %v18
  %v42 = vunpack.c.l.b16 %v19
  %v43 = vunpack.c.l.b16 %v20
  %v44 = vunpack.c.l.b16 %v21
  %v45 = vunpack.c.l.b16 %v22
  %v46 = vunpack.c.l.b16 %v23
  %v47 = vunpack.c.l.b16 %v24
  %v48 = vpack.c.b16 %v41, %v40
  %v49 = vpack.c.b16 %v43, %v42
  %v50 = vpack.c.b16 %v45, %v44
  %v51 = vpack.c.b16 %v47, %v46
  %vm56 = vcmask 523264
  %v58 = vsel %vm56, %v31, 0
  %60 = vmatprep.subr.bf16.mxu0 0
  %61 = vmatpush1.bf16.msra.mxu0 0
  %62 = vmatprep.subr.bf16.mxu0 0
  %63 = vmatpush1.bf16.msra.mxu0 0
  %64 = vmatprep.subr.bf16.mxu0 0
  %65 = vmatpush1.bf16.msra.mxu0 0
  %66 = vmatprep.subr.bf16.mxu0 0
  %67 = vmatpush1.bf16.msra.mxu0 0
  %68 = vmatprep.subr.bf16.mxu0 0
  %69 = vmatpush1.bf16.msra.mxu0 %v51
  %70 = vmatprep.subr.bf16.mxu0 0
  %71 = vmatpush1.bf16.msra.mxu0 %v50
  %72 = vmatprep.subr.bf16.mxu0 0
  %73 = vmatpush1.bf16.msra.mxu0 %v49
  %74 = vmatprep.subr.bf16.mxu0 0
  %75 = vmatpush1.bf16.msra.mxu0 %v48
  %76 = vmatprep.subr.bf16.mxu0 0
  %77 = vmatpush2.bf16.msra.mxu0 0
  %78 = vmatprep.subr.bf16.mxu0 0
  %79 = vmatpush2.bf16.msra.mxu0 0
  %80 = vmatprep.subr.bf16.mxu0 0
  %81 = vmatpush2.bf16.msra.mxu0 0
  %82 = vmatprep.subr.bf16.mxu0 0
  %83 = vmatpush2.bf16.msra.mxu0 0
  %84 = vmatprep.subr.bf16.mxu0 0
  %85 = vmatpush2.bf16.msra.mxu0 0
  %86 = vmatprep.subr.bf16.mxu0 0
  %87 = vmatpush2.bf16.msra.mxu0 0
  %88 = vmatprep.subr.bf16.mxu0 0
  %89 = vmatpush2.bf16.msra.mxu0 0
  %90 = vmatprep.subr.bf16.mxu0 0
  %91 = vmatpush2.bf16.msra.mxu0 0
  %92 = vmatprep.mubr.bf16.mxu0 0
  %93 = vmatmul.mubr.bf16.gmra.mxu0 %v58
  %v94 = vpop.f32.mrf.mxu0
  %v95 = vadd.f32 %v25, %v94
  %v96 = vpop.f32.mrf.mxu0
  %v97 = vpop.f32.mrf.mxu0
  %v98 = vadd.f32 %v26, %v97
  %v99 = vpop.f32.mrf.mxu0
  %100 = vdwg.mxu0
  %v101 = vmax.f32 %v95, 0.0
  %v102 = vmax.f32 %v98, 0.0
  %vm103 = vcmask 261120
  %104 = vst.msk [vmem:[%s3] sm:$0xff] %vm103, %v101
  %105 = vst.msk [vmem:[%s3 + $0x8] sm:$0xff] %vm103, %v102
  // Predicated region
  $region14: #{forward.27} parent=0 // pred_check
    _
  $region15: #{forward.27} parent=0 // pred_check_branch
    %107 = sbr.rel (0) target = $region17
  $region16: #{forward.27} parent=0 // pred_region
    _
  $region17: #{forward.27} parent=0 // pred_fallthru
    _
  // Predicated region
  $region18: #{forward.27} parent=0 // pred_check
    _
  $region19: #{forward.27} parent=0 // pred_check_branch
    %109 = sbr.rel (0) target = $region21
  $region20: #{forward.27} parent=0 // pred_region
    _
  $region21: #{forward.27} parent=0 // pred_fallthru
    _

// kernel: forward.28
$region0: #{forward.28}
  #allocation0 [shape = 'u32[]', space=smem, size = 0x4, offset = 0x4, fixed_abs, tag = 'smem constant byte address 0x4 - core index']
  #allocation1 [shape = 'u32[144,128]{1,0:T(1,128)}', space=vmem, size = 0x12000, scoped, tag = 'internal scratch']
  #allocation2 [shape = 'f32[1,1]{1,0:T(1,128)S(1)}', space=vmem, size = 0x200, scoped, tag = 'scoped memory for forward.28']
  %s0 = inlined_call_operand.vmem [shape: bf16[1,16], index: 0, kind: input, shape index: {}]
  %s1 = inlined_call_operand.vmem [shape: bf16[16,32], index: 1, kind: input, shape index: {}]
  %s2 = inlined_call_operand.<no memory space> [shape: f32[1,1], index: 2, kind: input, shape index: {}]
  %s3 = inlined_call_operand.vmem [shape: f32[1,32], index: 3, kind: output, shape index: {}]
  %s4 = sld [smem:[#allocation0]]
  $region22: #{forward.28} parent=0
    _
  %s6 = ssub.s32 1, %s4
  %s7 = scalar_select 0, %s6, %s4
  %v8 = vstv %s2
  %9 = vst [vmem:[#allocation2] sm:$0x1] %v8
  // Predicated region
  $region2: #{forward.28} parent=0 // pred_check
    _
  $region3: #{forward.28} parent=0 // pred_check_branch
    %11 = sbr.rel (0) target = $region5
  $region4: #{forward.28} parent=0 // pred_region
    _
  $region5: #{forward.28} parent=0 // pred_fallthru
    _
  // Predicated region
  $region6: #{forward.28} parent=0 // pred_check
    _
  $region7: #{forward.28} parent=0 // pred_check_branch
    %13 = sbr.rel (0) target = $region9
  $region8: #{forward.28} parent=0 // pred_region
    _
  $region9: #{forward.28} parent=0 // pred_fallthru
    _
  // Predicated region
  $region10: #{forward.28} parent=0 // pred_check
    _
  $region11: #{forward.28} parent=0 // pred_check_branch
    %15 = sbr.rel (0) target = $region13
  $region12: #{forward.28} parent=0 // pred_region
    _
  $region13: #{forward.28} parent=0 // pred_fallthru
    _
  %v17 = vld [vmem:[%s0] sm:$0x1]
  %v18 = vld [vmem:[%s1] sm:$0xf]
  %v19 = vld [vmem:[%s1 + $0x4] sm:$0xf]
  %v20 = vld [vmem:[#allocation2] sm:$0x1]
  %22 = vset.pattern.permute.xlu0 0
  %23 = vperm.xlu0 %22, %v20
  %v24 = vpop.permute.xlu0 %23
  %v26 = vlaneseq
  %v27 = vshrl.u32 %v26, 7
  %v28 = vsub.s32 0, %v27
  %v29 = vrot.slane %v24, %v28
  %v32 = vunpack.c.l.b16 %v18
  %v33 = vunpack.c.l.b16 %v19
  %v34 = vpack.c.b16 %v33, %v32
  %vm36 = vcmask 130048
  %v38 = vsel %vm36, %v17, 0
  %40 = vmatprep.subr.bf16.mxu0 0
  %41 = vmatpush1.bf16.msra.mxu0 0
  %42 = vmatprep.subr.bf16.mxu0 0
  %43 = vmatpush1.bf16.msra.mxu0 0
  %44 = vmatprep.subr.bf16.mxu0 0
  %45 = vmatpush1.bf16.msra.mxu0 0
  %46 = vmatprep.subr.bf16.mxu0 0
  %47 = vmatpush1.bf16.msra.mxu0 0
  %48 = vmatprep.subr.bf16.mxu0 0
  %49 = vmatpush1.bf16.msra.mxu0 0
  %50 = vmatprep.subr.bf16.mxu0 0
  %51 = vmatpush1.bf16.msra.mxu0 0
  %52 = vmatprep.subr.bf16.mxu0 0
  %53 = vmatpush1.bf16.msra.mxu0 0
  %54 = vmatprep.subr.bf16.mxu0 0
  %55 = vmatpush1.bf16.msra.mxu0 %v34
  %56 = vmatprep.subr.bf16.mxu0 0
  %57 = vmatpush2.bf16.msra.mxu0 0
  %58 = vmatprep.subr.bf16.mxu0 0
  %59 = vmatpush2.bf16.msra.mxu0 0
  %60 = vmatprep.subr.bf16.mxu0 0
  %61 = vmatpush2.bf16.msra.mxu0 0
  %62 = vmatprep.subr.bf16.mxu0 0
  %63 = vmatpush2.bf16.msra.mxu0 0
  %64 = vmatprep.subr.bf16.mxu0 0
  %65 = vmatpush2.bf16.msra.mxu0 0
  %66 = vmatprep.subr.bf16.mxu0 0
  %67 = vmatpush2.bf16.msra.mxu0 0
  %68 = vmatprep.subr.bf16.mxu0 0
  %69 = vmatpush2.bf16.msra.mxu0 0
  %70 = vmatprep.subr.bf16.mxu0 0
  %71 = vmatpush2.bf16.msra.mxu0 0
  %72 = vmatprep.mubr.bf16.mxu0 0
  %73 = vmatmul.mubr.bf16.gmra.mxu0 %v38
  %v74 = vpop.f32.mrf.mxu0
  %v75 = vadd.f32 %v29, %v74
  %v76 = vpop.f32.mrf.mxu0
  %v77 = vpop.f32.mrf.mxu0
  %v78 = vpop.f32.mrf.mxu0
  %79 = vdwg.mxu0
  %v80 = vxor.u32 %v75, 2147483648
  %v81 = vmul.f32 %v80, 1.442695
  %v82 = vpow.pop %v81
  %v83 = vadd.f32 %v82, 1.0
  %v84 = vrcp.pop %v83
  %v85 = vmul.f32 1.0, %v84
  %vm86 = vcmask 253952
  %87 = vst.msk [vmem:[%s3] sm:$0x1] %vm86, %v85
  // Predicated region
  $region14: #{forward.28} parent=0 // pred_check
    _
  $region15: #{forward.28} parent=0 // pred_check_branch
    %89 = sbr.rel (0) target = $region17
  $region16: #{forward.28} parent=0 // pred_region
    _
  $region17: #{forward.28} parent=0 // pred_fallthru
    _
  // Predicated region
  $region18: #{forward.28} parent=0 // pred_check
    _
  $region19: #{forward.28} parent=0 // pred_check_branch
    %91 = sbr.rel (0) target = $region21
  $region20: #{forward.28} parent=0 // pred_region
    _
  $region21: #{forward.28} parent=0 // pred_fallthru
    _

// kernel: forward.29
$region0: #{forward.29}
  #allocation0 [shape = 'u32[]', space=smem, size = 0x4, offset = 0x4, fixed_abs, tag = 'smem constant byte address 0x4 - core index']
  #allocation1 [shape = 'u32[144,128]{1,0:T(1,128)}', space=vmem, size = 0x12000, scoped, tag = 'internal scratch']
  %s0 = inlined_call_operand.vmem [shape: f32[2,4,4], index: 0, kind: input, shape index: {}]
  %s1 = inlined_call_operand.vmem [shape: f32[4,8], index: 1, kind: input, shape index: {}]
  %s2 = inlined_call_operand.vmem [shape: f32[8,4], index: 2, kind: input, shape index: {}]
  %s3 = inlined_call_operand.hbm [shape: f32[2,8,8], index: 3, kind: output, shape index: {}]
  %s4 = sld [smem:[#allocation0]]
  $region22: #{forward.29} parent=0
    _
  %s6 = ssub.s32 1, %s4
  %s7 = scalar_select 0, %s6, %s4
  $region1: #{forward.29} parent=0
    #allocation2 [shape = 'u8[8192]{0}', space=vmem, size = 0x2000, scoped, tag = 'output window, operand 0, single buffered']
    #allocation3 [shape = 's32[1]{0}', space=sflag, size = 0x4, scoped, tag = 'scoped memory for forward.29']
    %8 = vsyncpa [#allocation3], 0
    // Predicated region
    $region2: #{forward.29} parent=1 // pred_check
      _
    $region3: #{forward.29} parent=1 // pred_check_branch
      %10 = sbr.rel (0) target = $region5
    $region4: #{forward.29} parent=1 // pred_region
      _
    $region5: #{forward.29} parent=1 // pred_fallthru
      _
    // Predicated region
    $region6: #{forward.29} parent=1 // pred_check
      _
    $region7: #{forward.29} parent=1 // pred_check_branch
      %12 = sbr.rel (0) target = $region9
    $region8: #{forward.29} parent=1 // pred_region
      _
    $region9: #{forward.29} parent=1 // pred_fallthru
      _
    // Predicated region
    $region10: #{forward.29} parent=1 // pred_check
      _
    $region11: #{forward.29} parent=1 // pred_check_branch
      %14 = sbr.rel (0) target = $region13
    $region12: #{forward.29} parent=1 // pred_region
      _
    $region13: #{forward.29} parent=1 // pred_fallthru
      _
    %v15 = vld [vmem:[%s1] sm:$0xf]
    %v16 = vld [vmem:[%s2] sm:$0xff]
    %v17 = vld [vmem:[%s0] sm:$0xf]
    %vm18 = vcmask 31744
    %v20 = vsel %vm18, %v17, 0
    %vm22 = vcmask 1043456
    %v24 = vsel %vm22, %v15, 0
    %26 = vmatprep.subr.mxu0 0.0
    %27 = vmatpush1.msra.mxu0 0.0
    %28 = vmatprep.subr.mxu0 0.0
    %29 = vmatpush1.msra.mxu0 0.0
    %30 = vmatprep.subr.mxu0 0.0
    %31 = vmatpush1.msra.mxu0 0.0
    %32 = vmatprep.subr.mxu0 0.0
    %33 = vmatpush1.msra.mxu0 0.0
    %34 = vmatprep.subr.mxu0 0.0
    %35 = vmatpush1.msra.mxu0 0.0
    %36 = vmatprep.subr.mxu0 0.0
    %37 = vmatpush1.msra.mxu0 0.0
    %38 = vmatprep.subr.mxu0 0.0
    %39 = vmatpush1.msra.mxu0 0.0
    %40 = vmatprep.subr.mxu0 0.0
    %41 = vmatpush1.msra.mxu0 0.0
    %42 = vmatprep.subr.mxu0 0.0
    %43 = vmatpush1.msra.mxu0 0.0
    %44 = vmatprep.subr.mxu0 0.0
    %45 = vmatpush1.msra.mxu0 0.0
    %46 = vmatprep.subr.mxu0 0.0
    %47 = vmatpush1.msra.mxu0 0.0
    %48 = vmatprep.subr.mxu0 0.0
    %49 = vmatpush1.msra.mxu0 0.0
    %50 = vmatprep.subr.mxu0 0.0
    %51 = vmatpush1.msra.mxu0 0.0
    %52 = vmatprep.subr.mxu0 0.0
    %53 = vmatpush1.msra.mxu0 0.0
    %54 = vmatprep.subr.mxu0 0.0
    %55 = vmatpush1.msra.mxu0 0.0
    %56 = vmatprep.subr.mxu0 0.0
    %57 = vmatpush1.msra.mxu0 %v24
    %58 = vmatprep.subr.mxu0 0.0
    %59 = vmatpush2.msra.mxu0 0.0
    %60 = vmatprep.subr.mxu0 0.0
    %61 = vmatpush2.msra.mxu0 0.0
    %62 = vmatprep.subr.mxu0 0.0
    %63 = vmatpush2.msra.mxu0 0.0
    %64 = vmatprep.subr.mxu0 0.0
    %65 = vmatpush2.msra.mxu0 0.0
    %66 = vmatprep.subr.mxu0 0.0
    %67 = vmatpush2.msra.mxu0 0.0
    %68 = vmatprep.subr.mxu0 0.0
    %69 = vmatpush2.msra.mxu0 0.0
    %70 = vmatprep.subr.mxu0 0.0
    %71 = vmatpush2.msra.mxu0 0.0
    %72 = vmatprep.subr.mxu0 0.0
    %73 = vmatpush2.msra.mxu0 0.0
    %74 = vmatprep.subr.mxu0 0.0
    %75 = vmatpush2.msra.mxu0 0.0
    %76 = vmatprep.subr.mxu0 0.0
    %77 = vmatpush2.msra.mxu0 0.0
    %78 = vmatprep.subr.mxu0 0.0
    %79 = vmatpush2.msra.mxu0 0.0
    %80 = vmatprep.subr.mxu0 0.0
    %81 = vmatpush2.msra.mxu0 0.0
    %82 = vmatprep.subr.mxu0 0.0
    %83 = vmatpush2.msra.mxu0 0.0
    %84 = vmatprep.subr.mxu0 0.0
    %85 = vmatpush2.msra.mxu0 0.0
    %86 = vmatprep.subr.mxu0 0.0
    %87 = vmatpush2.msra.mxu0 0.0
    %88 = vmatprep.subr.mxu0 0.0
    %89 = vmatpush2.msra.mxu0 0.0
    %90 = vmatprep.mubr.f32.mxu0 0.0
    %91 = vmatmul.mubr.f32.gmra.mxu0 %v20
    %v92 = vpop.f32.mrf.mxu0
    %v93 = vadd.f32 0.0, %v92
    %v94 = vpop.f32.mrf.mxu0
    %95 = vdwg.mxu0
    %v97 = vsel %vm18, %v16, 0
    %v100 = vsel %vm22, %v93, 0
    %102 = vmatprep.subr.mxu0 0.0
    %103 = vmatpush1.msra.mxu0 0.0
    %104 = vmatprep.subr.mxu0 0.0
    %105 = vmatpush1.msra.mxu0 0.0
    %106 = vmatprep.subr.mxu0 0.0
    %107 = vmatpush1.msra.mxu0 0.0
    %108 = vmatprep.subr.mxu0 0.0
    %109 = vmatpush1.msra.mxu0 0.0
    %110 = vmatprep.subr.mxu0 0.0
    %111 = vmatpush1.msra.mxu0 0.0
    %112 = vmatprep.subr.mxu0 0.0
    %113 = vmatpush1.msra.mxu0 0.0
    %114 = vmatprep.subr.mxu0 0.0
    %115 = vmatpush1.msra.mxu0 0.0
    %116 = vmatprep.subr.mxu0 0.0
    %117 = vmatpush1.msra.mxu0 0.0
    %118 = vmatprep.subr.mxu0 0.0
    %119 = vmatpush1.msra.mxu0 0.0
    %120 = vmatprep.subr.mxu0 0.0
    %121 = vmatpush1.msra.mxu0 0.0
    %122 = vmatprep.subr.mxu0 0.0
    %123 = vmatpush1.msra.mxu0 0.0
    %124 = vmatprep.subr.mxu0 0.0
    %125 = vmatpush1.msra.mxu0 0.0
    %126 = vmatprep.subr.mxu0 0.0
    %127 = vmatpush1.msra.mxu0 0.0
    %128 = vmatprep.subr.mxu0 0.0
    %129 = vmatpush1.msra.mxu0 0.0
    %130 = vmatprep.subr.mxu0 0.0
    %131 = vmatpush1.msra.mxu0 0.0
    %132 = vmatprep.subr.mxu0 0.0
    %133 = vmatpush1.msra.mxu0 %v100
    %134 = vmatprep.subr.mxu0 0.0
    %135 = vmatpush2.msra.mxu0 0.0
    %136 = vmatprep.subr.mxu0 0.0
    %137 = vmatpush2.msra.mxu0 0.0
    %138 = vmatprep.subr.mxu0 0.0
    %139 = vmatpush2.msra.mxu0 0.0
    %140 = vmatprep.subr.mxu0 0.0
    %141 = vmatpush2.msra.mxu0 0.0
    %142 = vmatprep.subr.mxu0 0.0
    %143 = vmatpush2.msra.mxu0 0.0
    %144 = vmatprep.subr.mxu0 0.0
    %145 = vmatpush2.msra.mxu0 0.0
    %146 = vmatprep.subr.mxu0 0.0
    %147 = vmatpush2.msra.mxu0 0.0
    %148 = vmatprep.subr.mxu0 0.0
    %149 = vmatpush2.msra.mxu0 0.0
    %150 = vmatprep.subr.mxu0 0.0
    %151 = vmatpush2.msra.mxu0 0.0
    %152 = vmatprep.subr.mxu0 0.0
    %153 = vmatpush2.msra.mxu0 0.0
    %154 = vmatprep.subr.mxu0 0.0
    %155 = vmatpush2.msra.mxu0 0.0
    %156 = vmatprep.subr.mxu0 0.0
    %157 = vmatpush2.msra.mxu0 0.0
    %158 = vmatprep.subr.mxu0 0.0
    %159 = vmatpush2.msra.mxu0 0.0
    %160 = vmatprep.subr.mxu0 0.0
    %161 = vmatpush2.msra.mxu0 0.0
    %162 = vmatprep.subr.mxu0 0.0
    %163 = vmatpush2.msra.mxu0 0.0
    %164 = vmatprep.subr.mxu0 0.0
    %165 = vmatpush2.msra.mxu0 0.0
    %166 = vmatprep.mubr.f32.mxu0 0.0
    %167 = vmatmul.mubr.f32.gmra.mxu0 %v97
    %v168 = vpop.f32.mrf.mxu0
    %v169 = vadd.f32 0.0, %v168
    %v170 = vpop.f32.mrf.mxu0
    %171 = vdwg.mxu0
    %vm172 = vcmask 64512
    %173 = vst.msk [vmem:[#allocation2] sm:$0xff] %vm172, %v169
    %s174 = scalar_lea.vmem %s0, 4
    %v175 = vld [vmem:[%s174] sm:$0xf]
    %v177 = vsel %vm18, %v175, 0
    %179 = vmatprep.subr.mxu0 0.0
    %180 = vmatpush1.msra.mxu0 0.0
    %181 = vmatprep.subr.mxu0 0.0
    %182 = vmatpush1.msra.mxu0 0.0
    %183 = vmatprep.subr.mxu0 0.0
    %184 = vmatpush1.msra.mxu0 0.0
    %185 = vmatprep.subr.mxu0 0.0
    %186 = vmatpush1.msra.mxu0 0.0
    %187 = vmatprep.subr.mxu0 0.0
    %188 = vmatpush1.msra.mxu0 0.0
    %189 = vmatprep.subr.mxu0 0.0
    %190 = vmatpush1.msra.mxu0 0.0
    %191 = vmatprep.subr.mxu0 0.0
    %192 = vmatpush1.msra.mxu0 0.0
    %193 = vmatprep.subr.mxu0 0.0
    %194 = vmatpush1.msra.mxu0 0.0
    %195 = vmatprep.subr.mxu0 0.0
    %196 = vmatpush1.msra.mxu0 0.0
    %197 = vmatprep.subr.mxu0 0.0
    %198 = vmatpush1.msra.mxu0 0.0
    %199 = vmatprep.subr.mxu0 0.0
    %200 = vmatpush1.msra.mxu0 0.0
    %201 = vmatprep.subr.mxu0 0.0
    %202 = vmatpush1.msra.mxu0 0.0
    %203 = vmatprep.subr.mxu0 0.0
    %204 = vmatpush1.msra.mxu0 0.0
    %205 = vmatprep.subr.mxu0 0.0
    %206 = vmatpush1.msra.mxu0 0.0
    %207 = vmatprep.subr.mxu0 0.0
    %208 = vmatpush1.msra.mxu0 0.0
    %209 = vmatprep.subr.mxu0 0.0
    %210 = vmatpush1.msra.mxu0 %v24
    %211 = vmatprep.subr.mxu0 0.0
    %212 = vmatpush2.msra.mxu0 0.0
    %213 = vmatprep.subr.mxu0 0.0
    %214 = vmatpush2.msra.mxu0 0.0
    %215 = vmatprep.subr.mxu0 0.0
    %216 = vmatpush2.msra.mxu0 0.0
    %217 = vmatprep.subr.mxu0 0.0
    %218 = vmatpush2.msra.mxu0 0.0
    %219 = vmatprep.subr.mxu0 0.0
    %220 = vmatpush2.msra.mxu0 0.0
    %221 = vmatprep.subr.mxu0 0.0
    %222 = vmatpush2.msra.mxu0 0.0
    %223 = vmatprep.subr.mxu0 0.0
    %224 = vmatpush2.msra.mxu0 0.0
    %225 = vmatprep.subr.mxu0 0.0
    %226 = vmatpush2.msra.mxu0 0.0
    %227 = vmatprep.subr.mxu0 0.0
    %228 = vmatpush2.msra.mxu0 0.0
    %229 = vmatprep.subr.mxu0 0.0
    %230 = vmatpush2.msra.mxu0 0.0
    %231 = vmatprep.subr.mxu0 0.0
    %232 = vmatpush2.msra.mxu0 0.0
    %233 = vmatprep.subr.mxu0 0.0
    %234 = vmatpush2.msra.mxu0 0.0
    %235 = vmatprep.subr.mxu0 0.0
    %236 = vmatpush2.msra.mxu0 0.0
    %237 = vmatprep.subr.mxu0 0.0
    %238 = vmatpush2.msra.mxu0 0.0
    %239 = vmatprep.subr.mxu0 0.0
    %240 = vmatpush2.msra.mxu0 0.0
    %241 = vmatprep.subr.mxu0 0.0
    %242 = vmatpush2.msra.mxu0 0.0
    %243 = vmatprep.mubr.f32.mxu0 0.0
    %244 = vmatmul.mubr.f32.gmra.mxu0 %v177
    %v245 = vpop.f32.mrf.mxu0
    %v246 = vadd.f32 0.0, %v245
    %v247 = vpop.f32.mrf.mxu0
    %248 = vdwg.mxu0
    %v250 = vsel %vm22, %v246, 0
    %252 = vmatprep.subr.mxu0 0.0
    %253 = vmatpush1.msra.mxu0 0.0
    %254 = vmatprep.subr.mxu0 0.0
    %255 = vmatpush1.msra.mxu0 0.0
    %256 = vmatprep.subr.mxu0 0.0
    %257 = vmatpush1.msra.mxu0 0.0
    %258 = vmatprep.subr.mxu0 0.0
    %259 = vmatpush1.msra.mxu0 0.0
    %260 = vmatprep.subr.mxu0 0.0
    %261 = vmatpush1.msra.mxu0 0.0
    %262 = vmatprep.subr.mxu0 0.0
    %263 = vmatpush1.msra.mxu0 0.0
    %264 = vmatprep.subr.mxu0 0.0
    %265 = vmatpush1.msra.mxu0 0.0
    %266 = vmatprep.subr.mxu0 0.0
    %267 = vmatpush1.msra.mxu0 0.0
    %268 = vmatprep.subr.mxu0 0.0
    %269 = vmatpush1.msra.mxu0 0.0
    %270 = vmatprep.subr.mxu0 0.0
    %271 = vmatpush1.msra.mxu0 0.0
    %272 = vmatprep.subr.mxu0 0.0
    %273 = vmatpush1.msra.mxu0 0.0
    %274 = vmatprep.subr.mxu0 0.0
    %275 = vmatpush1.msra.mxu0 0.0
    %276 = vmatprep.subr.mxu0 0.0
    %277 = vmatpush1.msra.mxu0 0.0
    %278 = vmatprep.subr.mxu0 0.0
    %279 = vmatpush1.msra.mxu0 0.0
    %280 = vmatprep.subr.mxu0 0.0
    %281 = vmatpush1.msra.mxu0 0.0
    %282 = vmatprep.subr.mxu0 0.0
    %283 = vmatpush1.msra.mxu0 %v250
    %284 = vmatprep.subr.mxu0 0.0
    %285 = vmatpush2.msra.mxu0 0.0
    %286 = vmatprep.subr.mxu0 0.0
    %287 = vmatpush2.msra.mxu0 0.0
    %288 = vmatprep.subr.mxu0 0.0
    %289 = vmatpush2.msra.mxu0 0.0
    %290 = vmatprep.subr.mxu0 0.0
    %291 = vmatpush2.msra.mxu0 0.0
    %292 = vmatprep.subr.mxu0 0.0
    %293 = vmatpush2.msra.mxu0 0.0
    %294 = vmatprep.subr.mxu0 0.0
    %295 = vmatpush2.msra.mxu0 0.0
    %296 = vmatprep.subr.mxu0 0.0
    %297 = vmatpush2.msra.mxu0 0.0
    %298 = vmatprep.subr.mxu0 0.0
    %299 = vmatpush2.msra.mxu0 0.0
    %300 = vmatprep.subr.mxu0 0.0
    %301 = vmatpush2.msra.mxu0 0.0
    %302 = vmatprep.subr.mxu0 0.0
    %303 = vmatpush2.msra.mxu0 0.0
    %304 = vmatprep.subr.mxu0 0.0
    %305 = vmatpush2.msra.mxu0 0.0
    %306 = vmatprep.subr.mxu0 0.0
    %307 = vmatpush2.msra.mxu0 0.0
    %308 = vmatprep.subr.mxu0 0.0
    %309 = vmatpush2.msra.mxu0 0.0
    %310 = vmatprep.subr.mxu0 0.0
    %311 = vmatpush2.msra.mxu0 0.0
    %312 = vmatprep.subr.mxu0 0.0
    %313 = vmatpush2.msra.mxu0 0.0
    %314 = vmatprep.subr.mxu0 0.0
    %315 = vmatpush2.msra.mxu0 0.0
    %316 = vmatprep.mubr.f32.mxu0 0.0
    %317 = vmatmul.mubr.f32.gmra.mxu0 %v97
    %v318 = vpop.f32.mrf.mxu0
    %v319 = vadd.f32 0.0, %v318
    %v320 = vpop.f32.mrf.mxu0
    %321 = vdwg.mxu0
    %s322 = scalar_lea.vmem [#allocation2], 8
    %323 = vst.msk [vmem:[%s322] sm:$0xff] %vm172, %v319
    // Predicated region
    $region14: #{forward.29} parent=1 // pred_check
      _
    $region15: #{forward.29} parent=1 // pred_check_branch
      %325 = sbr.rel (0) target = $region17
    $region16: #{forward.29} parent=1 // pred_region
      %s327 = ssub.s32 256, 256
      %328 = vsyncadd [#allocation3], %s327
      %s329 = sshll.u32 [#allocation2], 4
      %s330 = int_to_ptr.vmem [resolvable:$true] %s329
      %335 = dma.vmem_to_hbm [thread:$0]  %s330, 256, %s3, [#allocation3], 128, 128, 8
    $region17: #{forward.29} parent=1 // pred_fallthru
      _
    // Predicated region
    $region18: #{forward.29} parent=1 // pred_check
      _
    $region19: #{forward.29} parent=1 // pred_check_branch
      %337 = sbr.rel (0) target = $region21
    $region20: #{forward.29} parent=1 // pred_region
      %338 = dma.done [#allocation3], 256
    $region21: #{forward.29} parent=1 // pred_fallthru
      _
    %339 = vsyncpa [#allocation3], 1

// kernel: forward.23
$region0: #{forward.23}
  #allocation0 [shape = 'u32[]', space=smem, size = 0x4, offset = 0x4, fixed_abs, tag = 'smem constant byte address 0x4 - core index']
  #allocation1 [shape = 'u32[144,128]{1,0:T(1,128)}', space=vmem, size = 0x12000, scoped, tag = 'internal scratch']
  %s0 = inlined_call_operand.vmem [shape: f32[64,4,4], index: 0, kind: input, shape index: {}]
  %s1 = inlined_call_operand.vmem [shape: f32[4,2], index: 1, kind: input, shape index: {}]
  %s2 = inlined_call_operand.vmem [shape: f32[2,4], index: 2, kind: input, shape index: {}]
  %s3 = inlined_call_operand.vmem [shape: f32[64,2,2], index: 3, kind: output, shape index: {}]
  %s4 = sld [smem:[#allocation0]]
  $region45: #{forward.23} parent=0
    _
  %s6 = ssub.s32 1, %s4
  %s7 = scalar_select 0, %s6, %s4
  loop: start=0, step=1, limit=10
  $region2: #{forward.23} parent=0 // loop_pre_header
    _
  $region3: #{forward.23} parent=0 // loop_header
    %s9 = sphi 0, %s13
    %p10 = scmp.ge.s32.totalorder %s9, 10
    %s19 = sphi 0, %s21
    %s22 = sphi 0, %s19
    %s23 = sphi 0, %s22
    %s39 = sphi 0, %s23
    %s43 = sphi 0, %s43
    %s45 = sphi 0, %s43
    %s46 = sphi 0, %s45
    %s60 = sphi 0, %s46
    %s64 = sphi 0, %s64
    %s66 = sphi 0, %s64
    %s67 = sphi 0, %s66
    %s81 = sphi 0, %s67
    %s87 = sphi 0, %s89
    %s90 = sphi 0, %s87
    %s91 = sphi 0, %s90
    %s107 = sphi 0, %s91
  $region4: #{forward.23} parent=0 // loop_header_branch
    %12 = sbr.rel (%p10) target = $region8
  $region5: #{forward.23} parent=0 // loop_body
    %s14 = ssub.s32 %s9, 1
    %s15 = ssub.s32 %s9, 2
    %s16 = sadd.s32 %s9, 1
    %s17 = ssub.s32 %s9, %s16
    %p18 = scmp.eq.s32.totalorder %s17, 0
    %s20 = sadd.s32 %s19, 1
    %s21 = scalar_select %p18, %s19, %s20
    %p24 = pneg %p18
    %p25 = scmp.eq.s32.totalorder %s9, 7
    %p26 = por %p24, %p25
    %p27 = scmp.ne.s32.totalorder %s19, %s22
    %p28 = scmp.eq.s32.totalorder %s9, 0
    %p29 = por %p27, %p28
    %p30 = scmp.ne.s32.totalorder %s19, %s22
    %p31 = scmp.eq.s32.totalorder %s14, 7
    %p32 = por %p30, %p31
    %p33 = scmp.ne.s32.totalorder %s22, %s23
    %p34 = scmp.eq.s32.totalorder %s14, 0
    %p35 = por %p33, %p34
    %p36 = scmp.ne.s32.totalorder %s22, %s23
    %p37 = scmp.eq.s32.totalorder %s15, 7
    %p38 = por %p36, %p37
    %p40 = scmp.ne.s32.totalorder %s23, %s39
    %p41 = scmp.eq.s32.totalorder %s15, 0
    %p42 = por %p40, %p41
    %s44 = sadd.s32 %s43, 1
    %p47 = scmp.eq.s32.totalorder %s9, 7
    %p48 = scmp.ne.s32.totalorder %s43, %s45
    %p49 = scmp.eq.s32.totalorder %s9, 0
    %p50 = por %p48, %p49
    %p51 = scmp.ne.s32.totalorder %s43, %s45
    %p52 = scmp.eq.s32.totalorder %s14, 7
    %p53 = por %p51, %p52
    %p54 = scmp.ne.s32.totalorder %s45, %s46
    %p55 = scmp.eq.s32.totalorder %s14, 0
    %p56 = por %p54, %p55
    %p57 = scmp.ne.s32.totalorder %s45, %s46
    %p58 = scmp.eq.s32.totalorder %s15, 7
    %p59 = por %p57, %p58
    %p61 = scmp.ne.s32.totalorder %s46, %s60
    %p62 = scmp.eq.s32.totalorder %s15, 0
    %p63 = por %p61, %p62
    %s65 = sadd.s32 %s64, 1
    %p68 = scmp.eq.s32.totalorder %s9, 7
    %p69 = scmp.ne.s32.totalorder %s64, %s66
    %p70 = scmp.eq.s32.totalorder %s9, 0
    %p71 = por %p69, %p70
    %p72 = scmp.ne.s32.totalorder %s64, %s66
    %p73 = scmp.eq.s32.totalorder %s14, 7
    %p74 = por %p72, %p73
    %p75 = scmp.ne.s32.totalorder %s66, %s67
    %p76 = scmp.eq.s32.totalorder %s14, 0
    %p77 = por %p75, %p76
    %p78 = scmp.ne.s32.totalorder %s66, %s67
    %p79 = scmp.eq.s32.totalorder %s15, 7
    %p80 = por %p78, %p79
    %p82 = scmp.ne.s32.totalorder %s67, %s81
    %p83 = scmp.eq.s32.totalorder %s15, 0
    %p84 = por %p82, %p83
    %s85 = ssub.s32 %s9, %s16
    %p86 = scmp.eq.s32.totalorder %s85, 0
    %s88 = sadd.s32 %s87, 1
    %s89 = scalar_select %p86, %s87, %s88
    %p92 = pneg %p86
    %p93 = scmp.eq.s32.totalorder %s9, 7
    %p94 = por %p92, %p93
    %p95 = scmp.ne.s32.totalorder %s87, %s90
    %p96 = scmp.eq.s32.totalorder %s9, 0
    %p97 = por %p95, %p96
    %p98 = scmp.ne.s32.totalorder %s87, %s90
    %p99 = scmp.eq.s32.totalorder %s14, 7
    %p100 = por %p98, %p99
    %p101 = scmp.ne.s32.totalorder %s90, %s91
    %p102 = scmp.eq.s32.totalorder %s14, 0
    %p103 = por %p101, %p102
    %p104 = scmp.ne.s32.totalorder %s90, %s91
    %p105 = scmp.eq.s32.totalorder %s15, 7
    %p106 = por %p104, %p105
    %p108 = scmp.ne.s32.totalorder %s91, %s107
    %p109 = scmp.eq.s32.totalorder %s15, 0
    %p110 = por %p108, %p109
    %p111 = scmp.le.s32.totalorder 1, %s9
    %p112 = scmp.lt.s32.totalorder %s9, 9
    %p113 = pnand %p111, %p112
    %p114 = pneg %p113
    // Predicated region
    $region9: #{forward.23} parent=5 // pred_check
      _
    $region10: #{forward.23} parent=5 // pred_check_branch
      %116 = sbr.rel (%p113) target = $region12
    $region11: #{forward.23} parent=5 // pred_region
      %s117 = ssub.s32 %s9, 1
      // Predicated region
      $region13: #{forward.23} parent=11 // pred_check
        %p118 = pneg %p56
      $region14: #{forward.23} parent=11 // pred_check_branch
        %120 = sbr.rel (%p118) target = $region16
      $region15: #{forward.23} parent=11 // pred_region
        _
      $region16: #{forward.23} parent=11 // pred_fallthru
        _
      // Predicated region
      $region17: #{forward.23} parent=11 // pred_check
        %p121 = pneg %p77
      $region18: #{forward.23} parent=11 // pred_check_branch
        %123 = sbr.rel (%p121) target = $region20
      $region19: #{forward.23} parent=11 // pred_region
        _
      $region20: #{forward.23} parent=11 // pred_fallthru
        _
    $region12: #{forward.23} parent=5 // pred_fallthru
      _
    %p124 = scmp.lt.s32.totalorder %s9, 8
    // Predicated region
    $region21: #{forward.23} parent=5 // pred_check
      %p125 = pneg %p124
    $region22: #{forward.23} parent=5 // pred_check_branch
      %127 = sbr.rel (%p125) target = $region24
    $region23: #{forward.23} parent=5 // pred_region
      // Predicated region
      $region25: #{forward.23} parent=23 // pred_check
        %p128 = pneg %p29
      $region26: #{forward.23} parent=23 // pred_check_branch
        %130 = sbr.rel (%p128) target = $region28
      $region27: #{forward.23} parent=23 // pred_region
        %s131 = smul.u32 8, %s9
        %p132 = scmp.lt.s32.totalorder %s131, 63
        %s133 = scalar_select %p132, %s131, 63
        %s134 = smul.addr %s133, 4
        %s135 = scalar_lea.vmem %s0, %s134
        %s136 = smul.u32 8, %s9
      $region28: #{forward.23} parent=23 // pred_fallthru
        _
    $region24: #{forward.23} parent=5 // pred_fallthru
      _
    %p137 = scmp.le.s32.totalorder 1, %s9
    %p138 = scmp.lt.s32.totalorder %s9, 9
    %p139 = pnand %p137, %p138
    %p140 = pneg %p139
    // Predicated region
    $region29: #{forward.23} parent=5 // pred_check
      _
    $region30: #{forward.23} parent=5 // pred_check_branch
      %142 = sbr.rel (%p139) target = $region32
    $region31: #{forward.23} parent=5 // pred_region
      %s143 = ssub.s32 %s9, 1
      %s144 = smul.u32 8, %s14
      %p145 = scmp.lt.s32.totalorder %s144, 63
      %s146 = scalar_select %p145, %s144, 63
      %s147 = smul.addr %s146, 4
      %s148 = scalar_lea.vmem %s0, %s147
      %p149 = pneg %p35
      %p150 = pneg %p32
      %p151 = pneg %p56
      %p152 = pneg %p53
      %p153 = pneg %p77
      %p154 = pneg %p74
      %p155 = pneg %p103
      %p156 = pneg %p100
      %s157 = smul.u32 8, %s14
      %p158 = scmp.lt.s32.totalorder %s157, 63
      %s159 = scalar_select %p158, %s157, 63
      %s160 = smul.addr %s159, 2
      %s161 = scalar_lea.vmem %s3, %s160
      %s162 = smul.u32 8, %s14
      %p163 = scmp.lt.s32.totalorder %s162, 63
      %s164 = scalar_select %p163, %s162, 63
      %s165 = smul.addr %s164, 4
      %s166 = scalar_lea.vmem %s0, %s165
      %s167 = smul.u32 8, %s14
      %s168 = smul.u32 8, %s14
      %p169 = scmp.lt.s32.totalorder %s168, 63
      %s170 = scalar_select %p169, %s168, 63
      %s171 = smul.addr %s170, 2
      %s172 = scalar_lea.vmem %s3, %s171
      %s173 = smul.u32 8, %s14
      %v174 = vld [vmem:[%s1] sm:$0xf]
      %v175 = vld [vmem:[%s2] sm:$0x3]
      %v176 = vld [vmem:[%s166] sm:$0xf]
      %vm177 = vcmask 31744
      %v179 = vsel %vm177, %v176, 0
      %vm181 = vcmask 1043456
      %v183 = vsel %vm181, %v174, 0
      %185 = vmatprep.subr.mxu0 0.0
      %186 = vmatpush1.msra.mxu0 0.0
      %187 = vmatprep.subr.mxu0 0.0
      %188 = vmatpush1.msra.mxu0 0.0
      %189 = vmatprep.subr.mxu0 0.0
      %190 = vmatpush1.msra.mxu0 0.0
      %191 = vmatprep.subr.mxu0 0.0
      %192 = vmatpush1.msra.mxu0 0.0
      %193 = vmatprep.subr.mxu0 0.0
      %194 = vmatpush1.msra.mxu0 0.0
      %195 = vmatprep.subr.mxu0 0.0
      %196 = vmatpush1.msra.mxu0 0.0
      %197 = vmatprep.subr.mxu0 0.0
      %198 = vmatpush1.msra.mxu0 0.0
      %199 = vmatprep.subr.mxu0 0.0
      %200 = vmatpush1.msra.mxu0 0.0
      %201 = vmatprep.subr.mxu0 0.0
      %202 = vmatpush1.msra.mxu0 0.0
      %203 = vmatprep.subr.mxu0 0.0
      %204 = vmatpush1.msra.mxu0 0.0
      %205 = vmatprep.subr.mxu0 0.0
      %206 = vmatpush1.msra.mxu0 0.0
      %207 = vmatprep.subr.mxu0 0.0
      %208 = vmatpush1.msra.mxu0 0.0
      %209 = vmatprep.subr.mxu0 0.0
      %210 = vmatpush1.msra.mxu0 0.0
      %211 = vmatprep.subr.mxu0 0.0
      %212 = vmatpush1.msra.mxu0 0.0
      %213 = vmatprep.subr.mxu0 0.0
      %214 = vmatpush1.msra.mxu0 0.0
      %215 = vmatprep.subr.mxu0 0.0
      %216 = vmatpush1.msra.mxu0 %v183
      %217 = vmatprep.subr.mxu0 0.0
      %218 = vmatpush2.msra.mxu0 0.0
      %219 = vmatprep.subr.mxu0 0.0
      %220 = vmatpush2.msra.mxu0 0.0
      %221 = vmatprep.subr.mxu0 0.0
      %222 = vmatpush2.msra.mxu0 0.0
      %223 = vmatprep.subr.mxu0 0.0
      %224 = vmatpush2.msra.mxu0 0.0
      %225 = vmatprep.subr.mxu0 0.0
      %226 = vmatpush2.msra.mxu0 0.0
      %227 = vmatprep.subr.mxu0 0.0
      %228 = vmatpush2.msra.mxu0 0.0
      %229 = vmatprep.subr.mxu0 0.0
      %230 = vmatpush2.msra.mxu0 0.0
      %231 = vmatprep.subr.mxu0 0.0
      %232 = vmatpush2.msra.mxu0 0.0
      %233 = vmatprep.subr.mxu0 0.0
      %234 = vmatpush2.msra.mxu0 0.0
      %235 = vmatprep.subr.mxu0 0.0
      %236 = vmatpush2.msra.mxu0 0.0
      %237 = vmatprep.subr.mxu0 0.0
      %238 = vmatpush2.msra.mxu0 0.0
      %239 = vmatprep.subr.mxu0 0.0
      %240 = vmatpush2.msra.mxu0 0.0
      %241 = vmatprep.subr.mxu0 0.0
      %242 = vmatpush2.msra.mxu0 0.0
      %243 = vmatprep.subr.mxu0 0.0
      %244 = vmatpush2.msra.mxu0 0.0
      %245 = vmatprep.subr.mxu0 0.0
      %246 = vmatpush2.msra.mxu0 0.0
      %247 = vmatprep.subr.mxu0 0.0
      %248 = vmatpush2.msra.mxu0 0.0
      %249 = vmatprep.mubr.f32.mxu0 0.0
      %250 = vmatmul.mubr.f32.gmra.mxu0 %v179
      %v251 = vpop.f32.mrf.mxu0
      %v252 = vadd.f32 0.0, %v251
      %v253 = vpop.f32.mrf.mxu0
      %254 = vdwg.mxu0
      %v256 = vsel %vm177, %v175, 0
      %v259 = vsel %vm181, %v252, 0
      %261 = vmatprep.subr.mxu0 0.0
      %262 = vmatpush1.msra.mxu0 0.0
      %263 = vmatprep.subr.mxu0 0.0
      %264 = vmatpush1.msra.mxu0 0.0
      %265 = vmatprep.subr.mxu0 0.0
      %266 = vmatpush1.msra.mxu0 0.0
      %267 = vmatprep.subr.mxu0 0.0
      %268 = vmatpush1.msra.mxu0 0.0
      %269 = vmatprep.subr.mxu0 0.0
      %270 = vmatpush1.msra.mxu0 0.0
      %271 = vmatprep.subr.mxu0 0.0
      %272 = vmatpush1.msra.mxu0 0.0
      %273 = vmatprep.subr.mxu0 0.0
      %274 = vmatpush1.msra.mxu0 0.0
      %275 = vmatprep.subr.mxu0 0.0
      %276 = vmatpush1.msra.mxu0 0.0
      %277 = vmatprep.subr.mxu0 0.0
      %278 = vmatpush1.msra.mxu0 0.0
      %279 = vmatprep.subr.mxu0 0.0
      %280 = vmatpush1.msra.mxu0 0.0
      %281 = vmatprep.subr.mxu0 0.0
      %282 = vmatpush1.msra.mxu0 0.0
      %283 = vmatprep.subr.mxu0 0.0
      %284 = vmatpush1.msra.mxu0 0.0
      %285 = vmatprep.subr.mxu0 0.0
      %286 = vmatpush1.msra.mxu0 0.0
      %287 = vmatprep.subr.mxu0 0.0
      %288 = vmatpush1.msra.mxu0 0.0
      %289 = vmatprep.subr.mxu0 0.0
      %290 = vmatpush1.msra.mxu0 0.0
      %291 = vmatprep.subr.mxu0 0.0
      %292 = vmatpush1.msra.mxu0 %v259
      %293 = vmatprep.subr.mxu0 0.0
      %294 = vmatpush2.msra.mxu0 0.0
      %295 = vmatprep.subr.mxu0 0.0
      %296 = vmatpush2.msra.mxu0 0.0
      %297 = vmatprep.subr.mxu0 0.0
      %298 = vmatpush2.msra.mxu0 0.0
      %299 = vmatprep.subr.mxu0 0.0
      %300 = vmatpush2.msra.mxu0 0.0
      %301 = vmatprep.subr.mxu0 0.0
      %302 = vmatpush2.msra.mxu0 0.0
      %303 = vmatprep.subr.mxu0 0.0
      %304 = vmatpush2.msra.mxu0 0.0
      %305 = vmatprep.subr.mxu0 0.0
      %306 = vmatpush2.msra.mxu0 0.0
      %307 = vmatprep.subr.mxu0 0.0
      %308 = vmatpush2.msra.mxu0 0.0
      %309 = vmatprep.subr.mxu0 0.0
      %310 = vmatpush2.msra.mxu0 0.0
      %311 = vmatprep.subr.mxu0 0.0
      %312 = vmatpush2.msra.mxu0 0.0
      %313 = vmatprep.subr.mxu0 0.0
      %314 = vmatpush2.msra.mxu0 0.0
      %315 = vmatprep.subr.mxu0 0.0
      %316 = vmatpush2.msra.mxu0 0.0
      %317 = vmatprep.subr.mxu0 0.0
      %318 = vmatpush2.msra.mxu0 0.0
      %319 = vmatprep.subr.mxu0 0.0
      %320 = vmatpush2.msra.mxu0 0.0
      %321 = vmatprep.subr.mxu0 0.0
      %322 = vmatpush2.msra.mxu0 0.0
      %323 = vmatprep.subr.mxu0 0.0
      %324 = vmatpush2.msra.mxu0 0.0
      %325 = vmatprep.mubr.f32.mxu0 0.0
      %326 = vmatmul.mubr.f32.gmra.mxu0 %v256
      %v327 = vpop.f32.mrf.mxu0
      %v328 = vadd.f32 0.0, %v327
      %v329 = vpop.f32.mrf.mxu0
      %330 = vdwg.mxu0
      %vm331 = vcmask 9216
      %332 = vst.msk [vmem:[%s172] sm:$0x3] %vm331, %v328
      %s333 = scalar_lea.vmem %s166, 4
      %v334 = vld [vmem:[%s333] sm:$0xf]
      %v336 = vsel %vm177, %v334, 0
      %338 = vmatprep.subr.mxu0 0.0
      %339 = vmatpush1.msra.mxu0 0.0
      %340 = vmatprep.subr.mxu0 0.0
      %341 = vmatpush1.msra.mxu0 0.0
      %342 = vmatprep.subr.mxu0 0.0
      %343 = vmatpush1.msra.mxu0 0.0
      %344 = vmatprep.subr.mxu0 0.0
      %345 = vmatpush1.msra.mxu0 0.0
      %346 = vmatprep.subr.mxu0 0.0
      %347 = vmatpush1.msra.mxu0 0.0
      %348 = vmatprep.subr.mxu0 0.0
      %349 = vmatpush1.msra.mxu0 0.0
      %350 = vmatprep.subr.mxu0 0.0
      %351 = vmatpush1.msra.mxu0 0.0
      %352 = vmatprep.subr.mxu0 0.0
      %353 = vmatpush1.msra.mxu0 0.0
      %354 = vmatprep.subr.mxu0 0.0
      %355 = vmatpush1.msra.mxu0 0.0
      %356 = vmatprep.subr.mxu0 0.0
      %357 = vmatpush1.msra.mxu0 0.0
      %358 = vmatprep.subr.mxu0 0.0
      %359 = vmatpush1.msra.mxu0 0.0
      %360 = vmatprep.subr.mxu0 0.0
      %361 = vmatpush1.msra.mxu0 0.0
      %362 = vmatprep.subr.mxu0 0.0
      %363 = vmatpush1.msra.mxu0 0.0
      %364 = vmatprep.subr.mxu0 0.0
      %365 = vmatpush1.msra.mxu0 0.0
      %366 = vmatprep.subr.mxu0 0.0
      %367 = vmatpush1.msra.mxu0 0.0
      %368 = vmatprep.subr.mxu0 0.0
      %369 = vmatpush1.msra.mxu0 %v183
      %370 = vmatprep.subr.mxu0 0.0
      %371 = vmatpush2.msra.mxu0 0.0
      %372 = vmatprep.subr.mxu0 0.0
      %373 = vmatpush2.msra.mxu0 0.0
      %374 = vmatprep.subr.mxu0 0.0
      %375 = vmatpush2.msra.mxu0 0.0
      %376 = vmatprep.subr.mxu0 0.0
      %377 = vmatpush2.msra.mxu0 0.0
      %378 = vmatprep.subr.mxu0 0.0
      %379 = vmatpush2.msra.mxu0 0.0
      %380 = vmatprep.subr.mxu0 0.0
      %381 = vmatpush2.msra.mxu0 0.0
      %382 = vmatprep.subr.mxu0 0.0
      %383 = vmatpush2.msra.mxu0 0.0
      %384 = vmatprep.subr.mxu0 0.0
      %385 = vmatpush2.msra.mxu0 0.0
      %386 = vmatprep.subr.mxu0 0.0
      %387 = vmatpush2.msra.mxu0 0.0
      %388 = vmatprep.subr.mxu0 0.0
      %389 = vmatpush2.msra.mxu0 0.0
      %390 = vmatprep.subr.mxu0 0.0
      %391 = vmatpush2.msra.mxu0 0.0
      %392 = vmatprep.subr.mxu0 0.0
      %393 = vmatpush2.msra.mxu0 0.0
      %394 = vmatprep.subr.mxu0 0.0
      %395 = vmatpush2.msra.mxu0 0.0
      %396 = vmatprep.subr.mxu0 0.0
      %397 = vmatpush2.msra.mxu0 0.0
      %398 = vmatprep.subr.mxu0 0.0
      %399 = vmatpush2.msra.mxu0 0.0
      %400 = vmatprep.subr.mxu0 0.0
      %401 = vmatpush2.msra.mxu0 0.0
      %402 = vmatprep.mubr.f32.mxu0 0.0
      %403 = vmatmul.mubr.f32.gmra.mxu0 %v336
      %v404 = vpop.f32.mrf.mxu0
      %v405 = vadd.f32 0.0, %v404
      %v406 = vpop.f32.mrf.mxu0
      %407 = vdwg.mxu0
      %v409 = vsel %vm181, %v405, 0
      %411 = vmatprep.subr.mxu0 0.0
      %412 = vmatpush1.msra.mxu0 0.0
      %413 = vmatprep.subr.mxu0 0.0
      %414 = vmatpush1.msra.mxu0 0.0
      %415 = vmatprep.subr.mxu0 0.0
      %416 = vmatpush1.msra.mxu0 0.0
      %417 = vmatprep.subr.mxu0 0.0
      %418 = vmatpush1.msra.mxu0 0.0
      %419 = vmatprep.subr.mxu0 0.0
      %420 = vmatpush1.msra.mxu0 0.0
      %421 = vmatprep.subr.mxu0 0.0
      %422 = vmatpush1.msra.mxu0 0.0
      %423 = vmatprep.subr.mxu0 0.0
      %424 = vmatpush1.msra.mxu0 0.0
      %425 = vmatprep.subr.mxu0 0.0
      %426 = vmatpush1.msra.mxu0 0.0
      %427 = vmatprep.subr.mxu0 0.0
      %428 = vmatpush1.msra.mxu0 0.0
      %429 = vmatprep.subr.mxu0 0.0
      %430 = vmatpush1.msra.mxu0 0.0
      %431 = vmatprep.subr.mxu0 0.0
      %432 = vmatpush1.msra.mxu0 0.0
      %433 = vmatprep.subr.mxu0 0.0
      %434 = vmatpush1.msra.mxu0 0.0
      %435 = vmatprep.subr.mxu0 0.0
      %436 = vmatpush1.msra.mxu0 0.0
      %437 = vmatprep.subr.mxu0 0.0
      %438 = vmatpush1.msra.mxu0 0.0
      %439 = vmatprep.subr.mxu0 0.0
      %440 = vmatpush1.msra.mxu0 0.0
      %441 = vmatprep.subr.mxu0 0.0
      %442 = vmatpush1.msra.mxu0 %v409
      %443 = vmatprep.subr.mxu0 0.0
      %444 = vmatpush2.msra.mxu0 0.0
      %445 = vmatprep.subr.mxu0 0.0
      %446 = vmatpush2.msra.mxu0 0.0
      %447 = vmatprep.subr.mxu0 0.0
      %448 = vmatpush2.msra.mxu0 0.0
      %449 = vmatprep.subr.mxu0 0.0
      %450 = vmatpush2.msra.mxu0 0.0
      %451 = vmatprep.subr.mxu0 0.0
      %452 = vmatpush2.msra.mxu0 0.0
      %453 = vmatprep.subr.mxu0 0.0
      %454 = vmatpush2.msra.mxu0 0.0
      %455 = vmatprep.subr.mxu0 0.0
      %456 = vmatpush2.msra.mxu0 0.0
      %457 = vmatprep.subr.mxu0 0.0
      %458 = vmatpush2.msra.mxu0 0.0
      %459 = vmatprep.subr.mxu0 0.0
      %460 = vmatpush2.msra.mxu0 0.0
      %461 = vmatprep.subr.mxu0 0.0
      %462 = vmatpush2.msra.mxu0 0.0
      %463 = vmatprep.subr.mxu0 0.0
      %464 = vmatpush2.msra.mxu0 0.0
      %465 = vmatprep.subr.mxu0 0.0
      %466 = vmatpush2.msra.mxu0 0.0
      %467 = vmatprep.subr.mxu0 0.0
      %468 = vmatpush2.msra.mxu0 0.0
      %469 = vmatprep.subr.mxu0 0.0
      %470 = vmatpush2.msra.mxu0 0.0
      %471 = vmatprep.subr.mxu0 0.0
      %472 = vmatpush2.msra.mxu0 0.0
      %473 = vmatprep.subr.mxu0 0.0
      %474 = vmatpush2.msra.mxu0 0.0
      %475 = vmatprep.mubr.f32.mxu0 0.0
      %476 = vmatmul.mubr.f32.gmra.mxu0 %v256
      %v477 = vpop.f32.mrf.mxu0
      %v478 = vadd.f32 0.0, %v477
      %v479 = vpop.f32.mrf.mxu0
      %480 = vdwg.mxu0
      %s481 = scalar_lea.vmem %s172, 2
      %482 = vst.msk [vmem:[%s481] sm:$0x3] %vm331, %v478
      %s483 = scalar_lea.vmem %s166, 8
      %v484 = vld [vmem:[%s483] sm:$0xf]
      %v486 = vsel %vm177, %v484, 0
      %488 = vmatprep.subr.mxu0 0.0
      %489 = vmatpush1.msra.mxu0 0.0
      %490 = vmatprep.subr.mxu0 0.0
      %491 = vmatpush1.msra.mxu0 0.0
      %492 = vmatprep.subr.mxu0 0.0
      %493 = vmatpush1.msra.mxu0 0.0
      %494 = vmatprep.subr.mxu0 0.0
      %495 = vmatpush1.msra.mxu0 0.0
      %496 = vmatprep.subr.mxu0 0.0
      %497 = vmatpush1.msra.mxu0 0.0
      %498 = vmatprep.subr.mxu0 0.0
      %499 = vmatpush1.msra.mxu0 0.0
      %500 = vmatprep.subr.mxu0 0.0
      %501 = vmatpush1.msra.mxu0 0.0
      %502 = vmatprep.subr.mxu0 0.0
      %503 = vmatpush1.msra.mxu0 0.0
      %504 = vmatprep.subr.mxu0 0.0
      %505 = vmatpush1.msra.mxu0 0.0
      %506 = vmatprep.subr.mxu0 0.0
      %507 = vmatpush1.msra.mxu0 0.0
      %508 = vmatprep.subr.mxu0 0.0
      %509 = vmatpush1.msra.mxu0 0.0
      %510 = vmatprep.subr.mxu0 0.0
      %511 = vmatpush1.msra.mxu0 0.0
      %512 = vmatprep.subr.mxu0 0.0
      %513 = vmatpush1.msra.mxu0 0.0
      %514 = vmatprep.subr.mxu0 0.0
      %515 = vmatpush1.msra.mxu0 0.0
      %516 = vmatprep.subr.mxu0 0.0
      %517 = vmatpush1.msra.mxu0 0.0
      %518 = vmatprep.subr.mxu0 0.0
      %519 = vmatpush1.msra.mxu0 %v183
      %520 = vmatprep.subr.mxu0 0.0
      %521 = vmatpush2.msra.mxu0 0.0
      %522 = vmatprep.subr.mxu0 0.0
      %523 = vmatpush2.msra.mxu0 0.0
      %524 = vmatprep.subr.mxu0 0.0
      %525 = vmatpush2.msra.mxu0 0.0
      %526 = vmatprep.subr.mxu0 0.0
      %527 = vmatpush2.msra.mxu0 0.0
      %528 = vmatprep.subr.mxu0 0.0
      %529 = vmatpush2.msra.mxu0 0.0
      %530 = vmatprep.subr.mxu0 0.0
      %531 = vmatpush2.msra.mxu0 0.0
      %532 = vmatprep.subr.mxu0 0.0
      %533 = vmatpush2.msra.mxu0 0.0
      %534 = vmatprep.subr.mxu0 0.0
      %535 = vmatpush2.msra.mxu0 0.0
      %536 = vmatprep.subr.mxu0 0.0
      %537 = vmatpush2.msra.mxu0 0.0
      %538 = vmatprep.subr.mxu0 0.0
      %539 = vmatpush2.msra.mxu0 0.0
      %540 = vmatprep.subr.mxu0 0.0
      %541 = vmatpush2.msra.mxu0 0.0
      %542 = vmatprep.subr.mxu0 0.0
      %543 = vmatpush2.msra.mxu0 0.0
      %544 = vmatprep.subr.mxu0 0.0
      %545 = vmatpush2.msra.mxu0 0.0
      %546 = vmatprep.subr.mxu0 0.0
      %547 = vmatpush2.msra.mxu0 0.0
      %548 = vmatprep.subr.mxu0 0.0
      %549 = vmatpush2.msra.mxu0 0.0
      %550 = vmatprep.subr.mxu0 0.0
      %551 = vmatpush2.msra.mxu0 0.0
      %552 = vmatprep.mubr.f32.mxu0 0.0
      %553 = vmatmul.mubr.f32.gmra.mxu0 %v486
      %v554 = vpop.f32.mrf.mxu0
      %v555 = vadd.f32 0.0, %v554
      %v556 = vpop.f32.mrf.mxu0
      %557 = vdwg.mxu0
      %v559 = vsel %vm181, %v555, 0
      %561 = vmatprep.subr.mxu0 0.0
      %562 = vmatpush1.msra.mxu0 0.0
      %563 = vmatprep.subr.mxu0 0.0
      %564 = vmatpush1.msra.mxu0 0.0
      %565 = vmatprep.subr.mxu0 0.0
      %566 = vmatpush1.msra.mxu0 0.0
      %567 = vmatprep.subr.mxu0 0.0
      %568 = vmatpush1.msra.mxu0 0.0
      %569 = vmatprep.subr.mxu0 0.0
      %570 = vmatpush1.msra.mxu0 0.0
      %571 = vmatprep.subr.mxu0 0.0
      %572 = vmatpush1.msra.mxu0 0.0
      %573 = vmatprep.subr.mxu0 0.0
      %574 = vmatpush1.msra.mxu0 0.0
      %575 = vmatprep.subr.mxu0 0.0
      %576 = vmatpush1.msra.mxu0 0.0
      %577 = vmatprep.subr.mxu0 0.0
      %578 = vmatpush1.msra.mxu0 0.0
      %579 = vmatprep.subr.mxu0 0.0
      %580 = vmatpush1.msra.mxu0 0.0
      %581 = vmatprep.subr.mxu0 0.0
      %582 = vmatpush1.msra.mxu0 0.0
      %583 = vmatprep.subr.mxu0 0.0
      %584 = vmatpush1.msra.mxu0 0.0
      %585 = vmatprep.subr.mxu0 0.0
      %586 = vmatpush1.msra.mxu0 0.0
      %587 = vmatprep.subr.mxu0 0.0
      %588 = vmatpush1.msra.mxu0 0.0
      %589 = vmatprep.subr.mxu0 0.0
      %590 = vmatpush1.msra.mxu0 0.0
      %591 = vmatprep.subr.mxu0 0.0
      %592 = vmatpush1.msra.mxu0 %v559
      %593 = vmatprep.subr.mxu0 0.0
      %594 = vmatpush2.msra.mxu0 0.0
      %595 = vmatprep.subr.mxu0 0.0
      %596 = vmatpush2.msra.mxu0 0.0
      %597 = vmatprep.subr.mxu0 0.0
      %598 = vmatpush2.msra.mxu0 0.0
      %599 = vmatprep.subr.mxu0 0.0
      %600 = vmatpush2.msra.mxu0 0.0
      %601 = vmatprep.subr.mxu0 0.0
      %602 = vmatpush2.msra.mxu0 0.0
      %603 = vmatprep.subr.mxu0 0.0
      %604 = vmatpush2.msra.mxu0 0.0
      %605 = vmatprep.subr.mxu0 0.0
      %606 = vmatpush2.msra.mxu0 0.0
      %607 = vmatprep.subr.mxu0 0.0
      %608 = vmatpush2.msra.mxu0 0.0
      %609 = vmatprep.subr.mxu0 0.0
      %610 = vmatpush2.msra.mxu0 0.0
      %611 = vmatprep.subr.mxu0 0.0
      %612 = vmatpush2.msra.mxu0 0.0
      %613 = vmatprep.subr.mxu0 0.0
      %614 = vmatpush2.msra.mxu0 0.0
      %615 = vmatprep.subr.mxu0 0.0
      %616 = vmatpush2.msra.mxu0 0.0
      %617 = vmatprep.subr.mxu0 0.0
      %618 = vmatpush2.msra.mxu0 0.0
      %619 = vmatprep.subr.mxu0 0.0
      %620 = vmatpush2.msra.mxu0 0.0
      %621 = vmatprep.subr.mxu0 0.0
      %622 = vmatpush2.msra.mxu0 0.0
      %623 = vmatprep.subr.mxu0 0.0
      %624 = vmatpush2.msra.mxu0 0.0
      %625 = vmatprep.mubr.f32.mxu0 0.0
      %626 = vmatmul.mubr.f32.gmra.mxu0 %v256
      %v627 = vpop.f32.mrf.mxu0
      %v628 = vadd.f32 0.0, %v627
      %v629 = vpop.f32.mrf.mxu0
      %630 = vdwg.mxu0
      %s631 = scalar_lea.vmem %s172, 4
      %632 = vst.msk [vmem:[%s631] sm:$0x3] %vm331, %v628
      %s633 = scalar_lea.vmem %s166, 12
      %v634 = vld [vmem:[%s633] sm:$0xf]
      %v636 = vsel %vm177, %v634, 0
      %638 = vmatprep.subr.mxu0 0.0
      %639 = vmatpush1.msra.mxu0 0.0
      %640 = vmatprep.subr.mxu0 0.0
      %641 = vmatpush1.msra.mxu0 0.0
      %642 = vmatprep.subr.mxu0 0.0
      %643 = vmatpush1.msra.mxu0 0.0
      %644 = vmatprep.subr.mxu0 0.0
      %645 = vmatpush1.msra.mxu0 0.0
      %646 = vmatprep.subr.mxu0 0.0
      %647 = vmatpush1.msra.mxu0 0.0
      %648 = vmatprep.subr.mxu0 0.0
      %649 = vmatpush1.msra.mxu0 0.0
      %650 = vmatprep.subr.mxu0 0.0
      %651 = vmatpush1.msra.mxu0 0.0
      %652 = vmatprep.subr.mxu0 0.0
      %653 = vmatpush1.msra.mxu0 0.0
      %654 = vmatprep.subr.mxu0 0.0
      %655 = vmatpush1.msra.mxu0 0.0
      %656 = vmatprep.subr.mxu0 0.0
      %657 = vmatpush1.msra.mxu0 0.0
      %658 = vmatprep.subr.mxu0 0.0
      %659 = vmatpush1.msra.mxu0 0.0
      %660 = vmatprep.subr.mxu0 0.0
      %661 = vmatpush1.msra.mxu0 0.0
      %662 = vmatprep.subr.mxu0 0.0
      %663 = vmatpush1.msra.mxu0 0.0
      %664 = vmatprep.subr.mxu0 0.0
      %665 = vmatpush1.msra.mxu0 0.0
      %666 = vmatprep.subr.mxu0 0.0
      %667 = vmatpush1.msra.mxu0 0.0
      %668 = vmatprep.subr.mxu0 0.0
      %669 = vmatpush1.msra.mxu0 %v183
      %670 = vmatprep.subr.mxu0 0.0
      %671 = vmatpush2.msra.mxu0 0.0
      %672 = vmatprep.subr.mxu0 0.0
      %673 = vmatpush2.msra.mxu0 0.0
      %674 = vmatprep.subr.mxu0 0.0
      %675 = vmatpush2.msra.mxu0 0.0
      %676 = vmatprep.subr.mxu0 0.0
      %677 = vmatpush2.msra.mxu0 0.0
      %678 = vmatprep.subr.mxu0 0.0
      %679 = vmatpush2.msra.mxu0 0.0
      %680 = vmatprep.subr.mxu0 0.0
      %681 = vmatpush2.msra.mxu0 0.0
      %682 = vmatprep.subr.mxu0 0.0
      %683 = vmatpush2.msra.mxu0 0.0
      %684 = vmatprep.subr.mxu0 0.0
      %685 = vmatpush2.msra.mxu0 0.0
      %686 = vmatprep.subr.mxu0 0.0
      %687 = vmatpush2.msra.mxu0 0.0
      %688 = vmatprep.subr.mxu0 0.0
      %689 = vmatpush2.msra.mxu0 0.0
      %690 = vmatprep.subr.mxu0 0.0
      %691 = vmatpush2.msra.mxu0 0.0
      %692 = vmatprep.subr.mxu0 0.0
      %693 = vmatpush2.msra.mxu0 0.0
      %694 = vmatprep.subr.mxu0 0.0
      %695 = vmatpush2.msra.mxu0 0.0
      %696 = vmatprep.subr.mxu0 0.0
      %697 = vmatpush2.msra.mxu0 0.0
      %698 = vmatprep.subr.mxu0 0.0
      %699 = vmatpush2.msra.mxu0 0.0
      %700 = vmatprep.subr.mxu0 0.0
      %701 = vmatpush2.msra.mxu0 0.0
      %702 = vmatprep.mubr.f32.mxu0 0.0
      %703 = vmatmul.mubr.f32.gmra.mxu0 %v636
      %v704 = vpop.f32.mrf.mxu0
      %v705 = vadd.f32 0.0, %v704
      %v706 = vpop.f32.mrf.mxu0
      %707 = vdwg.mxu0
      %v709 = vsel %vm181, %v705, 0
      %711 = vmatprep.subr.mxu0 0.0
      %712 = vmatpush1.msra.mxu0 0.0
      %713 = vmatprep.subr.mxu0 0.0
      %714 = vmatpush1.msra.mxu0 0.0
      %715 = vmatprep.subr.mxu0 0.0
      %716 = vmatpush1.msra.mxu0 0.0
      %717 = vmatprep.subr.mxu0 0.0
      %718 = vmatpush1.msra.mxu0 0.0
      %719 = vmatprep.subr.mxu0 0.0
      %720 = vmatpush1.msra.mxu0 0.0
      %721 = vmatprep.subr.mxu0 0.0
      %722 = vmatpush1.msra.mxu0 0.0
      %723 = vmatprep.subr.mxu0 0.0
      %724 = vmatpush1.msra.mxu0 0.0
      %725 = vmatprep.subr.mxu0 0.0
      %726 = vmatpush1.msra.mxu0 0.0
      %727 = vmatprep.subr.mxu0 0.0
      %728 = vmatpush1.msra.mxu0 0.0
      %729 = vmatprep.subr.mxu0 0.0
      %730 = vmatpush1.msra.mxu0 0.0
      %731 = vmatprep.subr.mxu0 0.0
      %732 = vmatpush1.msra.mxu0 0.0
      %733 = vmatprep.subr.mxu0 0.0
      %734 = vmatpush1.msra.mxu0 0.0
      %735 = vmatprep.subr.mxu0 0.0
      %736 = vmatpush1.msra.mxu0 0.0
      %737 = vmatprep.subr.mxu0 0.0
      %738 = vmatpush1.msra.mxu0 0.0
      %739 = vmatprep.subr.mxu0 0.0
      %740 = vmatpush1.msra.mxu0 0.0
      %741 = vmatprep.subr.mxu0 0.0
      %742 = vmatpush1.msra.mxu0 %v709
      %743 = vmatprep.subr.mxu0 0.0
      %744 = vmatpush2.msra.mxu0 0.0
      %745 = vmatprep.subr.mxu0 0.0
      %746 = vmatpush2.msra.mxu0 0.0
      %747 = vmatprep.subr.mxu0 0.0
      %748 = vmatpush2.msra.mxu0 0.0
      %749 = vmatprep.subr.mxu0 0.0
      %750 = vmatpush2.msra.mxu0 0.0
      %751 = vmatprep.subr.mxu0 0.0
      %752 = vmatpush2.msra.mxu0 0.0
      %753 = vmatprep.subr.mxu0 0.0
      %754 = vmatpush2.msra.mxu0 0.0
      %755 = vmatprep.subr.mxu0 0.0
      %756 = vmatpush2.msra.mxu0 0.0
      %757 = vmatprep.subr.mxu0 0.0
      %758 = vmatpush2.msra.mxu0 0.0
      %759 = vmatprep.subr.mxu0 0.0
      %760 = vmatpush2.msra.mxu0 0.0
      %761 = vmatprep.subr.mxu0 0.0
      %762 = vmatpush2.msra.mxu0 0.0
      %763 = vmatprep.subr.mxu0 0.0
      %764 = vmatpush2.msra.mxu0 0.0
      %765 = vmatprep.subr.mxu0 0.0
      %766 = vmatpush2.msra.mxu0 0.0
      %767 = vmatprep.subr.mxu0 0.0
      %768 = vmatpush2.msra.mxu0 0.0
      %769 = vmatprep.subr.mxu0 0.0
      %770 = vmatpush2.msra.mxu0 0.0
      %771 = vmatprep.subr.mxu0 0.0
      %772 = vmatpush2.msra.mxu0 0.0
      %773 = vmatprep.subr.mxu0 0.0
      %774 = vmatpush2.msra.mxu0 0.0
      %775 = vmatprep.mubr.f32.mxu0 0.0
      %776 = vmatmul.mubr.f32.gmra.mxu0 %v256
      %v777 = vpop.f32.mrf.mxu0
      %v778 = vadd.f32 0.0, %v777
      %v779 = vpop.f32.mrf.mxu0
      %780 = vdwg.mxu0
      %s781 = scalar_lea.vmem %s172, 6
      %782 = vst.msk [vmem:[%s781] sm:$0x3] %vm331, %v778
      %s783 = scalar_lea.vmem %s166, 16
      %v784 = vld [vmem:[%s783] sm:$0xf]
      %v786 = vsel %vm177, %v784, 0
      %788 = vmatprep.subr.mxu0 0.0
      %789 = vmatpush1.msra.mxu0 0.0
      %790 = vmatprep.subr.mxu0 0.0
      %791 = vmatpush1.msra.mxu0 0.0
      %792 = vmatprep.subr.mxu0 0.0
      %793 = vmatpush1.msra.mxu0 0.0
      %794 = vmatprep.subr.mxu0 0.0
      %795 = vmatpush1.msra.mxu0 0.0
      %796 = vmatprep.subr.mxu0 0.0
      %797 = vmatpush1.msra.mxu0 0.0
      %798 = vmatprep.subr.mxu0 0.0
      %799 = vmatpush1.msra.mxu0 0.0
      %800 = vmatprep.subr.mxu0 0.0
      %801 = vmatpush1.msra.mxu0 0.0
      %802 = vmatprep.subr.mxu0 0.0
      %803 = vmatpush1.msra.mxu0 0.0
      %804 = vmatprep.subr.mxu0 0.0
      %805 = vmatpush1.msra.mxu0 0.0
      %806 = vmatprep.subr.mxu0 0.0
      %807 = vmatpush1.msra.mxu0 0.0
      %808 = vmatprep.subr.mxu0 0.0
      %809 = vmatpush1.msra.mxu0 0.0
      %810 = vmatprep.subr.mxu0 0.0
      %811 = vmatpush1.msra.mxu0 0.0
      %812 = vmatprep.subr.mxu0 0.0
      %813 = vmatpush1.msra.mxu0 0.0
      %814 = vmatprep.subr.mxu0 0.0
      %815 = vmatpush1.msra.mxu0 0.0
      %816 = vmatprep.subr.mxu0 0.0
      %817 = vmatpush1.msra.mxu0 0.0
      %818 = vmatprep.subr.mxu0 0.0
      %819 = vmatpush1.msra.mxu0 %v183
      %820 = vmatprep.subr.mxu0 0.0
      %821 = vmatpush2.msra.mxu0 0.0
      %822 = vmatprep.subr.mxu0 0.0
      %823 = vmatpush2.msra.mxu0 0.0
      %824 = vmatprep.subr.mxu0 0.0
      %825 = vmatpush2.msra.mxu0 0.0
      %826 = vmatprep.subr.mxu0 0.0
      %827 = vmatpush2.msra.mxu0 0.0
      %828 = vmatprep.subr.mxu0 0.0
      %829 = vmatpush2.msra.mxu0 0.0
      %830 = vmatprep.subr.mxu0 0.0
      %831 = vmatpush2.msra.mxu0 0.0
      %832 = vmatprep.subr.mxu0 0.0
      %833 = vmatpush2.msra.mxu0 0.0
      %834 = vmatprep.subr.mxu0 0.0
      %835 = vmatpush2.msra.mxu0 0.0
      %836 = vmatprep.subr.mxu0 0.0
      %837 = vmatpush2.msra.mxu0 0.0
      %838 = vmatprep.subr.mxu0 0.0
      %839 = vmatpush2.msra.mxu0 0.0
      %840 = vmatprep.subr.mxu0 0.0
      %841 = vmatpush2.msra.mxu0 0.0
      %842 = vmatprep.subr.mxu0 0.0
      %843 = vmatpush2.msra.mxu0 0.0
      %844 = vmatprep.subr.mxu0 0.0
      %845 = vmatpush2.msra.mxu0 0.0
      %846 = vmatprep.subr.mxu0 0.0
      %847 = vmatpush2.msra.mxu0 0.0
      %848 = vmatprep.subr.mxu0 0.0
      %849 = vmatpush2.msra.mxu0 0.0
      %850 = vmatprep.subr.mxu0 0.0
      %851 = vmatpush2.msra.mxu0 0.0
      %852 = vmatprep.mubr.f32.mxu0 0.0
      %853 = vmatmul.mubr.f32.gmra.mxu0 %v786
      %v854 = vpop.f32.mrf.mxu0
      %v855 = vadd.f32 0.0, %v854
      %v856 = vpop.f32.mrf.mxu0
      %857 = vdwg.mxu0
      %v859 = vsel %vm181, %v855, 0
      %861 = vmatprep.subr.mxu0 0.0
      %862 = vmatpush1.msra.mxu0 0.0
      %863 = vmatprep.subr.mxu0 0.0
      %864 = vmatpush1.msra.mxu0 0.0
      %865 = vmatprep.subr.mxu0 0.0
      %866 = vmatpush1.msra.mxu0 0.0
      %867 = vmatprep.subr.mxu0 0.0
      %868 = vmatpush1.msra.mxu0 0.0
      %869 = vmatprep.subr.mxu0 0.0
      %870 = vmatpush1.msra.mxu0 0.0
      %871 = vmatprep.subr.mxu0 0.0
      %872 = vmatpush1.msra.mxu0 0.0
      %873 = vmatprep.subr.mxu0 0.0
      %874 = vmatpush1.msra.mxu0 0.0
      %875 = vmatprep.subr.mxu0 0.0
      %876 = vmatpush1.msra.mxu0 0.0
      %877 = vmatprep.subr.mxu0 0.0
      %878 = vmatpush1.msra.mxu0 0.0
      %879 = vmatprep.subr.mxu0 0.0
      %880 = vmatpush1.msra.mxu0 0.0
      %881 = vmatprep.subr.mxu0 0.0
      %882 = vmatpush1.msra.mxu0 0.0
      %883 = vmatprep.subr.mxu0 0.0
      %884 = vmatpush1.msra.mxu0 0.0
      %885 = vmatprep.subr.mxu0 0.0
      %886 = vmatpush1.msra.mxu0 0.0
      %887 = vmatprep.subr.mxu0 0.0
      %888 = vmatpush1.msra.mxu0 0.0
      %889 = vmatprep.subr.mxu0 0.0
      %890 = vmatpush1.msra.mxu0 0.0
      %891 = vmatprep.subr.mxu0 0.0
      %892 = vmatpush1.msra.mxu0 %v859
      %893 = vmatprep.subr.mxu0 0.0
      %894 = vmatpush2.msra.mxu0 0.0
      %895 = vmatprep.subr.mxu0 0.0
      %896 = vmatpush2.msra.mxu0 0.0
      %897 = vmatprep.subr.mxu0 0.0
      %898 = vmatpush2.msra.mxu0 0.0
      %899 = vmatprep.subr.mxu0 0.0
      %900 = vmatpush2.msra.mxu0 0.0
      %901 = vmatprep.subr.mxu0 0.0
      %902 = vmatpush2.msra.mxu0 0.0
      %903 = vmatprep.subr.mxu0 0.0
      %904 = vmatpush2.msra.mxu0 0.0
      %905 = vmatprep.subr.mxu0 0.0
      %906 = vmatpush2.msra.mxu0 0.0
      %907 = vmatprep.subr.mxu0 0.0
      %908 = vmatpush2.msra.mxu0 0.0
      %909 = vmatprep.subr.mxu0 0.0
      %910 = vmatpush2.msra.mxu0 0.0
      %911 = vmatprep.subr.mxu0 0.0
      %912 = vmatpush2.msra.mxu0 0.0
      %913 = vmatprep.subr.mxu0 0.0
      %914 = vmatpush2.msra.mxu0 0.0
      %915 = vmatprep.subr.mxu0 0.0
      %916 = vmatpush2.msra.mxu0 0.0
      %917 = vmatprep.subr.mxu0 0.0
      %918 = vmatpush2.msra.mxu0 0.0
      %919 = vmatprep.subr.mxu0 0.0
      %920 = vmatpush2.msra.mxu0 0.0
      %921 = vmatprep.subr.mxu0 0.0
      %922 = vmatpush2.msra.mxu0 0.0
      %923 = vmatprep.subr.mxu0 0.0
      %924 = vmatpush2.msra.mxu0 0.0
      %925 = vmatprep.mubr.f32.mxu0 0.0
      %926 = vmatmul.mubr.f32.gmra.mxu0 %v256
      %v927 = vpop.f32.mrf.mxu0
      %v928 = vadd.f32 0.0, %v927
      %v929 = vpop.f32.mrf.mxu0
      %930 = vdwg.mxu0
      %s931 = scalar_lea.vmem %s172, 8
      %932 = vst.msk [vmem:[%s931] sm:$0x3] %vm331, %v928
      %s933 = scalar_lea.vmem %s166, 20
      %v934 = vld [vmem:[%s933] sm:$0xf]
      %v936 = vsel %vm177, %v934, 0
      %938 = vmatprep.subr.mxu0 0.0
      %939 = vmatpush1.msra.mxu0 0.0
      %940 = vmatprep.subr.mxu0 0.0
      %941 = vmatpush1.msra.mxu0 0.0
      %942 = vmatprep.subr.mxu0 0.0
      %943 = vmatpush1.msra.mxu0 0.0
      %944 = vmatprep.subr.mxu0 0.0
      %945 = vmatpush1.msra.mxu0 0.0
      %946 = vmatprep.subr.mxu0 0.0
      %947 = vmatpush1.msra.mxu0 0.0
      %948 = vmatprep.subr.mxu0 0.0
      %949 = vmatpush1.msra.mxu0 0.0
      %950 = vmatprep.subr.mxu0 0.0
      %951 = vmatpush1.msra.mxu0 0.0
      %952 = vmatprep.subr.mxu0 0.0
      %953 = vmatpush1.msra.mxu0 0.0
      %954 = vmatprep.subr.mxu0 0.0
      %955 = vmatpush1.msra.mxu0 0.0
      %956 = vmatprep.subr.mxu0 0.0
      %957 = vmatpush1.msra.mxu0 0.0
      %958 = vmatprep.subr.mxu0 0.0
      %959 = vmatpush1.msra.mxu0 0.0
      %960 = vmatprep.subr.mxu0 0.0
      %961 = vmatpush1.msra.mxu0 0.0
      %962 = vmatprep.subr.mxu0 0.0
      %963 = vmatpush1.msra.mxu0 0.0
      %964 = vmatprep.subr.mxu0 0.0
      %965 = vmatpush1.msra.mxu0 0.0
      %966 = vmatprep.subr.mxu0 0.0
      %967 = vmatpush1.msra.mxu0 0.0
      %968 = vmatprep.subr.mxu0 0.0
      %969 = vmatpush1.msra.mxu0 %v183
      %970 = vmatprep.subr.mxu0 0.0
      %971 = vmatpush2.msra.mxu0 0.0
      %972 = vmatprep.subr.mxu0 0.0
      %973 = vmatpush2.msra.mxu0 0.0
      %974 = vmatprep.subr.mxu0 0.0
      %975 = vmatpush2.msra.mxu0 0.0
      %976 = vmatprep.subr.mxu0 0.0
      %977 = vmatpush2.msra.mxu0 0.0
      %978 = vmatprep.subr.mxu0 0.0
      %979 = vmatpush2.msra.mxu0 0.0
      %980 = vmatprep.subr.mxu0 0.0
      %981 = vmatpush2.msra.mxu0 0.0
      %982 = vmatprep.subr.mxu0 0.0
      %983 = vmatpush2.msra.mxu0 0.0
      %984 = vmatprep.subr.mxu0 0.0
      %985 = vmatpush2.msra.mxu0 0.0
      %986 = vmatprep.subr.mxu0 0.0
      %987 = vmatpush2.msra.mxu0 0.0
      %988 = vmatprep.subr.mxu0 0.0
      %989 = vmatpush2.msra.mxu0 0.0
      %990 = vmatprep.subr.mxu0 0.0
      %991 = vmatpush2.msra.mxu0 0.0
      %992 = vmatprep.subr.mxu0 0.0
      %993 = vmatpush2.msra.mxu0 0.0
      %994 = vmatprep.subr.mxu0 0.0
      %995 = vmatpush2.msra.mxu0 0.0
      %996 = vmatprep.subr.mxu0 0.0
      %997 = vmatpush2.msra.mxu0 0.0
      %998 = vmatprep.subr.mxu0 0.0
      %999 = vmatpush2.msra.mxu0 0.0
      %1000 = vmatprep.subr.mxu0 0.0
      %1001 = vmatpush2.msra.mxu0 0.0
      %1002 = vmatprep.mubr.f32.mxu0 0.0
      %1003 = vmatmul.mubr.f32.gmra.mxu0 %v936
      %v1004 = vpop.f32.mrf.mxu0
      %v1005 = vadd.f32 0.0, %v1004
      %v1006 = vpop.f32.mrf.mxu0
      %1007 = vdwg.mxu0
      %v1009 = vsel %vm181, %v1005, 0
      %1011 = vmatprep.subr.mxu0 0.0
      %1012 = vmatpush1.msra.mxu0 0.0
      %1013 = vmatprep.subr.mxu0 0.0
      %1014 = vmatpush1.msra.mxu0 0.0
      %1015 = vmatprep.subr.mxu0 0.0
      %1016 = vmatpush1.msra.mxu0 0.0
      %1017 = vmatprep.subr.mxu0 0.0
      %1018 = vmatpush1.msra.mxu0 0.0
      %1019 = vmatprep.subr.mxu0 0.0
      %1020 = vmatpush1.msra.mxu0 0.0
      %1021 = vmatprep.subr.mxu0 0.0
      %1022 = vmatpush1.msra.mxu0 0.0
      %1023 = vmatprep.subr.mxu0 0.0
      %1024 = vmatpush1.msra.mxu0 0.0
      %1025 = vmatprep.subr.mxu0 0.0
      %1026 = vmatpush1.msra.mxu0 0.0
      %1027 = vmatprep.subr.mxu0 0.0
      %1028 = vmatpush1.msra.mxu0 0.0
      %1029 = vmatprep.subr.mxu0 0.0
      %1030 = vmatpush1.msra.mxu0 0.0
      %1031 = vmatprep.subr.mxu0 0.0
      %1032 = vmatpush1.msra.mxu0 0.0
      %1033 = vmatprep.subr.mxu0 0.0
      %1034 = vmatpush1.msra.mxu0 0.0
      %1035 = vmatprep.subr.mxu0 0.0
      %1036 = vmatpush1.msra.mxu0 0.0
      %1037 = vmatprep.subr.mxu0 0.0
      %1038 = vmatpush1.msra.mxu0 0.0
      %1039 = vmatprep.subr.mxu0 0.0
      %1040 = vmatpush1.msra.mxu0 0.0
      %1041 = vmatprep.subr.mxu0 0.0
      %1042 = vmatpush1.msra.mxu0 %v1009
      %1043 = vmatprep.subr.mxu0 0.0
      %1044 = vmatpush2.msra.mxu0 0.0
      %1045 = vmatprep.subr.mxu0 0.0
      %1046 = vmatpush2.msra.mxu0 0.0
      %1047 = vmatprep.subr.mxu0 0.0
      %1048 = vmatpush2.msra.mxu0 0.0
      %1049 = vmatprep.subr.mxu0 0.0
      %1050 = vmatpush2.msra.mxu0 0.0
      %1051 = vmatprep.subr.mxu0 0.0
      %1052 = vmatpush2.msra.mxu0 0.0
      %1053 = vmatprep.subr.mxu0 0.0
      %1054 = vmatpush2.msra.mxu0 0.0
      %1055 = vmatprep.subr.mxu0 0.0
      %1056 = vmatpush2.msra.mxu0 0.0
      %1057 = vmatprep.subr.mxu0 0.0
      %1058 = vmatpush2.msra.mxu0 0.0
      %1059 = vmatprep.subr.mxu0 0.0
      %1060 = vmatpush2.msra.mxu0 0.0
      %1061 = vmatprep.subr.mxu0 0.0
      %1062 = vmatpush2.msra.mxu0 0.0
      %1063 = vmatprep.subr.mxu0 0.0
      %1064 = vmatpush2.msra.mxu0 0.0
      %1065 = vmatprep.subr.mxu0 0.0
      %1066 = vmatpush2.msra.mxu0 0.0
      %1067 = vmatprep.subr.mxu0 0.0
      %1068 = vmatpush2.msra.mxu0 0.0
      %1069 = vmatprep.subr.mxu0 0.0
      %1070 = vmatpush2.msra.mxu0 0.0
      %1071 = vmatprep.subr.mxu0 0.0
      %1072 = vmatpush2.msra.mxu0 0.0
      %1073 = vmatprep.subr.mxu0 0.0
      %1074 = vmatpush2.msra.mxu0 0.0
      %1075 = vmatprep.mubr.f32.mxu0 0.0
      %1076 = vmatmul.mubr.f32.gmra.mxu0 %v256
      %v1077 = vpop.f32.mrf.mxu0
      %v1078 = vadd.f32 0.0, %v1077
      %v1079 = vpop.f32.mrf.mxu0
      %1080 = vdwg.mxu0
      %s1081 = scalar_lea.vmem %s172, 10
      %1082 = vst.msk [vmem:[%s1081] sm:$0x3] %vm331, %v1078
      %s1083 = scalar_lea.vmem %s166, 24
      %v1084 = vld [vmem:[%s1083] sm:$0xf]
      %v1086 = vsel %vm177, %v1084, 0
      %1088 = vmatprep.subr.mxu0 0.0
      %1089 = vmatpush1.msra.mxu0 0.0
      %1090 = vmatprep.subr.mxu0 0.0
      %1091 = vmatpush1.msra.mxu0 0.0
      %1092 = vmatprep.subr.mxu0 0.0
      %1093 = vmatpush1.msra.mxu0 0.0
      %1094 = vmatprep.subr.mxu0 0.0
      %1095 = vmatpush1.msra.mxu0 0.0
      %1096 = vmatprep.subr.mxu0 0.0
      %1097 = vmatpush1.msra.mxu0 0.0
      %1098 = vmatprep.subr.mxu0 0.0
      %1099 = vmatpush1.msra.mxu0 0.0
      %1100 = vmatprep.subr.mxu0 0.0
      %1101 = vmatpush1.msra.mxu0 0.0
      %1102 = vmatprep.subr.mxu0 0.0
      %1103 = vmatpush1.msra.mxu0 0.0
      %1104 = vmatprep.subr.mxu0 0.0
      %1105 = vmatpush1.msra.mxu0 0.0
      %1106 = vmatprep.subr.mxu0 0.0
      %1107 = vmatpush1.msra.mxu0 0.0
      %1108 = vmatprep.subr.mxu0 0.0
      %1109 = vmatpush1.msra.mxu0 0.0
      %1110 = vmatprep.subr.mxu0 0.0
      %1111 = vmatpush1.msra.mxu0 0.0
      %1112 = vmatprep.subr.mxu0 0.0
      %1113 = vmatpush1.msra.mxu0 0.0
      %1114 = vmatprep.subr.mxu0 0.0
      %1115 = vmatpush1.msra.mxu0 0.0
      %1116 = vmatprep.subr.mxu0 0.0
      %1117 = vmatpush1.msra.mxu0 0.0
      %1118 = vmatprep.subr.mxu0 0.0
      %1119 = vmatpush1.msra.mxu0 %v183
      %1120 = vmatprep.subr.mxu0 0.0
      %1121 = vmatpush2.msra.mxu0 0.0
      %1122 = vmatprep.subr.mxu0 0.0
      %1123 = vmatpush2.msra.mxu0 0.0
      %1124 = vmatprep.subr.mxu0 0.0
      %1125 = vmatpush2.msra.mxu0 0.0
      %1126 = vmatprep.subr.mxu0 0.0
      %1127 = vmatpush2.msra.mxu0 0.0
      %1128 = vmatprep.subr.mxu0 0.0
      %1129 = vmatpush2.msra.mxu0 0.0
      %1130 = vmatprep.subr.mxu0 0.0
      %1131 = vmatpush2.msra.mxu0 0.0
      %1132 = vmatprep.subr.mxu0 0.0
      %1133 = vmatpush2.msra.mxu0 0.0
      %1134 = vmatprep.subr.mxu0 0.0
      %1135 = vmatpush2.msra.mxu0 0.0
      %1136 = vmatprep.subr.mxu0 0.0
      %1137 = vmatpush2.msra.mxu0 0.0
      %1138 = vmatprep.subr.mxu0 0.0
      %1139 = vmatpush2.msra.mxu0 0.0
      %1140 = vmatprep.subr.mxu0 0.0
      %1141 = vmatpush2.msra.mxu0 0.0
      %1142 = vmatprep.subr.mxu0 0.0
      %1143 = vmatpush2.msra.mxu0 0.0
      %1144 = vmatprep.subr.mxu0 0.0
      %1145 = vmatpush2.msra.mxu0 0.0
      %1146 = vmatprep.subr.mxu0 0.0
      %1147 = vmatpush2.msra.mxu0 0.0
      %1148 = vmatprep.subr.mxu0 0.0
      %1149 = vmatpush2.msra.mxu0 0.0
      %1150 = vmatprep.subr.mxu0 0.0
      %1151 = vmatpush2.msra.mxu0 0.0
      %1152 = vmatprep.mubr.f32.mxu0 0.0
      %1153 = vmatmul.mubr.f32.gmra.mxu0 %v1086
      %v1154 = vpop.f32.mrf.mxu0
      %v1155 = vadd.f32 0.0, %v1154
      %v1156 = vpop.f32.mrf.mxu0
      %1157 = vdwg.mxu0
      %v1159 = vsel %vm181, %v1155, 0
      %1161 = vmatprep.subr.mxu0 0.0
      %1162 = vmatpush1.msra.mxu0 0.0
      %1163 = vmatprep.subr.mxu0 0.0
      %1164 = vmatpush1.msra.mxu0 0.0
      %1165 = vmatprep.subr.mxu0 0.0
      %1166 = vmatpush1.msra.mxu0 0.0
      %1167 = vmatprep.subr.mxu0 0.0
      %1168 = vmatpush1.msra.mxu0 0.0
      %1169 = vmatprep.subr.mxu0 0.0
      %1170 = vmatpush1.msra.mxu0 0.0
      %1171 = vmatprep.subr.mxu0 0.0
      %1172 = vmatpush1.msra.mxu0 0.0
      %1173 = vmatprep.subr.mxu0 0.0
      %1174 = vmatpush1.msra.mxu0 0.0
      %1175 = vmatprep.subr.mxu0 0.0
      %1176 = vmatpush1.msra.mxu0 0.0
      %1177 = vmatprep.subr.mxu0 0.0
      %1178 = vmatpush1.msra.mxu0 0.0
      %1179 = vmatprep.subr.mxu0 0.0
      %1180 = vmatpush1.msra.mxu0 0.0
      %1181 = vmatprep.subr.mxu0 0.0
      %1182 = vmatpush1.msra.mxu0 0.0
      %1183 = vmatprep.subr.mxu0 0.0
      %1184 = vmatpush1.msra.mxu0 0.0
      %1185 = vmatprep.subr.mxu0 0.0
      %1186 = vmatpush1.msra.mxu0 0.0
      %1187 = vmatprep.subr.mxu0 0.0
      %1188 = vmatpush1.msra.mxu0 0.0
      %1189 = vmatprep.subr.mxu0 0.0
      %1190 = vmatpush1.msra.mxu0 0.0
      %1191 = vmatprep.subr.mxu0 0.0
      %1192 = vmatpush1.msra.mxu0 %v1159
      %1193 = vmatprep.subr.mxu0 0.0
      %1194 = vmatpush2.msra.mxu0 0.0
      %1195 = vmatprep.subr.mxu0 0.0
      %1196 = vmatpush2.msra.mxu0 0.0
      %1197 = vmatprep.subr.mxu0 0.0
      %1198 = vmatpush2.msra.mxu0 0.0
      %1199 = vmatprep.subr.mxu0 0.0
      %1200 = vmatpush2.msra.mxu0 0.0
      %1201 = vmatprep.subr.mxu0 0.0
      %1202 = vmatpush2.msra.mxu0 0.0
      %1203 = vmatprep.subr.mxu0 0.0
      %1204 = vmatpush2.msra.mxu0 0.0
      %1205 = vmatprep.subr.mxu0 0.0
      %1206 = vmatpush2.msra.mxu0 0.0
      %1207 = vmatprep.subr.mxu0 0.0
      %1208 = vmatpush2.msra.mxu0 0.0
      %1209 = vmatprep.subr.mxu0 0.0
      %1210 = vmatpush2.msra.mxu0 0.0
      %1211 = vmatprep.subr.mxu0 0.0
      %1212 = vmatpush2.msra.mxu0 0.0
      %1213 = vmatprep.subr.mxu0 0.0
      %1214 = vmatpush2.msra.mxu0 0.0
      %1215 = vmatprep.subr.mxu0 0.0
      %1216 = vmatpush2.msra.mxu0 0.0
      %1217 = vmatprep.subr.mxu0 0.0
      %1218 = vmatpush2.msra.mxu0 0.0
      %1219 = vmatprep.subr.mxu0 0.0
      %1220 = vmatpush2.msra.mxu0 0.0
      %1221 = vmatprep.subr.mxu0 0.0
      %1222 = vmatpush2.msra.mxu0 0.0
      %1223 = vmatprep.subr.mxu0 0.0
      %1224 = vmatpush2.msra.mxu0 0.0
      %1225 = vmatprep.mubr.f32.mxu0 0.0
      %1226 = vmatmul.mubr.f32.gmra.mxu0 %v256
      %v1227 = vpop.f32.mrf.mxu0
      %v1228 = vadd.f32 0.0, %v1227
      %v1229 = vpop.f32.mrf.mxu0
      %1230 = vdwg.mxu0
      %s1231 = scalar_lea.vmem %s172, 12
      %1232 = vst.msk [vmem:[%s1231] sm:$0x3] %vm331, %v1228
      %s1233 = scalar_lea.vmem %s166, 28
      %v1234 = vld [vmem:[%s1233] sm:$0xf]
      %v1236 = vsel %vm177, %v1234, 0
      %1238 = vmatprep.subr.mxu0 0.0
      %1239 = vmatpush1.msra.mxu0 0.0
      %1240 = vmatprep.subr.mxu0 0.0
      %1241 = vmatpush1.msra.mxu0 0.0
      %1242 = vmatprep.subr.mxu0 0.0
      %1243 = vmatpush1.msra.mxu0 0.0
      %1244 = vmatprep.subr.mxu0 0.0
      %1245 = vmatpush1.msra.mxu0 0.0
      %1246 = vmatprep.subr.mxu0 0.0
      %1247 = vmatpush1.msra.mxu0 0.0
      %1248 = vmatprep.subr.mxu0 0.0
      %1249 = vmatpush1.msra.mxu0 0.0
      %1250 = vmatprep.subr.mxu0 0.0
      %1251 = vmatpush1.msra.mxu0 0.0
      %1252 = vmatprep.subr.mxu0 0.0
      %1253 = vmatpush1.msra.mxu0 0.0
      %1254 = vmatprep.subr.mxu0 0.0
      %1255 = vmatpush1.msra.mxu0 0.0
      %1256 = vmatprep.subr.mxu0 0.0
      %1257 = vmatpush1.msra.mxu0 0.0
      %1258 = vmatprep.subr.mxu0 0.0
      %1259 = vmatpush1.msra.mxu0 0.0
      %1260 = vmatprep.subr.mxu0 0.0
      %1261 = vmatpush1.msra.mxu0 0.0
      %1262 = vmatprep.subr.mxu0 0.0
      %1263 = vmatpush1.msra.mxu0 0.0
      %1264 = vmatprep.subr.mxu0 0.0
      %1265 = vmatpush1.msra.mxu0 0.0
      %1266 = vmatprep.subr.mxu0 0.0
      %1267 = vmatpush1.msra.mxu0 0.0
      %1268 = vmatprep.subr.mxu0 0.0
      %1269 = vmatpush1.msra.mxu0 %v183
      %1270 = vmatprep.subr.mxu0 0.0
      %1271 = vmatpush2.msra.mxu0 0.0
      %1272 = vmatprep.subr.mxu0 0.0
      %1273 = vmatpush2.msra.mxu0 0.0
      %1274 = vmatprep.subr.mxu0 0.0
      %1275 = vmatpush2.msra.mxu0 0.0
      %1276 = vmatprep.subr.mxu0 0.0
      %1277 = vmatpush2.msra.mxu0 0.0
      %1278 = vmatprep.subr.mxu0 0.0
      %1279 = vmatpush2.msra.mxu0 0.0
      %1280 = vmatprep.subr.mxu0 0.0
      %1281 = vmatpush2.msra.mxu0 0.0
      %1282 = vmatprep.subr.mxu0 0.0
      %1283 = vmatpush2.msra.mxu0 0.0
      %1284 = vmatprep.subr.mxu0 0.0
      %1285 = vmatpush2.msra.mxu0 0.0
      %1286 = vmatprep.subr.mxu0 0.0
      %1287 = vmatpush2.msra.mxu0 0.0
      %1288 = vmatprep.subr.mxu0 0.0
      %1289 = vmatpush2.msra.mxu0 0.0
      %1290 = vmatprep.subr.mxu0 0.0
      %1291 = vmatpush2.msra.mxu0 0.0
      %1292 = vmatprep.subr.mxu0 0.0
      %1293 = vmatpush2.msra.mxu0 0.0
      %1294 = vmatprep.subr.mxu0 0.0
      %1295 = vmatpush2.msra.mxu0 0.0
      %1296 = vmatprep.subr.mxu0 0.0
      %1297 = vmatpush2.msra.mxu0 0.0
      %1298 = vmatprep.subr.mxu0 0.0
      %1299 = vmatpush2.msra.mxu0 0.0
      %1300 = vmatprep.subr.mxu0 0.0
      %1301 = vmatpush2.msra.mxu0 0.0
      %1302 = vmatprep.mubr.f32.mxu0 0.0
      %1303 = vmatmul.mubr.f32.gmra.mxu0 %v1236
      %v1304 = vpop.f32.mrf.mxu0
      %v1305 = vadd.f32 0.0, %v1304
      %v1306 = vpop.f32.mrf.mxu0
      %1307 = vdwg.mxu0
      %v1309 = vsel %vm181, %v1305, 0
      %1311 = vmatprep.subr.mxu0 0.0
      %1312 = vmatpush1.msra.mxu0 0.0
      %1313 = vmatprep.subr.mxu0 0.0
      %1314 = vmatpush1.msra.mxu0 0.0
      %1315 = vmatprep.subr.mxu0 0.0
      %1316 = vmatpush1.msra.mxu0 0.0
      %1317 = vmatprep.subr.mxu0 0.0
      %1318 = vmatpush1.msra.mxu0 0.0
      %1319 = vmatprep.subr.mxu0 0.0
      %1320 = vmatpush1.msra.mxu0 0.0
      %1321 = vmatprep.subr.mxu0 0.0
      %1322 = vmatpush1.msra.mxu0 0.0
      %1323 = vmatprep.subr.mxu0 0.0
      %1324 = vmatpush1.msra.mxu0 0.0
      %1325 = vmatprep.subr.mxu0 0.0
      %1326 = vmatpush1.msra.mxu0 0.0
      %1327 = vmatprep.subr.mxu0 0.0
      %1328 = vmatpush1.msra.mxu0 0.0
      %1329 = vmatprep.subr.mxu0 0.0
      %1330 = vmatpush1.msra.mxu0 0.0
      %1331 = vmatprep.subr.mxu0 0.0
      %1332 = vmatpush1.msra.mxu0 0.0
      %1333 = vmatprep.subr.mxu0 0.0
      %1334 = vmatpush1.msra.mxu0 0.0
      %1335 = vmatprep.subr.mxu0 0.0
      %1336 = vmatpush1.msra.mxu0 0.0
      %1337 = vmatprep.subr.mxu0 0.0
      %1338 = vmatpush1.msra.mxu0 0.0
      %1339 = vmatprep.subr.mxu0 0.0
      %1340 = vmatpush1.msra.mxu0 0.0
      %1341 = vmatprep.subr.mxu0 0.0
      %1342 = vmatpush1.msra.mxu0 %v1309
      %1343 = vmatprep.subr.mxu0 0.0
      %1344 = vmatpush2.msra.mxu0 0.0
      %1345 = vmatprep.subr.mxu0 0.0
      %1346 = vmatpush2.msra.mxu0 0.0
      %1347 = vmatprep.subr.mxu0 0.0
      %1348 = vmatpush2.msra.mxu0 0.0
      %1349 = vmatprep.subr.mxu0 0.0
      %1350 = vmatpush2.msra.mxu0 0.0
      %1351 = vmatprep.subr.mxu0 0.0
      %1352 = vmatpush2.msra.mxu0 0.0
      %1353 = vmatprep.subr.mxu0 0.0
      %1354 = vmatpush2.msra.mxu0 0.0
      %1355 = vmatprep.subr.mxu0 0.0
      %1356 = vmatpush2.msra.mxu0 0.0
      %1357 = vmatprep.subr.mxu0 0.0
      %1358 = vmatpush2.msra.mxu0 0.0
      %1359 = vmatprep.subr.mxu0 0.0
      %1360 = vmatpush2.msra.mxu0 0.0
      %1361 = vmatprep.subr.mxu0 0.0
      %1362 = vmatpush2.msra.mxu0 0.0
      %1363 = vmatprep.subr.mxu0 0.0
      %1364 = vmatpush2.msra.mxu0 0.0
      %1365 = vmatprep.subr.mxu0 0.0
      %1366 = vmatpush2.msra.mxu0 0.0
      %1367 = vmatprep.subr.mxu0 0.0
      %1368 = vmatpush2.msra.mxu0 0.0
      %1369 = vmatprep.subr.mxu0 0.0
      %1370 = vmatpush2.msra.mxu0 0.0
      %1371 = vmatprep.subr.mxu0 0.0
      %1372 = vmatpush2.msra.mxu0 0.0
      %1373 = vmatprep.subr.mxu0 0.0
      %1374 = vmatpush2.msra.mxu0 0.0
      %1375 = vmatprep.mubr.f32.mxu0 0.0
      %1376 = vmatmul.mubr.f32.gmra.mxu0 %v256
      %v1377 = vpop.f32.mrf.mxu0
      %v1378 = vadd.f32 0.0, %v1377
      %v1379 = vpop.f32.mrf.mxu0
      %1380 = vdwg.mxu0
      %s1381 = scalar_lea.vmem %s172, 14
      %1382 = vst.msk [vmem:[%s1381] sm:$0x3] %vm331, %v1378
      %s1383 = smul.u32 8, %s14
      %p1384 = scmp.lt.s32.totalorder %s1383, 63
      %s1385 = scalar_select %p1384, %s1383, 63
      %s1386 = smul.addr %s1385, 2
      %s1387 = scalar_lea.vmem %s3, %s1386
      // Predicated region
      $region33: #{forward.23} parent=31 // pred_check
        %p1388 = pneg %p100
      $region34: #{forward.23} parent=31 // pred_check_branch
        %1390 = sbr.rel (%p1388) target = $region36
      $region35: #{forward.23} parent=31 // pred_region
        %s1391 = smul.u32 8, %s14
      $region36: #{forward.23} parent=31 // pred_fallthru
        _
    $region32: #{forward.23} parent=5 // pred_fallthru
      _
    %p1392 = scmp.le.s32.totalorder 2, %s9
    // Predicated region
    $region37: #{forward.23} parent=5 // pred_check
      %p1393 = pneg %p1392
    $region38: #{forward.23} parent=5 // pred_check_branch
      %1395 = sbr.rel (%p1393) target = $region40
    $region39: #{forward.23} parent=5 // pred_region
      %s1396 = ssub.s32 %s9, 2
      // Predicated region
      $region41: #{forward.23} parent=39 // pred_check
        %p1397 = pneg %p106
      $region42: #{forward.23} parent=39 // pred_check_branch
        %1399 = sbr.rel (%p1397) target = $region44
      $region43: #{forward.23} parent=39 // pred_region
        %s1400 = smul.u32 8, %s15
        %p1401 = scmp.lt.s32.totalorder %s1400, 63
        %s1402 = scalar_select %p1401, %s1400, 63
        %s1403 = smul.addr %s1402, 2
        %s1404 = scalar_lea.vmem %s3, %s1403
      $region44: #{forward.23} parent=39 // pred_fallthru
        _
    $region40: #{forward.23} parent=5 // pred_fallthru
      _
  $region6: #{forward.23} parent=0 // loop_footer
    %s13 = sadd.s32 1, %s9
  $region7: #{forward.23} parent=0 // loop_footer_branch
    %8 = sbr.rel target = $region3
  $region8: #{forward.23} parent=0 // loop_exit
    _

// kernel: forward.25
$region0: #{forward.25}
  #allocation0 [shape = 'u32[]', space=smem, size = 0x4, offset = 0x4, fixed_abs, tag = 'smem constant byte address 0x4 - core index']
  #allocation1 [shape = 'u32[144,128]{1,0:T(1,128)}', space=vmem, size = 0x12000, scoped, tag = 'internal scratch']
  #allocation2 [shape = 'f32[1,1]{1,0:T(1,128)S(1)}', space=vmem, size = 0x200, scoped, tag = 'scoped memory for forward.25']
  %s0 = inlined_call_operand.vmem [shape: bf16[1,32], index: 0, kind: input, shape index: {}]
  %s1 = inlined_call_operand.vmem [shape: bf16[32,8], index: 1, kind: input, shape index: {}]
  %s2 = inlined_call_operand.<no memory space> [shape: f32[1,1], index: 2, kind: input, shape index: {}]
  %s3 = inlined_call_operand.vmem [shape: f32[1,8], index: 3, kind: output, shape index: {}]
  %s4 = sld [smem:[#allocation0]]
  $region22: #{forward.25} parent=0
    _
  %s6 = ssub.s32 1, %s4
  %s7 = scalar_select 0, %s6, %s4
  %v8 = vstv %s2
  %9 = vst [vmem:[#allocation2] sm:$0x1] %v8
  // Predicated region
  $region2: #{forward.25} parent=0 // pred_check
    _
  $region3: #{forward.25} parent=0 // pred_check_branch
    %11 = sbr.rel (0) target = $region5
  $region4: #{forward.25} parent=0 // pred_region
    _
  $region5: #{forward.25} parent=0 // pred_fallthru
    _
  // Predicated region
  $region6: #{forward.25} parent=0 // pred_check
    _
  $region7: #{forward.25} parent=0 // pred_check_branch
    %13 = sbr.rel (0) target = $region9
  $region8: #{forward.25} parent=0 // pred_region
    _
  $region9: #{forward.25} parent=0 // pred_fallthru
    _
  // Predicated region
  $region10: #{forward.25} parent=0 // pred_check
    _
  $region11: #{forward.25} parent=0 // pred_check_branch
    %15 = sbr.rel (0) target = $region13
  $region12: #{forward.25} parent=0 // pred_region
    _
  $region13: #{forward.25} parent=0 // pred_fallthru
    _
  %v17 = vld [vmem:[%s0] sm:$0x1]
  %v18 = vld [vmem:[%s1] sm:$0xf]
  %v19 = vld [vmem:[%s1 + $0x4] sm:$0xf]
  %v20 = vld [vmem:[%s1 + $0x8] sm:$0xf]
  %v21 = vld [vmem:[%s1 + $0xc] sm:$0xf]
  %v22 = vld [vmem:[#allocation2] sm:$0x1]
  %24 = vset.pattern.permute.xlu0 0
  %25 = vperm.xlu0 %24, %v22
  %v26 = vpop.permute.xlu0 %25
  %v28 = vlaneseq
  %v29 = vshrl.u32 %v28, 7
  %v30 = vsub.s32 0, %v29
  %v31 = vrot.slane %v26, %v30
  %v36 = vunpack.c.l.b16 %v18
  %v37 = vunpack.c.l.b16 %v19
  %v38 = vunpack.c.l.b16 %v20
  %v39 = vunpack.c.l.b16 %v21
  %v40 = vpack.c.b16 %v37, %v36
  %v41 = vpack.c.b16 %v39, %v38
  %vm44 = vcmask 261120
  %v46 = vsel %vm44, %v17, 0
  %48 = vmatprep.subr.bf16.mxu0 0
  %49 = vmatpush1.bf16.msra.mxu0 0
  %50 = vmatprep.subr.bf16.mxu0 0
  %51 = vmatpush1.bf16.msra.mxu0 0
  %52 = vmatprep.subr.bf16.mxu0 0
  %53 = vmatpush1.bf16.msra.mxu0 0
  %54 = vmatprep.subr.bf16.mxu0 0
  %55 = vmatpush1.bf16.msra.mxu0 0
  %56 = vmatprep.subr.bf16.mxu0 0
  %57 = vmatpush1.bf16.msra.mxu0 0
  %58 = vmatprep.subr.bf16.mxu0 0
  %59 = vmatpush1.bf16.msra.mxu0 0
  %60 = vmatprep.subr.bf16.mxu0 0
  %61 = vmatpush1.bf16.msra.mxu0 %v41
  %62 = vmatprep.subr.bf16.mxu0 0
  %63 = vmatpush1.bf16.msra.mxu0 %v40
  %64 = vmatprep.subr.bf16.mxu0 0
  %65 = vmatpush2.bf16.msra.mxu0 0
  %66 = vmatprep.subr.bf16.mxu0 0
  %67 = vmatpush2.bf16.msra.mxu0 0
  %68 = vmatprep.subr.bf16.mxu0 0
  %69 = vmatpush2.bf16.msra.mxu0 0
  %70 = vmatprep.subr.bf16.mxu0 0
  %71 = vmatpush2.bf16.msra.mxu0 0
  %72 = vmatprep.subr.bf16.mxu0 0
  %73 = vmatpush2.bf16.msra.mxu0 0
  %74 = vmatprep.subr.bf16.mxu0 0
  %75 = vmatpush2.bf16.msra.mxu0 0
  %76 = vmatprep.subr.bf16.mxu0 0
  %77 = vmatpush2.bf16.msra.mxu0 0
  %78 = vmatprep.subr.bf16.mxu0 0
  %79 = vmatpush2.bf16.msra.mxu0 0
  %80 = vmatprep.mubr.bf16.mxu0 0
  %81 = vmatmul.mubr.bf16.gmra.mxu0 %v46
  %v82 = vpop.f32.mrf.mxu0
  %v83 = vadd.f32 %v31, %v82
  %v84 = vpop.f32.mrf.mxu0
  %v85 = vpop.f32.mrf.mxu0
  %v86 = vpop.f32.mrf.mxu0
  %87 = vdwg.mxu0
  %v88 = vxor.u32 %v83, 2147483648
  %v89 = vmul.f32 %v88, 1.442695
  %v90 = vpow.pop %v89
  %v91 = vadd.f32 %v90, 1.0
  %v92 = vrcp.pop %v91
  %v93 = vmul.f32 1.0, %v92
  %vm94 = vcmask 57344
  %95 = vst.msk [vmem:[%s3] sm:$0x1] %vm94, %v93
  // Predicated region
  $region14: #{forward.25} parent=0 // pred_check
    _
  $region15: #{forward.25} parent=0 // pred_check_branch
    %97 = sbr.rel (0) target = $region17
  $region16: #{forward.25} parent=0 // pred_region
    _
  $region17: #{forward.25} parent=0 // pred_fallthru
    _
  // Predicated region
  $region18: #{forward.25} parent=0 // pred_check
    _
  $region19: #{forward.25} parent=0 // pred_check_branch
    %99 = sbr.rel (0) target = $region21
  $region20: #{forward.25} parent=0 // pred_region
    _
  $region21: #{forward.25} parent=0 // pred_fallthru
    _

// kernel: forward.24
$region0: #{forward.24}
  #allocation0 [shape = 'u32[]', space=smem, size = 0x4, offset = 0x4, fixed_abs, tag = 'smem constant byte address 0x4 - core index']
  #allocation1 [shape = 'u32[144,128]{1,0:T(1,128)}', space=vmem, size = 0x12000, scoped, tag = 'internal scratch']
  %s0 = inlined_call_operand.vmem [shape: bf16[32,128], index: 0, kind: input, shape index: {}]
  %s1 = inlined_call_operand.vmem [shape: bf16[128,8], index: 1, kind: input, shape index: {}]
  %s2 = inlined_call_operand.vmem [shape: f32[32,8], index: 2, kind: input, shape index: {}]
  %s3 = inlined_call_operand.vmem [shape: f32[32,8], index: 3, kind: output, shape index: {}]
  %s4 = sld [smem:[#allocation0]]
  $region22: #{forward.24} parent=0
    _
  %s6 = ssub.s32 1, %s4
  %s7 = scalar_select 0, %s6, %s4
  // Predicated region
  $region2: #{forward.24} parent=0 // pred_check
    _
  $region3: #{forward.24} parent=0 // pred_check_branch
    %9 = sbr.rel (0) target = $region5
  $region4: #{forward.24} parent=0 // pred_region
    _
  $region5: #{forward.24} parent=0 // pred_fallthru
    _
  // Predicated region
  $region6: #{forward.24} parent=0 // pred_check
    _
  $region7: #{forward.24} parent=0 // pred_check_branch
    %11 = sbr.rel (0) target = $region9
  $region8: #{forward.24} parent=0 // pred_region
    _
  $region9: #{forward.24} parent=0 // pred_fallthru
    _
  // Predicated region
  $region10: #{forward.24} parent=0 // pred_check
    _
  $region11: #{forward.24} parent=0 // pred_check_branch
    %13 = sbr.rel (0) target = $region13
  $region12: #{forward.24} parent=0 // pred_region
    _
  $region13: #{forward.24} parent=0 // pred_fallthru
    _
  %v15 = vld [vmem:[%s0] sm:$0xf]
  %v16 = vld [vmem:[%s0 + $0x4] sm:$0xf]
  %v17 = vld [vmem:[%s0 + $0x8] sm:$0xf]
  %v18 = vld [vmem:[%s0 + $0xc] sm:$0xf]
  %v19 = vld [vmem:[%s1] sm:$0xf]
  %v20 = vld [vmem:[%s1 + $0x4] sm:$0xf]
  %v21 = vld [vmem:[%s1 + $0x8] sm:$0xf]
  %v22 = vld [vmem:[%s1 + $0xc] sm:$0xf]
  %v23 = vld [vmem:[%s1 + $0x10] sm:$0xf]
  %v24 = vld [vmem:[%s1 + $0x14] sm:$0xf]
  %v25 = vld [vmem:[%s1 + $0x18] sm:$0xf]
  %v26 = vld [vmem:[%s1 + $0x1c] sm:$0xf]
  %v27 = vld [vmem:[%s1 + $0x20] sm:$0xf]
  %v28 = vld [vmem:[%s1 + $0x24] sm:$0xf]
  %v29 = vld [vmem:[%s1 + $0x28] sm:$0xf]
  %v30 = vld [vmem:[%s1 + $0x2c] sm:$0xf]
  %v31 = vld [vmem:[%s1 + $0x30] sm:$0xf]
  %v32 = vld [vmem:[%s1 + $0x34] sm:$0xf]
  %v33 = vld [vmem:[%s1 + $0x38] sm:$0xf]
  %v34 = vld [vmem:[%s1 + $0x3c] sm:$0xf]
  %v35 = vld [vmem:[%s2] sm:$0xff]
  %v36 = vld [vmem:[%s2 + $0x8] sm:$0xff]
  %v37 = vld [vmem:[%s2 + $0x10] sm:$0xff]
  %v38 = vld [vmem:[%s2 + $0x18] sm:$0xff]
  %v43 = vunpack.c.l.b16 %v15
  %v44 = vunpack.c.l.b16 %v16
  %v45 = vunpack.c.l.b16 %v17
  %v46 = vunpack.c.l.b16 %v18
  %v47 = vpack.c.b16 %v44, %v43
  %v48 = vpack.c.b16 %v46, %v45
  %v67 = vunpack.c.l.b16 %v19
  %v68 = vunpack.c.l.b16 %v20
  %v69 = vunpack.c.l.b16 %v21
  %v70 = vunpack.c.l.b16 %v22
  %v71 = vunpack.c.l.b16 %v23
  %v72 = vunpack.c.l.b16 %v24
  %v73 = vunpack.c.l.b16 %v25
  %v74 = vunpack.c.l.b16 %v26
  %v75 = vunpack.c.l.b16 %v27
  %v76 = vunpack.c.l.b16 %v28
  %v77 = vunpack.c.l.b16 %v29
  %v78 = vunpack.c.l.b16 %v30
  %v79 = vunpack.c.l.b16 %v31
  %v80 = vunpack.c.l.b16 %v32
  %v81 = vunpack.c.l.b16 %v33
  %v82 = vunpack.c.l.b16 %v34
  %v83 = vpack.c.b16 %v68, %v67
  %v84 = vpack.c.b16 %v70, %v69
  %v85 = vpack.c.b16 %v72, %v71
  %v86 = vpack.c.b16 %v74, %v73
  %v87 = vpack.c.b16 %v76, %v75
  %v88 = vpack.c.b16 %v78, %v77
  %v89 = vpack.c.b16 %v80, %v79
  %v90 = vpack.c.b16 %v82, %v81
  %99 = vmatprep.subr.bf16.mxu0 0
  %100 = vmatpush1.bf16.msra.mxu0 %v90
  %101 = vmatprep.subr.bf16.mxu0 0
  %102 = vmatpush1.bf16.msra.mxu0 %v89
  %103 = vmatprep.subr.bf16.mxu0 0
  %104 = vmatpush1.bf16.msra.mxu0 %v88
  %105 = vmatprep.subr.bf16.mxu0 0
  %106 = vmatpush1.bf16.msra.mxu0 %v87
  %107 = vmatprep.subr.bf16.mxu0 0
  %108 = vmatpush1.bf16.msra.mxu0 %v86
  %109 = vmatprep.subr.bf16.mxu0 0
  %110 = vmatpush1.bf16.msra.mxu0 %v85
  %111 = vmatprep.subr.bf16.mxu0 0
  %112 = vmatpush1.bf16.msra.mxu0 %v84
  %113 = vmatprep.subr.bf16.mxu0 0
  %114 = vmatpush1.bf16.msra.mxu0 %v83
  %115 = vmatprep.subr.bf16.mxu0 0
  %116 = vmatpush2.bf16.msra.mxu0 0
  %117 = vmatprep.subr.bf16.mxu0 0
  %118 = vmatpush2.bf16.msra.mxu0 0
  %119 = vmatprep.subr.bf16.mxu0 0
  %120 = vmatpush2.bf16.msra.mxu0 0
  %121 = vmatprep.subr.bf16.mxu0 0
  %122 = vmatpush2.bf16.msra.mxu0 0
  %123 = vmatprep.subr.bf16.mxu0 0
  %124 = vmatpush2.bf16.msra.mxu0 0
  %125 = vmatprep.subr.bf16.mxu0 0
  %126 = vmatpush2.bf16.msra.mxu0 0
  %127 = vmatprep.subr.bf16.mxu0 0
  %128 = vmatpush2.bf16.msra.mxu0 0
  %129 = vmatprep.subr.bf16.mxu0 0
  %130 = vmatpush2.bf16.msra.mxu0 0
  %131 = vmatprep.mubr.bf16.mxu0 0
  %132 = vmatmul.mubr.bf16.gmra.mxu0 %v47
  %v133 = vpop.f32.mrf.mxu0
  %v134 = vadd.f32 %v35, %v133
  %v135 = vpop.f32.mrf.mxu0
  %v136 = vpop.f32.mrf.mxu0
  %v137 = vadd.f32 %v36, %v136
  %v138 = vpop.f32.mrf.mxu0
  %139 = vmatprep.mubr.bf16.mxu0 0
  %140 = vmatmul.mubr.bf16.gmra.mxu0 %v48
  %v141 = vpop.f32.mrf.mxu0
  %v142 = vadd.f32 %v37, %v141
  %v143 = vpop.f32.mrf.mxu0
  %v144 = vpop.f32.mrf.mxu0
  %v145 = vadd.f32 %v38, %v144
  %v146 = vpop.f32.mrf.mxu0
  %147 = vdwg.mxu0
  %v148 = vmax.f32 %v134, 0.0
  %v149 = vmax.f32 %v137, 0.0
  %v150 = vmax.f32 %v142, 0.0
  %v151 = vmax.f32 %v145, 0.0
  %vm152 = vcmask 64512
  %153 = vst.msk [vmem:[%s3] sm:$0xff] %vm152, %v148
  %154 = vst.msk [vmem:[%s3 + $0x8] sm:$0xff] %vm152, %v149
  %155 = vst.msk [vmem:[%s3 + $0x10] sm:$0xff] %vm152, %v150
  %156 = vst.msk [vmem:[%s3 + $0x18] sm:$0xff] %vm152, %v151
  // Predicated region
  $region14: #{forward.24} parent=0 // pred_check
    _
  $region15: #{forward.24} parent=0 // pred_check_branch
    %158 = sbr.rel (0) target = $region17
  $region16: #{forward.24} parent=0 // pred_region
    _
  $region17: #{forward.24} parent=0 // pred_fallthru
    _
  // Predicated region
  $region18: #{forward.24} parent=0 // pred_check
    _
  $region19: #{forward.24} parent=0 // pred_check_branch
    %160 = sbr.rel (0) target = $region21
  $region20: #{forward.24} parent=0 // pred_region
    _
  $region21: #{forward.24} parent=0 // pred_fallthru
    _

// kernel: forward.26
$region0: #{forward.26}
  #allocation0 [shape = 'u32[]', space=smem, size = 0x4, offset = 0x4, fixed_abs, tag = 'smem constant byte address 0x4 - core index']
  #allocation1 [shape = 'u32[144,128]{1,0:T(1,128)}', space=vmem, size = 0x12000, scoped, tag = 'internal scratch']
  %s0 = inlined_call_operand.vmem [shape: f32[2,2,2], index: 0, kind: input, shape index: {}]
  %s1 = inlined_call_operand.vmem [shape: f32[2,4], index: 1, kind: input, shape index: {}]
  %s2 = inlined_call_operand.vmem [shape: f32[4,2], index: 2, kind: input, shape index: {}]
  %s3 = inlined_call_operand.hbm [shape: f32[2,4,4], index: 3, kind: output, shape index: {}]
  %s4 = sld [smem:[#allocation0]]
  $region22: #{forward.26} parent=0
    _
  %s6 = ssub.s32 1, %s4
  %s7 = scalar_select 0, %s6, %s4
  $region1: #{forward.26} parent=0
    #allocation2 [shape = 'u8[4096]{0}', space=vmem, size = 0x1000, scoped, tag = 'output window, operand 0, single buffered']
    #allocation3 [shape = 's32[1]{0}', space=sflag, size = 0x4, scoped, tag = 'scoped memory for forward.26']
    %8 = vsyncpa [#allocation3], 0
    // Predicated region
    $region2: #{forward.26} parent=1 // pred_check
      _
    $region3: #{forward.26} parent=1 // pred_check_branch
      %10 = sbr.rel (0) target = $region5
    $region4: #{forward.26} parent=1 // pred_region
      _
    $region5: #{forward.26} parent=1 // pred_fallthru
      _
    // Predicated region
    $region6: #{forward.26} parent=1 // pred_check
      _
    $region7: #{forward.26} parent=1 // pred_check_branch
      %12 = sbr.rel (0) target = $region9
    $region8: #{forward.26} parent=1 // pred_region
      _
    $region9: #{forward.26} parent=1 // pred_fallthru
      _
    // Predicated region
    $region10: #{forward.26} parent=1 // pred_check
      _
    $region11: #{forward.26} parent=1 // pred_check_branch
      %14 = sbr.rel (0) target = $region13
    $region12: #{forward.26} parent=1 // pred_region
      _
    $region13: #{forward.26} parent=1 // pred_fallthru
      _
    %v15 = vld [vmem:[%s1] sm:$0x3]
    %v16 = vld [vmem:[%s2] sm:$0xf]
    %v17 = vld [vmem:[%s0] sm:$0x3]
    %vm18 = vcmask 15360
    %v20 = vsel %vm18, %v17, 0
    %vm22 = vcmask 1041408
    %v24 = vsel %vm22, %v15, 0
    %26 = vmatprep.subr.mxu0 0.0
    %27 = vmatpush1.msra.mxu0 0.0
    %28 = vmatprep.subr.mxu0 0.0
    %29 = vmatpush1.msra.mxu0 0.0
    %30 = vmatprep.subr.mxu0 0.0
    %31 = vmatpush1.msra.mxu0 0.0
    %32 = vmatprep.subr.mxu0 0.0
    %33 = vmatpush1.msra.mxu0 0.0
    %34 = vmatprep.subr.mxu0 0.0
    %35 = vmatpush1.msra.mxu0 0.0
    %36 = vmatprep.subr.mxu0 0.0
    %37 = vmatpush1.msra.mxu0 0.0
    %38 = vmatprep.subr.mxu0 0.0
    %39 = vmatpush1.msra.mxu0 0.0
    %40 = vmatprep.subr.mxu0 0.0
    %41 = vmatpush1.msra.mxu0 0.0
    %42 = vmatprep.subr.mxu0 0.0
    %43 = vmatpush1.msra.mxu0 0.0
    %44 = vmatprep.subr.mxu0 0.0
    %45 = vmatpush1.msra.mxu0 0.0
    %46 = vmatprep.subr.mxu0 0.0
    %47 = vmatpush1.msra.mxu0 0.0
    %48 = vmatprep.subr.mxu0 0.0
    %49 = vmatpush1.msra.mxu0 0.0
    %50 = vmatprep.subr.mxu0 0.0
    %51 = vmatpush1.msra.mxu0 0.0
    %52 = vmatprep.subr.mxu0 0.0
    %53 = vmatpush1.msra.mxu0 0.0
    %54 = vmatprep.subr.mxu0 0.0
    %55 = vmatpush1.msra.mxu0 0.0
    %56 = vmatprep.subr.mxu0 0.0
    %57 = vmatpush1.msra.mxu0 %v24
    %58 = vmatprep.subr.mxu0 0.0
    %59 = vmatpush2.msra.mxu0 0.0
    %60 = vmatprep.subr.mxu0 0.0
    %61 = vmatpush2.msra.mxu0 0.0
    %62 = vmatprep.subr.mxu0 0.0
    %63 = vmatpush2.msra.mxu0 0.0
    %64 = vmatprep.subr.mxu0 0.0
    %65 = vmatpush2.msra.mxu0 0.0
    %66 = vmatprep.subr.mxu0 0.0
    %67 = vmatpush2.msra.mxu0 0.0
    %68 = vmatprep.subr.mxu0 0.0
    %69 = vmatpush2.msra.mxu0 0.0
    %70 = vmatprep.subr.mxu0 0.0
    %71 = vmatpush2.msra.mxu0 0.0
    %72 = vmatprep.subr.mxu0 0.0
    %73 = vmatpush2.msra.mxu0 0.0
    %74 = vmatprep.subr.mxu0 0.0
    %75 = vmatpush2.msra.mxu0 0.0
    %76 = vmatprep.subr.mxu0 0.0
    %77 = vmatpush2.msra.mxu0 0.0
    %78 = vmatprep.subr.mxu0 0.0
    %79 = vmatpush2.msra.mxu0 0.0
    %80 = vmatprep.subr.mxu0 0.0
    %81 = vmatpush2.msra.mxu0 0.0
    %82 = vmatprep.subr.mxu0 0.0
    %83 = vmatpush2.msra.mxu0 0.0
    %84 = vmatprep.subr.mxu0 0.0
    %85 = vmatpush2.msra.mxu0 0.0
    %86 = vmatprep.subr.mxu0 0.0
    %87 = vmatpush2.msra.mxu0 0.0
    %88 = vmatprep.subr.mxu0 0.0
    %89 = vmatpush2.msra.mxu0 0.0
    %90 = vmatprep.mubr.f32.mxu0 0.0
    %91 = vmatmul.mubr.f32.gmra.mxu0 %v20
    %v92 = vpop.f32.mrf.mxu0
    %v93 = vadd.f32 0.0, %v92
    %v94 = vpop.f32.mrf.mxu0
    %95 = vdwg.mxu0
    %v97 = vsel %vm18, %v16, 0
    %v100 = vsel %vm22, %v93, 0
    %102 = vmatprep.subr.mxu0 0.0
    %103 = vmatpush1.msra.mxu0 0.0
    %104 = vmatprep.subr.mxu0 0.0
    %105 = vmatpush1.msra.mxu0 0.0
    %106 = vmatprep.subr.mxu0 0.0
    %107 = vmatpush1.msra.mxu0 0.0
    %108 = vmatprep.subr.mxu0 0.0
    %109 = vmatpush1.msra.mxu0 0.0
    %110 = vmatprep.subr.mxu0 0.0
    %111 = vmatpush1.msra.mxu0 0.0
    %112 = vmatprep.subr.mxu0 0.0
    %113 = vmatpush1.msra.mxu0 0.0
    %114 = vmatprep.subr.mxu0 0.0
    %115 = vmatpush1.msra.mxu0 0.0
    %116 = vmatprep.subr.mxu0 0.0
    %117 = vmatpush1.msra.mxu0 0.0
    %118 = vmatprep.subr.mxu0 0.0
    %119 = vmatpush1.msra.mxu0 0.0
    %120 = vmatprep.subr.mxu0 0.0
    %121 = vmatpush1.msra.mxu0 0.0
    %122 = vmatprep.subr.mxu0 0.0
    %123 = vmatpush1.msra.mxu0 0.0
    %124 = vmatprep.subr.mxu0 0.0
    %125 = vmatpush1.msra.mxu0 0.0
    %126 = vmatprep.subr.mxu0 0.0
    %127 = vmatpush1.msra.mxu0 0.0
    %128 = vmatprep.subr.mxu0 0.0
    %129 = vmatpush1.msra.mxu0 0.0
    %130 = vmatprep.subr.mxu0 0.0
    %131 = vmatpush1.msra.mxu0 0.0
    %132 = vmatprep.subr.mxu0 0.0
    %133 = vmatpush1.msra.mxu0 %v100
    %134 = vmatprep.subr.mxu0 0.0
    %135 = vmatpush2.msra.mxu0 0.0
    %136 = vmatprep.subr.mxu0 0.0
    %137 = vmatpush2.msra.mxu0 0.0
    %138 = vmatprep.subr.mxu0 0.0
    %139 = vmatpush2.msra.mxu0 0.0
    %140 = vmatprep.subr.mxu0 0.0
    %141 = vmatpush2.msra.mxu0 0.0
    %142 = vmatprep.subr.mxu0 0.0
    %143 = vmatpush2.msra.mxu0 0.0
    %144 = vmatprep.subr.mxu0 0.0
    %145 = vmatpush2.msra.mxu0 0.0
    %146 = vmatprep.subr.mxu0 0.0
    %147 = vmatpush2.msra.mxu0 0.0
    %148 = vmatprep.subr.mxu0 0.0
    %149 = vmatpush2.msra.mxu0 0.0
    %150 = vmatprep.subr.mxu0 0.0
    %151 = vmatpush2.msra.mxu0 0.0
    %152 = vmatprep.subr.mxu0 0.0
    %153 = vmatpush2.msra.mxu0 0.0
    %154 = vmatprep.subr.mxu0 0.0
    %155 = vmatpush2.msra.mxu0 0.0
    %156 = vmatprep.subr.mxu0 0.0
    %157 = vmatpush2.msra.mxu0 0.0
    %158 = vmatprep.subr.mxu0 0.0
    %159 = vmatpush2.msra.mxu0 0.0
    %160 = vmatprep.subr.mxu0 0.0
    %161 = vmatpush2.msra.mxu0 0.0
    %162 = vmatprep.subr.mxu0 0.0
    %163 = vmatpush2.msra.mxu0 0.0
    %164 = vmatprep.subr.mxu0 0.0
    %165 = vmatpush2.msra.mxu0 0.0
    %166 = vmatprep.mubr.f32.mxu0 0.0
    %167 = vmatmul.mubr.f32.gmra.mxu0 %v97
    %v168 = vpop.f32.mrf.mxu0
    %v169 = vadd.f32 0.0, %v168
    %v170 = vpop.f32.mrf.mxu0
    %171 = vdwg.mxu0
    %vm172 = vcmask 27648
    %173 = vst.msk [vmem:[#allocation2] sm:$0xf] %vm172, %v169
    %s174 = scalar_lea.vmem %s0, 2
    %v175 = vld [vmem:[%s174] sm:$0x3]
    %v177 = vsel %vm18, %v175, 0
    %179 = vmatprep.subr.mxu0 0.0
    %180 = vmatpush1.msra.mxu0 0.0
    %181 = vmatprep.subr.mxu0 0.0
    %182 = vmatpush1.msra.mxu0 0.0
    %183 = vmatprep.subr.mxu0 0.0
    %184 = vmatpush1.msra.mxu0 0.0
    %185 = vmatprep.subr.mxu0 0.0
    %186 = vmatpush1.msra.mxu0 0.0
    %187 = vmatprep.subr.mxu0 0.0
    %188 = vmatpush1.msra.mxu0 0.0
    %189 = vmatprep.subr.mxu0 0.0
    %190 = vmatpush1.msra.mxu0 0.0
    %191 = vmatprep.subr.mxu0 0.0
    %192 = vmatpush1.msra.mxu0 0.0
    %193 = vmatprep.subr.mxu0 0.0
    %194 = vmatpush1.msra.mxu0 0.0
    %195 = vmatprep.subr.mxu0 0.0
    %196 = vmatpush1.msra.mxu0 0.0
    %197 = vmatprep.subr.mxu0 0.0
    %198 = vmatpush1.msra.mxu0 0.0
    %199 = vmatprep.subr.mxu0 0.0
    %200 = vmatpush1.msra.mxu0 0.0
    %201 = vmatprep.subr.mxu0 0.0
    %202 = vmatpush1.msra.mxu0 0.0
    %203 = vmatprep.subr.mxu0 0.0
    %204 = vmatpush1.msra.mxu0 0.0
    %205 = vmatprep.subr.mxu0 0.0
    %206 = vmatpush1.msra.mxu0 0.0
    %207 = vmatprep.subr.mxu0 0.0
    %208 = vmatpush1.msra.mxu0 0.0
    %209 = vmatprep.subr.mxu0 0.0
    %210 = vmatpush1.msra.mxu0 %v24
    %211 = vmatprep.subr.mxu0 0.0
    %212 = vmatpush2.msra.mxu0 0.0
    %213 = vmatprep.subr.mxu0 0.0
    %214 = vmatpush2.msra.mxu0 0.0
    %215 = vmatprep.subr.mxu0 0.0
    %216 = vmatpush2.msra.mxu0 0.0
    %217 = vmatprep.subr.mxu0 0.0
    %218 = vmatpush2.msra.mxu0 0.0
    %219 = vmatprep.subr.mxu0 0.0
    %220 = vmatpush2.msra.mxu0 0.0
    %221 = vmatprep.subr.mxu0 0.0
    %222 = vmatpush2.msra.mxu0 0.0
    %223 = vmatprep.subr.mxu0 0.0
    %224 = vmatpush2.msra.mxu0 0.0
    %225 = vmatprep.subr.mxu0 0.0
    %226 = vmatpush2.msra.mxu0 0.0
    %227 = vmatprep.subr.mxu0 0.0
    %228 = vmatpush2.msra.mxu0 0.0
    %229 = vmatprep.subr.mxu0 0.0
    %230 = vmatpush2.msra.mxu0 0.0
    %231 = vmatprep.subr.mxu0 0.0
    %232 = vmatpush2.msra.mxu0 0.0
    %233 = vmatprep.subr.mxu0 0.0
    %234 = vmatpush2.msra.mxu0 0.0
    %235 = vmatprep.subr.mxu0 0.0
    %236 = vmatpush2.msra.mxu0 0.0
    %237 = vmatprep.subr.mxu0 0.0
    %238 = vmatpush2.msra.mxu0 0.0
    %239 = vmatprep.subr.mxu0 0.0
    %240 = vmatpush2.msra.mxu0 0.0
    %241 = vmatprep.subr.mxu0 0.0
    %242 = vmatpush2.msra.mxu0 0.0
    %243 = vmatprep.mubr.f32.mxu0 0.0
    %244 = vmatmul.mubr.f32.gmra.mxu0 %v177
    %v245 = vpop.f32.mrf.mxu0
    %v246 = vadd.f32 0.0, %v245
    %v247 = vpop.f32.mrf.mxu0
    %248 = vdwg.mxu0
    %v250 = vsel %vm22, %v246, 0
    %252 = vmatprep.subr.mxu0 0.0
    %253 = vmatpush1.msra.mxu0 0.0
    %254 = vmatprep.subr.mxu0 0.0
    %255 = vmatpush1.msra.mxu0 0.0
    %256 = vmatprep.subr.mxu0 0.0
    %257 = vmatpush1.msra.mxu0 0.0
    %258 = vmatprep.subr.mxu0 0.0
    %259 = vmatpush1.msra.mxu0 0.0
    %260 = vmatprep.subr.mxu0 0.0
    %261 = vmatpush1.msra.mxu0 0.0
    %262 = vmatprep.subr.mxu0 0.0
    %263 = vmatpush1.msra.mxu0 0.0
    %264 = vmatprep.subr.mxu0 0.0
    %265 = vmatpush1.msra.mxu0 0.0
    %266 = vmatprep.subr.mxu0 0.0
    %267 = vmatpush1.msra.mxu0 0.0
    %268 = vmatprep.subr.mxu0 0.0
    %269 = vmatpush1.msra.mxu0 0.0
    %270 = vmatprep.subr.mxu0 0.0
    %271 = vmatpush1.msra.mxu0 0.0
    %272 = vmatprep.subr.mxu0 0.0
    %273 = vmatpush1.msra.mxu0 0.0
    %274 = vmatprep.subr.mxu0 0.0
    %275 = vmatpush1.msra.mxu0 0.0
    %276 = vmatprep.subr.mxu0 0.0
    %277 = vmatpush1.msra.mxu0 0.0
    %278 = vmatprep.subr.mxu0 0.0
    %279 = vmatpush1.msra.mxu0 0.0
    %280 = vmatprep.subr.mxu0 0.0
    %281 = vmatpush1.msra.mxu0 0.0
    %282 = vmatprep.subr.mxu0 0.0
    %283 = vmatpush1.msra.mxu0 %v250
    %284 = vmatprep.subr.mxu0 0.0
    %285 = vmatpush2.msra.mxu0 0.0
    %286 = vmatprep.subr.mxu0 0.0
    %287 = vmatpush2.msra.mxu0 0.0
    %288 = vmatprep.subr.mxu0 0.0
    %289 = vmatpush2.msra.mxu0 0.0
    %290 = vmatprep.subr.mxu0 0.0
    %291 = vmatpush2.msra.mxu0 0.0
    %292 = vmatprep.subr.mxu0 0.0
    %293 = vmatpush2.msra.mxu0 0.0
    %294 = vmatprep.subr.mxu0 0.0
    %295 = vmatpush2.msra.mxu0 0.0
    %296 = vmatprep.subr.mxu0 0.0
    %297 = vmatpush2.msra.mxu0 0.0
    %298 = vmatprep.subr.mxu0 0.0
    %299 = vmatpush2.msra.mxu0 0.0
    %300 = vmatprep.subr.mxu0 0.0
    %301 = vmatpush2.msra.mxu0 0.0
    %302 = vmatprep.subr.mxu0 0.0
    %303 = vmatpush2.msra.mxu0 0.0
    %304 = vmatprep.subr.mxu0 0.0
    %305 = vmatpush2.msra.mxu0 0.0
    %306 = vmatprep.subr.mxu0 0.0
    %307 = vmatpush2.msra.mxu0 0.0
    %308 = vmatprep.subr.mxu0 0.0
    %309 = vmatpush2.msra.mxu0 0.0
    %310 = vmatprep.subr.mxu0 0.0
    %311 = vmatpush2.msra.mxu0 0.0
    %312 = vmatprep.subr.mxu0 0.0
    %313 = vmatpush2.msra.mxu0 0.0
    %314 = vmatprep.subr.mxu0 0.0
    %315 = vmatpush2.msra.mxu0 0.0
    %316 = vmatprep.mubr.f32.mxu0 0.0
    %317 = vmatmul.mubr.f32.gmra.mxu0 %v97
    %v318 = vpop.f32.mrf.mxu0
    %v319 = vadd.f32 0.0, %v318
    %v320 = vpop.f32.mrf.mxu0
    %321 = vdwg.mxu0
    %s322 = scalar_lea.vmem [#allocation2], 4
    %323 = vst.msk [vmem:[%s322] sm:$0xf] %vm172, %v319
    // Predicated region
    $region14: #{forward.26} parent=1 // pred_check
      _
    $region15: #{forward.26} parent=1 // pred_check_branch
      %325 = sbr.rel (0) target = $region17
    $region16: #{forward.26} parent=1 // pred_region
      %s327 = ssub.s32 128, 128
      %328 = vsyncadd [#allocation3], %s327
      %s329 = sshll.u32 [#allocation2], 4
      %s330 = int_to_ptr.vmem [resolvable:$true] %s329
      %335 = dma.vmem_to_hbm [thread:$0]  %s330, 128, %s3, [#allocation3], 64, 64, 4
    $region17: #{forward.26} parent=1 // pred_fallthru
      _
    // Predicated region
    $region18: #{forward.26} parent=1 // pred_check
      _
    $region19: #{forward.26} parent=1 // pred_check_branch
      %337 = sbr.rel (0) target = $region21
    $region20: #{forward.26} parent=1 // pred_region
      %338 = dma.done [#allocation3], 128
    $region21: #{forward.26} parent=1 // pred_fallthru
      _
    %339 = vsyncpa [#allocation3], 1

</llo_original>
